<compile_context>
chip_gen: v7x
topology: tpu7x:2x2x1
jax: 0.10.0
libtpu: 0.0.40
codegen_flags: <defaults>
</compile_context>

<pallas_src>
import math
import functools

import jax
import jax.numpy as jnp
from jax.experimental import pallas as pl
from jax.experimental.pallas import tpu as pltpu

LN_EPS = 1e-5  # nn.LayerNorm default


def _layernorm(h, w, b):
    mu = jnp.mean(h, axis=-1, keepdims=True)
    var = jnp.mean((h - mu) ** 2, axis=-1, keepdims=True)
    return (h - mu) * jax.lax.rsqrt(var + LN_EPS) * w + b


def _gelu_exact(x):
    # nn.GELU() default = exact erf-based GELU
    return 0.5 * x * (1.0 + jax.lax.erf(x * (1.0 / math.sqrt(2.0))))


# --------------------------------------------------------------------------------------
# Main fused kernel: embeddings -> all transformer blocks -> final LayerNorm.
# Grid = (num_batch_blocks, n_layer); the (Btile*T, E) activation slab lives in the
# output block (constant index over the layer axis) and is carried layer to layer.
# All stacked weights are VMEM-resident (constant index maps) and indexed with `l`.
# --------------------------------------------------------------------------------------
def char_lm_kernel(n_head, seq_len,
                   x_ref,
                   in_w_ref, in_b_ref, out_w_ref, out_b_ref,
                   ln1_w_ref, ln1_b_ref, ln2_w_ref, ln2_b_ref,
                   fc1_w_ref, fc1_b_ref, fc2_w_ref, fc2_b_ref,
                   lnf_w_ref, lnf_b_ref,
                   xf_ref):
    l = pl.program_id(1)
    n_layer = pl.num_programs(1)

    # Load the fresh embedding slab into the resident output block at layer 0.
    @pl.when(l == 0)
    def _():
        xf_ref[...] = x_ref[...]

    x = xf_ref[...]                          # (Mt, E) f32, Mt = Btile * T
    Mt, E = x.shape
    T = seq_len
    Bt = Mt // T
    H = n_head
    Dh = E // H
    scale = 1.0 / math.sqrt(Dh)              # nn.MultiheadAttention q-scaling

    # Causal mask built in-kernel (cheap VALU filler under MXU slack; saves VMEM + HBM).
    row = jax.lax.broadcasted_iota(jnp.int32, (T, T), 0)
    col = jax.lax.broadcasted_iota(jnp.int32, (T, T), 1)
    neg_mask = jnp.where(col > row, jnp.float32(-1e30), jnp.float32(0.0))   # (T, T)

    # ---------------- self-attention (pre-LN) ----------------
    xn = _layernorm(x, ln1_w_ref[l], ln1_b_ref[l]).astype(jnp.bfloat16)
    qkv = jnp.dot(xn, in_w_ref[l],
                  preferred_element_type=jnp.float32) + in_b_ref[l]          # (Mt, 3E) f32

    q = qkv[:, :E] * scale                   # fold 1/sqrt(Dh) into q (Mt*E, not Bt*H*T*T)
    k = qkv[:, E:2 * E]
    v = qkv[:, 2 * E:]

    # (Bt*H, T, Dh) head-batched tensors for a single-batch-dim score / PV einsum.
    # TODO(synk): replace the per-(b,h) slice+stack relayout with one fused
    #             pltpu.einshape relayout, and switch to flash-style KV tiling for T>=512.
    def split_heads(a):                      # a: (Mt, E) f32 -> (Bt*H, T, Dh)
        return jnp.stack([a[b * T:(b + 1) * T, h * Dh:(h + 1) * Dh]
                          for b in range(Bt) for h in range(H)], axis=0)

    qh = split_heads(q).astype(jnp.bfloat16)
    kh = split_heads(k).astype(jnp.bfloat16)
    vh = split_heads(v).astype(jnp.bfloat16)

    s = jnp.einsum('bqd,bkd->bqk', qh, kh,
                   preferred_element_type=jnp.float32)                       # (Bt*H, T, T)
    s = s + neg_mask                          # causal mask broadcast over (b, h)
    s = s - jnp.max(s, axis=-1, keepdims=True)
    p = jnp.exp(s)
    p = p * pl.reciprocal(jnp.sum(p, axis=-1, keepdims=True), approx=True)
    # TODO(synk): attention dropout (p=0.1) treated as identity (eval-mode semantics).

    o = jnp.einsum('bqk,bkd->bqd', p.astype(jnp.bfloat16), vh,
                   preferred_element_type=jnp.float32)                       # (Bt*H, T, Dh)

    # Merge heads back to (Mt, E): concat heads along lanes per item, then items along rows.
    o_cat = jnp.concatenate(
        [jnp.concatenate([o[b * H + h] for h in range(H)], axis=-1)
         for b in range(Bt)],
        axis=0)                                                               # (Mt, E)

    attn = jnp.dot(o_cat.astype(jnp.bfloat16), out_w_ref[l],
                   preferred_element_type=jnp.float32) + out_b_ref[l]         # (Mt, E)
    x = x + attn

    # ---------------- MLP (pre-LN) ----------------
    xn2 = _layernorm(x, ln2_w_ref[l], ln2_b_ref[l]).astype(jnp.bfloat16)
    h1 = jnp.dot(xn2, fc1_w_ref[l],
                 preferred_element_type=jnp.float32) + fc1_b_ref[l]           # (Mt, 4E)
    h1 = _gelu_exact(h1).astype(jnp.bfloat16)
    h2 = jnp.dot(h1, fc2_w_ref[l],
                 preferred_element_type=jnp.float32) + fc2_b_ref[l]           # (Mt, E)
    # TODO(synk): MLP dropout (p=0.2) treated as identity (eval-mode semantics).
    x = x + h2

    xf_ref[...] = x                           # carry to next layer step

    # Final LayerNorm fused into the last layer step (LM head is a separate call).
    @pl.when(l == n_layer - 1)
    def _():
        xf_ref[...] = _layernorm(x, lnf_w_ref[...], lnf_b_ref[...])


# --------------------------------------------------------------------------------------
# LM head kernel (separate call so head_w / logits are never resident across layers).
# --------------------------------------------------------------------------------------
def lm_head_kernel(x_ref, w_ref, out_ref):
    out_ref[...] = jnp.dot(x_ref[...].astype(jnp.bfloat16), w_ref[...],
                           preferred_element_type=jnp.float32)


# --------------------------------------------------------------------------------------
# Wrapper
# --------------------------------------------------------------------------------------
_LAYER_PARAM_ORDER = ('in_w', 'in_b', 'out_w', 'out_b',
                      'ln1_w', 'ln1_b', 'ln2_w', 'ln2_b',
                      'fc1_w', 'fc1_b', 'fc2_w', 'fc2_b')


def _resident_spec(a):
    # Full-array block + constant index map -> DMA'd once, resident in VMEM for the call.
    nd = a.ndim
    return pl.BlockSpec(a.shape, lambda b, l, _nd=nd: (0,) * _nd)


def _pick_batch_tile(B, max_tile=8):
    cands = [c for c in range(1, min(B, max_tile) + 1) if B % c == 0]
    bt = max(cands)
    if B // bt < 2:  # keep >=2 batch blocks so both v7x TensorCores get work
        two_plus = [c for c in cands if B // c >= 2]
        if two_plus:
            bt = max(two_plus)
    return bt


def _vmem_limit_bytes():
    # Generation-aware VMEM budget: ~3/4 of physical (48 MiB on v7x, ~96 MiB on v5e/v6e).
    try:
        cap = int(pltpu.get_tpu_info().vmem_capacity_bytes)
    except Exception:
        return None  # fall back to the compiler default scoped limit
    return min(cap * 3 // 4, 100 * 1024 * 1024)


def char_lm_forward(params, idx, n_head, vocab_size, batch_tile=None):
    B, T = idx.shape
    E = params['tok_emb'].shape[1]
    L = params['in_w'].shape[0]
    Vp = params['head_w'].shape[1]
    assert T <= params['pos_emb'].shape[1], 'Cannot forward sequence length > block_size'
    assert E % n_head == 0
    assert T % 8 == 0 and E % 128 == 0       # sublane/lane-dense tiles

    Bt = batch_tile if batch_tile is not None else _pick_batch_tile(B)
    assert B % Bt == 0
    nb = B // Bt
    Mt = Bt * T

    # Embedding gather + positional add (glue, outside the kernel); flatten to (B*T, E)
    # so each grid step works on a lane/sublane-dense 2-D slab.
    tok_emb = params['tok_emb'][idx]                                   # (B, T, E)
    x = (tok_emb + params['pos_emb'][:, :T, :]).astype(jnp.float32).reshape(B * T, E)
    # TODO(synk): embedding dropout (p=0.2) treated as identity (eval-mode semantics).

    layer_args = [params[k] for k in _LAYER_PARAM_ORDER]
    vmem_limit = _vmem_limit_bytes()

    in_specs = ([pl.BlockSpec((Mt, E), lambda b, l: (b, 0))]
                + [_resident_spec(a) for a in layer_args]
                + [_resident_spec(params['lnf_w']), _resident_spec(params['lnf_b'])])

    # ---- blocks + final LayerNorm ----
    xf = pl.pallas_call(
        functools.partial(char_lm_kernel, n_head, T),
        out_shape=jax.ShapeDtypeStruct((B * T, E), jnp.float32),
        grid=(nb, L),
        in_specs=in_specs,
        out_specs=pl.BlockSpec((Mt, E), lambda b, l: (b, 0)),
        compiler_params=pltpu.CompilerParams(
            dimension_semantics=("parallel", "arbitrary"),
            vmem_limit_bytes=vmem_limit),
    )(x, *layer_args, params['lnf_w'], params['lnf_b'])

    # ---- LM head, tiled over (batch block, vocab tile) ----
    Vt = Vp if Vp <= 2048 else 2048
    if Vp % Vt != 0:
        Vt = 128
    nv = Vp // Vt

    logits = pl.pallas_call(
        lm_head_kernel,
        out_shape=jax.ShapeDtypeStruct((B * T, Vp), jnp.float32),
        grid=(nb, nv),
        in_specs=[pl.BlockSpec((Mt, E), lambda b, v: (b, 0)),
                  pl.BlockSpec((E, Vt), lambda b, v: (0, v))],
        out_specs=pl.BlockSpec((Mt, Vt), lambda b, v: (b, v)),
        compiler_params=pltpu.CompilerParams(
            dimension_semantics=("parallel", "parallel"),
            vmem_limit_bytes=vmem_limit),
    )(xf, params['head_w'])

    return logits.reshape(B, T, Vp)[:, :, :vocab_size]


# --------------------------------------------------------------------------------------
# Deterministic synthetic parameters (mirrors the PyTorch __init__ shapes).
# Linear weights are stored PRE-TRANSPOSED (kernel computes x @ W), stacked across layers,
# and cast to bf16 for MXU-friendly matmuls; norms/biases stay f32.
# --------------------------------------------------------------------------------------
def init_params(key, vocab_size, n_embd, n_head, n_layer, block_size):
    E = n_embd
    Vp = ((vocab_size + 127) // 128) * 128     # lane-dense LM-head output
    keys = jax.random.split(key, 3 + n_layer)

    head_w = 0.02 * jax.random.normal(keys[2], (E, vocab_size), jnp.float32)
    head_w = jnp.pad(head_w, ((0, 0), (0, Vp - vocab_size)))

    in_w, out_w, fc1_w, fc2_w = [], [], [], []
    for li in range(n_layer):
        k = jax.random.split(keys[3 + li], 4)
        # MHA in_proj_weight (3E, E) -> stored (E, 3E)
        in_w.append((jax.random.normal(k[0], (3 * E, E), jnp.float32)
                     * math.sqrt(1.0 / E)).T)
        # MHA out_proj weight (E, E) -> stored transposed
        out_w.append((jax.random.normal(k[1], (E, E), jnp.float32)
                      * math.sqrt(1.0 / E)).T)
        # MLP kaiming fan_in init, zero bias (as in the module)
        fc1_w.append((jax.random.normal(k[2], (4 * E, E), jnp.float32)
                      * math.sqrt(2.0 / E)).T)
        fc2_w.append((jax.random.normal(k[3], (E, 4 * E), jnp.float32)
                      * math.sqrt(2.0 / (4 * E))).T)

    params = {
        'tok_emb': 0.02 * jax.random.normal(keys[0], (vocab_size, E), jnp.float32),
        'pos_emb': 0.02 * jax.random.normal(keys[1], (1, block_size, E), jnp.float32),
        'lnf_w': jnp.ones((1, E), jnp.float32),
        'lnf_b': jnp.zeros((1, E), jnp.float32),
        'head_w': head_w.astype(jnp.bfloat16),                       # (E, Vp)
        # stacked per-layer params (kept whole-resident in VMEM by the kernel)
        'in_w': jnp.stack(in_w).astype(jnp.bfloat16),                # (L, E, 3E)
        'in_b': jnp.zeros((n_layer, 1, 3 * E), jnp.float32),
        'out_w': jnp.stack(out_w).astype(jnp.bfloat16),              # (L, E, E)
        'out_b': jnp.zeros((n_layer, 1, E), jnp.float32),
        'ln1_w': jnp.ones((n_layer, 1, E), jnp.float32),
        'ln1_b': jnp.zeros((n_layer, 1, E), jnp.float32),
        'ln2_w': jnp.ones((n_layer, 1, E), jnp.float32),
        'ln2_b': jnp.zeros((n_layer, 1, E), jnp.float32),
        'fc1_w': jnp.stack(fc1_w).astype(jnp.bfloat16),              # (L, E, 4E)
        'fc1_b': jnp.zeros((n_layer, 1, 4 * E), jnp.float32),
        'fc2_w': jnp.stack(fc2_w).astype(jnp.bfloat16),              # (L, 4E, E)
        'fc2_b': jnp.zeros((n_layer, 1, E), jnp.float32),
    }
    return params


if __name__ == "__main__":
    # Small shapes consistent with the module (n_embd multiple of 128 for lane-dense tiles).
    vocab_size = 65
    n_embd = 128
    n_head = 4
    n_layer = 2
    block_size = 32
    B, T = 8, 32     # -> batch tile 4, 2 batch blocks (keeps both v7x TCs busy)

    key = jax.random.PRNGKey(0)
    pkey, ikey = jax.random.split(key)
    params = init_params(pkey, vocab_size, n_embd, n_head, n_layer, block_size)
    idx = jax.random.randint(ikey, (B, T), 0, vocab_size, dtype=jnp.int32)

    logits = char_lm_forward(params, idx, n_head, vocab_size)
    logits = jax.block_until_ready(logits)
    assert logits.shape == (B, T, vocab_size)
    assert bool(jnp.all(jnp.isfinite(logits)))
    print("KERNEL_OK")
</pallas_src>

<mosaic_0001>
module attributes {stable_mosaic.version = 11 : i64} {
  func.func @char_lm_kernel(%arg0: i32, %arg1: i32, %arg2: memref<128x128xf32, #tpu.memory_space<vmem>>, %arg3: memref<2x128x384xbf16, #tpu.memory_space<vmem>>, %arg4: memref<2x1x384xf32, #tpu.memory_space<vmem>>, %arg5: memref<2x128x128xbf16, #tpu.memory_space<vmem>>, %arg6: memref<2x1x128xf32, #tpu.memory_space<vmem>>, %arg7: memref<2x1x128xf32, #tpu.memory_space<vmem>>, %arg8: memref<2x1x128xf32, #tpu.memory_space<vmem>>, %arg9: memref<2x1x128xf32, #tpu.memory_space<vmem>>, %arg10: memref<2x1x128xf32, #tpu.memory_space<vmem>>, %arg11: memref<2x128x512xbf16, #tpu.memory_space<vmem>>, %arg12: memref<2x1x512xf32, #tpu.memory_space<vmem>>, %arg13: memref<2x512x128xbf16, #tpu.memory_space<vmem>>, %arg14: memref<2x1x128xf32, #tpu.memory_space<vmem>>, %arg15: memref<1x128xf32, #tpu.memory_space<vmem>>, %arg16: memref<1x128xf32, #tpu.memory_space<vmem>>, %arg17: memref<128x128xf32, #tpu.memory_space<vmem>>) attributes {dimension_semantics = [#tpu.dimension_semantics<parallel>, #tpu.dimension_semantics<arbitrary>], iteration_bounds = array<i64: 2, 2>, scalar_prefetch = 0 : i64, scratch_operands = 0 : i64, tpu.core_type = #tpu.core_type<tc>, window_params = [{transform_indices = @transform_0, window_bounds = array<i64: 128, 128>}, {pipeline_mode = #tpu.pipeline_mode<synchronous>, transform_indices = @transform_1, window_bounds = array<i64: 2, 128, 384>}, {pipeline_mode = #tpu.pipeline_mode<synchronous>, transform_indices = @transform_2, window_bounds = array<i64: 2, 1, 384>}, {pipeline_mode = #tpu.pipeline_mode<synchronous>, transform_indices = @transform_3, window_bounds = array<i64: 2, 128, 128>}, {pipeline_mode = #tpu.pipeline_mode<synchronous>, transform_indices = @transform_4, window_bounds = array<i64: 2, 1, 128>}, {pipeline_mode = #tpu.pipeline_mode<synchronous>, transform_indices = @transform_5, window_bounds = array<i64: 2, 1, 128>}, {pipeline_mode = #tpu.pipeline_mode<synchronous>, transform_indices = @transform_6, window_bounds = array<i64: 2, 1, 128>}, {pipeline_mode = #tpu.pipeline_mode<synchronous>, transform_indices = @transform_7, window_bounds = array<i64: 2, 1, 128>}, {pipeline_mode = #tpu.pipeline_mode<synchronous>, transform_indices = @transform_8, window_bounds = array<i64: 2, 1, 128>}, {pipeline_mode = #tpu.pipeline_mode<synchronous>, transform_indices = @transform_9, window_bounds = array<i64: 2, 128, 512>}, {pipeline_mode = #tpu.pipeline_mode<synchronous>, transform_indices = @transform_10, window_bounds = array<i64: 2, 1, 512>}, {pipeline_mode = #tpu.pipeline_mode<synchronous>, transform_indices = @transform_11, window_bounds = array<i64: 2, 512, 128>}, {pipeline_mode = #tpu.pipeline_mode<synchronous>, transform_indices = @transform_12, window_bounds = array<i64: 2, 1, 128>}, {pipeline_mode = #tpu.pipeline_mode<synchronous>, transform_indices = @transform_13, window_bounds = array<i64: 1, 128>}, {pipeline_mode = #tpu.pipeline_mode<synchronous>, transform_indices = @transform_14, window_bounds = array<i64: 1, 128>}, {transform_indices = @transform_15, window_bounds = array<i64: 128, 128>}]} {
    %c0_i32 = arith.constant 0 : i32
    %0 = arith.cmpi eq, %arg1, %c0_i32 : i32
    %1 = arith.extui %0 : i1 to i32
    %c0_i32_0 = arith.constant 0 : i32
    %2 = arith.cmpi ne, %1, %c0_i32_0 : i32
    scf.if %2 {
      %c0_52 = arith.constant 0 : index
      %c0_53 = arith.constant 0 : index
      %280 = vector.load %arg2[%c0_52, %c0_53] : memref<128x128xf32, #tpu.memory_space<vmem>>, vector<128x128xf32>
      %c0_54 = arith.constant 0 : index
      %c0_55 = arith.constant 0 : index
      %281 = vector.load %arg17[%c0_54, %c0_55] : memref<128x128xf32, #tpu.memory_space<vmem>>, vector<128x128xf32>
      tpu.vector_store %arg17[%c0_54, %c0_55], %280 {strides = array<i32>} : memref<128x128xf32, #tpu.memory_space<vmem>>, vector<128x128xf32>,
    } else {
    }
    %c0 = arith.constant 0 : index
    %c0_1 = arith.constant 0 : index
    %3 = vector.load %arg17[%c0, %c0_1] : memref<128x128xf32, #tpu.memory_space<vmem>>, vector<128x128xf32>
    %4 = tpu.iota {dimensions = array<i32: 0>} : vector<32x32xi32>
    %5 = tpu.iota {dimensions = array<i32: 1>} : vector<32x32xi32>
    %6 = arith.cmpi sgt, %5, %4 : vector<32x32xi32>
    %cst = arith.constant -1.000000e+30 : f32
    %cst_2 = arith.constant 0.000000e+00 : f32
    %7 = vector.broadcast %cst : f32 to vector<32x32xf32>
    %8 = vector.broadcast %cst_2 : f32 to vector<32x32xf32>
    %9 = arith.select %6, %7, %8 : vector<32x32xi1>, vector<32x32xf32>
    %10 = arith.index_cast %arg1 : i32 to index
    %c0_3 = arith.constant 0 : index
    %c0_4 = arith.constant 0 : index
    %11 = vector.load %arg7[%10, %c0_3, %c0_4] : memref<2x1x128xf32, #tpu.memory_space<vmem>>, vector<1x1x128xf32>
    %12 = vector.shape_cast %11 : vector<1x1x128xf32> to vector<1x128xf32>
    %13 = arith.index_cast %arg1 : i32 to index
    %c0_5 = arith.constant 0 : index
    %c0_6 = arith.constant 0 : index
    %14 = vector.load %arg8[%13, %c0_5, %c0_6] : memref<2x1x128xf32, #tpu.memory_space<vmem>>, vector<1x1x128xf32>
    %15 = vector.shape_cast %14 : vector<1x1x128xf32> to vector<1x128xf32>
    %cst_7 = arith.constant dense<0.000000e+00> : vector<128xf32>
    %16 = vector.multi_reduction <add>, %3, %cst_7 [1] : vector<128x128xf32> to vector<128xf32>
    %17 = vector.shape_cast %16 : vector<128xf32> to vector<128x1xf32>
    %cst_8 = arith.constant 1.280000e+02 : f32
    %18 = vector.broadcast %cst_8 : f32 to vector<128x1xf32>
    %19 = arith.divf %17, %18 : vector<128x1xf32>
    %20 = vector.broadcast %19 : vector<128x1xf32> to vector<128x128xf32>
    %21 = arith.subf %3, %20 : vector<128x128xf32>
    %22 = arith.mulf %21, %21 : vector<128x128xf32>
    %cst_9 = arith.constant dense<0.000000e+00> : vector<128xf32>
    %23 = vector.multi_reduction <add>, %22, %cst_9 [1] : vector<128x128xf32> to vector<128xf32>
    %24 = vector.shape_cast %23 : vector<128xf32> to vector<128x1xf32>
    %cst_10 = arith.constant 1.280000e+02 : f32
    %25 = vector.broadcast %cst_10 : f32 to vector<128x1xf32>
    %26 = arith.divf %24, %25 : vector<128x1xf32>
    %27 = vector.broadcast %19 : vector<128x1xf32> to vector<128x128xf32>
    %28 = arith.subf %3, %27 : vector<128x128xf32>
    %cst_11 = arith.constant 9.99999974E-6 : f32
    %29 = vector.broadcast %cst_11 : f32 to vector<128x1xf32>
    %30 = arith.addf %26, %29 : vector<128x1xf32>
    %31 = math.rsqrt %30 : vector<128x1xf32>
    %32 = vector.broadcast %31 : vector<128x1xf32> to vector<128x128xf32>
    %33 = arith.mulf %28, %32 : vector<128x128xf32>
    %34 = vector.broadcast %12 : vector<1x128xf32> to vector<128x128xf32>
    %35 = arith.mulf %33, %34 : vector<128x128xf32>
    %36 = vector.broadcast %15 : vector<1x128xf32> to vector<128x128xf32>
    %37 = arith.addf %35, %36 : vector<128x128xf32>
    %38 = arith.truncf %37 : vector<128x128xf32> to vector<128x128xbf16>
    %39 = arith.index_cast %arg1 : i32 to index
    %c0_12 = arith.constant 0 : index
    %c0_13 = arith.constant 0 : index
    %40 = vector.load %arg3[%39, %c0_12, %c0_13] : memref<2x128x384xbf16, #tpu.memory_space<vmem>>, vector<1x128x384xbf16>
    %41 = vector.shape_cast %40 : vector<1x128x384xbf16> to vector<128x384xbf16>
    %cst_14 = arith.constant dense<0.000000e+00> : vector<128x384xf32>
    %42 = tpu.matmul %38, %41, %cst_14 {dimension_numbers = #tpu.dot_dimension_numbers<[1], [0], [0], [1], [0, 0, 1, 1], [], []>} : vector<128x128xbf16>, vector<128x384xbf16>, vector<128x384xf32> -> vector<128x384xf32>
    %43 = arith.index_cast %arg1 : i32 to index
    %c0_15 = arith.constant 0 : index
    %c0_16 = arith.constant 0 : index
    %44 = vector.load %arg4[%43, %c0_15, %c0_16] : memref<2x1x384xf32, #tpu.memory_space<vmem>>, vector<1x1x384xf32>
    %45 = vector.shape_cast %44 : vector<1x1x384xf32> to vector<1x384xf32>
    %46 = vector.broadcast %45 : vector<1x384xf32> to vector<128x384xf32>
    %47 = arith.addf %42, %46 : vector<128x384xf32>
    %48 = vector.extract_strided_slice %47 {offsets = [0, 0], sizes = [128, 128], strides = [1, 1]} : vector<128x384xf32> to vector<128x128xf32>
    %cst_17 = arith.constant 0.176776692 : f32
    %49 = vector.broadcast %cst_17 : f32 to vector<128x128xf32>
    %50 = arith.mulf %48, %49 : vector<128x128xf32>
    %51 = vector.extract_strided_slice %47 {offsets = [0, 128], sizes = [128, 128], strides = [1, 1]} : vector<128x384xf32> to vector<128x128xf32>
    %52 = vector.extract_strided_slice %47 {offsets = [0, 256], sizes = [128, 128], strides = [1, 1]} : vector<128x384xf32> to vector<128x128xf32>
    %53 = vector.extract_strided_slice %50 {offsets = [0, 0], sizes = [32, 32], strides = [1, 1]} : vector<128x128xf32> to vector<32x32xf32>
    %54 = vector.extract_strided_slice %50 {offsets = [0, 32], sizes = [32, 32], strides = [1, 1]} : vector<128x128xf32> to vector<32x32xf32>
    %55 = vector.extract_strided_slice %50 {offsets = [0, 64], sizes = [32, 32], strides = [1, 1]} : vector<128x128xf32> to vector<32x32xf32>
    %56 = vector.extract_strided_slice %50 {offsets = [0, 96], sizes = [32, 32], strides = [1, 1]} : vector<128x128xf32> to vector<32x32xf32>
    %57 = vector.extract_strided_slice %50 {offsets = [32, 0], sizes = [32, 32], strides = [1, 1]} : vector<128x128xf32> to vector<32x32xf32>
    %58 = vector.extract_strided_slice %50 {offsets = [32, 32], sizes = [32, 32], strides = [1, 1]} : vector<128x128xf32> to vector<32x32xf32>
    %59 = vector.extract_strided_slice %50 {offsets = [32, 64], sizes = [32, 32], strides = [1, 1]} : vector<128x128xf32> to vector<32x32xf32>
    %60 = vector.extract_strided_slice %50 {offsets = [32, 96], sizes = [32, 32], strides = [1, 1]} : vector<128x128xf32> to vector<32x32xf32>
    %61 = vector.extract_strided_slice %50 {offsets = [64, 0], sizes = [32, 32], strides = [1, 1]} : vector<128x128xf32> to vector<32x32xf32>
    %62 = vector.extract_strided_slice %50 {offsets = [64, 32], sizes = [32, 32], strides = [1, 1]} : vector<128x128xf32> to vector<32x32xf32>
    %63 = vector.extract_strided_slice %50 {offsets = [64, 64], sizes = [32, 32], strides = [1, 1]} : vector<128x128xf32> to vector<32x32xf32>
    %64 = vector.extract_strided_slice %50 {offsets = [64, 96], sizes = [32, 32], strides = [1, 1]} : vector<128x128xf32> to vector<32x32xf32>
    %65 = vector.extract_strided_slice %50 {offsets = [96, 0], sizes = [32, 32], strides = [1, 1]} : vector<128x128xf32> to vector<32x32xf32>
    %66 = vector.extract_strided_slice %50 {offsets = [96, 32], sizes = [32, 32], strides = [1, 1]} : vector<128x128xf32> to vector<32x32xf32>
    %67 = vector.extract_strided_slice %50 {offsets = [96, 64], sizes = [32, 32], strides = [1, 1]} : vector<128x128xf32> to vector<32x32xf32>
    %68 = vector.extract_strided_slice %50 {offsets = [96, 96], sizes = [32, 32], strides = [1, 1]} : vector<128x128xf32> to vector<32x32xf32>
    %69 = vector.shape_cast %53 : vector<32x32xf32> to vector<1x32x32xf32>
    %70 = vector.shape_cast %54 : vector<32x32xf32> to vector<1x32x32xf32>
    %71 = vector.shape_cast %55 : vector<32x32xf32> to vector<1x32x32xf32>
    %72 = vector.shape_cast %56 : vector<32x32xf32> to vector<1x32x32xf32>
    %73 = vector.shape_cast %57 : vector<32x32xf32> to vector<1x32x32xf32>
    %74 = vector.shape_cast %58 : vector<32x32xf32> to vector<1x32x32xf32>
    %75 = vector.shape_cast %59 : vector<32x32xf32> to vector<1x32x32xf32>
    %76 = vector.shape_cast %60 : vector<32x32xf32> to vector<1x32x32xf32>
    %77 = vector.shape_cast %61 : vector<32x32xf32> to vector<1x32x32xf32>
    %78 = vector.shape_cast %62 : vector<32x32xf32> to vector<1x32x32xf32>
    %79 = vector.shape_cast %63 : vector<32x32xf32> to vector<1x32x32xf32>
    %80 = vector.shape_cast %64 : vector<32x32xf32> to vector<1x32x32xf32>
    %81 = vector.shape_cast %65 : vector<32x32xf32> to vector<1x32x32xf32>
    %82 = vector.shape_cast %66 : vector<32x32xf32> to vector<1x32x32xf32>
    %83 = vector.shape_cast %67 : vector<32x32xf32> to vector<1x32x32xf32>
    %84 = vector.shape_cast %68 : vector<32x32xf32> to vector<1x32x32xf32>
    %85 = tpu.concatenate %69, %70, %71, %72, %73, %74, %75, %76, %77, %78, %79, %80, %81, %82, %83, %84 in 0 : vector<1x32x32xf32>, vector<1x32x32xf32>, vector<1x32x32xf32>, vector<1x32x32xf32>, vector<1x32x32xf32>, vector<1x32x32xf32>, vector<1x32x32xf32>, vector<1x32x32xf32>, vector<1x32x32xf32>, vector<1x32x32xf32>, vector<1x32x32xf32>, vector<1x32x32xf32>, vector<1x32x32xf32>, vector<1x32x32xf32>, vector<1x32x32xf32>, vector<1x32x32xf32> -> vector<16x32x32xf32>
    %86 = arith.truncf %85 : vector<16x32x32xf32> to vector<16x32x32xbf16>
    %87 = vector.extract_strided_slice %51 {offsets = [0, 0], sizes = [32, 32], strides = [1, 1]} : vector<128x128xf32> to vector<32x32xf32>
    %88 = vector.extract_strided_slice %51 {offsets = [0, 32], sizes = [32, 32], strides = [1, 1]} : vector<128x128xf32> to vector<32x32xf32>
    %89 = vector.extract_strided_slice %51 {offsets = [0, 64], sizes = [32, 32], strides = [1, 1]} : vector<128x128xf32> to vector<32x32xf32>
    %90 = vector.extract_strided_slice %51 {offsets = [0, 96], sizes = [32, 32], strides = [1, 1]} : vector<128x128xf32> to vector<32x32xf32>
    %91 = vector.extract_strided_slice %51 {offsets = [32, 0], sizes = [32, 32], strides = [1, 1]} : vector<128x128xf32> to vector<32x32xf32>
    %92 = vector.extract_strided_slice %51 {offsets = [32, 32], sizes = [32, 32], strides = [1, 1]} : vector<128x128xf32> to vector<32x32xf32>
    %93 = vector.extract_strided_slice %51 {offsets = [32, 64], sizes = [32, 32], strides = [1, 1]} : vector<128x128xf32> to vector<32x32xf32>
    %94 = vector.extract_strided_slice %51 {offsets = [32, 96], sizes = [32, 32], strides = [1, 1]} : vector<128x128xf32> to vector<32x32xf32>
    %95 = vector.extract_strided_slice %51 {offsets = [64, 0], sizes = [32, 32], strides = [1, 1]} : vector<128x128xf32> to vector<32x32xf32>
    %96 = vector.extract_strided_slice %51 {offsets = [64, 32], sizes = [32, 32], strides = [1, 1]} : vector<128x128xf32> to vector<32x32xf32>
    %97 = vector.extract_strided_slice %51 {offsets = [64, 64], sizes = [32, 32], strides = [1, 1]} : vector<128x128xf32> to vector<32x32xf32>
    %98 = vector.extract_strided_slice %51 {offsets = [64, 96], sizes = [32, 32], strides = [1, 1]} : vector<128x128xf32> to vector<32x32xf32>
    %99 = vector.extract_strided_slice %51 {offsets = [96, 0], sizes = [32, 32], strides = [1, 1]} : vector<128x128xf32> to vector<32x32xf32>
    %100 = vector.extract_strided_slice %51 {offsets = [96, 32], sizes = [32, 32], strides = [1, 1]} : vector<128x128xf32> to vector<32x32xf32>
    %101 = vector.extract_strided_slice %51 {offsets = [96, 64], sizes = [32, 32], strides = [1, 1]} : vector<128x128xf32> to vector<32x32xf32>
    %102 = vector.extract_strided_slice %51 {offsets = [96, 96], sizes = [32, 32], strides = [1, 1]} : vector<128x128xf32> to vector<32x32xf32>
    %103 = vector.shape_cast %87 : vector<32x32xf32> to vector<1x32x32xf32>
    %104 = vector.shape_cast %88 : vector<32x32xf32> to vector<1x32x32xf32>
    %105 = vector.shape_cast %89 : vector<32x32xf32> to vector<1x32x32xf32>
    %106 = vector.shape_cast %90 : vector<32x32xf32> to vector<1x32x32xf32>
    %107 = vector.shape_cast %91 : vector<32x32xf32> to vector<1x32x32xf32>
    %108 = vector.shape_cast %92 : vector<32x32xf32> to vector<1x32x32xf32>
    %109 = vector.shape_cast %93 : vector<32x32xf32> to vector<1x32x32xf32>
    %110 = vector.shape_cast %94 : vector<32x32xf32> to vector<1x32x32xf32>
    %111 = vector.shape_cast %95 : vector<32x32xf32> to vector<1x32x32xf32>
    %112 = vector.shape_cast %96 : vector<32x32xf32> to vector<1x32x32xf32>
    %113 = vector.shape_cast %97 : vector<32x32xf32> to vector<1x32x32xf32>
    %114 = vector.shape_cast %98 : vector<32x32xf32> to vector<1x32x32xf32>
    %115 = vector.shape_cast %99 : vector<32x32xf32> to vector<1x32x32xf32>
    %116 = vector.shape_cast %100 : vector<32x32xf32> to vector<1x32x32xf32>
    %117 = vector.shape_cast %101 : vector<32x32xf32> to vector<1x32x32xf32>
    %118 = vector.shape_cast %102 : vector<32x32xf32> to vector<1x32x32xf32>
    %119 = tpu.concatenate %103, %104, %105, %106, %107, %108, %109, %110, %111, %112, %113, %114, %115, %116, %117, %118 in 0 : vector<1x32x32xf32>, vector<1x32x32xf32>, vector<1x32x32xf32>, vector<1x32x32xf32>, vector<1x32x32xf32>, vector<1x32x32xf32>, vector<1x32x32xf32>, vector<1x32x32xf32>, vector<1x32x32xf32>, vector<1x32x32xf32>, vector<1x32x32xf32>, vector<1x32x32xf32>, vector<1x32x32xf32>, vector<1x32x32xf32>, vector<1x32x32xf32>, vector<1x32x32xf32> -> vector<16x32x32xf32>
    %120 = arith.truncf %119 : vector<16x32x32xf32> to vector<16x32x32xbf16>
    %121 = vector.extract_strided_slice %52 {offsets = [0, 0], sizes = [32, 32], strides = [1, 1]} : vector<128x128xf32> to vector<32x32xf32>
    %122 = vector.extract_strided_slice %52 {offsets = [0, 32], sizes = [32, 32], strides = [1, 1]} : vector<128x128xf32> to vector<32x32xf32>
    %123 = vector.extract_strided_slice %52 {offsets = [0, 64], sizes = [32, 32], strides = [1, 1]} : vector<128x128xf32> to vector<32x32xf32>
    %124 = vector.extract_strided_slice %52 {offsets = [0, 96], sizes = [32, 32], strides = [1, 1]} : vector<128x128xf32> to vector<32x32xf32>
    %125 = vector.extract_strided_slice %52 {offsets = [32, 0], sizes = [32, 32], strides = [1, 1]} : vector<128x128xf32> to vector<32x32xf32>
    %126 = vector.extract_strided_slice %52 {offsets = [32, 32], sizes = [32, 32], strides = [1, 1]} : vector<128x128xf32> to vector<32x32xf32>
    %127 = vector.extract_strided_slice %52 {offsets = [32, 64], sizes = [32, 32], strides = [1, 1]} : vector<128x128xf32> to vector<32x32xf32>
    %128 = vector.extract_strided_slice %52 {offsets = [32, 96], sizes = [32, 32], strides = [1, 1]} : vector<128x128xf32> to vector<32x32xf32>
    %129 = vector.extract_strided_slice %52 {offsets = [64, 0], sizes = [32, 32], strides = [1, 1]} : vector<128x128xf32> to vector<32x32xf32>
    %130 = vector.extract_strided_slice %52 {offsets = [64, 32], sizes = [32, 32], strides = [1, 1]} : vector<128x128xf32> to vector<32x32xf32>
    %131 = vector.extract_strided_slice %52 {offsets = [64, 64], sizes = [32, 32], strides = [1, 1]} : vector<128x128xf32> to vector<32x32xf32>
    %132 = vector.extract_strided_slice %52 {offsets = [64, 96], sizes = [32, 32], strides = [1, 1]} : vector<128x128xf32> to vector<32x32xf32>
    %133 = vector.extract_strided_slice %52 {offsets = [96, 0], sizes = [32, 32], strides = [1, 1]} : vector<128x128xf32> to vector<32x32xf32>
    %134 = vector.extract_strided_slice %52 {offsets = [96, 32], sizes = [32, 32], strides = [1, 1]} : vector<128x128xf32> to vector<32x32xf32>
    %135 = vector.extract_strided_slice %52 {offsets = [96, 64], sizes = [32, 32], strides = [1, 1]} : vector<128x128xf32> to vector<32x32xf32>
    %136 = vector.extract_strided_slice %52 {offsets = [96, 96], sizes = [32, 32], strides = [1, 1]} : vector<128x128xf32> to vector<32x32xf32>
    %137 = vector.shape_cast %121 : vector<32x32xf32> to vector<1x32x32xf32>
    %138 = vector.shape_cast %122 : vector<32x32xf32> to vector<1x32x32xf32>
    %139 = vector.shape_cast %123 : vector<32x32xf32> to vector<1x32x32xf32>
    %140 = vector.shape_cast %124 : vector<32x32xf32> to vector<1x32x32xf32>
    %141 = vector.shape_cast %125 : vector<32x32xf32> to vector<1x32x32xf32>
    %142 = vector.shape_cast %126 : vector<32x32xf32> to vector<1x32x32xf32>
    %143 = vector.shape_cast %127 : vector<32x32xf32> to vector<1x32x32xf32>
    %144 = vector.shape_cast %128 : vector<32x32xf32> to vector<1x32x32xf32>
    %145 = vector.shape_cast %129 : vector<32x32xf32> to vector<1x32x32xf32>
    %146 = vector.shape_cast %130 : vector<32x32xf32> to vector<1x32x32xf32>
    %147 = vector.shape_cast %131 : vector<32x32xf32> to vector<1x32x32xf32>
    %148 = vector.shape_cast %132 : vector<32x32xf32> to vector<1x32x32xf32>
    %149 = vector.shape_cast %133 : vector<32x32xf32> to vector<1x32x32xf32>
    %150 = vector.shape_cast %134 : vector<32x32xf32> to vector<1x32x32xf32>
    %151 = vector.shape_cast %135 : vector<32x32xf32> to vector<1x32x32xf32>
    %152 = vector.shape_cast %136 : vector<32x32xf32> to vector<1x32x32xf32>
    %153 = tpu.concatenate %137, %138, %139, %140, %141, %142, %143, %144, %145, %146, %147, %148, %149, %150, %151, %152 in 0 : vector<1x32x32xf32>, vector<1x32x32xf32>, vector<1x32x32xf32>, vector<1x32x32xf32>, vector<1x32x32xf32>, vector<1x32x32xf32>, vector<1x32x32xf32>, vector<1x32x32xf32>, vector<1x32x32xf32>, vector<1x32x32xf32>, vector<1x32x32xf32>, vector<1x32x32xf32>, vector<1x32x32xf32>, vector<1x32x32xf32>, vector<1x32x32xf32>, vector<1x32x32xf32> -> vector<16x32x32xf32>
    %154 = arith.truncf %153 : vector<16x32x32xf32> to vector<16x32x32xbf16>
    "tpu.trace_start"() <{level = 10 : i32, message = "bqd,bkd->bqk"}> : () -> ()
    %cst_18 = arith.constant dense<0.000000e+00> : vector<16x32x32xf32>
    %155 = tpu.matmul %86, %120, %cst_18 {dimension_numbers = #tpu.dot_dimension_numbers<[2], [2], [1], [1], [0, 0, 0, 1, 1, 1], [0], [0]>} : vector<16x32x32xbf16>, vector<16x32x32xbf16>, vector<16x32x32xf32> -> vector<16x32x32xf32>
    "tpu.trace_stop"() : () -> ()
    %156 = vector.shape_cast %9 : vector<32x32xf32> to vector<1x32x32xf32>
    %157 = vector.broadcast %156 : vector<1x32x32xf32> to vector<16x32x32xf32>
    %158 = arith.addf %155, %157 : vector<16x32x32xf32>
    %cst_19 = arith.constant dense<0xFF800000> : vector<16x32xf32>
    %159 = vector.multi_reduction <maximumf>, %158, %cst_19 [2] : vector<16x32x32xf32> to vector<16x32xf32>
    %160 = vector.shape_cast %159 : vector<16x32xf32> to vector<16x32x1xf32>
    %161 = vector.broadcast %160 : vector<16x32x1xf32> to vector<16x32x32xf32>
    %162 = arith.subf %158, %161 : vector<16x32x32xf32>
    %163 = math.exp %162 : vector<16x32x32xf32>
    %cst_20 = arith.constant dense<0.000000e+00> : vector<16x32xf32>
    %164 = vector.multi_reduction <add>, %163, %cst_20 [2] : vector<16x32x32xf32> to vector<16x32xf32>
    %165 = vector.shape_cast %164 : vector<16x32xf32> to vector<16x32x1xf32>
    %166 = tpu.reciprocal %165 {approx = true} : vector<16x32x1xf32> -> vector<16x32x1xf32>
    %167 = vector.broadcast %166 : vector<16x32x1xf32> to vector<16x32x32xf32>
    %168 = arith.mulf %163, %167 : vector<16x32x32xf32>
    %169 = arith.truncf %168 : vector<16x32x32xf32> to vector<16x32x32xbf16>
    "tpu.trace_start"() <{level = 10 : i32, message = "bqk,bkd->bqd"}> : () -> ()
    %cst_21 = arith.constant dense<0.000000e+00> : vector<16x32x32xf32>
    %170 = tpu.matmul %169, %154, %cst_21 {dimension_numbers = #tpu.dot_dimension_numbers<[2], [1], [1], [2], [0, 0, 0, 1, 1, 2], [0], [0]>} : vector<16x32x32xbf16>, vector<16x32x32xbf16>, vector<16x32x32xf32> -> vector<16x32x32xf32>
    "tpu.trace_stop"() : () -> ()
    %171 = vector.extract_strided_slice %170 {offsets = [0, 0, 0], sizes = [1, 32, 32], strides = [1, 1, 1]} : vector<16x32x32xf32> to vector<1x32x32xf32>
    %172 = vector.shape_cast %171 : vector<1x32x32xf32> to vector<32x32xf32>
    %173 = vector.extract_strided_slice %170 {offsets = [1, 0, 0], sizes = [1, 32, 32], strides = [1, 1, 1]} : vector<16x32x32xf32> to vector<1x32x32xf32>
    %174 = vector.shape_cast %173 : vector<1x32x32xf32> to vector<32x32xf32>
    %175 = vector.extract_strided_slice %170 {offsets = [2, 0, 0], sizes = [1, 32, 32], strides = [1, 1, 1]} : vector<16x32x32xf32> to vector<1x32x32xf32>
    %176 = vector.shape_cast %175 : vector<1x32x32xf32> to vector<32x32xf32>
    %177 = vector.extract_strided_slice %170 {offsets = [3, 0, 0], sizes = [1, 32, 32], strides = [1, 1, 1]} : vector<16x32x32xf32> to vector<1x32x32xf32>
    %178 = vector.shape_cast %177 : vector<1x32x32xf32> to vector<32x32xf32>
    %179 = tpu.concatenate %172, %174, %176, %178 in 1 : vector<32x32xf32>, vector<32x32xf32>, vector<32x32xf32>, vector<32x32xf32> -> vector<32x128xf32>
    %180 = vector.extract_strided_slice %170 {offsets = [4, 0, 0], sizes = [1, 32, 32], strides = [1, 1, 1]} : vector<16x32x32xf32> to vector<1x32x32xf32>
    %181 = vector.shape_cast %180 : vector<1x32x32xf32> to vector<32x32xf32>
    %182 = vector.extract_strided_slice %170 {offsets = [5, 0, 0], sizes = [1, 32, 32], strides = [1, 1, 1]} : vector<16x32x32xf32> to vector<1x32x32xf32>
    %183 = vector.shape_cast %182 : vector<1x32x32xf32> to vector<32x32xf32>
    %184 = vector.extract_strided_slice %170 {offsets = [6, 0, 0], sizes = [1, 32, 32], strides = [1, 1, 1]} : vector<16x32x32xf32> to vector<1x32x32xf32>
    %185 = vector.shape_cast %184 : vector<1x32x32xf32> to vector<32x32xf32>
    %186 = vector.extract_strided_slice %170 {offsets = [7, 0, 0], sizes = [1, 32, 32], strides = [1, 1, 1]} : vector<16x32x32xf32> to vector<1x32x32xf32>
    %187 = vector.shape_cast %186 : vector<1x32x32xf32> to vector<32x32xf32>
    %188 = tpu.concatenate %181, %183, %185, %187 in 1 : vector<32x32xf32>, vector<32x32xf32>, vector<32x32xf32>, vector<32x32xf32> -> vector<32x128xf32>
    %189 = vector.extract_strided_slice %170 {offsets = [8, 0, 0], sizes = [1, 32, 32], strides = [1, 1, 1]} : vector<16x32x32xf32> to vector<1x32x32xf32>
    %190 = vector.shape_cast %189 : vector<1x32x32xf32> to vector<32x32xf32>
    %191 = vector.extract_strided_slice %170 {offsets = [9, 0, 0], sizes = [1, 32, 32], strides = [1, 1, 1]} : vector<16x32x32xf32> to vector<1x32x32xf32>
    %192 = vector.shape_cast %191 : vector<1x32x32xf32> to vector<32x32xf32>
    %193 = vector.extract_strided_slice %170 {offsets = [10, 0, 0], sizes = [1, 32, 32], strides = [1, 1, 1]} : vector<16x32x32xf32> to vector<1x32x32xf32>
    %194 = vector.shape_cast %193 : vector<1x32x32xf32> to vector<32x32xf32>
    %195 = vector.extract_strided_slice %170 {offsets = [11, 0, 0], sizes = [1, 32, 32], strides = [1, 1, 1]} : vector<16x32x32xf32> to vector<1x32x32xf32>
    %196 = vector.shape_cast %195 : vector<1x32x32xf32> to vector<32x32xf32>
    %197 = tpu.concatenate %190, %192, %194, %196 in 1 : vector<32x32xf32>, vector<32x32xf32>, vector<32x32xf32>, vector<32x32xf32> -> vector<32x128xf32>
    %198 = vector.extract_strided_slice %170 {offsets = [12, 0, 0], sizes = [1, 32, 32], strides = [1, 1, 1]} : vector<16x32x32xf32> to vector<1x32x32xf32>
    %199 = vector.shape_cast %198 : vector<1x32x32xf32> to vector<32x32xf32>
    %200 = vector.extract_strided_slice %170 {offsets = [13, 0, 0], sizes = [1, 32, 32], strides = [1, 1, 1]} : vector<16x32x32xf32> to vector<1x32x32xf32>
    %201 = vector.shape_cast %200 : vector<1x32x32xf32> to vector<32x32xf32>
    %202 = vector.extract_strided_slice %170 {offsets = [14, 0, 0], sizes = [1, 32, 32], strides = [1, 1, 1]} : vector<16x32x32xf32> to vector<1x32x32xf32>
    %203 = vector.shape_cast %202 : vector<1x32x32xf32> to vector<32x32xf32>
    %204 = vector.extract_strided_slice %170 {offsets = [15, 0, 0], sizes = [1, 32, 32], strides = [1, 1, 1]} : vector<16x32x32xf32> to vector<1x32x32xf32>
    %205 = vector.shape_cast %204 : vector<1x32x32xf32> to vector<32x32xf32>
    %206 = tpu.concatenate %199, %201, %203, %205 in 1 : vector<32x32xf32>, vector<32x32xf32>, vector<32x32xf32>, vector<32x32xf32> -> vector<32x128xf32>
    %207 = tpu.concatenate %179, %188, %197, %206 in 0 : vector<32x128xf32>, vector<32x128xf32>, vector<32x128xf32>, vector<32x128xf32> -> vector<128x128xf32>
    %208 = arith.truncf %207 : vector<128x128xf32> to vector<128x128xbf16>
    %209 = arith.index_cast %arg1 : i32 to index
    %c0_22 = arith.constant 0 : index
    %c0_23 = arith.constant 0 : index
    %210 = vector.load %arg5[%209, %c0_22, %c0_23] : memref<2x128x128xbf16, #tpu.memory_space<vmem>>, vector<1x128x128xbf16>
    %211 = vector.shape_cast %210 : vector<1x128x128xbf16> to vector<128x128xbf16>
    %cst_24 = arith.constant dense<0.000000e+00> : vector<128x128xf32>
    %212 = tpu.matmul %208, %211, %cst_24 {dimension_numbers = #tpu.dot_dimension_numbers<[1], [0], [0], [1], [0, 0, 1, 1], [], []>} : vector<128x128xbf16>, vector<128x128xbf16>, vector<128x128xf32> -> vector<128x128xf32>
    %213 = arith.index_cast %arg1 : i32 to index
    %c0_25 = arith.constant 0 : index
    %c0_26 = arith.constant 0 : index
    %214 = vector.load %arg6[%213, %c0_25, %c0_26] : memref<2x1x128xf32, #tpu.memory_space<vmem>>, vector<1x1x128xf32>
    %215 = vector.shape_cast %214 : vector<1x1x128xf32> to vector<1x128xf32>
    %216 = vector.broadcast %215 : vector<1x128xf32> to vector<128x128xf32>
    %217 = arith.addf %212, %216 : vector<128x128xf32>
    %218 = arith.addf %3, %217 : vector<128x128xf32>
    %219 = arith.index_cast %arg1 : i32 to index
    %c0_27 = arith.constant 0 : index
    %c0_28 = arith.constant 0 : index
    %220 = vector.load %arg9[%219, %c0_27, %c0_28] : memref<2x1x128xf32, #tpu.memory_space<vmem>>, vector<1x1x128xf32>
    %221 = vector.shape_cast %220 : vector<1x1x128xf32> to vector<1x128xf32>
    %222 = arith.index_cast %arg1 : i32 to index
    %c0_29 = arith.constant 0 : index
    %c0_30 = arith.constant 0 : index
    %223 = vector.load %arg10[%222, %c0_29, %c0_30] : memref<2x1x128xf32, #tpu.memory_space<vmem>>, vector<1x1x128xf32>
    %224 = vector.shape_cast %223 : vector<1x1x128xf32> to vector<1x128xf32>
    %cst_31 = arith.constant dense<0.000000e+00> : vector<128xf32>
    %225 = vector.multi_reduction <add>, %218, %cst_31 [1] : vector<128x128xf32> to vector<128xf32>
    %226 = vector.shape_cast %225 : vector<128xf32> to vector<128x1xf32>
    %cst_32 = arith.constant 1.280000e+02 : f32
    %227 = vector.broadcast %cst_32 : f32 to vector<128x1xf32>
    %228 = arith.divf %226, %227 : vector<128x1xf32>
    %229 = vector.broadcast %228 : vector<128x1xf32> to vector<128x128xf32>
    %230 = arith.subf %218, %229 : vector<128x128xf32>
    %231 = arith.mulf %230, %230 : vector<128x128xf32>
    %cst_33 = arith.constant dense<0.000000e+00> : vector<128xf32>
    %232 = vector.multi_reduction <add>, %231, %cst_33 [1] : vector<128x128xf32> to vector<128xf32>
    %233 = vector.shape_cast %232 : vector<128xf32> to vector<128x1xf32>
    %cst_34 = arith.constant 1.280000e+02 : f32
    %234 = vector.broadcast %cst_34 : f32 to vector<128x1xf32>
    %235 = arith.divf %233, %234 : vector<128x1xf32>
    %236 = vector.broadcast %228 : vector<128x1xf32> to vector<128x128xf32>
    %237 = arith.subf %218, %236 : vector<128x128xf32>
    %cst_35 = arith.constant 9.99999974E-6 : f32
    %238 = vector.broadcast %cst_35 : f32 to vector<128x1xf32>
    %239 = arith.addf %235, %238 : vector<128x1xf32>
    %240 = math.rsqrt %239 : vector<128x1xf32>
    %241 = vector.broadcast %240 : vector<128x1xf32> to vector<128x128xf32>
    %242 = arith.mulf %237, %241 : vector<128x128xf32>
    %243 = vector.broadcast %221 : vector<1x128xf32> to vector<128x128xf32>
    %244 = arith.mulf %242, %243 : vector<128x128xf32>
    %245 = vector.broadcast %224 : vector<1x128xf32> to vector<128x128xf32>
    %246 = arith.addf %244, %245 : vector<128x128xf32>
    %247 = arith.truncf %246 : vector<128x128xf32> to vector<128x128xbf16>
    %248 = arith.index_cast %arg1 : i32 to index
    %c0_36 = arith.constant 0 : index
    %c0_37 = arith.constant 0 : index
    %249 = vector.load %arg11[%248, %c0_36, %c0_37] : memref<2x128x512xbf16, #tpu.memory_space<vmem>>, vector<1x128x512xbf16>
    %250 = vector.shape_cast %249 : vector<1x128x512xbf16> to vector<128x512xbf16>
    %cst_38 = arith.constant dense<0.000000e+00> : vector<128x512xf32>
    %251 = tpu.matmul %247, %250, %cst_38 {dimension_numbers = #tpu.dot_dimension_numbers<[1], [0], [0], [1], [0, 0, 1, 1], [], []>} : vector<128x128xbf16>, vector<128x512xbf16>, vector<128x512xf32> -> vector<128x512xf32>
    %252 = arith.index_cast %arg1 : i32 to index
    %c0_39 = arith.constant 0 : index
    %c0_40 = arith.constant 0 : index
    %253 = vector.load %arg12[%252, %c0_39, %c0_40] : memref<2x1x512xf32, #tpu.memory_space<vmem>>, vector<1x1x512xf32>
    %254 = vector.shape_cast %253 : vector<1x1x512xf32> to vector<1x512xf32>
    %255 = vector.broadcast %254 : vector<1x512xf32> to vector<128x512xf32>
    %256 = arith.addf %251, %255 : vector<128x512xf32>
    %cst_41 = arith.constant 5.000000e-01 : f32
    %257 = vector.broadcast %cst_41 : f32 to vector<128x512xf32>
    %258 = arith.mulf %257, %256 : vector<128x512xf32>
    %cst_42 = arith.constant 0.707106769 : f32
    %259 = vector.broadcast %cst_42 : f32 to vector<128x512xf32>
    %260 = arith.mulf %256, %259 : vector<128x512xf32>
    %261 = math.erf %260 : vector<128x512xf32>
    %cst_43 = arith.constant 1.000000e+00 : f32
    %262 = vector.broadcast %cst_43 : f32 to vector<128x512xf32>
    %263 = arith.addf %262, %261 : vector<128x512xf32>
    %264 = arith.mulf %258, %263 : vector<128x512xf32>
    %265 = arith.truncf %264 : vector<128x512xf32> to vector<128x512xbf16>
    %266 = arith.index_cast %arg1 : i32 to index
    %c0_44 = arith.constant 0 : index
    %c0_45 = arith.constant 0 : index
    %267 = vector.load %arg13[%266, %c0_44, %c0_45] : memref<2x512x128xbf16, #tpu.memory_space<vmem>>, vector<1x512x128xbf16>
    %268 = vector.shape_cast %267 : vector<1x512x128xbf16> to vector<512x128xbf16>
    %cst_46 = arith.constant dense<0.000000e+00> : vector<128x128xf32>
    %269 = tpu.matmul %265, %268, %cst_46 {dimension_numbers = #tpu.dot_dimension_numbers<[1], [0], [0], [1], [0, 0, 1, 1], [], []>} : vector<128x512xbf16>, vector<512x128xbf16>, vector<128x128xf32> -> vector<128x128xf32>
    %270 = arith.index_cast %arg1 : i32 to index
    %c0_47 = arith.constant 0 : index
    %c0_48 = arith.constant 0 : index
    %271 = vector.load %arg14[%270, %c0_47, %c0_48] : memref<2x1x128xf32, #tpu.memory_space<vmem>>, vector<1x1x128xf32>
    %272 = vector.shape_cast %271 : vector<1x1x128xf32> to vector<1x128xf32>
    %273 = vector.broadcast %272 : vector<1x128xf32> to vector<128x128xf32>
    %274 = arith.addf %269, %273 : vector<128x128xf32>
    %275 = arith.addf %218, %274 : vector<128x128xf32>
    %c0_49 = arith.constant 0 : index
    %c0_50 = arith.constant 0 : index
    %276 = vector.load %arg17[%c0_49, %c0_50] : memref<128x128xf32, #tpu.memory_space<vmem>>, vector<128x128xf32>
    tpu.vector_store %arg17[%c0_49, %c0_50], %275 {strides = array<i32>} : memref<128x128xf32, #tpu.memory_space<vmem>>, vector<128x128xf32>,
    %c1_i32 = arith.constant 1 : i32
    %277 = arith.cmpi eq, %arg1, %c1_i32 : i32
    %278 = arith.extui %277 : i1 to i32
    %c0_i32_51 = arith.constant 0 : i32
    %279 = arith.cmpi ne, %278, %c0_i32_51 : i32
    scf.if %279 {
      %c0_52 = arith.constant 0 : index
      %c0_53 = arith.constant 0 : index
      %280 = vector.load %arg15[%c0_52, %c0_53] : memref<1x128xf32, #tpu.memory_space<vmem>>, vector<1x128xf32>
      %c0_54 = arith.constant 0 : index
      %c0_55 = arith.constant 0 : index
      %281 = vector.load %arg16[%c0_54, %c0_55] : memref<1x128xf32, #tpu.memory_space<vmem>>, vector<1x128xf32>
      %cst_56 = arith.constant dense<0.000000e+00> : vector<128xf32>
      %282 = vector.multi_reduction <add>, %275, %cst_56 [1] : vector<128x128xf32> to vector<128xf32>
      %283 = vector.shape_cast %282 : vector<128xf32> to vector<128x1xf32>
      %cst_57 = arith.constant 1.280000e+02 : f32
      %284 = vector.broadcast %cst_57 : f32 to vector<128x1xf32>
      %285 = arith.divf %283, %284 : vector<128x1xf32>
      %286 = vector.broadcast %285 : vector<128x1xf32> to vector<128x128xf32>
      %287 = arith.subf %275, %286 : vector<128x128xf32>
      %288 = arith.mulf %287, %287 : vector<128x128xf32>
      %cst_58 = arith.constant dense<0.000000e+00> : vector<128xf32>
      %289 = vector.multi_reduction <add>, %288, %cst_58 [1] : vector<128x128xf32> to vector<128xf32>
      %290 = vector.shape_cast %289 : vector<128xf32> to vector<128x1xf32>
      %cst_59 = arith.constant 1.280000e+02 : f32
      %291 = vector.broadcast %cst_59 : f32 to vector<128x1xf32>
      %292 = arith.divf %290, %291 : vector<128x1xf32>
      %293 = vector.broadcast %285 : vector<128x1xf32> to vector<128x128xf32>
      %294 = arith.subf %275, %293 : vector<128x128xf32>
      %cst_60 = arith.constant 9.99999974E-6 : f32
      %295 = vector.broadcast %cst_60 : f32 to vector<128x1xf32>
      %296 = arith.addf %292, %295 : vector<128x1xf32>
      %297 = math.rsqrt %296 : vector<128x1xf32>
      %298 = vector.broadcast %297 : vector<128x1xf32> to vector<128x128xf32>
      %299 = arith.mulf %294, %298 : vector<128x128xf32>
      %300 = vector.broadcast %280 : vector<1x128xf32> to vector<128x128xf32>
      %301 = arith.mulf %299, %300 : vector<128x128xf32>
      %302 = vector.broadcast %281 : vector<1x128xf32> to vector<128x128xf32>
      %303 = arith.addf %301, %302 : vector<128x128xf32>
      %c0_61 = arith.constant 0 : index
      %c0_62 = arith.constant 0 : index
      %304 = vector.load %arg17[%c0_61, %c0_62] : memref<128x128xf32, #tpu.memory_space<vmem>>, vector<128x128xf32>
      tpu.vector_store %arg17[%c0_61, %c0_62], %303 {strides = array<i32>} : memref<128x128xf32, #tpu.memory_space<vmem>>, vector<128x128xf32>,
    } else {
    }
    return
  }
  func.func @transform_0(%arg0: i32, %arg1: i32) -> (i32, i32) {
    %c0_i32 = arith.constant 0 : i32
    %c0_i32_0 = arith.constant 0 : i32
    return %arg0, %c0_i32 : i32, i32
  }
  func.func @transform_1(%arg0: i32, %arg1: i32) -> (i32, i32, i32) {
    %c0_i32 = arith.constant 0 : i32
    %c0_i32_0 = arith.constant 0 : i32
    %c0_i32_1 = arith.constant 0 : i32
    %c0_i32_2 = arith.constant 0 : i32
    return %c0_i32, %c0_i32_0, %c0_i32_1 : i32, i32, i32
  }
  func.func @transform_2(%arg0: i32, %arg1: i32) -> (i32, i32, i32) {
    %c0_i32 = arith.constant 0 : i32
    %c0_i32_0 = arith.constant 0 : i32
    %c0_i32_1 = arith.constant 0 : i32
    %c0_i32_2 = arith.constant 0 : i32
    return %c0_i32, %c0_i32_0, %c0_i32_1 : i32, i32, i32
  }
  func.func @transform_3(%arg0: i32, %arg1: i32) -> (i32, i32, i32) {
    %c0_i32 = arith.constant 0 : i32
    %c0_i32_0 = arith.constant 0 : i32
    %c0_i32_1 = arith.constant 0 : i32
    %c0_i32_2 = arith.constant 0 : i32
    return %c0_i32, %c0_i32_0, %c0_i32_1 : i32, i32, i32
  }
  func.func @transform_4(%arg0: i32, %arg1: i32) -> (i32, i32, i32) {
    %c0_i32 = arith.constant 0 : i32
    %c0_i32_0 = arith.constant 0 : i32
    %c0_i32_1 = arith.constant 0 : i32
    %c0_i32_2 = arith.constant 0 : i32
    return %c0_i32, %c0_i32_0, %c0_i32_1 : i32, i32, i32
  }
  func.func @transform_5(%arg0: i32, %arg1: i32) -> (i32, i32, i32) {
    %c0_i32 = arith.constant 0 : i32
    %c0_i32_0 = arith.constant 0 : i32
    %c0_i32_1 = arith.constant 0 : i32
    %c0_i32_2 = arith.constant 0 : i32
    return %c0_i32, %c0_i32_0, %c0_i32_1 : i32, i32, i32
  }
  func.func @transform_6(%arg0: i32, %arg1: i32) -> (i32, i32, i32) {
    %c0_i32 = arith.constant 0 : i32
    %c0_i32_0 = arith.constant 0 : i32
    %c0_i32_1 = arith.constant 0 : i32
    %c0_i32_2 = arith.constant 0 : i32
    return %c0_i32, %c0_i32_0, %c0_i32_1 : i32, i32, i32
  }
  func.func @transform_7(%arg0: i32, %arg1: i32) -> (i32, i32, i32) {
    %c0_i32 = arith.constant 0 : i32
    %c0_i32_0 = arith.constant 0 : i32
    %c0_i32_1 = arith.constant 0 : i32
    %c0_i32_2 = arith.constant 0 : i32
    return %c0_i32, %c0_i32_0, %c0_i32_1 : i32, i32, i32
  }
  func.func @transform_8(%arg0: i32, %arg1: i32) -> (i32, i32, i32) {
    %c0_i32 = arith.constant 0 : i32
    %c0_i32_0 = arith.constant 0 : i32
    %c0_i32_1 = arith.constant 0 : i32
    %c0_i32_2 = arith.constant 0 : i32
    return %c0_i32, %c0_i32_0, %c0_i32_1 : i32, i32, i32
  }
  func.func @transform_9(%arg0: i32, %arg1: i32) -> (i32, i32, i32) {
    %c0_i32 = arith.constant 0 : i32
    %c0_i32_0 = arith.constant 0 : i32
    %c0_i32_1 = arith.constant 0 : i32
    %c0_i32_2 = arith.constant 0 : i32
    return %c0_i32, %c0_i32_0, %c0_i32_1 : i32, i32, i32
  }
  func.func @transform_10(%arg0: i32, %arg1: i32) -> (i32, i32, i32) {
    %c0_i32 = arith.constant 0 : i32
    %c0_i32_0 = arith.constant 0 : i32
    %c0_i32_1 = arith.constant 0 : i32
    %c0_i32_2 = arith.constant 0 : i32
    return %c0_i32, %c0_i32_0, %c0_i32_1 : i32, i32, i32
  }
  func.func @transform_11(%arg0: i32, %arg1: i32) -> (i32, i32, i32) {
    %c0_i32 = arith.constant 0 : i32
    %c0_i32_0 = arith.constant 0 : i32
    %c0_i32_1 = arith.constant 0 : i32
    %c0_i32_2 = arith.constant 0 : i32
    return %c0_i32, %c0_i32_0, %c0_i32_1 : i32, i32, i32
  }
  func.func @transform_12(%arg0: i32, %arg1: i32) -> (i32, i32, i32) {
    %c0_i32 = arith.constant 0 : i32
    %c0_i32_0 = arith.constant 0 : i32
    %c0_i32_1 = arith.constant 0 : i32
    %c0_i32_2 = arith.constant 0 : i32
    return %c0_i32, %c0_i32_0, %c0_i32_1 : i32, i32, i32
  }
  func.func @transform_13(%arg0: i32, %arg1: i32) -> (i32, i32) {
    %c0_i32 = arith.constant 0 : i32
    %c0_i32_0 = arith.constant 0 : i32
    %c0_i32_1 = arith.constant 0 : i32
    return %c0_i32, %c0_i32_0 : i32, i32
  }
  func.func @transform_14(%arg0: i32, %arg1: i32) -> (i32, i32) {
    %c0_i32 = arith.constant 0 : i32
    %c0_i32_0 = arith.constant 0 : i32
    %c0_i32_1 = arith.constant 0 : i32
    return %c0_i32, %c0_i32_0 : i32, i32
  }
  func.func @transform_15(%arg0: i32, %arg1: i32) -> (i32, i32) {
    %c0_i32 = arith.constant 0 : i32
    %c0_i32_0 = arith.constant 0 : i32
    return %arg0, %c0_i32 : i32, i32
  }
}

</mosaic_0001>

<llo_original>
// kernel: tpu_custom_call.1
$region0: #{tpu_custom_call.1}
  #allocation0 [shape = 'u32[]', space=smem, size = 0x4, offset = 0x4, fixed_abs, tag = 'smem constant byte address 0x4 - core index']
  #allocation1 [shape = 'u32[144,128]{1,0:T(1,128)}', space=vmem, size = 0x12000, scoped, tag = 'internal scratch']
  %s0 = inlined_call_operand.hbm [shape: f32[256,128], index: 0, kind: input, shape index: {}]
  %s1 = inlined_call_operand.hbm [shape: bf16[2,128,384], index: 1, kind: input, shape index: {}]
  %s2 = inlined_call_operand.vmem [shape: f32[2,1,384], index: 2, kind: input, shape index: {}]
  %s3 = inlined_call_operand.hbm [shape: bf16[2,128,128], index: 3, kind: input, shape index: {}]
  %s4 = inlined_call_operand.hbm [shape: f32[2,1,128], index: 4, kind: input, shape index: {}]
  %s5 = inlined_call_operand.vmem [shape: f32[2,1,128], index: 5, kind: input, shape index: {}]
  %s6 = inlined_call_operand.vmem [shape: f32[2,1,128], index: 6, kind: input, shape index: {}]
  %s7 = inlined_call_operand.vmem [shape: f32[2,1,128], index: 7, kind: input, shape index: {}]
  %s8 = inlined_call_operand.vmem [shape: f32[2,1,128], index: 8, kind: input, shape index: {}]
  %s9 = inlined_call_operand.hbm [shape: bf16[2,128,512], index: 9, kind: input, shape index: {}]
  %s10 = inlined_call_operand.vmem [shape: f32[2,1,512], index: 10, kind: input, shape index: {}]
  %s11 = inlined_call_operand.hbm [shape: bf16[2,512,128], index: 11, kind: input, shape index: {}]
  %s12 = inlined_call_operand.vmem [shape: f32[2,1,128], index: 12, kind: input, shape index: {}]
  %s13 = inlined_call_operand.vmem [shape: f32[1,128], index: 13, kind: input, shape index: {}]
  %s14 = inlined_call_operand.vmem [shape: f32[1,128], index: 14, kind: input, shape index: {}]
  %s15 = inlined_call_operand.hbm [shape: f32[256,128], index: 15, kind: output, shape index: {}]
  %s16 = sld [smem:[#allocation0]]
  $region125: #{tpu_custom_call.1} parent=0
    _
  %s18 = ssub.s32 1, %s16
  %s19 = scalar_select 0, %s18, %s16
  $region1: #{tpu_custom_call.1} parent=0
    #allocation2 [shape = 'u8[131072]{0}', space=vmem, size = 0x20000, scoped, tag = 'input window, operand 0']
    #allocation3 [shape = 's32[2]{0}', space=sflag, size = 0x8, scoped, tag = 'scoped memory for tpu_custom_call.1']
    #allocation4 [shape = 's32[2]{0}', space=sflag, size = 0x8, scoped, tag = 'scoped memory for tpu_custom_call.1']
    #allocation5 [shape = 'u8[196608]{0}', space=vmem, size = 0x30000, scoped, tag = 'input window, operand 1, single buffered']
    #allocation6 [shape = 's32[1]{0}', space=sflag, size = 0x4, scoped, tag = 'scoped memory for tpu_custom_call.1']
    #allocation7 [shape = 'u8[65536]{0}', space=vmem, size = 0x10000, scoped, tag = 'input window, operand 3, single buffered']
    #allocation8 [shape = 'u8[1024]{0}', space=vmem, size = 0x400, scoped, tag = 'input window, operand 4, single buffered']
    #allocation9 [shape = 's32[1]{0}', space=sflag, size = 0x4, scoped, tag = 'scoped memory for tpu_custom_call.1']
    #allocation10 [shape = 'u8[262144]{0}', space=vmem, size = 0x40000, scoped, tag = 'input window, operand 9, single buffered']
    #allocation11 [shape = 'u8[262144]{0}', space=vmem, size = 0x40000, scoped, tag = 'input window, operand 11, single buffered']
    #allocation12 [shape = 's32[1]{0}', space=sflag, size = 0x4, scoped, tag = 'scoped memory for tpu_custom_call.1']
    #allocation13 [shape = 'u8[131072]{0}', space=vmem, size = 0x20000, scoped, tag = 'output window, operand 0']
    %20 = vsyncpa [#allocation3], 0
    %s21 = scalar_lea.sflag [#allocation3], 1
    %22 = vsyncpa %s21, 0
    %23 = vsyncpa [#allocation6], 0
    %24 = vsyncpa [#allocation9], 0
    %25 = vsyncpa [#allocation12], 0
    %26 = vsyncpa [#allocation4], 0
    %s27 = scalar_lea.sflag [#allocation4], 1
    %28 = vsyncpa %s27, 0
    loop: start=0, step=1, limit=6
    $region2: #{tpu_custom_call.1} parent=1 // loop_pre_header
      _
    $region3: #{tpu_custom_call.1} parent=1 // loop_header
      %s30 = sphi 0, %s34
      %p31 = scmp.ge.s32.totalorder %s30, 6
      %s37 = sphi 0, %s49
      %s38 = sphi 0, %s45
      %s39 = sphi 0, %s37
      %s40 = sphi 0, %s38
      %s41 = sphi 0, %s39
      %s42 = sphi 0, %s40
      %s52 = sphi 0, %s54
      %s55 = sphi 0, %s52
      %s56 = sphi 0, %s55
      %s72 = sphi 0, %s56
      %s76 = sphi 0, %s76
      %s78 = sphi 0, %s76
      %s79 = sphi 0, %s78
      %s93 = sphi 0, %s79
      %s97 = sphi 0, %s97
      %s99 = sphi 0, %s97
      %s100 = sphi 0, %s99
      %s114 = sphi 0, %s100
      %s118 = sphi 0, %s118
      %s120 = sphi 0, %s118
      %s121 = sphi 0, %s120
      %s135 = sphi 0, %s121
      %s139 = sphi 0, %s139
      %s141 = sphi 0, %s139
      %s142 = sphi 0, %s141
      %s156 = sphi 0, %s142
      %s160 = sphi 0, %s160
      %s162 = sphi 0, %s160
      %s163 = sphi 0, %s162
      %s177 = sphi 0, %s163
      %s181 = sphi 0, %s181
      %s183 = sphi 0, %s181
      %s184 = sphi 0, %s183
      %s198 = sphi 0, %s184
      %s202 = sphi 0, %s202
      %s204 = sphi 0, %s202
      %s205 = sphi 0, %s204
      %s219 = sphi 0, %s205
      %s223 = sphi 0, %s223
      %s225 = sphi 0, %s223
      %s226 = sphi 0, %s225
      %s240 = sphi 0, %s226
      %s244 = sphi 0, %s244
      %s246 = sphi 0, %s244
      %s247 = sphi 0, %s246
      %s261 = sphi 0, %s247
      %s265 = sphi 0, %s265
      %s267 = sphi 0, %s265
      %s268 = sphi 0, %s267
      %s282 = sphi 0, %s268
      %s286 = sphi 0, %s286
      %s288 = sphi 0, %s286
      %s289 = sphi 0, %s288
      %s303 = sphi 0, %s289
      %s307 = sphi 0, %s307
      %s309 = sphi 0, %s307
      %s310 = sphi 0, %s309
      %s324 = sphi 0, %s310
      %s328 = sphi 0, %s328
      %s330 = sphi 0, %s328
      %s331 = sphi 0, %s330
      %s345 = sphi 0, %s331
      %s349 = sphi 0, %s349
      %s351 = sphi 0, %s349
      %s352 = sphi 0, %s351
      %s366 = sphi 0, %s352
      %s372 = sphi 0, %s374
      %s375 = sphi 0, %s372
      %s376 = sphi 0, %s375
      %s392 = sphi 0, %s376
    $region4: #{tpu_custom_call.1} parent=1 // loop_header_branch
      %33 = sbr.rel (%p31) target = $region8
    $region5: #{tpu_custom_call.1} parent=1 // loop_body
      %s35 = ssub.s32 %s30, 1
      %s36 = ssub.s32 %s30, 2
      %s43 = sadd.s32 1, %s38
      %p44 = scmp.ge.s32.totalorder %s43, 2
      %s45 = scalar_select %p44, 0, %s43
      %s46 = sadd.s32 1, %s37
      %s47 = scalar_select %p44, %s46, %s37
      %p48 = scmp.ge.s32.totalorder %s47, 2
      %s49 = scalar_select %p48, 0, %s47
      %s50 = ssub.s32 %s37, %s49
      %p51 = scmp.eq.s32.totalorder %s50, 0
      %s53 = sadd.s32 %s52, 1
      %s54 = scalar_select %p51, %s52, %s53
      %p57 = pneg %p51
      %p58 = scmp.eq.s32.totalorder %s30, 3
      %p59 = por %p57, %p58
      %p60 = scmp.ne.s32.totalorder %s52, %s55
      %p61 = scmp.eq.s32.totalorder %s30, 0
      %p62 = por %p60, %p61
      %p63 = scmp.ne.s32.totalorder %s52, %s55
      %p64 = scmp.eq.s32.totalorder %s35, 3
      %p65 = por %p63, %p64
      %p66 = scmp.ne.s32.totalorder %s55, %s56
      %p67 = scmp.eq.s32.totalorder %s35, 0
      %p68 = por %p66, %p67
      %p69 = scmp.ne.s32.totalorder %s55, %s56
      %p70 = scmp.eq.s32.totalorder %s36, 3
      %p71 = por %p69, %p70
      %p73 = scmp.ne.s32.totalorder %s56, %s72
      %p74 = scmp.eq.s32.totalorder %s36, 0
      %p75 = por %p73, %p74
      %s77 = sadd.s32 %s76, 1
      %p80 = scmp.eq.s32.totalorder %s30, 3
      %p81 = scmp.ne.s32.totalorder %s76, %s78
      %p82 = scmp.eq.s32.totalorder %s30, 0
      %p83 = por %p81, %p82
      %p84 = scmp.ne.s32.totalorder %s76, %s78
      %p85 = scmp.eq.s32.totalorder %s35, 3
      %p86 = por %p84, %p85
      %p87 = scmp.ne.s32.totalorder %s78, %s79
      %p88 = scmp.eq.s32.totalorder %s35, 0
      %p89 = por %p87, %p88
      %p90 = scmp.ne.s32.totalorder %s78, %s79
      %p91 = scmp.eq.s32.totalorder %s36, 3
      %p92 = por %p90, %p91
      %p94 = scmp.ne.s32.totalorder %s79, %s93
      %p95 = scmp.eq.s32.totalorder %s36, 0
      %p96 = por %p94, %p95
      %s98 = sadd.s32 %s97, 1
      %p101 = scmp.eq.s32.totalorder %s30, 3
      %p102 = scmp.ne.s32.totalorder %s97, %s99
      %p103 = scmp.eq.s32.totalorder %s30, 0
      %p104 = por %p102, %p103
      %p105 = scmp.ne.s32.totalorder %s97, %s99
      %p106 = scmp.eq.s32.totalorder %s35, 3
      %p107 = por %p105, %p106
      %p108 = scmp.ne.s32.totalorder %s99, %s100
      %p109 = scmp.eq.s32.totalorder %s35, 0
      %p110 = por %p108, %p109
      %p111 = scmp.ne.s32.totalorder %s99, %s100
      %p112 = scmp.eq.s32.totalorder %s36, 3
      %p113 = por %p111, %p112
      %p115 = scmp.ne.s32.totalorder %s100, %s114
      %p116 = scmp.eq.s32.totalorder %s36, 0
      %p117 = por %p115, %p116
      %s119 = sadd.s32 %s118, 1
      %p122 = scmp.eq.s32.totalorder %s30, 3
      %p123 = scmp.ne.s32.totalorder %s118, %s120
      %p124 = scmp.eq.s32.totalorder %s30, 0
      %p125 = por %p123, %p124
      %p126 = scmp.ne.s32.totalorder %s118, %s120
      %p127 = scmp.eq.s32.totalorder %s35, 3
      %p128 = por %p126, %p127
      %p129 = scmp.ne.s32.totalorder %s120, %s121
      %p130 = scmp.eq.s32.totalorder %s35, 0
      %p131 = por %p129, %p130
      %p132 = scmp.ne.s32.totalorder %s120, %s121
      %p133 = scmp.eq.s32.totalorder %s36, 3
      %p134 = por %p132, %p133
      %p136 = scmp.ne.s32.totalorder %s121, %s135
      %p137 = scmp.eq.s32.totalorder %s36, 0
      %p138 = por %p136, %p137
      %s140 = sadd.s32 %s139, 1
      %p143 = scmp.eq.s32.totalorder %s30, 3
      %p144 = scmp.ne.s32.totalorder %s139, %s141
      %p145 = scmp.eq.s32.totalorder %s30, 0
      %p146 = por %p144, %p145
      %p147 = scmp.ne.s32.totalorder %s139, %s141
      %p148 = scmp.eq.s32.totalorder %s35, 3
      %p149 = por %p147, %p148
      %p150 = scmp.ne.s32.totalorder %s141, %s142
      %p151 = scmp.eq.s32.totalorder %s35, 0
      %p152 = por %p150, %p151
      %p153 = scmp.ne.s32.totalorder %s141, %s142
      %p154 = scmp.eq.s32.totalorder %s36, 3
      %p155 = por %p153, %p154
      %p157 = scmp.ne.s32.totalorder %s142, %s156
      %p158 = scmp.eq.s32.totalorder %s36, 0
      %p159 = por %p157, %p158
      %s161 = sadd.s32 %s160, 1
      %p164 = scmp.eq.s32.totalorder %s30, 3
      %p165 = scmp.ne.s32.totalorder %s160, %s162
      %p166 = scmp.eq.s32.totalorder %s30, 0
      %p167 = por %p165, %p166
      %p168 = scmp.ne.s32.totalorder %s160, %s162
      %p169 = scmp.eq.s32.totalorder %s35, 3
      %p170 = por %p168, %p169
      %p171 = scmp.ne.s32.totalorder %s162, %s163
      %p172 = scmp.eq.s32.totalorder %s35, 0
      %p173 = por %p171, %p172
      %p174 = scmp.ne.s32.totalorder %s162, %s163
      %p175 = scmp.eq.s32.totalorder %s36, 3
      %p176 = por %p174, %p175
      %p178 = scmp.ne.s32.totalorder %s163, %s177
      %p179 = scmp.eq.s32.totalorder %s36, 0
      %p180 = por %p178, %p179
      %s182 = sadd.s32 %s181, 1
      %p185 = scmp.eq.s32.totalorder %s30, 3
      %p186 = scmp.ne.s32.totalorder %s181, %s183
      %p187 = scmp.eq.s32.totalorder %s30, 0
      %p188 = por %p186, %p187
      %p189 = scmp.ne.s32.totalorder %s181, %s183
      %p190 = scmp.eq.s32.totalorder %s35, 3
      %p191 = por %p189, %p190
      %p192 = scmp.ne.s32.totalorder %s183, %s184
      %p193 = scmp.eq.s32.totalorder %s35, 0
      %p194 = por %p192, %p193
      %p195 = scmp.ne.s32.totalorder %s183, %s184
      %p196 = scmp.eq.s32.totalorder %s36, 3
      %p197 = por %p195, %p196
      %p199 = scmp.ne.s32.totalorder %s184, %s198
      %p200 = scmp.eq.s32.totalorder %s36, 0
      %p201 = por %p199, %p200
      %s203 = sadd.s32 %s202, 1
      %p206 = scmp.eq.s32.totalorder %s30, 3
      %p207 = scmp.ne.s32.totalorder %s202, %s204
      %p208 = scmp.eq.s32.totalorder %s30, 0
      %p209 = por %p207, %p208
      %p210 = scmp.ne.s32.totalorder %s202, %s204
      %p211 = scmp.eq.s32.totalorder %s35, 3
      %p212 = por %p210, %p211
      %p213 = scmp.ne.s32.totalorder %s204, %s205
      %p214 = scmp.eq.s32.totalorder %s35, 0
      %p215 = por %p213, %p214
      %p216 = scmp.ne.s32.totalorder %s204, %s205
      %p217 = scmp.eq.s32.totalorder %s36, 3
      %p218 = por %p216, %p217
      %p220 = scmp.ne.s32.totalorder %s205, %s219
      %p221 = scmp.eq.s32.totalorder %s36, 0
      %p222 = por %p220, %p221
      %s224 = sadd.s32 %s223, 1
      %p227 = scmp.eq.s32.totalorder %s30, 3
      %p228 = scmp.ne.s32.totalorder %s223, %s225
      %p229 = scmp.eq.s32.totalorder %s30, 0
      %p230 = por %p228, %p229
      %p231 = scmp.ne.s32.totalorder %s223, %s225
      %p232 = scmp.eq.s32.totalorder %s35, 3
      %p233 = por %p231, %p232
      %p234 = scmp.ne.s32.totalorder %s225, %s226
      %p235 = scmp.eq.s32.totalorder %s35, 0
      %p236 = por %p234, %p235
      %p237 = scmp.ne.s32.totalorder %s225, %s226
      %p238 = scmp.eq.s32.totalorder %s36, 3
      %p239 = por %p237, %p238
      %p241 = scmp.ne.s32.totalorder %s226, %s240
      %p242 = scmp.eq.s32.totalorder %s36, 0
      %p243 = por %p241, %p242
      %s245 = sadd.s32 %s244, 1
      %p248 = scmp.eq.s32.totalorder %s30, 3
      %p249 = scmp.ne.s32.totalorder %s244, %s246
      %p250 = scmp.eq.s32.totalorder %s30, 0
      %p251 = por %p249, %p250
      %p252 = scmp.ne.s32.totalorder %s244, %s246
      %p253 = scmp.eq.s32.totalorder %s35, 3
      %p254 = por %p252, %p253
      %p255 = scmp.ne.s32.totalorder %s246, %s247
      %p256 = scmp.eq.s32.totalorder %s35, 0
      %p257 = por %p255, %p256
      %p258 = scmp.ne.s32.totalorder %s246, %s247
      %p259 = scmp.eq.s32.totalorder %s36, 3
      %p260 = por %p258, %p259
      %p262 = scmp.ne.s32.totalorder %s247, %s261
      %p263 = scmp.eq.s32.totalorder %s36, 0
      %p264 = por %p262, %p263
      %s266 = sadd.s32 %s265, 1
      %p269 = scmp.eq.s32.totalorder %s30, 3
      %p270 = scmp.ne.s32.totalorder %s265, %s267
      %p271 = scmp.eq.s32.totalorder %s30, 0
      %p272 = por %p270, %p271
      %p273 = scmp.ne.s32.totalorder %s265, %s267
      %p274 = scmp.eq.s32.totalorder %s35, 3
      %p275 = por %p273, %p274
      %p276 = scmp.ne.s32.totalorder %s267, %s268
      %p277 = scmp.eq.s32.totalorder %s35, 0
      %p278 = por %p276, %p277
      %p279 = scmp.ne.s32.totalorder %s267, %s268
      %p280 = scmp.eq.s32.totalorder %s36, 3
      %p281 = por %p279, %p280
      %p283 = scmp.ne.s32.totalorder %s268, %s282
      %p284 = scmp.eq.s32.totalorder %s36, 0
      %p285 = por %p283, %p284
      %s287 = sadd.s32 %s286, 1
      %p290 = scmp.eq.s32.totalorder %s30, 3
      %p291 = scmp.ne.s32.totalorder %s286, %s288
      %p292 = scmp.eq.s32.totalorder %s30, 0
      %p293 = por %p291, %p292
      %p294 = scmp.ne.s32.totalorder %s286, %s288
      %p295 = scmp.eq.s32.totalorder %s35, 3
      %p296 = por %p294, %p295
      %p297 = scmp.ne.s32.totalorder %s288, %s289
      %p298 = scmp.eq.s32.totalorder %s35, 0
      %p299 = por %p297, %p298
      %p300 = scmp.ne.s32.totalorder %s288, %s289
      %p301 = scmp.eq.s32.totalorder %s36, 3
      %p302 = por %p300, %p301
      %p304 = scmp.ne.s32.totalorder %s289, %s303
      %p305 = scmp.eq.s32.totalorder %s36, 0
      %p306 = por %p304, %p305
      %s308 = sadd.s32 %s307, 1
      %p311 = scmp.eq.s32.totalorder %s30, 3
      %p312 = scmp.ne.s32.totalorder %s307, %s309
      %p313 = scmp.eq.s32.totalorder %s30, 0
      %p314 = por %p312, %p313
      %p315 = scmp.ne.s32.totalorder %s307, %s309
      %p316 = scmp.eq.s32.totalorder %s35, 3
      %p317 = por %p315, %p316
      %p318 = scmp.ne.s32.totalorder %s309, %s310
      %p319 = scmp.eq.s32.totalorder %s35, 0
      %p320 = por %p318, %p319
      %p321 = scmp.ne.s32.totalorder %s309, %s310
      %p322 = scmp.eq.s32.totalorder %s36, 3
      %p323 = por %p321, %p322
      %p325 = scmp.ne.s32.totalorder %s310, %s324
      %p326 = scmp.eq.s32.totalorder %s36, 0
      %p327 = por %p325, %p326
      %s329 = sadd.s32 %s328, 1
      %p332 = scmp.eq.s32.totalorder %s30, 3
      %p333 = scmp.ne.s32.totalorder %s328, %s330
      %p334 = scmp.eq.s32.totalorder %s30, 0
      %p335 = por %p333, %p334
      %p336 = scmp.ne.s32.totalorder %s328, %s330
      %p337 = scmp.eq.s32.totalorder %s35, 3
      %p338 = por %p336, %p337
      %p339 = scmp.ne.s32.totalorder %s330, %s331
      %p340 = scmp.eq.s32.totalorder %s35, 0
      %p341 = por %p339, %p340
      %p342 = scmp.ne.s32.totalorder %s330, %s331
      %p343 = scmp.eq.s32.totalorder %s36, 3
      %p344 = por %p342, %p343
      %p346 = scmp.ne.s32.totalorder %s331, %s345
      %p347 = scmp.eq.s32.totalorder %s36, 0
      %p348 = por %p346, %p347
      %s350 = sadd.s32 %s349, 1
      %p353 = scmp.eq.s32.totalorder %s30, 3
      %p354 = scmp.ne.s32.totalorder %s349, %s351
      %p355 = scmp.eq.s32.totalorder %s30, 0
      %p356 = por %p354, %p355
      %p357 = scmp.ne.s32.totalorder %s349, %s351
      %p358 = scmp.eq.s32.totalorder %s35, 3
      %p359 = por %p357, %p358
      %p360 = scmp.ne.s32.totalorder %s351, %s352
      %p361 = scmp.eq.s32.totalorder %s35, 0
      %p362 = por %p360, %p361
      %p363 = scmp.ne.s32.totalorder %s351, %s352
      %p364 = scmp.eq.s32.totalorder %s36, 3
      %p365 = por %p363, %p364
      %p367 = scmp.ne.s32.totalorder %s352, %s366
      %p368 = scmp.eq.s32.totalorder %s36, 0
      %p369 = por %p367, %p368
      %s370 = ssub.s32 %s37, %s49
      %p371 = scmp.eq.s32.totalorder %s370, 0
      %s373 = sadd.s32 %s372, 1
      %s374 = scalar_select %p371, %s372, %s373
      %p377 = pneg %p371
      %p378 = scmp.eq.s32.totalorder %s30, 3
      %p379 = por %p377, %p378
      %p380 = scmp.ne.s32.totalorder %s372, %s375
      %p381 = scmp.eq.s32.totalorder %s30, 0
      %p382 = por %p380, %p381
      %p383 = scmp.ne.s32.totalorder %s372, %s375
      %p384 = scmp.eq.s32.totalorder %s35, 3
      %p385 = por %p383, %p384
      %p386 = scmp.ne.s32.totalorder %s375, %s376
      %p387 = scmp.eq.s32.totalorder %s35, 0
      %p388 = por %p386, %p387
      %p389 = scmp.ne.s32.totalorder %s375, %s376
      %p390 = scmp.eq.s32.totalorder %s36, 3
      %p391 = por %p389, %p390
      %p393 = scmp.ne.s32.totalorder %s376, %s392
      %p394 = scmp.eq.s32.totalorder %s36, 0
      %p395 = por %p393, %p394
      %p396 = scmp.le.s32.totalorder 1, %s30
      %p397 = scmp.lt.s32.totalorder %s30, 5
      %p398 = pnand %p396, %p397
      %p399 = pneg %p398
      // Predicated region
      $region9: #{tpu_custom_call.1} parent=5 // pred_check
        _
      $region10: #{tpu_custom_call.1} parent=5 // pred_check_branch
        %401 = sbr.rel (%p398) target = $region12
      $region11: #{tpu_custom_call.1} parent=5 // pred_region
        %s402 = ssub.s32 %s30, 1
        // Predicated region
        $region13: #{tpu_custom_call.1} parent=11 // pred_check
          %p403 = pneg %p89
        $region14: #{tpu_custom_call.1} parent=11 // pred_check_branch
          %405 = sbr.rel (%p403) target = $region16
        $region15: #{tpu_custom_call.1} parent=11 // pred_region
          %s407 = ssub.s32 6144, 6144
          %408 = vsyncadd [#allocation6], %s407
          %s409 = sshll.u32 [#allocation5], 4
          %s410 = int_to_ptr.vmem [resolvable:$true] %s409
          %415 = dma.hbm_to_vmem [thread:$0]  %s1, 6144, %s410, [#allocation6], 192, 192, 12
        $region16: #{tpu_custom_call.1} parent=11 // pred_fallthru
          _
        // Predicated region
        $region17: #{tpu_custom_call.1} parent=11 // pred_check
          %p416 = pneg %p110
        $region18: #{tpu_custom_call.1} parent=11 // pred_check_branch
          %418 = sbr.rel (%p416) target = $region20
        $region19: #{tpu_custom_call.1} parent=11 // pred_region
          _
        $region20: #{tpu_custom_call.1} parent=11 // pred_fallthru
          _
        // Predicated region
        $region21: #{tpu_custom_call.1} parent=11 // pred_check
          %p419 = pneg %p131
        $region22: #{tpu_custom_call.1} parent=11 // pred_check_branch
          %421 = sbr.rel (%p419) target = $region24
        $region23: #{tpu_custom_call.1} parent=11 // pred_region
          %s423 = ssub.s32 2048, 2048
          %424 = vsyncadd [#allocation6], %s423
          %s425 = sshll.u32 [#allocation7], 4
          %s426 = int_to_ptr.vmem [resolvable:$true] %s425
          %431 = dma.hbm_to_vmem [thread:$0]  %s3, 2048, %s426, [#allocation6], 64, 64, 4
        $region24: #{tpu_custom_call.1} parent=11 // pred_fallthru
          _
        // Predicated region
        $region25: #{tpu_custom_call.1} parent=11 // pred_check
          %p432 = pneg %p152
        $region26: #{tpu_custom_call.1} parent=11 // pred_check_branch
          %434 = sbr.rel (%p432) target = $region28
        $region27: #{tpu_custom_call.1} parent=11 // pred_region
          %s436 = ssub.s32 32, 32
          %437 = vsyncadd [#allocation9], %s436
          %s438 = sshll.u32 [#allocation8], 4
          %s439 = int_to_ptr.vmem [resolvable:$true] %s438
          %444 = dma.hbm_to_vmem [thread:$0]  %s4, 32, %s439, [#allocation9], 16, 16, 1
        $region28: #{tpu_custom_call.1} parent=11 // pred_fallthru
          _
        // Predicated region
        $region29: #{tpu_custom_call.1} parent=11 // pred_check
          %p445 = pneg %p173
        $region30: #{tpu_custom_call.1} parent=11 // pred_check_branch
          %447 = sbr.rel (%p445) target = $region32
        $region31: #{tpu_custom_call.1} parent=11 // pred_region
          _
        $region32: #{tpu_custom_call.1} parent=11 // pred_fallthru
          _
        // Predicated region
        $region33: #{tpu_custom_call.1} parent=11 // pred_check
          %p448 = pneg %p194
        $region34: #{tpu_custom_call.1} parent=11 // pred_check_branch
          %450 = sbr.rel (%p448) target = $region36
        $region35: #{tpu_custom_call.1} parent=11 // pred_region
          _
        $region36: #{tpu_custom_call.1} parent=11 // pred_fallthru
          _
        // Predicated region
        $region37: #{tpu_custom_call.1} parent=11 // pred_check
          %p451 = pneg %p215
        $region38: #{tpu_custom_call.1} parent=11 // pred_check_branch
          %453 = sbr.rel (%p451) target = $region40
        $region39: #{tpu_custom_call.1} parent=11 // pred_region
          _
        $region40: #{tpu_custom_call.1} parent=11 // pred_fallthru
          _
        // Predicated region
        $region41: #{tpu_custom_call.1} parent=11 // pred_check
          %p454 = pneg %p236
        $region42: #{tpu_custom_call.1} parent=11 // pred_check_branch
          %456 = sbr.rel (%p454) target = $region44
        $region43: #{tpu_custom_call.1} parent=11 // pred_region
          _
        $region44: #{tpu_custom_call.1} parent=11 // pred_fallthru
          _
        // Predicated region
        $region45: #{tpu_custom_call.1} parent=11 // pred_check
          %p457 = pneg %p257
        $region46: #{tpu_custom_call.1} parent=11 // pred_check_branch
          %459 = sbr.rel (%p457) target = $region48
        $region47: #{tpu_custom_call.1} parent=11 // pred_region
          %s461 = ssub.s32 8192, 8192
          %462 = vsyncadd [#allocation9], %s461
          %s463 = sshll.u32 [#allocation10], 4
          %s464 = int_to_ptr.vmem [resolvable:$true] %s463
          %469 = dma.hbm_to_vmem [thread:$0]  %s9, 8192, %s464, [#allocation9], 256, 256, 16
        $region48: #{tpu_custom_call.1} parent=11 // pred_fallthru
          _
        // Predicated region
        $region49: #{tpu_custom_call.1} parent=11 // pred_check
          %p470 = pneg %p278
        $region50: #{tpu_custom_call.1} parent=11 // pred_check_branch
          %472 = sbr.rel (%p470) target = $region52
        $region51: #{tpu_custom_call.1} parent=11 // pred_region
          _
        $region52: #{tpu_custom_call.1} parent=11 // pred_fallthru
          _
        // Predicated region
        $region53: #{tpu_custom_call.1} parent=11 // pred_check
          %p473 = pneg %p299
        $region54: #{tpu_custom_call.1} parent=11 // pred_check_branch
          %475 = sbr.rel (%p473) target = $region56
        $region55: #{tpu_custom_call.1} parent=11 // pred_region
          %s477 = ssub.s32 8192, 8192
          %478 = vsyncadd [#allocation12], %s477
          %s479 = sshll.u32 [#allocation11], 4
          %s480 = int_to_ptr.vmem [resolvable:$true] %s479
          %485 = dma.hbm_to_vmem [thread:$0]  %s11, 8192, %s480, [#allocation12], 64, 64, 4
        $region56: #{tpu_custom_call.1} parent=11 // pred_fallthru
          _
        // Predicated region
        $region57: #{tpu_custom_call.1} parent=11 // pred_check
          %p486 = pneg %p320
        $region58: #{tpu_custom_call.1} parent=11 // pred_check_branch
          %488 = sbr.rel (%p486) target = $region60
        $region59: #{tpu_custom_call.1} parent=11 // pred_region
          _
        $region60: #{tpu_custom_call.1} parent=11 // pred_fallthru
          _
        // Predicated region
        $region61: #{tpu_custom_call.1} parent=11 // pred_check
          %p489 = pneg %p341
        $region62: #{tpu_custom_call.1} parent=11 // pred_check_branch
          %491 = sbr.rel (%p489) target = $region64
        $region63: #{tpu_custom_call.1} parent=11 // pred_region
          _
        $region64: #{tpu_custom_call.1} parent=11 // pred_fallthru
          _
        // Predicated region
        $region65: #{tpu_custom_call.1} parent=11 // pred_check
          %p492 = pneg %p362
        $region66: #{tpu_custom_call.1} parent=11 // pred_check_branch
          %494 = sbr.rel (%p492) target = $region68
        $region67: #{tpu_custom_call.1} parent=11 // pred_region
          _
        $region68: #{tpu_custom_call.1} parent=11 // pred_fallthru
          _
      $region12: #{tpu_custom_call.1} parent=5 // pred_fallthru
        _
      %p495 = scmp.lt.s32.totalorder %s30, 4
      // Predicated region
      $region69: #{tpu_custom_call.1} parent=5 // pred_check
        %p496 = pneg %p495
      $region70: #{tpu_custom_call.1} parent=5 // pred_check_branch
        %498 = sbr.rel (%p496) target = $region72
      $region71: #{tpu_custom_call.1} parent=5 // pred_region
        // Predicated region
        $region73: #{tpu_custom_call.1} parent=71 // pred_check
          %p499 = pneg %p62
        $region74: #{tpu_custom_call.1} parent=71 // pred_check_branch
          %501 = sbr.rel (%p499) target = $region76
        $region75: #{tpu_custom_call.1} parent=71 // pred_region
          %s502 = sand.u32 %s52, 1
          %s503 = scalar_lea.sflag [#allocation3], %s502
          %s504 = sand.u32 %s52, 1
          %s505 = smul.addr %s504, 128
          %s506 = scalar_lea.vmem [#allocation2], %s505
          %s507 = smul.u32 16, %s37
          %s509 = ssub.s32 2048, 2048
          %510 = vsyncadd %s503, %s509
          %s511 = smul.addr %s507, 128
          %s512 = scalar_lea.hbm %s0, %s511
          %s513 = sshll.u32 %s506, 4
          %s514 = int_to_ptr.vmem [resolvable:$true] %s513
          %519 = dma.hbm_to_vmem [thread:$0]  %s512, 2048, %s514, %s503, 128, 128, 8
        $region76: #{tpu_custom_call.1} parent=71 // pred_fallthru
          _
      $region72: #{tpu_custom_call.1} parent=5 // pred_fallthru
        _
      %p520 = scmp.le.s32.totalorder 1, %s30
      %p521 = scmp.lt.s32.totalorder %s30, 5
      %p522 = pnand %p520, %p521
      %p523 = pneg %p522
      // Predicated region
      $region77: #{tpu_custom_call.1} parent=5 // pred_check
        _
      $region78: #{tpu_custom_call.1} parent=5 // pred_check_branch
        %525 = sbr.rel (%p522) target = $region80
      $region79: #{tpu_custom_call.1} parent=5 // pred_region
        %s526 = ssub.s32 %s30, 1
        %s527 = sand.u32 %s55, 1
        %s528 = scalar_lea.sflag [#allocation3], %s527
        %s529 = sand.u32 %s55, 1
        %s530 = smul.addr %s529, 128
        %s531 = scalar_lea.vmem [#allocation2], %s530
        // Predicated region
        $region81: #{tpu_custom_call.1} parent=79 // pred_check
          %p532 = pneg %p68
        $region82: #{tpu_custom_call.1} parent=79 // pred_check_branch
          %534 = sbr.rel (%p532) target = $region84
        $region83: #{tpu_custom_call.1} parent=79 // pred_region
          %535 = dma.done %s528, 2048
        $region84: #{tpu_custom_call.1} parent=79 // pred_fallthru
          _
        // Predicated region
        $region85: #{tpu_custom_call.1} parent=79 // pred_check
          %p536 = pneg %p89
        $region86: #{tpu_custom_call.1} parent=79 // pred_check_branch
          %538 = sbr.rel (%p536) target = $region88
        $region87: #{tpu_custom_call.1} parent=79 // pred_region
          %539 = dma.done [#allocation6], 6144
        $region88: #{tpu_custom_call.1} parent=79 // pred_fallthru
          _
        // Predicated region
        $region89: #{tpu_custom_call.1} parent=79 // pred_check
          %p540 = pneg %p131
        $region90: #{tpu_custom_call.1} parent=79 // pred_check_branch
          %542 = sbr.rel (%p540) target = $region92
        $region91: #{tpu_custom_call.1} parent=79 // pred_region
          %543 = dma.done [#allocation6], 2048
        $region92: #{tpu_custom_call.1} parent=79 // pred_fallthru
          _
        // Predicated region
        $region93: #{tpu_custom_call.1} parent=79 // pred_check
          %p544 = pneg %p152
        $region94: #{tpu_custom_call.1} parent=79 // pred_check_branch
          %546 = sbr.rel (%p544) target = $region96
        $region95: #{tpu_custom_call.1} parent=79 // pred_region
          %547 = dma.done [#allocation9], 32
        $region96: #{tpu_custom_call.1} parent=79 // pred_fallthru
          _
        // Predicated region
        $region97: #{tpu_custom_call.1} parent=79 // pred_check
          %p548 = pneg %p257
        $region98: #{tpu_custom_call.1} parent=79 // pred_check_branch
          %550 = sbr.rel (%p548) target = $region100
        $region99: #{tpu_custom_call.1} parent=79 // pred_region
          %551 = dma.done [#allocation9], 8192
        $region100: #{tpu_custom_call.1} parent=79 // pred_fallthru
          _
        // Predicated region
        $region101: #{tpu_custom_call.1} parent=79 // pred_check
          %p552 = pneg %p299
        $region102: #{tpu_custom_call.1} parent=79 // pred_check_branch
          %554 = sbr.rel (%p552) target = $region104
        $region103: #{tpu_custom_call.1} parent=79 // pred_region
          %555 = dma.done [#allocation12], 8192
        $region104: #{tpu_custom_call.1} parent=79 // pred_fallthru
          _
        %s556 = sand.u32 %s55, 1
        %s557 = scalar_lea.sflag [#allocation3], %s556
        %s558 = sand.u32 %s55, 1
        %s559 = smul.addr %s558, 128
        %s560 = scalar_lea.vmem [#allocation2], %s559
        %p561 = pneg %p68
        %p562 = pneg %p65
        %p563 = pneg %p89
        %p564 = pneg %p86
        %p565 = pneg %p110
        %p566 = pneg %p107
        %p567 = pneg %p131
        %p568 = pneg %p128
        %p569 = pneg %p152
        %p570 = pneg %p149
        %p571 = pneg %p173
        %p572 = pneg %p170
        %p573 = pneg %p194
        %p574 = pneg %p191
        %p575 = pneg %p215
        %p576 = pneg %p212
        %p577 = pneg %p236
        %p578 = pneg %p233
        %p579 = pneg %p257
        %p580 = pneg %p254
        %p581 = pneg %p278
        %p582 = pneg %p275
        %p583 = pneg %p299
        %p584 = pneg %p296
        %p585 = pneg %p320
        %p586 = pneg %p317
        %p587 = pneg %p341
        %p588 = pneg %p338
        %p589 = pneg %p362
        %p590 = pneg %p359
        %p591 = pneg %p388
        %p592 = pneg %p385
        %s593 = sand.u32 %s375, 1
        %s594 = scalar_lea.sflag [#allocation4], %s593
        %s595 = sand.u32 %s375, 1
        %s596 = smul.addr %s595, 128
        %s597 = scalar_lea.vmem [#allocation13], %s596
        %s598 = smul.u32 16, %s39
        %s599 = smul.u32 16, %s39
        %p601 = scmp.eq.s32.totalorder %s40, 0
        // Predicated region
        $region105: #{tpu_custom_call.1} parent=79 // pred_check
          %p602 = pneg %p601
        $region106: #{tpu_custom_call.1} parent=79 // pred_check_branch
          %604 = sbr.rel (%p602) target = $region108
        $region107: #{tpu_custom_call.1} parent=79 // pred_region
          %v605 = vld [vmem:[%s531] sm:$0xff]
          %v606 = vld [vmem:[%s531 + $0x8] sm:$0xff]
          %v607 = vld [vmem:[%s531 + $0x10] sm:$0xff]
          %v608 = vld [vmem:[%s531 + $0x18] sm:$0xff]
          %v609 = vld [vmem:[%s531 + $0x20] sm:$0xff]
          %v610 = vld [vmem:[%s531 + $0x28] sm:$0xff]
          %v611 = vld [vmem:[%s531 + $0x30] sm:$0xff]
          %v612 = vld [vmem:[%s531 + $0x38] sm:$0xff]
          %v613 = vld [vmem:[%s531 + $0x40] sm:$0xff]
          %v614 = vld [vmem:[%s531 + $0x48] sm:$0xff]
          %v615 = vld [vmem:[%s531 + $0x50] sm:$0xff]
          %v616 = vld [vmem:[%s531 + $0x58] sm:$0xff]
          %v617 = vld [vmem:[%s531 + $0x60] sm:$0xff]
          %v618 = vld [vmem:[%s531 + $0x68] sm:$0xff]
          %v619 = vld [vmem:[%s531 + $0x70] sm:$0xff]
          %v620 = vld [vmem:[%s531 + $0x78] sm:$0xff]
          %621 = vst [vmem:[%s597] sm:$0xff] %v605
          %622 = vst [vmem:[%s597 + $0x8] sm:$0xff] %v606
          %623 = vst [vmem:[%s597 + $0x10] sm:$0xff] %v607
          %624 = vst [vmem:[%s597 + $0x18] sm:$0xff] %v608
          %625 = vst [vmem:[%s597 + $0x20] sm:$0xff] %v609
          %626 = vst [vmem:[%s597 + $0x28] sm:$0xff] %v610
          %627 = vst [vmem:[%s597 + $0x30] sm:$0xff] %v611
          %628 = vst [vmem:[%s597 + $0x38] sm:$0xff] %v612
          %629 = vst [vmem:[%s597 + $0x40] sm:$0xff] %v613
          %630 = vst [vmem:[%s597 + $0x48] sm:$0xff] %v614
          %631 = vst [vmem:[%s597 + $0x50] sm:$0xff] %v615
          %632 = vst [vmem:[%s597 + $0x58] sm:$0xff] %v616
          %633 = vst [vmem:[%s597 + $0x60] sm:$0xff] %v617
          %634 = vst [vmem:[%s597 + $0x68] sm:$0xff] %v618
          %635 = vst [vmem:[%s597 + $0x70] sm:$0xff] %v619
          %636 = vst [vmem:[%s597 + $0x78] sm:$0xff] %v620
        $region108: #{tpu_custom_call.1} parent=79 // pred_fallthru
          _
        %v637 = vld [vmem:[%s597] sm:$0xff]
        %v638 = vld [vmem:[%s597 + $0x8] sm:$0xff]
        %v639 = vld [vmem:[%s597 + $0x10] sm:$0xff]
        %v640 = vld [vmem:[%s597 + $0x18] sm:$0xff]
        %v641 = vld [vmem:[%s597 + $0x20] sm:$0xff]
        %v642 = vld [vmem:[%s597 + $0x28] sm:$0xff]
        %v643 = vld [vmem:[%s597 + $0x30] sm:$0xff]
        %v644 = vld [vmem:[%s597 + $0x38] sm:$0xff]
        %v645 = vld [vmem:[%s597 + $0x40] sm:$0xff]
        %v646 = vld [vmem:[%s597 + $0x48] sm:$0xff]
        %v647 = vld [vmem:[%s597 + $0x50] sm:$0xff]
        %v648 = vld [vmem:[%s597 + $0x58] sm:$0xff]
        %v649 = vld [vmem:[%s597 + $0x60] sm:$0xff]
        %v650 = vld [vmem:[%s597 + $0x68] sm:$0xff]
        %v651 = vld [vmem:[%s597 + $0x70] sm:$0xff]
        %v652 = vld [vmem:[%s597 + $0x78] sm:$0xff]
        %v653 = vlaneseq
        %v654 = vshrl.u32 %v653, 7
        %v655 = vadd.s32 %v654, 8
        %v656 = vadd.s32 %v654, 16
        %v657 = vadd.s32 %v654, 24
        %v658 = vlaneseq
        %v659 = vand.u32 %v658, 127
        %vm660 = vcmp.gt.s32.totalorder %v659, %v654
        %vm661 = vcmp.gt.s32.totalorder %v659, %v655
        %vm662 = vcmp.gt.s32.totalorder %v659, %v656
        %vm663 = vcmp.gt.s32.totalorder %v659, %v657
        %v664 = vsel %vm660, -1e+30, 0.0
        %v665 = vsel %vm661, -1e+30, 0.0
        %v666 = vsel %vm662, -1e+30, 0.0
        %v667 = vsel %vm663, -1e+30, 0.0
        %s668 = scalar_lea.vmem %s5, %s40
        %v669 = vld [vmem:[%s668] sm:$0x1]
        %s670 = scalar_lea.vmem %s6, %s40
        %v671 = vld [vmem:[%s670] sm:$0x1]
        %672 = vadd.xlane.f32.xlu0 %v637
        %v673 = vpop.xlane.xlu0 %672
        %674 = vadd.xlane.f32.xlu0 %v638
        %v675 = vpop.xlane.xlu0 %674
        %676 = vadd.xlane.f32.xlu0 %v639
        %v677 = vpop.xlane.xlu0 %676
        %678 = vadd.xlane.f32.xlu0 %v640
        %v679 = vpop.xlane.xlu0 %678
        %680 = vadd.xlane.f32.xlu0 %v641
        %v681 = vpop.xlane.xlu0 %680
        %682 = vadd.xlane.f32.xlu0 %v642
        %v683 = vpop.xlane.xlu0 %682
        %684 = vadd.xlane.f32.xlu0 %v643
        %v685 = vpop.xlane.xlu0 %684
        %686 = vadd.xlane.f32.xlu0 %v644
        %v687 = vpop.xlane.xlu0 %686
        %688 = vadd.xlane.f32.xlu0 %v645
        %v689 = vpop.xlane.xlu0 %688
        %690 = vadd.xlane.f32.xlu0 %v646
        %v691 = vpop.xlane.xlu0 %690
        %692 = vadd.xlane.f32.xlu0 %v647
        %v693 = vpop.xlane.xlu0 %692
        %694 = vadd.xlane.f32.xlu0 %v648
        %v695 = vpop.xlane.xlu0 %694
        %696 = vadd.xlane.f32.xlu0 %v649
        %v697 = vpop.xlane.xlu0 %696
        %698 = vadd.xlane.f32.xlu0 %v650
        %v699 = vpop.xlane.xlu0 %698
        %700 = vadd.xlane.f32.xlu0 %v651
        %v701 = vpop.xlane.xlu0 %700
        %702 = vadd.xlane.f32.xlu0 %v652
        %v703 = vpop.xlane.xlu0 %702
        %v704 = vrcp.pop 128.0
        %v705 = vmul.f32 %v673, %v704
        %v706 = vmul.f32 %v675, %v704
        %v707 = vmul.f32 %v677, %v704
        %v708 = vmul.f32 %v679, %v704
        %v709 = vmul.f32 %v681, %v704
        %v710 = vmul.f32 %v683, %v704
        %v711 = vmul.f32 %v685, %v704
        %v712 = vmul.f32 %v687, %v704
        %v713 = vmul.f32 %v689, %v704
        %v714 = vmul.f32 %v691, %v704
        %v715 = vmul.f32 %v693, %v704
        %v716 = vmul.f32 %v695, %v704
        %v717 = vmul.f32 %v697, %v704
        %v718 = vmul.f32 %v699, %v704
        %v719 = vmul.f32 %v701, %v704
        %v720 = vmul.f32 %v703, %v704
        %v721 = vsub.f32 %v637, %v705
        %v722 = vsub.f32 %v638, %v706
        %v723 = vsub.f32 %v639, %v707
        %v724 = vsub.f32 %v640, %v708
        %v725 = vsub.f32 %v641, %v709
        %v726 = vsub.f32 %v642, %v710
        %v727 = vsub.f32 %v643, %v711
        %v728 = vsub.f32 %v644, %v712
        %v729 = vsub.f32 %v645, %v713
        %v730 = vsub.f32 %v646, %v714
        %v731 = vsub.f32 %v647, %v715
        %v732 = vsub.f32 %v648, %v716
        %v733 = vsub.f32 %v649, %v717
        %v734 = vsub.f32 %v650, %v718
        %v735 = vsub.f32 %v651, %v719
        %v736 = vsub.f32 %v652, %v720
        %v737 = vmul.f32 %v721, %v721
        %v738 = vmul.f32 %v722, %v722
        %v739 = vmul.f32 %v723, %v723
        %v740 = vmul.f32 %v724, %v724
        %v741 = vmul.f32 %v725, %v725
        %v742 = vmul.f32 %v726, %v726
        %v743 = vmul.f32 %v727, %v727
        %v744 = vmul.f32 %v728, %v728
        %v745 = vmul.f32 %v729, %v729
        %v746 = vmul.f32 %v730, %v730
        %v747 = vmul.f32 %v731, %v731
        %v748 = vmul.f32 %v732, %v732
        %v749 = vmul.f32 %v733, %v733
        %v750 = vmul.f32 %v734, %v734
        %v751 = vmul.f32 %v735, %v735
        %v752 = vmul.f32 %v736, %v736
        %753 = vadd.xlane.f32.xlu0 %v737
        %v754 = vpop.xlane.xlu0 %753
        %755 = vadd.xlane.f32.xlu0 %v738
        %v756 = vpop.xlane.xlu0 %755
        %757 = vadd.xlane.f32.xlu0 %v739
        %v758 = vpop.xlane.xlu0 %757
        %759 = vadd.xlane.f32.xlu0 %v740
        %v760 = vpop.xlane.xlu0 %759
        %761 = vadd.xlane.f32.xlu0 %v741
        %v762 = vpop.xlane.xlu0 %761
        %763 = vadd.xlane.f32.xlu0 %v742
        %v764 = vpop.xlane.xlu0 %763
        %765 = vadd.xlane.f32.xlu0 %v743
        %v766 = vpop.xlane.xlu0 %765
        %767 = vadd.xlane.f32.xlu0 %v744
        %v768 = vpop.xlane.xlu0 %767
        %769 = vadd.xlane.f32.xlu0 %v745
        %v770 = vpop.xlane.xlu0 %769
        %771 = vadd.xlane.f32.xlu0 %v746
        %v772 = vpop.xlane.xlu0 %771
        %773 = vadd.xlane.f32.xlu0 %v747
        %v774 = vpop.xlane.xlu0 %773
        %775 = vadd.xlane.f32.xlu0 %v748
        %v776 = vpop.xlane.xlu0 %775
        %777 = vadd.xlane.f32.xlu0 %v749
        %v778 = vpop.xlane.xlu0 %777
        %779 = vadd.xlane.f32.xlu0 %v750
        %v780 = vpop.xlane.xlu0 %779
        %781 = vadd.xlane.f32.xlu0 %v751
        %v782 = vpop.xlane.xlu0 %781
        %783 = vadd.xlane.f32.xlu0 %v752
        %v784 = vpop.xlane.xlu0 %783
        %v785 = vmul.f32 %v754, %v704
        %v786 = vmul.f32 %v756, %v704
        %v787 = vmul.f32 %v758, %v704
        %v788 = vmul.f32 %v760, %v704
        %v789 = vmul.f32 %v762, %v704
        %v790 = vmul.f32 %v764, %v704
        %v791 = vmul.f32 %v766, %v704
        %v792 = vmul.f32 %v768, %v704
        %v793 = vmul.f32 %v770, %v704
        %v794 = vmul.f32 %v772, %v704
        %v795 = vmul.f32 %v774, %v704
        %v796 = vmul.f32 %v776, %v704
        %v797 = vmul.f32 %v778, %v704
        %v798 = vmul.f32 %v780, %v704
        %v799 = vmul.f32 %v782, %v704
        %v800 = vmul.f32 %v784, %v704
        %v801 = vadd.f32 %v785, 1e-05
        %v802 = vadd.f32 %v786, 1e-05
        %v803 = vadd.f32 %v787, 1e-05
        %v804 = vadd.f32 %v788, 1e-05
        %v805 = vadd.f32 %v789, 1e-05
        %v806 = vadd.f32 %v790, 1e-05
        %v807 = vadd.f32 %v791, 1e-05
        %v808 = vadd.f32 %v792, 1e-05
        %v809 = vadd.f32 %v793, 1e-05
        %v810 = vadd.f32 %v794, 1e-05
        %v811 = vadd.f32 %v795, 1e-05
        %v812 = vadd.f32 %v796, 1e-05
        %v813 = vadd.f32 %v797, 1e-05
        %v814 = vadd.f32 %v798, 1e-05
        %v815 = vadd.f32 %v799, 1e-05
        %v816 = vadd.f32 %v800, 1e-05
        %v817 = vrsqrt.pop %v801
        %v818 = vrsqrt.pop %v802
        %v819 = vrsqrt.pop %v803
        %v820 = vrsqrt.pop %v804
        %v821 = vrsqrt.pop %v805
        %v822 = vrsqrt.pop %v806
        %v823 = vrsqrt.pop %v807
        %v824 = vrsqrt.pop %v808
        %v825 = vrsqrt.pop %v809
        %v826 = vrsqrt.pop %v810
        %v827 = vrsqrt.pop %v811
        %v828 = vrsqrt.pop %v812
        %v829 = vrsqrt.pop %v813
        %v830 = vrsqrt.pop %v814
        %v831 = vrsqrt.pop %v815
        %v832 = vrsqrt.pop %v816
        %v833 = vmul.f32 %v721, %v817
        %v834 = vmul.f32 %v722, %v818
        %v835 = vmul.f32 %v723, %v819
        %v836 = vmul.f32 %v724, %v820
        %v837 = vmul.f32 %v725, %v821
        %v838 = vmul.f32 %v726, %v822
        %v839 = vmul.f32 %v727, %v823
        %v840 = vmul.f32 %v728, %v824
        %v841 = vmul.f32 %v729, %v825
        %v842 = vmul.f32 %v730, %v826
        %v843 = vmul.f32 %v731, %v827
        %v844 = vmul.f32 %v732, %v828
        %v845 = vmul.f32 %v733, %v829
        %v846 = vmul.f32 %v734, %v830
        %v847 = vmul.f32 %v735, %v831
        %v848 = vmul.f32 %v736, %v832
        %v850 = vlaneseq
        %v851 = vshrl.u32 %v850, 7
        %v852 = vsub.s32 0, %v851
        %v853 = vrot.slane %v669, %v852
        %v855 = vmul.f32 %v833, %v853
        %v856 = vmul.f32 %v834, %v853
        %v857 = vmul.f32 %v835, %v853
        %v858 = vmul.f32 %v836, %v853
        %v859 = vmul.f32 %v837, %v853
        %v860 = vmul.f32 %v838, %v853
        %v861 = vmul.f32 %v839, %v853
        %v862 = vmul.f32 %v840, %v853
        %v863 = vmul.f32 %v841, %v853
        %v864 = vmul.f32 %v842, %v853
        %v865 = vmul.f32 %v843, %v853
        %v866 = vmul.f32 %v844, %v853
        %v867 = vmul.f32 %v845, %v853
        %v868 = vmul.f32 %v846, %v853
        %v869 = vmul.f32 %v847, %v853
        %v870 = vmul.f32 %v848, %v853
        %v872 = vlaneseq
        %v873 = vshrl.u32 %v872, 7
        %v874 = vsub.s32 0, %v873
        %v875 = vrot.slane %v671, %v874
        %v877 = vadd.f32 %v855, %v875
        %v878 = vadd.f32 %v856, %v875
        %v879 = vadd.f32 %v857, %v875
        %v880 = vadd.f32 %v858, %v875
        %v881 = vadd.f32 %v859, %v875
        %v882 = vadd.f32 %v860, %v875
        %v883 = vadd.f32 %v861, %v875
        %v884 = vadd.f32 %v862, %v875
        %v885 = vadd.f32 %v863, %v875
        %v886 = vadd.f32 %v864, %v875
        %v887 = vadd.f32 %v865, %v875
        %v888 = vadd.f32 %v866, %v875
        %v889 = vadd.f32 %v867, %v875
        %v890 = vadd.f32 %v868, %v875
        %v891 = vadd.f32 %v869, %v875
        %v892 = vadd.f32 %v870, %v875
        %v893 = vpack.c.bf16 %v878, %v877
        %v894 = vpack.c.bf16 %v880, %v879
        %v895 = vpack.c.bf16 %v882, %v881
        %v896 = vpack.c.bf16 %v884, %v883
        %v897 = vpack.c.bf16 %v886, %v885
        %v898 = vpack.c.bf16 %v888, %v887
        %v899 = vpack.c.bf16 %v890, %v889
        %v900 = vpack.c.bf16 %v892, %v891
        %s901 = smul.u32 %s40, 48
        %s902 = smul.addr %s901, 4
        %s903 = scalar_lea.vmem [#allocation5], %s902
        %v904 = vld [vmem:[%s903] sm:$0xff]
        %v905 = vld [vmem:[%s903 + $0x8] sm:$0xf]
        %v906 = vld [vmem:[%s903 + $0xc] sm:$0xff]
        %v907 = vld [vmem:[%s903 + $0x14] sm:$0xf]
        %v908 = vld [vmem:[%s903 + $0x18] sm:$0xff]
        %v909 = vld [vmem:[%s903 + $0x20] sm:$0xf]
        %v910 = vld [vmem:[%s903 + $0x24] sm:$0xff]
        %v911 = vld [vmem:[%s903 + $0x2c] sm:$0xf]
        %v912 = vld [vmem:[%s903 + $0x30] sm:$0xff]
        %v913 = vld [vmem:[%s903 + $0x38] sm:$0xf]
        %v914 = vld [vmem:[%s903 + $0x3c] sm:$0xff]
        %v915 = vld [vmem:[%s903 + $0x44] sm:$0xf]
        %v916 = vld [vmem:[%s903 + $0x48] sm:$0xff]
        %v917 = vld [vmem:[%s903 + $0x50] sm:$0xf]
        %v918 = vld [vmem:[%s903 + $0x54] sm:$0xff]
        %v919 = vld [vmem:[%s903 + $0x5c] sm:$0xf]
        %v920 = vld [vmem:[%s903 + $0x60] sm:$0xff]
        %v921 = vld [vmem:[%s903 + $0x68] sm:$0xf]
        %v922 = vld [vmem:[%s903 + $0x6c] sm:$0xff]
        %v923 = vld [vmem:[%s903 + $0x74] sm:$0xf]
        %v924 = vld [vmem:[%s903 + $0x78] sm:$0xff]
        %v925 = vld [vmem:[%s903 + $0x80] sm:$0xf]
        %v926 = vld [vmem:[%s903 + $0x84] sm:$0xff]
        %v927 = vld [vmem:[%s903 + $0x8c] sm:$0xf]
        %v928 = vld [vmem:[%s903 + $0x90] sm:$0xff]
        %v929 = vld [vmem:[%s903 + $0x98] sm:$0xf]
        %v930 = vld [vmem:[%s903 + $0x9c] sm:$0xff]
        %v931 = vld [vmem:[%s903 + $0xa4] sm:$0xf]
        %v932 = vld [vmem:[%s903 + $0xa8] sm:$0xff]
        %v933 = vld [vmem:[%s903 + $0xb0] sm:$0xf]
        %v934 = vld [vmem:[%s903 + $0xb4] sm:$0xff]
        %v935 = vld [vmem:[%s903 + $0xbc] sm:$0xf]
        %s936 = smul.u32 %s40, 3
        %s937 = scalar_lea.vmem %s2, %s936
        %v938 = vld [vmem:[%s937] sm:$0x7]
        %v940 = vlaneseq
        %v941 = vshrl.u32 %v940, 7
        %v942 = vsub.s32 0, %v941
        %v943 = vrot.slane %v938, %v942
        %v944 = vlaneseq
        %v945 = vshrl.u32 %v944, 7
        %v946 = vsub.s32 1, %v945
        %v947 = vrot.slane %v938, %v946
        %v948 = vlaneseq
        %v949 = vshrl.u32 %v948, 7
        %v950 = vsub.s32 2, %v949
        %v951 = vrot.slane %v938, %v950
        %v987 = vunpack.c.l.b16 %v904
        %v988 = vunpack.c.h.b16 %v904
        %v989 = vunpack.c.l.b16 %v905
        %v990 = vunpack.c.l.b16 %v906
        %v991 = vunpack.c.h.b16 %v906
        %v992 = vunpack.c.l.b16 %v907
        %v993 = vunpack.c.l.b16 %v908
        %v994 = vunpack.c.h.b16 %v908
        %v995 = vunpack.c.l.b16 %v909
        %v996 = vunpack.c.l.b16 %v910
        %v997 = vunpack.c.h.b16 %v910
        %v998 = vunpack.c.l.b16 %v911
        %v999 = vunpack.c.l.b16 %v912
        %v1000 = vunpack.c.h.b16 %v912
        %v1001 = vunpack.c.l.b16 %v913
        %v1002 = vunpack.c.l.b16 %v914
        %v1003 = vunpack.c.h.b16 %v914
        %v1004 = vunpack.c.l.b16 %v915
        %v1005 = vunpack.c.l.b16 %v916
        %v1006 = vunpack.c.h.b16 %v916
        %v1007 = vunpack.c.l.b16 %v917
        %v1008 = vunpack.c.l.b16 %v918
        %v1009 = vunpack.c.h.b16 %v918
        %v1010 = vunpack.c.l.b16 %v919
        %v1011 = vunpack.c.l.b16 %v920
        %v1012 = vunpack.c.h.b16 %v920
        %v1013 = vunpack.c.l.b16 %v921
        %v1014 = vunpack.c.l.b16 %v922
        %v1015 = vunpack.c.h.b16 %v922
        %v1016 = vunpack.c.l.b16 %v923
        %v1017 = vunpack.c.l.b16 %v924
        %v1018 = vunpack.c.h.b16 %v924
        %v1019 = vunpack.c.l.b16 %v925
        %v1020 = vunpack.c.l.b16 %v926
        %v1021 = vunpack.c.h.b16 %v926
        %v1022 = vunpack.c.l.b16 %v927
        %v1023 = vunpack.c.l.b16 %v928
        %v1024 = vunpack.c.h.b16 %v928
        %v1025 = vunpack.c.l.b16 %v929
        %v1026 = vunpack.c.l.b16 %v930
        %v1027 = vunpack.c.h.b16 %v930
        %v1028 = vunpack.c.l.b16 %v931
        %v1029 = vunpack.c.l.b16 %v932
        %v1030 = vunpack.c.h.b16 %v932
        %v1031 = vunpack.c.l.b16 %v933
        %v1032 = vunpack.c.l.b16 %v934
        %v1033 = vunpack.c.h.b16 %v934
        %v1034 = vunpack.c.l.b16 %v935
        %v1035 = vpack.c.b16 %v990, %v987
        %v1036 = vpack.c.b16 %v991, %v988
        %v1037 = vpack.c.b16 %v992, %v989
        %v1038 = vpack.c.b16 %v996, %v993
        %v1039 = vpack.c.b16 %v997, %v994
        %v1040 = vpack.c.b16 %v998, %v995
        %v1041 = vpack.c.b16 %v1002, %v999
        %v1042 = vpack.c.b16 %v1003, %v1000
        %v1043 = vpack.c.b16 %v1004, %v1001
        %v1044 = vpack.c.b16 %v1008, %v1005
        %v1045 = vpack.c.b16 %v1009, %v1006
        %v1046 = vpack.c.b16 %v1010, %v1007
        %v1047 = vpack.c.b16 %v1014, %v1011
        %v1048 = vpack.c.b16 %v1015, %v1012
        %v1049 = vpack.c.b16 %v1016, %v1013
        %v1050 = vpack.c.b16 %v1020, %v1017
        %v1051 = vpack.c.b16 %v1021, %v1018
        %v1052 = vpack.c.b16 %v1022, %v1019
        %v1053 = vpack.c.b16 %v1026, %v1023
        %v1054 = vpack.c.b16 %v1027, %v1024
        %v1055 = vpack.c.b16 %v1028, %v1025
        %v1056 = vpack.c.b16 %v1032, %v1029
        %v1057 = vpack.c.b16 %v1033, %v1030
        %v1058 = vpack.c.b16 %v1034, %v1031
        %1083 = vmatprep.subr.bf16.mxu0 %v1036
        %1084 = vmatpush1.bf16.msra.mxu0 %v1035
        %1085 = vmatprep.subr.bf16.mxu0 %v1039
        %1086 = vmatpush1.bf16.msra.mxu0 %v1038
        %1087 = vmatprep.subr.bf16.mxu0 %v1042
        %1088 = vmatpush1.bf16.msra.mxu0 %v1041
        %1089 = vmatprep.subr.bf16.mxu0 %v1045
        %1090 = vmatpush1.bf16.msra.mxu0 %v1044
        %1091 = vmatprep.subr.bf16.mxu0 %v1048
        %1092 = vmatpush1.bf16.msra.mxu0 %v1047
        %1093 = vmatprep.subr.bf16.mxu0 %v1051
        %1094 = vmatpush1.bf16.msra.mxu0 %v1050
        %1095 = vmatprep.subr.bf16.mxu0 %v1054
        %1096 = vmatpush1.bf16.msra.mxu0 %v1053
        %1097 = vmatprep.subr.bf16.mxu0 %v1057
        %1098 = vmatpush1.bf16.msra.mxu0 %v1056
        %1099 = vmatprep.subr.bf16.mxu0 0
        %1100 = vmatpush1.bf16.msra.mxu0 0
        %1101 = vmatprep.subr.bf16.mxu0 0
        %1102 = vmatpush1.bf16.msra.mxu0 0
        %1103 = vmatprep.subr.bf16.mxu0 0
        %1104 = vmatpush1.bf16.msra.mxu0 0
        %1105 = vmatprep.subr.bf16.mxu0 0
        %1106 = vmatpush1.bf16.msra.mxu0 0
        %1107 = vmatprep.subr.bf16.mxu0 0
        %1108 = vmatpush1.bf16.msra.mxu0 0
        %1109 = vmatprep.subr.bf16.mxu0 0
        %1110 = vmatpush1.bf16.msra.mxu0 0
        %1111 = vmatprep.subr.bf16.mxu0 0
        %1112 = vmatpush1.bf16.msra.mxu0 0
        %1113 = vmatprep.subr.bf16.mxu0 0
        %1114 = vmatpush1.bf16.msra.mxu0 0
        %1115 = vmatprep.mubr.bf16.mxu0 0
        %1116 = vmatmul.mubr.bf16.gmra.mrb[0].mxu0 %v893
        %v1117 = vpop.f32.mrb[0].mxu0
        %v1118 = vadd.f32 %v943, %v1117
        %v1119 = vpop.f32.mrb[0].mxu0
        %v1120 = vadd.f32 %v947, %v1119
        %v1121 = vpop.f32.mrb[0].mxu0
        %v1122 = vadd.f32 %v943, %v1121
        %v1123 = vpop.f32.mrb[0].mxu0
        %v1124 = vadd.f32 %v947, %v1123
        %1125 = vmatprep.mubr.bf16.mxu0 0
        %1126 = vmatmul.mubr.bf16.gmra.mrb[0].mxu0 %v894
        %v1127 = vpop.f32.mrb[0].mxu0
        %v1128 = vadd.f32 %v943, %v1127
        %v1129 = vpop.f32.mrb[0].mxu0
        %v1130 = vadd.f32 %v947, %v1129
        %v1131 = vpop.f32.mrb[0].mxu0
        %v1132 = vadd.f32 %v943, %v1131
        %v1133 = vpop.f32.mrb[0].mxu0
        %v1134 = vadd.f32 %v947, %v1133
        %1135 = vmatprep.mubr.bf16.mxu0 0
        %1136 = vmatmul.mubr.bf16.gmra.mrb[0].mxu0 %v895
        %v1137 = vpop.f32.mrb[0].mxu0
        %v1138 = vadd.f32 %v943, %v1137
        %v1139 = vpop.f32.mrb[0].mxu0
        %v1140 = vadd.f32 %v947, %v1139
        %v1141 = vpop.f32.mrb[0].mxu0
        %v1142 = vadd.f32 %v943, %v1141
        %v1143 = vpop.f32.mrb[0].mxu0
        %v1144 = vadd.f32 %v947, %v1143
        %1145 = vmatprep.mubr.bf16.mxu0 0
        %1146 = vmatmul.mubr.bf16.gmra.mrb[0].mxu0 %v896
        %v1147 = vpop.f32.mrb[0].mxu0
        %v1148 = vadd.f32 %v943, %v1147
        %v1149 = vpop.f32.mrb[0].mxu0
        %v1150 = vadd.f32 %v947, %v1149
        %v1151 = vpop.f32.mrb[0].mxu0
        %v1152 = vadd.f32 %v943, %v1151
        %v1153 = vpop.f32.mrb[0].mxu0
        %v1154 = vadd.f32 %v947, %v1153
        %1155 = vmatprep.mubr.bf16.mxu0 0
        %1156 = vmatmul.mubr.bf16.gmra.mrb[0].mxu0 %v897
        %v1157 = vpop.f32.mrb[0].mxu0
        %v1158 = vadd.f32 %v943, %v1157
        %v1159 = vpop.f32.mrb[0].mxu0
        %v1160 = vadd.f32 %v947, %v1159
        %v1161 = vpop.f32.mrb[0].mxu0
        %v1162 = vadd.f32 %v943, %v1161
        %v1163 = vpop.f32.mrb[0].mxu0
        %v1164 = vadd.f32 %v947, %v1163
        %1165 = vmatprep.mubr.bf16.mxu0 0
        %1166 = vmatmul.mubr.bf16.gmra.mrb[0].mxu0 %v898
        %v1167 = vpop.f32.mrb[0].mxu0
        %v1168 = vadd.f32 %v943, %v1167
        %v1169 = vpop.f32.mrb[0].mxu0
        %v1170 = vadd.f32 %v947, %v1169
        %v1171 = vpop.f32.mrb[0].mxu0
        %v1172 = vadd.f32 %v943, %v1171
        %v1173 = vpop.f32.mrb[0].mxu0
        %v1174 = vadd.f32 %v947, %v1173
        %1175 = vmatprep.mubr.bf16.mxu0 0
        %1176 = vmatmul.mubr.bf16.gmra.mrb[0].mxu0 %v899
        %v1177 = vpop.f32.mrb[0].mxu0
        %v1178 = vadd.f32 %v943, %v1177
        %v1179 = vpop.f32.mrb[0].mxu0
        %v1180 = vadd.f32 %v947, %v1179
        %v1181 = vpop.f32.mrb[0].mxu0
        %v1182 = vadd.f32 %v943, %v1181
        %v1183 = vpop.f32.mrb[0].mxu0
        %v1184 = vadd.f32 %v947, %v1183
        %1185 = vmatprep.mubr.bf16.mxu0 0
        %1186 = vmatmul.mubr.bf16.gmra.mrb[0].mxu0 %v900
        %v1187 = vpop.f32.mrb[0].mxu0
        %v1188 = vadd.f32 %v943, %v1187
        %v1189 = vpop.f32.mrb[0].mxu0
        %v1190 = vadd.f32 %v947, %v1189
        %v1191 = vpop.f32.mrb[0].mxu0
        %v1192 = vadd.f32 %v943, %v1191
        %v1193 = vpop.f32.mrb[0].mxu0
        %v1194 = vadd.f32 %v947, %v1193
        %1195 = vdwg.mxu0
        %1196 = vmatprep.subr.bf16.mxu0 0
        %1197 = vmatpush1.bf16.msra.mxu0 %v1037
        %1198 = vmatprep.subr.bf16.mxu0 0
        %1199 = vmatpush1.bf16.msra.mxu0 %v1040
        %1200 = vmatprep.subr.bf16.mxu0 0
        %1201 = vmatpush1.bf16.msra.mxu0 %v1043
        %1202 = vmatprep.subr.bf16.mxu0 0
        %1203 = vmatpush1.bf16.msra.mxu0 %v1046
        %1204 = vmatprep.subr.bf16.mxu0 0
        %1205 = vmatpush1.bf16.msra.mxu0 %v1049
        %1206 = vmatprep.subr.bf16.mxu0 0
        %1207 = vmatpush1.bf16.msra.mxu0 %v1052
        %1208 = vmatprep.subr.bf16.mxu0 0
        %1209 = vmatpush1.bf16.msra.mxu0 %v1055
        %1210 = vmatprep.subr.bf16.mxu0 0
        %1211 = vmatpush1.bf16.msra.mxu0 %v1058
        %1212 = vmatprep.subr.bf16.mxu0 0
        %1213 = vmatpush1.bf16.msra.mxu0 0
        %1214 = vmatprep.subr.bf16.mxu0 0
        %1215 = vmatpush1.bf16.msra.mxu0 0
        %1216 = vmatprep.subr.bf16.mxu0 0
        %1217 = vmatpush1.bf16.msra.mxu0 0
        %1218 = vmatprep.subr.bf16.mxu0 0
        %1219 = vmatpush1.bf16.msra.mxu0 0
        %1220 = vmatprep.subr.bf16.mxu0 0
        %1221 = vmatpush1.bf16.msra.mxu0 0
        %1222 = vmatprep.subr.bf16.mxu0 0
        %1223 = vmatpush1.bf16.msra.mxu0 0
        %1224 = vmatprep.subr.bf16.mxu0 0
        %1225 = vmatpush1.bf16.msra.mxu0 0
        %1226 = vmatprep.subr.bf16.mxu0 0
        %1227 = vmatpush1.bf16.msra.mxu0 0
        %1228 = vmatprep.mubr.bf16.mxu0 0
        %1229 = vmatmul.mubr.bf16.gmra.mrb[0].mxu0 %v893
        %v1230 = vpop.f32.mrb[0].mxu0
        %v1231 = vadd.f32 %v951, %v1230
        %v1232 = vpop.f32.mrb[0].mxu0
        %v1233 = vpop.f32.mrb[0].mxu0
        %v1234 = vadd.f32 %v951, %v1233
        %v1235 = vpop.f32.mrb[0].mxu0
        %1236 = vmatprep.mubr.bf16.mxu0 0
        %1237 = vmatmul.mubr.bf16.gmra.mrb[0].mxu0 %v894
        %v1238 = vpop.f32.mrb[0].mxu0
        %v1239 = vadd.f32 %v951, %v1238
        %v1240 = vpop.f32.mrb[0].mxu0
        %v1241 = vpop.f32.mrb[0].mxu0
        %v1242 = vadd.f32 %v951, %v1241
        %v1243 = vpop.f32.mrb[0].mxu0
        %1244 = vmatprep.mubr.bf16.mxu0 0
        %1245 = vmatmul.mubr.bf16.gmra.mrb[0].mxu0 %v895
        %v1246 = vpop.f32.mrb[0].mxu0
        %v1247 = vadd.f32 %v951, %v1246
        %v1248 = vpop.f32.mrb[0].mxu0
        %v1249 = vpop.f32.mrb[0].mxu0
        %v1250 = vadd.f32 %v951, %v1249
        %v1251 = vpop.f32.mrb[0].mxu0
        %1252 = vmatprep.mubr.bf16.mxu0 0
        %1253 = vmatmul.mubr.bf16.gmra.mrb[0].mxu0 %v896
        %v1254 = vpop.f32.mrb[0].mxu0
        %v1255 = vadd.f32 %v951, %v1254
        %v1256 = vpop.f32.mrb[0].mxu0
        %v1257 = vpop.f32.mrb[0].mxu0
        %v1258 = vadd.f32 %v951, %v1257
        %v1259 = vpop.f32.mrb[0].mxu0
        %1260 = vmatprep.mubr.bf16.mxu0 0
        %1261 = vmatmul.mubr.bf16.gmra.mrb[0].mxu0 %v897
        %v1262 = vpop.f32.mrb[0].mxu0
        %v1263 = vadd.f32 %v951, %v1262
        %v1264 = vpop.f32.mrb[0].mxu0
        %v1265 = vpop.f32.mrb[0].mxu0
        %v1266 = vadd.f32 %v951, %v1265
        %v1267 = vpop.f32.mrb[0].mxu0
        %1268 = vmatprep.mubr.bf16.mxu0 0
        %1269 = vmatmul.mubr.bf16.gmra.mrb[0].mxu0 %v898
        %v1270 = vpop.f32.mrb[0].mxu0
        %v1271 = vadd.f32 %v951, %v1270
        %v1272 = vpop.f32.mrb[0].mxu0
        %v1273 = vpop.f32.mrb[0].mxu0
        %v1274 = vadd.f32 %v951, %v1273
        %v1275 = vpop.f32.mrb[0].mxu0
        %1276 = vmatprep.mubr.bf16.mxu0 0
        %1277 = vmatmul.mubr.bf16.gmra.mrb[0].mxu0 %v899
        %v1278 = vpop.f32.mrb[0].mxu0
        %v1279 = vadd.f32 %v951, %v1278
        %v1280 = vpop.f32.mrb[0].mxu0
        %v1281 = vpop.f32.mrb[0].mxu0
        %v1282 = vadd.f32 %v951, %v1281
        %v1283 = vpop.f32.mrb[0].mxu0
        %1284 = vmatprep.mubr.bf16.mxu0 0
        %1285 = vmatmul.mubr.bf16.gmra.mrb[0].mxu0 %v900
        %v1286 = vpop.f32.mrb[0].mxu0
        %v1287 = vadd.f32 %v951, %v1286
        %v1288 = vpop.f32.mrb[0].mxu0
        %v1289 = vpop.f32.mrb[0].mxu0
        %v1290 = vadd.f32 %v951, %v1289
        %v1291 = vpop.f32.mrb[0].mxu0
        %1292 = vdwg.mxu0
        %v1293 = vmul.f32 %v1118, 0.17677669
        %v1294 = vmul.f32 %v1122, 0.17677669
        %v1295 = vmul.f32 %v1128, 0.17677669
        %v1296 = vmul.f32 %v1132, 0.17677669
        %v1297 = vmul.f32 %v1138, 0.17677669
        %v1298 = vmul.f32 %v1142, 0.17677669
        %v1299 = vmul.f32 %v1148, 0.17677669
        %v1300 = vmul.f32 %v1152, 0.17677669
        %v1301 = vmul.f32 %v1158, 0.17677669
        %v1302 = vmul.f32 %v1162, 0.17677669
        %v1303 = vmul.f32 %v1168, 0.17677669
        %v1304 = vmul.f32 %v1172, 0.17677669
        %v1305 = vmul.f32 %v1178, 0.17677669
        %v1306 = vmul.f32 %v1182, 0.17677669
        %v1307 = vmul.f32 %v1188, 0.17677669
        %v1308 = vmul.f32 %v1192, 0.17677669
        %1313 = vrot.lane.b32.xlu0 %v1293, 96
        %v1314 = vpop.permute.xlu0 %1313
        %1315 = vrot.lane.b32.xlu0 %v1294, 96
        %v1316 = vpop.permute.xlu0 %1315
        %1317 = vrot.lane.b32.xlu0 %v1295, 96
        %v1318 = vpop.permute.xlu0 %1317
        %1319 = vrot.lane.b32.xlu0 %v1296, 96
        %v1320 = vpop.permute.xlu0 %1319
        %1325 = vrot.lane.b32.xlu0 %v1293, 64
        %v1326 = vpop.permute.xlu0 %1325
        %1327 = vrot.lane.b32.xlu0 %v1294, 64
        %v1328 = vpop.permute.xlu0 %1327
        %1329 = vrot.lane.b32.xlu0 %v1295, 64
        %v1330 = vpop.permute.xlu0 %1329
        %1331 = vrot.lane.b32.xlu0 %v1296, 64
        %v1332 = vpop.permute.xlu0 %1331
        %1337 = vrot.lane.b32.xlu0 %v1293, 32
        %v1338 = vpop.permute.xlu0 %1337
        %1339 = vrot.lane.b32.xlu0 %v1294, 32
        %v1340 = vpop.permute.xlu0 %1339
        %1341 = vrot.lane.b32.xlu0 %v1295, 32
        %v1342 = vpop.permute.xlu0 %1341
        %1343 = vrot.lane.b32.xlu0 %v1296, 32
        %v1344 = vpop.permute.xlu0 %1343
        %1353 = vrot.lane.b32.xlu0 %v1297, 96
        %v1354 = vpop.permute.xlu0 %1353
        %1355 = vrot.lane.b32.xlu0 %v1298, 96
        %v1356 = vpop.permute.xlu0 %1355
        %1357 = vrot.lane.b32.xlu0 %v1299, 96
        %v1358 = vpop.permute.xlu0 %1357
        %1359 = vrot.lane.b32.xlu0 %v1300, 96
        %v1360 = vpop.permute.xlu0 %1359
        %1365 = vrot.lane.b32.xlu0 %v1297, 64
        %v1366 = vpop.permute.xlu0 %1365
        %1367 = vrot.lane.b32.xlu0 %v1298, 64
        %v1368 = vpop.permute.xlu0 %1367
        %1369 = vrot.lane.b32.xlu0 %v1299, 64
        %v1370 = vpop.permute.xlu0 %1369
        %1371 = vrot.lane.b32.xlu0 %v1300, 64
        %v1372 = vpop.permute.xlu0 %1371
        %1377 = vrot.lane.b32.xlu0 %v1297, 32
        %v1378 = vpop.permute.xlu0 %1377
        %1379 = vrot.lane.b32.xlu0 %v1298, 32
        %v1380 = vpop.permute.xlu0 %1379
        %1381 = vrot.lane.b32.xlu0 %v1299, 32
        %v1382 = vpop.permute.xlu0 %1381
        %1383 = vrot.lane.b32.xlu0 %v1300, 32
        %v1384 = vpop.permute.xlu0 %1383
        %1393 = vrot.lane.b32.xlu0 %v1301, 96
        %v1394 = vpop.permute.xlu0 %1393
        %1395 = vrot.lane.b32.xlu0 %v1302, 96
        %v1396 = vpop.permute.xlu0 %1395
        %1397 = vrot.lane.b32.xlu0 %v1303, 96
        %v1398 = vpop.permute.xlu0 %1397
        %1399 = vrot.lane.b32.xlu0 %v1304, 96
        %v1400 = vpop.permute.xlu0 %1399
        %1405 = vrot.lane.b32.xlu0 %v1301, 64
        %v1406 = vpop.permute.xlu0 %1405
        %1407 = vrot.lane.b32.xlu0 %v1302, 64
        %v1408 = vpop.permute.xlu0 %1407
        %1409 = vrot.lane.b32.xlu0 %v1303, 64
        %v1410 = vpop.permute.xlu0 %1409
        %1411 = vrot.lane.b32.xlu0 %v1304, 64
        %v1412 = vpop.permute.xlu0 %1411
        %1417 = vrot.lane.b32.xlu0 %v1301, 32
        %v1418 = vpop.permute.xlu0 %1417
        %1419 = vrot.lane.b32.xlu0 %v1302, 32
        %v1420 = vpop.permute.xlu0 %1419
        %1421 = vrot.lane.b32.xlu0 %v1303, 32
        %v1422 = vpop.permute.xlu0 %1421
        %1423 = vrot.lane.b32.xlu0 %v1304, 32
        %v1424 = vpop.permute.xlu0 %1423
        %1433 = vrot.lane.b32.xlu0 %v1305, 96
        %v1434 = vpop.permute.xlu0 %1433
        %1435 = vrot.lane.b32.xlu0 %v1306, 96
        %v1436 = vpop.permute.xlu0 %1435
        %1437 = vrot.lane.b32.xlu0 %v1307, 96
        %v1438 = vpop.permute.xlu0 %1437
        %1439 = vrot.lane.b32.xlu0 %v1308, 96
        %v1440 = vpop.permute.xlu0 %1439
        %1445 = vrot.lane.b32.xlu0 %v1305, 64
        %v1446 = vpop.permute.xlu0 %1445
        %1447 = vrot.lane.b32.xlu0 %v1306, 64
        %v1448 = vpop.permute.xlu0 %1447
        %1449 = vrot.lane.b32.xlu0 %v1307, 64
        %v1450 = vpop.permute.xlu0 %1449
        %1451 = vrot.lane.b32.xlu0 %v1308, 64
        %v1452 = vpop.permute.xlu0 %1451
        %1457 = vrot.lane.b32.xlu0 %v1305, 32
        %v1458 = vpop.permute.xlu0 %1457
        %1459 = vrot.lane.b32.xlu0 %v1306, 32
        %v1460 = vpop.permute.xlu0 %1459
        %1461 = vrot.lane.b32.xlu0 %v1307, 32
        %v1462 = vpop.permute.xlu0 %1461
        %1463 = vrot.lane.b32.xlu0 %v1308, 32
        %v1464 = vpop.permute.xlu0 %1463
        %v1469 = vpack.c.bf16 %v1294, %v1293
        %v1470 = vpack.c.bf16 %v1296, %v1295
        %v1471 = vpack.c.bf16 %v1316, %v1314
        %v1472 = vpack.c.bf16 %v1320, %v1318
        %v1473 = vpack.c.bf16 %v1328, %v1326
        %v1474 = vpack.c.bf16 %v1332, %v1330
        %v1475 = vpack.c.bf16 %v1340, %v1338
        %v1476 = vpack.c.bf16 %v1344, %v1342
        %v1477 = vpack.c.bf16 %v1298, %v1297
        %v1478 = vpack.c.bf16 %v1300, %v1299
        %v1479 = vpack.c.bf16 %v1356, %v1354
        %v1480 = vpack.c.bf16 %v1360, %v1358
        %v1481 = vpack.c.bf16 %v1368, %v1366
        %v1482 = vpack.c.bf16 %v1372, %v1370
        %v1483 = vpack.c.bf16 %v1380, %v1378
        %v1484 = vpack.c.bf16 %v1384, %v1382
        %v1485 = vpack.c.bf16 %v1302, %v1301
        %v1486 = vpack.c.bf16 %v1304, %v1303
        %v1487 = vpack.c.bf16 %v1396, %v1394
        %v1488 = vpack.c.bf16 %v1400, %v1398
        %v1489 = vpack.c.bf16 %v1408, %v1406
        %v1490 = vpack.c.bf16 %v1412, %v1410
        %v1491 = vpack.c.bf16 %v1420, %v1418
        %v1492 = vpack.c.bf16 %v1424, %v1422
        %v1493 = vpack.c.bf16 %v1306, %v1305
        %v1494 = vpack.c.bf16 %v1308, %v1307
        %v1495 = vpack.c.bf16 %v1436, %v1434
        %v1496 = vpack.c.bf16 %v1440, %v1438
        %v1497 = vpack.c.bf16 %v1448, %v1446
        %v1498 = vpack.c.bf16 %v1452, %v1450
        %v1499 = vpack.c.bf16 %v1460, %v1458
        %v1500 = vpack.c.bf16 %v1464, %v1462
        %1505 = vrot.lane.b32.xlu0 %v1120, 96
        %v1506 = vpop.permute.xlu0 %1505
        %1507 = vrot.lane.b32.xlu0 %v1124, 96
        %v1508 = vpop.permute.xlu0 %1507
        %1509 = vrot.lane.b32.xlu0 %v1130, 96
        %v1510 = vpop.permute.xlu0 %1509
        %1511 = vrot.lane.b32.xlu0 %v1134, 96
        %v1512 = vpop.permute.xlu0 %1511
        %1517 = vrot.lane.b32.xlu0 %v1120, 64
        %v1518 = vpop.permute.xlu0 %1517
        %1519 = vrot.lane.b32.xlu0 %v1124, 64
        %v1520 = vpop.permute.xlu0 %1519
        %1521 = vrot.lane.b32.xlu0 %v1130, 64
        %v1522 = vpop.permute.xlu0 %1521
        %1523 = vrot.lane.b32.xlu0 %v1134, 64
        %v1524 = vpop.permute.xlu0 %1523
        %1529 = vrot.lane.b32.xlu0 %v1120, 32
        %v1530 = vpop.permute.xlu0 %1529
        %1531 = vrot.lane.b32.xlu0 %v1124, 32
        %v1532 = vpop.permute.xlu0 %1531
        %1533 = vrot.lane.b32.xlu0 %v1130, 32
        %v1534 = vpop.permute.xlu0 %1533
        %1535 = vrot.lane.b32.xlu0 %v1134, 32
        %v1536 = vpop.permute.xlu0 %1535
        %1545 = vrot.lane.b32.xlu0 %v1140, 96
        %v1546 = vpop.permute.xlu0 %1545
        %1547 = vrot.lane.b32.xlu0 %v1144, 96
        %v1548 = vpop.permute.xlu0 %1547
        %1549 = vrot.lane.b32.xlu0 %v1150, 96
        %v1550 = vpop.permute.xlu0 %1549
        %1551 = vrot.lane.b32.xlu0 %v1154, 96
        %v1552 = vpop.permute.xlu0 %1551
        %1557 = vrot.lane.b32.xlu0 %v1140, 64
        %v1558 = vpop.permute.xlu0 %1557
        %1559 = vrot.lane.b32.xlu0 %v1144, 64
        %v1560 = vpop.permute.xlu0 %1559
        %1561 = vrot.lane.b32.xlu0 %v1150, 64
        %v1562 = vpop.permute.xlu0 %1561
        %1563 = vrot.lane.b32.xlu0 %v1154, 64
        %v1564 = vpop.permute.xlu0 %1563
        %1569 = vrot.lane.b32.xlu0 %v1140, 32
        %v1570 = vpop.permute.xlu0 %1569
        %1571 = vrot.lane.b32.xlu0 %v1144, 32
        %v1572 = vpop.permute.xlu0 %1571
        %1573 = vrot.lane.b32.xlu0 %v1150, 32
        %v1574 = vpop.permute.xlu0 %1573
        %1575 = vrot.lane.b32.xlu0 %v1154, 32
        %v1576 = vpop.permute.xlu0 %1575
        %1585 = vrot.lane.b32.xlu0 %v1160, 96
        %v1586 = vpop.permute.xlu0 %1585
        %1587 = vrot.lane.b32.xlu0 %v1164, 96
        %v1588 = vpop.permute.xlu0 %1587
        %1589 = vrot.lane.b32.xlu0 %v1170, 96
        %v1590 = vpop.permute.xlu0 %1589
        %1591 = vrot.lane.b32.xlu0 %v1174, 96
        %v1592 = vpop.permute.xlu0 %1591
        %1597 = vrot.lane.b32.xlu0 %v1160, 64
        %v1598 = vpop.permute.xlu0 %1597
        %1599 = vrot.lane.b32.xlu0 %v1164, 64
        %v1600 = vpop.permute.xlu0 %1599
        %1601 = vrot.lane.b32.xlu0 %v1170, 64
        %v1602 = vpop.permute.xlu0 %1601
        %1603 = vrot.lane.b32.xlu0 %v1174, 64
        %v1604 = vpop.permute.xlu0 %1603
        %1609 = vrot.lane.b32.xlu0 %v1160, 32
        %v1610 = vpop.permute.xlu0 %1609
        %1611 = vrot.lane.b32.xlu0 %v1164, 32
        %v1612 = vpop.permute.xlu0 %1611
        %1613 = vrot.lane.b32.xlu0 %v1170, 32
        %v1614 = vpop.permute.xlu0 %1613
        %1615 = vrot.lane.b32.xlu0 %v1174, 32
        %v1616 = vpop.permute.xlu0 %1615
        %1625 = vrot.lane.b32.xlu0 %v1180, 96
        %v1626 = vpop.permute.xlu0 %1625
        %1627 = vrot.lane.b32.xlu0 %v1184, 96
        %v1628 = vpop.permute.xlu0 %1627
        %1629 = vrot.lane.b32.xlu0 %v1190, 96
        %v1630 = vpop.permute.xlu0 %1629
        %1631 = vrot.lane.b32.xlu0 %v1194, 96
        %v1632 = vpop.permute.xlu0 %1631
        %1637 = vrot.lane.b32.xlu0 %v1180, 64
        %v1638 = vpop.permute.xlu0 %1637
        %1639 = vrot.lane.b32.xlu0 %v1184, 64
        %v1640 = vpop.permute.xlu0 %1639
        %1641 = vrot.lane.b32.xlu0 %v1190, 64
        %v1642 = vpop.permute.xlu0 %1641
        %1643 = vrot.lane.b32.xlu0 %v1194, 64
        %v1644 = vpop.permute.xlu0 %1643
        %1649 = vrot.lane.b32.xlu0 %v1180, 32
        %v1650 = vpop.permute.xlu0 %1649
        %1651 = vrot.lane.b32.xlu0 %v1184, 32
        %v1652 = vpop.permute.xlu0 %1651
        %1653 = vrot.lane.b32.xlu0 %v1190, 32
        %v1654 = vpop.permute.xlu0 %1653
        %1655 = vrot.lane.b32.xlu0 %v1194, 32
        %v1656 = vpop.permute.xlu0 %1655
        %v1661 = vpack.c.bf16 %v1124, %v1120
        %v1662 = vpack.c.bf16 %v1134, %v1130
        %v1663 = vpack.c.bf16 %v1508, %v1506
        %v1664 = vpack.c.bf16 %v1512, %v1510
        %v1665 = vpack.c.bf16 %v1520, %v1518
        %v1666 = vpack.c.bf16 %v1524, %v1522
        %v1667 = vpack.c.bf16 %v1532, %v1530
        %v1668 = vpack.c.bf16 %v1536, %v1534
        %v1669 = vpack.c.bf16 %v1144, %v1140
        %v1670 = vpack.c.bf16 %v1154, %v1150
        %v1671 = vpack.c.bf16 %v1548, %v1546
        %v1672 = vpack.c.bf16 %v1552, %v1550
        %v1673 = vpack.c.bf16 %v1560, %v1558
        %v1674 = vpack.c.bf16 %v1564, %v1562
        %v1675 = vpack.c.bf16 %v1572, %v1570
        %v1676 = vpack.c.bf16 %v1576, %v1574
        %v1677 = vpack.c.bf16 %v1164, %v1160
        %v1678 = vpack.c.bf16 %v1174, %v1170
        %v1679 = vpack.c.bf16 %v1588, %v1586
        %v1680 = vpack.c.bf16 %v1592, %v1590
        %v1681 = vpack.c.bf16 %v1600, %v1598
        %v1682 = vpack.c.bf16 %v1604, %v1602
        %v1683 = vpack.c.bf16 %v1612, %v1610
        %v1684 = vpack.c.bf16 %v1616, %v1614
        %v1685 = vpack.c.bf16 %v1184, %v1180
        %v1686 = vpack.c.bf16 %v1194, %v1190
        %v1687 = vpack.c.bf16 %v1628, %v1626
        %v1688 = vpack.c.bf16 %v1632, %v1630
        %v1689 = vpack.c.bf16 %v1640, %v1638
        %v1690 = vpack.c.bf16 %v1644, %v1642
        %v1691 = vpack.c.bf16 %v1652, %v1650
        %v1692 = vpack.c.bf16 %v1656, %v1654
        %1697 = vrot.lane.b32.xlu0 %v1231, 96
        %v1698 = vpop.permute.xlu0 %1697
        %1699 = vrot.lane.b32.xlu0 %v1234, 96
        %v1700 = vpop.permute.xlu0 %1699
        %1701 = vrot.lane.b32.xlu0 %v1239, 96
        %v1702 = vpop.permute.xlu0 %1701
        %1703 = vrot.lane.b32.xlu0 %v1242, 96
        %v1704 = vpop.permute.xlu0 %1703
        %1709 = vrot.lane.b32.xlu0 %v1231, 64
        %v1710 = vpop.permute.xlu0 %1709
        %1711 = vrot.lane.b32.xlu0 %v1234, 64
        %v1712 = vpop.permute.xlu0 %1711
        %1713 = vrot.lane.b32.xlu0 %v1239, 64
        %v1714 = vpop.permute.xlu0 %1713
        %1715 = vrot.lane.b32.xlu0 %v1242, 64
        %v1716 = vpop.permute.xlu0 %1715
        %1721 = vrot.lane.b32.xlu0 %v1231, 32
        %v1722 = vpop.permute.xlu0 %1721
        %1723 = vrot.lane.b32.xlu0 %v1234, 32
        %v1724 = vpop.permute.xlu0 %1723
        %1725 = vrot.lane.b32.xlu0 %v1239, 32
        %v1726 = vpop.permute.xlu0 %1725
        %1727 = vrot.lane.b32.xlu0 %v1242, 32
        %v1728 = vpop.permute.xlu0 %1727
        %1737 = vrot.lane.b32.xlu0 %v1247, 96
        %v1738 = vpop.permute.xlu0 %1737
        %1739 = vrot.lane.b32.xlu0 %v1250, 96
        %v1740 = vpop.permute.xlu0 %1739
        %1741 = vrot.lane.b32.xlu0 %v1255, 96
        %v1742 = vpop.permute.xlu0 %1741
        %1743 = vrot.lane.b32.xlu0 %v1258, 96
        %v1744 = vpop.permute.xlu0 %1743
        %1749 = vrot.lane.b32.xlu0 %v1247, 64
        %v1750 = vpop.permute.xlu0 %1749
        %1751 = vrot.lane.b32.xlu0 %v1250, 64
        %v1752 = vpop.permute.xlu0 %1751
        %1753 = vrot.lane.b32.xlu0 %v1255, 64
        %v1754 = vpop.permute.xlu0 %1753
        %1755 = vrot.lane.b32.xlu0 %v1258, 64
        %v1756 = vpop.permute.xlu0 %1755
        %1761 = vrot.lane.b32.xlu0 %v1247, 32
        %v1762 = vpop.permute.xlu0 %1761
        %1763 = vrot.lane.b32.xlu0 %v1250, 32
        %v1764 = vpop.permute.xlu0 %1763
        %1765 = vrot.lane.b32.xlu0 %v1255, 32
        %v1766 = vpop.permute.xlu0 %1765
        %1767 = vrot.lane.b32.xlu0 %v1258, 32
        %v1768 = vpop.permute.xlu0 %1767
        %1777 = vrot.lane.b32.xlu0 %v1263, 96
        %v1778 = vpop.permute.xlu0 %1777
        %1779 = vrot.lane.b32.xlu0 %v1266, 96
        %v1780 = vpop.permute.xlu0 %1779
        %1781 = vrot.lane.b32.xlu0 %v1271, 96
        %v1782 = vpop.permute.xlu0 %1781
        %1783 = vrot.lane.b32.xlu0 %v1274, 96
        %v1784 = vpop.permute.xlu0 %1783
        %1789 = vrot.lane.b32.xlu0 %v1263, 64
        %v1790 = vpop.permute.xlu0 %1789
        %1791 = vrot.lane.b32.xlu0 %v1266, 64
        %v1792 = vpop.permute.xlu0 %1791
        %1793 = vrot.lane.b32.xlu0 %v1271, 64
        %v1794 = vpop.permute.xlu0 %1793
        %1795 = vrot.lane.b32.xlu0 %v1274, 64
        %v1796 = vpop.permute.xlu0 %1795
        %1801 = vrot.lane.b32.xlu0 %v1263, 32
        %v1802 = vpop.permute.xlu0 %1801
        %1803 = vrot.lane.b32.xlu0 %v1266, 32
        %v1804 = vpop.permute.xlu0 %1803
        %1805 = vrot.lane.b32.xlu0 %v1271, 32
        %v1806 = vpop.permute.xlu0 %1805
        %1807 = vrot.lane.b32.xlu0 %v1274, 32
        %v1808 = vpop.permute.xlu0 %1807
        %1817 = vrot.lane.b32.xlu0 %v1279, 96
        %v1818 = vpop.permute.xlu0 %1817
        %1819 = vrot.lane.b32.xlu0 %v1282, 96
        %v1820 = vpop.permute.xlu0 %1819
        %1821 = vrot.lane.b32.xlu0 %v1287, 96
        %v1822 = vpop.permute.xlu0 %1821
        %1823 = vrot.lane.b32.xlu0 %v1290, 96
        %v1824 = vpop.permute.xlu0 %1823
        %1829 = vrot.lane.b32.xlu0 %v1279, 64
        %v1830 = vpop.permute.xlu0 %1829
        %1831 = vrot.lane.b32.xlu0 %v1282, 64
        %v1832 = vpop.permute.xlu0 %1831
        %1833 = vrot.lane.b32.xlu0 %v1287, 64
        %v1834 = vpop.permute.xlu0 %1833
        %1835 = vrot.lane.b32.xlu0 %v1290, 64
        %v1836 = vpop.permute.xlu0 %1835
        %1841 = vrot.lane.b32.xlu0 %v1279, 32
        %v1842 = vpop.permute.xlu0 %1841
        %1843 = vrot.lane.b32.xlu0 %v1282, 32
        %v1844 = vpop.permute.xlu0 %1843
        %1845 = vrot.lane.b32.xlu0 %v1287, 32
        %v1846 = vpop.permute.xlu0 %1845
        %1847 = vrot.lane.b32.xlu0 %v1290, 32
        %v1848 = vpop.permute.xlu0 %1847
        %v1853 = vpack.c.bf16 %v1234, %v1231
        %v1854 = vpack.c.bf16 %v1242, %v1239
        %v1855 = vpack.c.bf16 %v1700, %v1698
        %v1856 = vpack.c.bf16 %v1704, %v1702
        %v1857 = vpack.c.bf16 %v1712, %v1710
        %v1858 = vpack.c.bf16 %v1716, %v1714
        %v1859 = vpack.c.bf16 %v1724, %v1722
        %v1860 = vpack.c.bf16 %v1728, %v1726
        %v1861 = vpack.c.bf16 %v1250, %v1247
        %v1862 = vpack.c.bf16 %v1258, %v1255
        %v1863 = vpack.c.bf16 %v1740, %v1738
        %v1864 = vpack.c.bf16 %v1744, %v1742
        %v1865 = vpack.c.bf16 %v1752, %v1750
        %v1866 = vpack.c.bf16 %v1756, %v1754
        %v1867 = vpack.c.bf16 %v1764, %v1762
        %v1868 = vpack.c.bf16 %v1768, %v1766
        %v1869 = vpack.c.bf16 %v1266, %v1263
        %v1870 = vpack.c.bf16 %v1274, %v1271
        %v1871 = vpack.c.bf16 %v1780, %v1778
        %v1872 = vpack.c.bf16 %v1784, %v1782
        %v1873 = vpack.c.bf16 %v1792, %v1790
        %v1874 = vpack.c.bf16 %v1796, %v1794
        %v1875 = vpack.c.bf16 %v1804, %v1802
        %v1876 = vpack.c.bf16 %v1808, %v1806
        %v1877 = vpack.c.bf16 %v1282, %v1279
        %v1878 = vpack.c.bf16 %v1290, %v1287
        %v1879 = vpack.c.bf16 %v1820, %v1818
        %v1880 = vpack.c.bf16 %v1824, %v1822
        %v1881 = vpack.c.bf16 %v1832, %v1830
        %v1882 = vpack.c.bf16 %v1836, %v1834
        %v1883 = vpack.c.bf16 %v1844, %v1842
        %v1884 = vpack.c.bf16 %v1848, %v1846
        %vm1885 = vcmask 261120
        %v1887 = vsel %vm1885, %v1469, 0
        %v1890 = vsel %vm1885, %v1470, 0
        %v1893 = vsel %vm1885, %v1661, 0
        %v1896 = vsel %vm1885, %v1662, 0
        %1898 = vmatprep.subr.bf16.mxu0 0
        %1899 = vmatpush1.bf16.xpose.msra.mxu0 %v1893
        %1900 = vmatprep.subr.bf16.mxu0 0
        %1901 = vmatpush1.bf16.xpose.msra.mxu0 %v1896
        %1902 = vmatprep.subr.bf16.mxu0 0
        %1903 = vmatpush1.bf16.xpose.msra.mxu0 0
        %1904 = vmatprep.subr.bf16.mxu0 0
        %1905 = vmatpush1.bf16.xpose.msra.mxu0 0
        %1906 = vmatprep.subr.bf16.mxu0 0
        %1907 = vmatpush1.bf16.xpose.msra.mxu0 0
        %1908 = vmatprep.subr.bf16.mxu0 0
        %1909 = vmatpush1.bf16.xpose.msra.mxu0 0
        %1910 = vmatprep.subr.bf16.mxu0 0
        %1911 = vmatpush1.bf16.xpose.msra.mxu0 0
        %1912 = vmatprep.subr.bf16.mxu0 0
        %1913 = vmatpush1.bf16.xpose.msra.mxu0 0
        %1914 = vmatprep.subr.bf16.mxu0 0
        %1915 = vmatpush1.bf16.xpose.msra.mxu0 0
        %1916 = vmatprep.subr.bf16.mxu0 0
        %1917 = vmatpush1.bf16.xpose.msra.mxu0 0
        %1918 = vmatprep.subr.bf16.mxu0 0
        %1919 = vmatpush1.bf16.xpose.msra.mxu0 0
        %1920 = vmatprep.subr.bf16.mxu0 0
        %1921 = vmatpush1.bf16.xpose.msra.mxu0 0
        %1922 = vmatprep.subr.bf16.mxu0 0
        %1923 = vmatpush1.bf16.xpose.msra.mxu0 0
        %1924 = vmatprep.subr.bf16.mxu0 0
        %1925 = vmatpush1.bf16.xpose.msra.mxu0 0
        %1926 = vmatprep.subr.bf16.mxu0 0
        %1927 = vmatpush1.bf16.xpose.msra.mxu0 0
        %1928 = vmatprep.subr.bf16.mxu0 0
        %1929 = vmatpush1.bf16.xpose.msra.mxu0 0
        %1930 = vmatprep.mubr.bf16.mxu0 0
        %1931 = vmatmul.mubr.bf16.gmra.mrb[0].mxu0 %v1887
        %v1932 = vpop.f32.mrb[0].mxu0
        %v1933 = vadd.f32 %v664, %v1932
        %v1934 = vpop.f32.mrb[0].mxu0
        %v1935 = vpop.f32.mrb[0].mxu0
        %v1936 = vadd.f32 %v665, %v1935
        %v1937 = vpop.f32.mrb[0].mxu0
        %1938 = vmatprep.mubr.bf16.mxu0 0
        %1939 = vmatmul.mubr.bf16.gmra.mrb[0].mxu0 %v1890
        %v1940 = vpop.f32.mrb[0].mxu0
        %v1941 = vadd.f32 %v666, %v1940
        %v1942 = vpop.f32.mrb[0].mxu0
        %v1943 = vpop.f32.mrb[0].mxu0
        %v1944 = vadd.f32 %v667, %v1943
        %v1945 = vpop.f32.mrb[0].mxu0
        %1946 = vdwg.mxu0
        %v1948 = vsel %vm1885, %v1471, 0
        %v1951 = vsel %vm1885, %v1472, 0
        %v1954 = vsel %vm1885, %v1663, 0
        %v1957 = vsel %vm1885, %v1664, 0
        %1959 = vmatprep.subr.bf16.mxu0 0
        %1960 = vmatpush1.bf16.xpose.msra.mxu0 %v1954
        %1961 = vmatprep.subr.bf16.mxu0 0
        %1962 = vmatpush1.bf16.xpose.msra.mxu0 %v1957
        %1963 = vmatprep.subr.bf16.mxu0 0
        %1964 = vmatpush1.bf16.xpose.msra.mxu0 0
        %1965 = vmatprep.subr.bf16.mxu0 0
        %1966 = vmatpush1.bf16.xpose.msra.mxu0 0
        %1967 = vmatprep.subr.bf16.mxu0 0
        %1968 = vmatpush1.bf16.xpose.msra.mxu0 0
        %1969 = vmatprep.subr.bf16.mxu0 0
        %1970 = vmatpush1.bf16.xpose.msra.mxu0 0
        %1971 = vmatprep.subr.bf16.mxu0 0
        %1972 = vmatpush1.bf16.xpose.msra.mxu0 0
        %1973 = vmatprep.subr.bf16.mxu0 0
        %1974 = vmatpush1.bf16.xpose.msra.mxu0 0
        %1975 = vmatprep.subr.bf16.mxu0 0
        %1976 = vmatpush1.bf16.xpose.msra.mxu0 0
        %1977 = vmatprep.subr.bf16.mxu0 0
        %1978 = vmatpush1.bf16.xpose.msra.mxu0 0
        %1979 = vmatprep.subr.bf16.mxu0 0
        %1980 = vmatpush1.bf16.xpose.msra.mxu0 0
        %1981 = vmatprep.subr.bf16.mxu0 0
        %1982 = vmatpush1.bf16.xpose.msra.mxu0 0
        %1983 = vmatprep.subr.bf16.mxu0 0
        %1984 = vmatpush1.bf16.xpose.msra.mxu0 0
        %1985 = vmatprep.subr.bf16.mxu0 0
        %1986 = vmatpush1.bf16.xpose.msra.mxu0 0
        %1987 = vmatprep.subr.bf16.mxu0 0
        %1988 = vmatpush1.bf16.xpose.msra.mxu0 0
        %1989 = vmatprep.subr.bf16.mxu0 0
        %1990 = vmatpush1.bf16.xpose.msra.mxu0 0
        %1991 = vmatprep.mubr.bf16.mxu0 0
        %1992 = vmatmul.mubr.bf16.gmra.mrb[0].mxu0 %v1948
        %v1993 = vpop.f32.mrb[0].mxu0
        %v1994 = vadd.f32 %v664, %v1993
        %v1995 = vpop.f32.mrb[0].mxu0
        %v1996 = vpop.f32.mrb[0].mxu0
        %v1997 = vadd.f32 %v665, %v1996
        %v1998 = vpop.f32.mrb[0].mxu0
        %1999 = vmatprep.mubr.bf16.mxu0 0
        %2000 = vmatmul.mubr.bf16.gmra.mrb[0].mxu0 %v1951
        %v2001 = vpop.f32.mrb[0].mxu0
        %v2002 = vadd.f32 %v666, %v2001
        %v2003 = vpop.f32.mrb[0].mxu0
        %v2004 = vpop.f32.mrb[0].mxu0
        %v2005 = vadd.f32 %v667, %v2004
        %v2006 = vpop.f32.mrb[0].mxu0
        %2007 = vdwg.mxu0
        %v2009 = vsel %vm1885, %v1473, 0
        %v2012 = vsel %vm1885, %v1474, 0
        %v2015 = vsel %vm1885, %v1665, 0
        %v2018 = vsel %vm1885, %v1666, 0
        %2020 = vmatprep.subr.bf16.mxu0 0
        %2021 = vmatpush1.bf16.xpose.msra.mxu0 %v2015
        %2022 = vmatprep.subr.bf16.mxu0 0
        %2023 = vmatpush1.bf16.xpose.msra.mxu0 %v2018
        %2024 = vmatprep.subr.bf16.mxu0 0
        %2025 = vmatpush1.bf16.xpose.msra.mxu0 0
        %2026 = vmatprep.subr.bf16.mxu0 0
        %2027 = vmatpush1.bf16.xpose.msra.mxu0 0
        %2028 = vmatprep.subr.bf16.mxu0 0
        %2029 = vmatpush1.bf16.xpose.msra.mxu0 0
        %2030 = vmatprep.subr.bf16.mxu0 0
        %2031 = vmatpush1.bf16.xpose.msra.mxu0 0
        %2032 = vmatprep.subr.bf16.mxu0 0
        %2033 = vmatpush1.bf16.xpose.msra.mxu0 0
        %2034 = vmatprep.subr.bf16.mxu0 0
        %2035 = vmatpush1.bf16.xpose.msra.mxu0 0
        %2036 = vmatprep.subr.bf16.mxu0 0
        %2037 = vmatpush1.bf16.xpose.msra.mxu0 0
        %2038 = vmatprep.subr.bf16.mxu0 0
        %2039 = vmatpush1.bf16.xpose.msra.mxu0 0
        %2040 = vmatprep.subr.bf16.mxu0 0
        %2041 = vmatpush1.bf16.xpose.msra.mxu0 0
        %2042 = vmatprep.subr.bf16.mxu0 0
        %2043 = vmatpush1.bf16.xpose.msra.mxu0 0
        %2044 = vmatprep.subr.bf16.mxu0 0
        %2045 = vmatpush1.bf16.xpose.msra.mxu0 0
        %2046 = vmatprep.subr.bf16.mxu0 0
        %2047 = vmatpush1.bf16.xpose.msra.mxu0 0
        %2048 = vmatprep.subr.bf16.mxu0 0
        %2049 = vmatpush1.bf16.xpose.msra.mxu0 0
        %2050 = vmatprep.subr.bf16.mxu0 0
        %2051 = vmatpush1.bf16.xpose.msra.mxu0 0
        %2052 = vmatprep.mubr.bf16.mxu0 0
        %2053 = vmatmul.mubr.bf16.gmra.mrb[0].mxu0 %v2009
        %v2054 = vpop.f32.mrb[0].mxu0
        %v2055 = vadd.f32 %v664, %v2054
        %v2056 = vpop.f32.mrb[0].mxu0
        %v2057 = vpop.f32.mrb[0].mxu0
        %v2058 = vadd.f32 %v665, %v2057
        %v2059 = vpop.f32.mrb[0].mxu0
        %2060 = vmatprep.mubr.bf16.mxu0 0
        %2061 = vmatmul.mubr.bf16.gmra.mrb[0].mxu0 %v2012
        %v2062 = vpop.f32.mrb[0].mxu0
        %v2063 = vadd.f32 %v666, %v2062
        %v2064 = vpop.f32.mrb[0].mxu0
        %v2065 = vpop.f32.mrb[0].mxu0
        %v2066 = vadd.f32 %v667, %v2065
        %v2067 = vpop.f32.mrb[0].mxu0
        %2068 = vdwg.mxu0
        %v2070 = vsel %vm1885, %v1475, 0
        %v2073 = vsel %vm1885, %v1476, 0
        %v2076 = vsel %vm1885, %v1667, 0
        %v2079 = vsel %vm1885, %v1668, 0
        %2081 = vmatprep.subr.bf16.mxu0 0
        %2082 = vmatpush1.bf16.xpose.msra.mxu0 %v2076
        %2083 = vmatprep.subr.bf16.mxu0 0
        %2084 = vmatpush1.bf16.xpose.msra.mxu0 %v2079
        %2085 = vmatprep.subr.bf16.mxu0 0
        %2086 = vmatpush1.bf16.xpose.msra.mxu0 0
        %2087 = vmatprep.subr.bf16.mxu0 0
        %2088 = vmatpush1.bf16.xpose.msra.mxu0 0
        %2089 = vmatprep.subr.bf16.mxu0 0
        %2090 = vmatpush1.bf16.xpose.msra.mxu0 0
        %2091 = vmatprep.subr.bf16.mxu0 0
        %2092 = vmatpush1.bf16.xpose.msra.mxu0 0
        %2093 = vmatprep.subr.bf16.mxu0 0
        %2094 = vmatpush1.bf16.xpose.msra.mxu0 0
        %2095 = vmatprep.subr.bf16.mxu0 0
        %2096 = vmatpush1.bf16.xpose.msra.mxu0 0
        %2097 = vmatprep.subr.bf16.mxu0 0
        %2098 = vmatpush1.bf16.xpose.msra.mxu0 0
        %2099 = vmatprep.subr.bf16.mxu0 0
        %2100 = vmatpush1.bf16.xpose.msra.mxu0 0
        %2101 = vmatprep.subr.bf16.mxu0 0
        %2102 = vmatpush1.bf16.xpose.msra.mxu0 0
        %2103 = vmatprep.subr.bf16.mxu0 0
        %2104 = vmatpush1.bf16.xpose.msra.mxu0 0
        %2105 = vmatprep.subr.bf16.mxu0 0
        %2106 = vmatpush1.bf16.xpose.msra.mxu0 0
        %2107 = vmatprep.subr.bf16.mxu0 0
        %2108 = vmatpush1.bf16.xpose.msra.mxu0 0
        %2109 = vmatprep.subr.bf16.mxu0 0
        %2110 = vmatpush1.bf16.xpose.msra.mxu0 0
        %2111 = vmatprep.subr.bf16.mxu0 0
        %2112 = vmatpush1.bf16.xpose.msra.mxu0 0
        %2113 = vmatprep.mubr.bf16.mxu0 0
        %2114 = vmatmul.mubr.bf16.gmra.mrb[0].mxu0 %v2070
        %v2115 = vpop.f32.mrb[0].mxu0
        %v2116 = vadd.f32 %v664, %v2115
        %v2117 = vpop.f32.mrb[0].mxu0
        %v2118 = vpop.f32.mrb[0].mxu0
        %v2119 = vadd.f32 %v665, %v2118
        %v2120 = vpop.f32.mrb[0].mxu0
        %2121 = vmatprep.mubr.bf16.mxu0 0
        %2122 = vmatmul.mubr.bf16.gmra.mrb[0].mxu0 %v2073
        %v2123 = vpop.f32.mrb[0].mxu0
        %v2124 = vadd.f32 %v666, %v2123
        %v2125 = vpop.f32.mrb[0].mxu0
        %v2126 = vpop.f32.mrb[0].mxu0
        %v2127 = vadd.f32 %v667, %v2126
        %v2128 = vpop.f32.mrb[0].mxu0
        %2129 = vdwg.mxu0
        %v2131 = vsel %vm1885, %v1477, 0
        %v2134 = vsel %vm1885, %v1478, 0
        %v2137 = vsel %vm1885, %v1669, 0
        %v2140 = vsel %vm1885, %v1670, 0
        %2142 = vmatprep.subr.bf16.mxu0 0
        %2143 = vmatpush1.bf16.xpose.msra.mxu0 %v2137
        %2144 = vmatprep.subr.bf16.mxu0 0
        %2145 = vmatpush1.bf16.xpose.msra.mxu0 %v2140
        %2146 = vmatprep.subr.bf16.mxu0 0
        %2147 = vmatpush1.bf16.xpose.msra.mxu0 0
        %2148 = vmatprep.subr.bf16.mxu0 0
        %2149 = vmatpush1.bf16.xpose.msra.mxu0 0
        %2150 = vmatprep.subr.bf16.mxu0 0
        %2151 = vmatpush1.bf16.xpose.msra.mxu0 0
        %2152 = vmatprep.subr.bf16.mxu0 0
        %2153 = vmatpush1.bf16.xpose.msra.mxu0 0
        %2154 = vmatprep.subr.bf16.mxu0 0
        %2155 = vmatpush1.bf16.xpose.msra.mxu0 0
        %2156 = vmatprep.subr.bf16.mxu0 0
        %2157 = vmatpush1.bf16.xpose.msra.mxu0 0
        %2158 = vmatprep.subr.bf16.mxu0 0
        %2159 = vmatpush1.bf16.xpose.msra.mxu0 0
        %2160 = vmatprep.subr.bf16.mxu0 0
        %2161 = vmatpush1.bf16.xpose.msra.mxu0 0
        %2162 = vmatprep.subr.bf16.mxu0 0
        %2163 = vmatpush1.bf16.xpose.msra.mxu0 0
        %2164 = vmatprep.subr.bf16.mxu0 0
        %2165 = vmatpush1.bf16.xpose.msra.mxu0 0
        %2166 = vmatprep.subr.bf16.mxu0 0
        %2167 = vmatpush1.bf16.xpose.msra.mxu0 0
        %2168 = vmatprep.subr.bf16.mxu0 0
        %2169 = vmatpush1.bf16.xpose.msra.mxu0 0
        %2170 = vmatprep.subr.bf16.mxu0 0
        %2171 = vmatpush1.bf16.xpose.msra.mxu0 0
        %2172 = vmatprep.subr.bf16.mxu0 0
        %2173 = vmatpush1.bf16.xpose.msra.mxu0 0
        %2174 = vmatprep.mubr.bf16.mxu0 0
        %2175 = vmatmul.mubr.bf16.gmra.mrb[0].mxu0 %v2131
        %v2176 = vpop.f32.mrb[0].mxu0
        %v2177 = vadd.f32 %v664, %v2176
        %v2178 = vpop.f32.mrb[0].mxu0
        %v2179 = vpop.f32.mrb[0].mxu0
        %v2180 = vadd.f32 %v665, %v2179
        %v2181 = vpop.f32.mrb[0].mxu0
        %2182 = vmatprep.mubr.bf16.mxu0 0
        %2183 = vmatmul.mubr.bf16.gmra.mrb[0].mxu0 %v2134
        %v2184 = vpop.f32.mrb[0].mxu0
        %v2185 = vadd.f32 %v666, %v2184
        %v2186 = vpop.f32.mrb[0].mxu0
        %v2187 = vpop.f32.mrb[0].mxu0
        %v2188 = vadd.f32 %v667, %v2187
        %v2189 = vpop.f32.mrb[0].mxu0
        %2190 = vdwg.mxu0
        %v2192 = vsel %vm1885, %v1479, 0
        %v2195 = vsel %vm1885, %v1480, 0
        %v2198 = vsel %vm1885, %v1671, 0
        %v2201 = vsel %vm1885, %v1672, 0
        %2203 = vmatprep.subr.bf16.mxu0 0
        %2204 = vmatpush1.bf16.xpose.msra.mxu0 %v2198
        %2205 = vmatprep.subr.bf16.mxu0 0
        %2206 = vmatpush1.bf16.xpose.msra.mxu0 %v2201
        %2207 = vmatprep.subr.bf16.mxu0 0
        %2208 = vmatpush1.bf16.xpose.msra.mxu0 0
        %2209 = vmatprep.subr.bf16.mxu0 0
        %2210 = vmatpush1.bf16.xpose.msra.mxu0 0
        %2211 = vmatprep.subr.bf16.mxu0 0
        %2212 = vmatpush1.bf16.xpose.msra.mxu0 0
        %2213 = vmatprep.subr.bf16.mxu0 0
        %2214 = vmatpush1.bf16.xpose.msra.mxu0 0
        %2215 = vmatprep.subr.bf16.mxu0 0
        %2216 = vmatpush1.bf16.xpose.msra.mxu0 0
        %2217 = vmatprep.subr.bf16.mxu0 0
        %2218 = vmatpush1.bf16.xpose.msra.mxu0 0
        %2219 = vmatprep.subr.bf16.mxu0 0
        %2220 = vmatpush1.bf16.xpose.msra.mxu0 0
        %2221 = vmatprep.subr.bf16.mxu0 0
        %2222 = vmatpush1.bf16.xpose.msra.mxu0 0
        %2223 = vmatprep.subr.bf16.mxu0 0
        %2224 = vmatpush1.bf16.xpose.msra.mxu0 0
        %2225 = vmatprep.subr.bf16.mxu0 0
        %2226 = vmatpush1.bf16.xpose.msra.mxu0 0
        %2227 = vmatprep.subr.bf16.mxu0 0
        %2228 = vmatpush1.bf16.xpose.msra.mxu0 0
        %2229 = vmatprep.subr.bf16.mxu0 0
        %2230 = vmatpush1.bf16.xpose.msra.mxu0 0
        %2231 = vmatprep.subr.bf16.mxu0 0
        %2232 = vmatpush1.bf16.xpose.msra.mxu0 0
        %2233 = vmatprep.subr.bf16.mxu0 0
        %2234 = vmatpush1.bf16.xpose.msra.mxu0 0
        %2235 = vmatprep.mubr.bf16.mxu0 0
        %2236 = vmatmul.mubr.bf16.gmra.mrb[0].mxu0 %v2192
        %v2237 = vpop.f32.mrb[0].mxu0
        %v2238 = vadd.f32 %v664, %v2237
        %v2239 = vpop.f32.mrb[0].mxu0
        %v2240 = vpop.f32.mrb[0].mxu0
        %v2241 = vadd.f32 %v665, %v2240
        %v2242 = vpop.f32.mrb[0].mxu0
        %2243 = vmatprep.mubr.bf16.mxu0 0
        %2244 = vmatmul.mubr.bf16.gmra.mrb[0].mxu0 %v2195
        %v2245 = vpop.f32.mrb[0].mxu0
        %v2246 = vadd.f32 %v666, %v2245
        %v2247 = vpop.f32.mrb[0].mxu0
        %v2248 = vpop.f32.mrb[0].mxu0
        %v2249 = vadd.f32 %v667, %v2248
        %v2250 = vpop.f32.mrb[0].mxu0
        %2251 = vdwg.mxu0
        %v2253 = vsel %vm1885, %v1481, 0
        %v2256 = vsel %vm1885, %v1482, 0
        %v2259 = vsel %vm1885, %v1673, 0
        %v2262 = vsel %vm1885, %v1674, 0
        %2264 = vmatprep.subr.bf16.mxu0 0
        %2265 = vmatpush1.bf16.xpose.msra.mxu0 %v2259
        %2266 = vmatprep.subr.bf16.mxu0 0
        %2267 = vmatpush1.bf16.xpose.msra.mxu0 %v2262
        %2268 = vmatprep.subr.bf16.mxu0 0
        %2269 = vmatpush1.bf16.xpose.msra.mxu0 0
        %2270 = vmatprep.subr.bf16.mxu0 0
        %2271 = vmatpush1.bf16.xpose.msra.mxu0 0
        %2272 = vmatprep.subr.bf16.mxu0 0
        %2273 = vmatpush1.bf16.xpose.msra.mxu0 0
        %2274 = vmatprep.subr.bf16.mxu0 0
        %2275 = vmatpush1.bf16.xpose.msra.mxu0 0
        %2276 = vmatprep.subr.bf16.mxu0 0
        %2277 = vmatpush1.bf16.xpose.msra.mxu0 0
        %2278 = vmatprep.subr.bf16.mxu0 0
        %2279 = vmatpush1.bf16.xpose.msra.mxu0 0
        %2280 = vmatprep.subr.bf16.mxu0 0
        %2281 = vmatpush1.bf16.xpose.msra.mxu0 0
        %2282 = vmatprep.subr.bf16.mxu0 0
        %2283 = vmatpush1.bf16.xpose.msra.mxu0 0
        %2284 = vmatprep.subr.bf16.mxu0 0
        %2285 = vmatpush1.bf16.xpose.msra.mxu0 0
        %2286 = vmatprep.subr.bf16.mxu0 0
        %2287 = vmatpush1.bf16.xpose.msra.mxu0 0
        %2288 = vmatprep.subr.bf16.mxu0 0
        %2289 = vmatpush1.bf16.xpose.msra.mxu0 0
        %2290 = vmatprep.subr.bf16.mxu0 0
        %2291 = vmatpush1.bf16.xpose.msra.mxu0 0
        %2292 = vmatprep.subr.bf16.mxu0 0
        %2293 = vmatpush1.bf16.xpose.msra.mxu0 0
        %2294 = vmatprep.subr.bf16.mxu0 0
        %2295 = vmatpush1.bf16.xpose.msra.mxu0 0
        %2296 = vmatprep.mubr.bf16.mxu0 0
        %2297 = vmatmul.mubr.bf16.gmra.mrb[0].mxu0 %v2253
        %v2298 = vpop.f32.mrb[0].mxu0
        %v2299 = vadd.f32 %v664, %v2298
        %v2300 = vpop.f32.mrb[0].mxu0
        %v2301 = vpop.f32.mrb[0].mxu0
        %v2302 = vadd.f32 %v665, %v2301
        %v2303 = vpop.f32.mrb[0].mxu0
        %2304 = vmatprep.mubr.bf16.mxu0 0
        %2305 = vmatmul.mubr.bf16.gmra.mrb[0].mxu0 %v2256
        %v2306 = vpop.f32.mrb[0].mxu0
        %v2307 = vadd.f32 %v666, %v2306
        %v2308 = vpop.f32.mrb[0].mxu0
        %v2309 = vpop.f32.mrb[0].mxu0
        %v2310 = vadd.f32 %v667, %v2309
        %v2311 = vpop.f32.mrb[0].mxu0
        %2312 = vdwg.mxu0
        %v2314 = vsel %vm1885, %v1483, 0
        %v2317 = vsel %vm1885, %v1484, 0
        %v2320 = vsel %vm1885, %v1675, 0
        %v2323 = vsel %vm1885, %v1676, 0
        %2325 = vmatprep.subr.bf16.mxu0 0
        %2326 = vmatpush1.bf16.xpose.msra.mxu0 %v2320
        %2327 = vmatprep.subr.bf16.mxu0 0
        %2328 = vmatpush1.bf16.xpose.msra.mxu0 %v2323
        %2329 = vmatprep.subr.bf16.mxu0 0
        %2330 = vmatpush1.bf16.xpose.msra.mxu0 0
        %2331 = vmatprep.subr.bf16.mxu0 0
        %2332 = vmatpush1.bf16.xpose.msra.mxu0 0
        %2333 = vmatprep.subr.bf16.mxu0 0
        %2334 = vmatpush1.bf16.xpose.msra.mxu0 0
        %2335 = vmatprep.subr.bf16.mxu0 0
        %2336 = vmatpush1.bf16.xpose.msra.mxu0 0
        %2337 = vmatprep.subr.bf16.mxu0 0
        %2338 = vmatpush1.bf16.xpose.msra.mxu0 0
        %2339 = vmatprep.subr.bf16.mxu0 0
        %2340 = vmatpush1.bf16.xpose.msra.mxu0 0
        %2341 = vmatprep.subr.bf16.mxu0 0
        %2342 = vmatpush1.bf16.xpose.msra.mxu0 0
        %2343 = vmatprep.subr.bf16.mxu0 0
        %2344 = vmatpush1.bf16.xpose.msra.mxu0 0
        %2345 = vmatprep.subr.bf16.mxu0 0
        %2346 = vmatpush1.bf16.xpose.msra.mxu0 0
        %2347 = vmatprep.subr.bf16.mxu0 0
        %2348 = vmatpush1.bf16.xpose.msra.mxu0 0
        %2349 = vmatprep.subr.bf16.mxu0 0
        %2350 = vmatpush1.bf16.xpose.msra.mxu0 0
        %2351 = vmatprep.subr.bf16.mxu0 0
        %2352 = vmatpush1.bf16.xpose.msra.mxu0 0
        %2353 = vmatprep.subr.bf16.mxu0 0
        %2354 = vmatpush1.bf16.xpose.msra.mxu0 0
        %2355 = vmatprep.subr.bf16.mxu0 0
        %2356 = vmatpush1.bf16.xpose.msra.mxu0 0
        %2357 = vmatprep.mubr.bf16.mxu0 0
        %2358 = vmatmul.mubr.bf16.gmra.mrb[0].mxu0 %v2314
        %v2359 = vpop.f32.mrb[0].mxu0
        %v2360 = vadd.f32 %v664, %v2359
        %v2361 = vpop.f32.mrb[0].mxu0
        %v2362 = vpop.f32.mrb[0].mxu0
        %v2363 = vadd.f32 %v665, %v2362
        %v2364 = vpop.f32.mrb[0].mxu0
        %2365 = vmatprep.mubr.bf16.mxu0 0
        %2366 = vmatmul.mubr.bf16.gmra.mrb[0].mxu0 %v2317
        %v2367 = vpop.f32.mrb[0].mxu0
        %v2368 = vadd.f32 %v666, %v2367
        %v2369 = vpop.f32.mrb[0].mxu0
        %v2370 = vpop.f32.mrb[0].mxu0
        %v2371 = vadd.f32 %v667, %v2370
        %v2372 = vpop.f32.mrb[0].mxu0
        %2373 = vdwg.mxu0
        %v2375 = vsel %vm1885, %v1485, 0
        %v2378 = vsel %vm1885, %v1486, 0
        %v2381 = vsel %vm1885, %v1677, 0
        %v2384 = vsel %vm1885, %v1678, 0
        %2386 = vmatprep.subr.bf16.mxu0 0
        %2387 = vmatpush1.bf16.xpose.msra.mxu0 %v2381
        %2388 = vmatprep.subr.bf16.mxu0 0
        %2389 = vmatpush1.bf16.xpose.msra.mxu0 %v2384
        %2390 = vmatprep.subr.bf16.mxu0 0
        %2391 = vmatpush1.bf16.xpose.msra.mxu0 0
        %2392 = vmatprep.subr.bf16.mxu0 0
        %2393 = vmatpush1.bf16.xpose.msra.mxu0 0
        %2394 = vmatprep.subr.bf16.mxu0 0
        %2395 = vmatpush1.bf16.xpose.msra.mxu0 0
        %2396 = vmatprep.subr.bf16.mxu0 0
        %2397 = vmatpush1.bf16.xpose.msra.mxu0 0
        %2398 = vmatprep.subr.bf16.mxu0 0
        %2399 = vmatpush1.bf16.xpose.msra.mxu0 0
        %2400 = vmatprep.subr.bf16.mxu0 0
        %2401 = vmatpush1.bf16.xpose.msra.mxu0 0
        %2402 = vmatprep.subr.bf16.mxu0 0
        %2403 = vmatpush1.bf16.xpose.msra.mxu0 0
        %2404 = vmatprep.subr.bf16.mxu0 0
        %2405 = vmatpush1.bf16.xpose.msra.mxu0 0
        %2406 = vmatprep.subr.bf16.mxu0 0
        %2407 = vmatpush1.bf16.xpose.msra.mxu0 0
        %2408 = vmatprep.subr.bf16.mxu0 0
        %2409 = vmatpush1.bf16.xpose.msra.mxu0 0
        %2410 = vmatprep.subr.bf16.mxu0 0
        %2411 = vmatpush1.bf16.xpose.msra.mxu0 0
        %2412 = vmatprep.subr.bf16.mxu0 0
        %2413 = vmatpush1.bf16.xpose.msra.mxu0 0
        %2414 = vmatprep.subr.bf16.mxu0 0
        %2415 = vmatpush1.bf16.xpose.msra.mxu0 0
        %2416 = vmatprep.subr.bf16.mxu0 0
        %2417 = vmatpush1.bf16.xpose.msra.mxu0 0
        %2418 = vmatprep.mubr.bf16.mxu0 0
        %2419 = vmatmul.mubr.bf16.gmra.mrb[0].mxu0 %v2375
        %v2420 = vpop.f32.mrb[0].mxu0
        %v2421 = vadd.f32 %v664, %v2420
        %v2422 = vpop.f32.mrb[0].mxu0
        %v2423 = vpop.f32.mrb[0].mxu0
        %v2424 = vadd.f32 %v665, %v2423
        %v2425 = vpop.f32.mrb[0].mxu0
        %2426 = vmatprep.mubr.bf16.mxu0 0
        %2427 = vmatmul.mubr.bf16.gmra.mrb[0].mxu0 %v2378
        %v2428 = vpop.f32.mrb[0].mxu0
        %v2429 = vadd.f32 %v666, %v2428
        %v2430 = vpop.f32.mrb[0].mxu0
        %v2431 = vpop.f32.mrb[0].mxu0
        %v2432 = vadd.f32 %v667, %v2431
        %v2433 = vpop.f32.mrb[0].mxu0
        %2434 = vdwg.mxu0
        %v2436 = vsel %vm1885, %v1487, 0
        %v2439 = vsel %vm1885, %v1488, 0
        %v2442 = vsel %vm1885, %v1679, 0
        %v2445 = vsel %vm1885, %v1680, 0
        %2447 = vmatprep.subr.bf16.mxu0 0
        %2448 = vmatpush1.bf16.xpose.msra.mxu0 %v2442
        %2449 = vmatprep.subr.bf16.mxu0 0
        %2450 = vmatpush1.bf16.xpose.msra.mxu0 %v2445
        %2451 = vmatprep.subr.bf16.mxu0 0
        %2452 = vmatpush1.bf16.xpose.msra.mxu0 0
        %2453 = vmatprep.subr.bf16.mxu0 0
        %2454 = vmatpush1.bf16.xpose.msra.mxu0 0
        %2455 = vmatprep.subr.bf16.mxu0 0
        %2456 = vmatpush1.bf16.xpose.msra.mxu0 0
        %2457 = vmatprep.subr.bf16.mxu0 0
        %2458 = vmatpush1.bf16.xpose.msra.mxu0 0
        %2459 = vmatprep.subr.bf16.mxu0 0
        %2460 = vmatpush1.bf16.xpose.msra.mxu0 0
        %2461 = vmatprep.subr.bf16.mxu0 0
        %2462 = vmatpush1.bf16.xpose.msra.mxu0 0
        %2463 = vmatprep.subr.bf16.mxu0 0
        %2464 = vmatpush1.bf16.xpose.msra.mxu0 0
        %2465 = vmatprep.subr.bf16.mxu0 0
        %2466 = vmatpush1.bf16.xpose.msra.mxu0 0
        %2467 = vmatprep.subr.bf16.mxu0 0
        %2468 = vmatpush1.bf16.xpose.msra.mxu0 0
        %2469 = vmatprep.subr.bf16.mxu0 0
        %2470 = vmatpush1.bf16.xpose.msra.mxu0 0
        %2471 = vmatprep.subr.bf16.mxu0 0
        %2472 = vmatpush1.bf16.xpose.msra.mxu0 0
        %2473 = vmatprep.subr.bf16.mxu0 0
        %2474 = vmatpush1.bf16.xpose.msra.mxu0 0
        %2475 = vmatprep.subr.bf16.mxu0 0
        %2476 = vmatpush1.bf16.xpose.msra.mxu0 0
        %2477 = vmatprep.subr.bf16.mxu0 0
        %2478 = vmatpush1.bf16.xpose.msra.mxu0 0
        %2479 = vmatprep.mubr.bf16.mxu0 0
        %2480 = vmatmul.mubr.bf16.gmra.mrb[0].mxu0 %v2436
        %v2481 = vpop.f32.mrb[0].mxu0
        %v2482 = vadd.f32 %v664, %v2481
        %v2483 = vpop.f32.mrb[0].mxu0
        %v2484 = vpop.f32.mrb[0].mxu0
        %v2485 = vadd.f32 %v665, %v2484
        %v2486 = vpop.f32.mrb[0].mxu0
        %2487 = vmatprep.mubr.bf16.mxu0 0
        %2488 = vmatmul.mubr.bf16.gmra.mrb[0].mxu0 %v2439
        %v2489 = vpop.f32.mrb[0].mxu0
        %v2490 = vadd.f32 %v666, %v2489
        %v2491 = vpop.f32.mrb[0].mxu0
        %v2492 = vpop.f32.mrb[0].mxu0
        %v2493 = vadd.f32 %v667, %v2492
        %v2494 = vpop.f32.mrb[0].mxu0
        %2495 = vdwg.mxu0
        %v2497 = vsel %vm1885, %v1489, 0
        %v2500 = vsel %vm1885, %v1490, 0
        %v2503 = vsel %vm1885, %v1681, 0
        %v2506 = vsel %vm1885, %v1682, 0
        %2508 = vmatprep.subr.bf16.mxu0 0
        %2509 = vmatpush1.bf16.xpose.msra.mxu0 %v2503
        %2510 = vmatprep.subr.bf16.mxu0 0
        %2511 = vmatpush1.bf16.xpose.msra.mxu0 %v2506
        %2512 = vmatprep.subr.bf16.mxu0 0
        %2513 = vmatpush1.bf16.xpose.msra.mxu0 0
        %2514 = vmatprep.subr.bf16.mxu0 0
        %2515 = vmatpush1.bf16.xpose.msra.mxu0 0
        %2516 = vmatprep.subr.bf16.mxu0 0
        %2517 = vmatpush1.bf16.xpose.msra.mxu0 0
        %2518 = vmatprep.subr.bf16.mxu0 0
        %2519 = vmatpush1.bf16.xpose.msra.mxu0 0
        %2520 = vmatprep.subr.bf16.mxu0 0
        %2521 = vmatpush1.bf16.xpose.msra.mxu0 0
        %2522 = vmatprep.subr.bf16.mxu0 0
        %2523 = vmatpush1.bf16.xpose.msra.mxu0 0
        %2524 = vmatprep.subr.bf16.mxu0 0
        %2525 = vmatpush1.bf16.xpose.msra.mxu0 0
        %2526 = vmatprep.subr.bf16.mxu0 0
        %2527 = vmatpush1.bf16.xpose.msra.mxu0 0
        %2528 = vmatprep.subr.bf16.mxu0 0
        %2529 = vmatpush1.bf16.xpose.msra.mxu0 0
        %2530 = vmatprep.subr.bf16.mxu0 0
        %2531 = vmatpush1.bf16.xpose.msra.mxu0 0
        %2532 = vmatprep.subr.bf16.mxu0 0
        %2533 = vmatpush1.bf16.xpose.msra.mxu0 0
        %2534 = vmatprep.subr.bf16.mxu0 0
        %2535 = vmatpush1.bf16.xpose.msra.mxu0 0
        %2536 = vmatprep.subr.bf16.mxu0 0
        %2537 = vmatpush1.bf16.xpose.msra.mxu0 0
        %2538 = vmatprep.subr.bf16.mxu0 0
        %2539 = vmatpush1.bf16.xpose.msra.mxu0 0
        %2540 = vmatprep.mubr.bf16.mxu0 0
        %2541 = vmatmul.mubr.bf16.gmra.mrb[0].mxu0 %v2497
        %v2542 = vpop.f32.mrb[0].mxu0
        %v2543 = vadd.f32 %v664, %v2542
        %v2544 = vpop.f32.mrb[0].mxu0
        %v2545 = vpop.f32.mrb[0].mxu0
        %v2546 = vadd.f32 %v665, %v2545
        %v2547 = vpop.f32.mrb[0].mxu0
        %2548 = vmatprep.mubr.bf16.mxu0 0
        %2549 = vmatmul.mubr.bf16.gmra.mrb[0].mxu0 %v2500
        %v2550 = vpop.f32.mrb[0].mxu0
        %v2551 = vadd.f32 %v666, %v2550
        %v2552 = vpop.f32.mrb[0].mxu0
        %v2553 = vpop.f32.mrb[0].mxu0
        %v2554 = vadd.f32 %v667, %v2553
        %v2555 = vpop.f32.mrb[0].mxu0
        %2556 = vdwg.mxu0
        %v2558 = vsel %vm1885, %v1491, 0
        %v2561 = vsel %vm1885, %v1492, 0
        %v2564 = vsel %vm1885, %v1683, 0
        %v2567 = vsel %vm1885, %v1684, 0
        %2569 = vmatprep.subr.bf16.mxu0 0
        %2570 = vmatpush1.bf16.xpose.msra.mxu0 %v2564
        %2571 = vmatprep.subr.bf16.mxu0 0
        %2572 = vmatpush1.bf16.xpose.msra.mxu0 %v2567
        %2573 = vmatprep.subr.bf16.mxu0 0
        %2574 = vmatpush1.bf16.xpose.msra.mxu0 0
        %2575 = vmatprep.subr.bf16.mxu0 0
        %2576 = vmatpush1.bf16.xpose.msra.mxu0 0
        %2577 = vmatprep.subr.bf16.mxu0 0
        %2578 = vmatpush1.bf16.xpose.msra.mxu0 0
        %2579 = vmatprep.subr.bf16.mxu0 0
        %2580 = vmatpush1.bf16.xpose.msra.mxu0 0
        %2581 = vmatprep.subr.bf16.mxu0 0
        %2582 = vmatpush1.bf16.xpose.msra.mxu0 0
        %2583 = vmatprep.subr.bf16.mxu0 0
        %2584 = vmatpush1.bf16.xpose.msra.mxu0 0
        %2585 = vmatprep.subr.bf16.mxu0 0
        %2586 = vmatpush1.bf16.xpose.msra.mxu0 0
        %2587 = vmatprep.subr.bf16.mxu0 0
        %2588 = vmatpush1.bf16.xpose.msra.mxu0 0
        %2589 = vmatprep.subr.bf16.mxu0 0
        %2590 = vmatpush1.bf16.xpose.msra.mxu0 0
        %2591 = vmatprep.subr.bf16.mxu0 0
        %2592 = vmatpush1.bf16.xpose.msra.mxu0 0
        %2593 = vmatprep.subr.bf16.mxu0 0
        %2594 = vmatpush1.bf16.xpose.msra.mxu0 0
        %2595 = vmatprep.subr.bf16.mxu0 0
        %2596 = vmatpush1.bf16.xpose.msra.mxu0 0
        %2597 = vmatprep.subr.bf16.mxu0 0
        %2598 = vmatpush1.bf16.xpose.msra.mxu0 0
        %2599 = vmatprep.subr.bf16.mxu0 0
        %2600 = vmatpush1.bf16.xpose.msra.mxu0 0
        %2601 = vmatprep.mubr.bf16.mxu0 0
        %2602 = vmatmul.mubr.bf16.gmra.mrb[0].mxu0 %v2558
        %v2603 = vpop.f32.mrb[0].mxu0
        %v2604 = vadd.f32 %v664, %v2603
        %v2605 = vpop.f32.mrb[0].mxu0
        %v2606 = vpop.f32.mrb[0].mxu0
        %v2607 = vadd.f32 %v665, %v2606
        %v2608 = vpop.f32.mrb[0].mxu0
        %2609 = vmatprep.mubr.bf16.mxu0 0
        %2610 = vmatmul.mubr.bf16.gmra.mrb[0].mxu0 %v2561
        %v2611 = vpop.f32.mrb[0].mxu0
        %v2612 = vadd.f32 %v666, %v2611
        %v2613 = vpop.f32.mrb[0].mxu0
        %v2614 = vpop.f32.mrb[0].mxu0
        %v2615 = vadd.f32 %v667, %v2614
        %v2616 = vpop.f32.mrb[0].mxu0
        %2617 = vdwg.mxu0
        %v2619 = vsel %vm1885, %v1493, 0
        %v2622 = vsel %vm1885, %v1494, 0
        %v2625 = vsel %vm1885, %v1685, 0
        %v2628 = vsel %vm1885, %v1686, 0
        %2630 = vmatprep.subr.bf16.mxu0 0
        %2631 = vmatpush1.bf16.xpose.msra.mxu0 %v2625
        %2632 = vmatprep.subr.bf16.mxu0 0
        %2633 = vmatpush1.bf16.xpose.msra.mxu0 %v2628
        %2634 = vmatprep.subr.bf16.mxu0 0
        %2635 = vmatpush1.bf16.xpose.msra.mxu0 0
        %2636 = vmatprep.subr.bf16.mxu0 0
        %2637 = vmatpush1.bf16.xpose.msra.mxu0 0
        %2638 = vmatprep.subr.bf16.mxu0 0
        %2639 = vmatpush1.bf16.xpose.msra.mxu0 0
        %2640 = vmatprep.subr.bf16.mxu0 0
        %2641 = vmatpush1.bf16.xpose.msra.mxu0 0
        %2642 = vmatprep.subr.bf16.mxu0 0
        %2643 = vmatpush1.bf16.xpose.msra.mxu0 0
        %2644 = vmatprep.subr.bf16.mxu0 0
        %2645 = vmatpush1.bf16.xpose.msra.mxu0 0
        %2646 = vmatprep.subr.bf16.mxu0 0
        %2647 = vmatpush1.bf16.xpose.msra.mxu0 0
        %2648 = vmatprep.subr.bf16.mxu0 0
        %2649 = vmatpush1.bf16.xpose.msra.mxu0 0
        %2650 = vmatprep.subr.bf16.mxu0 0
        %2651 = vmatpush1.bf16.xpose.msra.mxu0 0
        %2652 = vmatprep.subr.bf16.mxu0 0
        %2653 = vmatpush1.bf16.xpose.msra.mxu0 0
        %2654 = vmatprep.subr.bf16.mxu0 0
        %2655 = vmatpush1.bf16.xpose.msra.mxu0 0
        %2656 = vmatprep.subr.bf16.mxu0 0
        %2657 = vmatpush1.bf16.xpose.msra.mxu0 0
        %2658 = vmatprep.subr.bf16.mxu0 0
        %2659 = vmatpush1.bf16.xpose.msra.mxu0 0
        %2660 = vmatprep.subr.bf16.mxu0 0
        %2661 = vmatpush1.bf16.xpose.msra.mxu0 0
        %2662 = vmatprep.mubr.bf16.mxu0 0
        %2663 = vmatmul.mubr.bf16.gmra.mrb[0].mxu0 %v2619
        %v2664 = vpop.f32.mrb[0].mxu0
        %v2665 = vadd.f32 %v664, %v2664
        %v2666 = vpop.f32.mrb[0].mxu0
        %v2667 = vpop.f32.mrb[0].mxu0
        %v2668 = vadd.f32 %v665, %v2667
        %v2669 = vpop.f32.mrb[0].mxu0
        %2670 = vmatprep.mubr.bf16.mxu0 0
        %2671 = vmatmul.mubr.bf16.gmra.mrb[0].mxu0 %v2622
        %v2672 = vpop.f32.mrb[0].mxu0
        %v2673 = vadd.f32 %v666, %v2672
        %v2674 = vpop.f32.mrb[0].mxu0
        %v2675 = vpop.f32.mrb[0].mxu0
        %v2676 = vadd.f32 %v667, %v2675
        %v2677 = vpop.f32.mrb[0].mxu0
        %2678 = vdwg.mxu0
        %v2680 = vsel %vm1885, %v1495, 0
        %v2683 = vsel %vm1885, %v1496, 0
        %v2686 = vsel %vm1885, %v1687, 0
        %v2689 = vsel %vm1885, %v1688, 0
        %2691 = vmatprep.subr.bf16.mxu0 0
        %2692 = vmatpush1.bf16.xpose.msra.mxu0 %v2686
        %2693 = vmatprep.subr.bf16.mxu0 0
        %2694 = vmatpush1.bf16.xpose.msra.mxu0 %v2689
        %2695 = vmatprep.subr.bf16.mxu0 0
        %2696 = vmatpush1.bf16.xpose.msra.mxu0 0
        %2697 = vmatprep.subr.bf16.mxu0 0
        %2698 = vmatpush1.bf16.xpose.msra.mxu0 0
        %2699 = vmatprep.subr.bf16.mxu0 0
        %2700 = vmatpush1.bf16.xpose.msra.mxu0 0
        %2701 = vmatprep.subr.bf16.mxu0 0
        %2702 = vmatpush1.bf16.xpose.msra.mxu0 0
        %2703 = vmatprep.subr.bf16.mxu0 0
        %2704 = vmatpush1.bf16.xpose.msra.mxu0 0
        %2705 = vmatprep.subr.bf16.mxu0 0
        %2706 = vmatpush1.bf16.xpose.msra.mxu0 0
        %2707 = vmatprep.subr.bf16.mxu0 0
        %2708 = vmatpush1.bf16.xpose.msra.mxu0 0
        %2709 = vmatprep.subr.bf16.mxu0 0
        %2710 = vmatpush1.bf16.xpose.msra.mxu0 0
        %2711 = vmatprep.subr.bf16.mxu0 0
        %2712 = vmatpush1.bf16.xpose.msra.mxu0 0
        %2713 = vmatprep.subr.bf16.mxu0 0
        %2714 = vmatpush1.bf16.xpose.msra.mxu0 0
        %2715 = vmatprep.subr.bf16.mxu0 0
        %2716 = vmatpush1.bf16.xpose.msra.mxu0 0
        %2717 = vmatprep.subr.bf16.mxu0 0
        %2718 = vmatpush1.bf16.xpose.msra.mxu0 0
        %2719 = vmatprep.subr.bf16.mxu0 0
        %2720 = vmatpush1.bf16.xpose.msra.mxu0 0
        %2721 = vmatprep.subr.bf16.mxu0 0
        %2722 = vmatpush1.bf16.xpose.msra.mxu0 0
        %2723 = vmatprep.mubr.bf16.mxu0 0
        %2724 = vmatmul.mubr.bf16.gmra.mrb[0].mxu0 %v2680
        %v2725 = vpop.f32.mrb[0].mxu0
        %v2726 = vadd.f32 %v664, %v2725
        %v2727 = vpop.f32.mrb[0].mxu0
        %v2728 = vpop.f32.mrb[0].mxu0
        %v2729 = vadd.f32 %v665, %v2728
        %v2730 = vpop.f32.mrb[0].mxu0
        %2731 = vmatprep.mubr.bf16.mxu0 0
        %2732 = vmatmul.mubr.bf16.gmra.mrb[0].mxu0 %v2683
        %v2733 = vpop.f32.mrb[0].mxu0
        %v2734 = vadd.f32 %v666, %v2733
        %v2735 = vpop.f32.mrb[0].mxu0
        %v2736 = vpop.f32.mrb[0].mxu0
        %v2737 = vadd.f32 %v667, %v2736
        %v2738 = vpop.f32.mrb[0].mxu0
        %2739 = vdwg.mxu0
        %v2741 = vsel %vm1885, %v1497, 0
        %v2744 = vsel %vm1885, %v1498, 0
        %v2747 = vsel %vm1885, %v1689, 0
        %v2750 = vsel %vm1885, %v1690, 0
        %2752 = vmatprep.subr.bf16.mxu0 0
        %2753 = vmatpush1.bf16.xpose.msra.mxu0 %v2747
        %2754 = vmatprep.subr.bf16.mxu0 0
        %2755 = vmatpush1.bf16.xpose.msra.mxu0 %v2750
        %2756 = vmatprep.subr.bf16.mxu0 0
        %2757 = vmatpush1.bf16.xpose.msra.mxu0 0
        %2758 = vmatprep.subr.bf16.mxu0 0
        %2759 = vmatpush1.bf16.xpose.msra.mxu0 0
        %2760 = vmatprep.subr.bf16.mxu0 0
        %2761 = vmatpush1.bf16.xpose.msra.mxu0 0
        %2762 = vmatprep.subr.bf16.mxu0 0
        %2763 = vmatpush1.bf16.xpose.msra.mxu0 0
        %2764 = vmatprep.subr.bf16.mxu0 0
        %2765 = vmatpush1.bf16.xpose.msra.mxu0 0
        %2766 = vmatprep.subr.bf16.mxu0 0
        %2767 = vmatpush1.bf16.xpose.msra.mxu0 0
        %2768 = vmatprep.subr.bf16.mxu0 0
        %2769 = vmatpush1.bf16.xpose.msra.mxu0 0
        %2770 = vmatprep.subr.bf16.mxu0 0
        %2771 = vmatpush1.bf16.xpose.msra.mxu0 0
        %2772 = vmatprep.subr.bf16.mxu0 0
        %2773 = vmatpush1.bf16.xpose.msra.mxu0 0
        %2774 = vmatprep.subr.bf16.mxu0 0
        %2775 = vmatpush1.bf16.xpose.msra.mxu0 0
        %2776 = vmatprep.subr.bf16.mxu0 0
        %2777 = vmatpush1.bf16.xpose.msra.mxu0 0
        %2778 = vmatprep.subr.bf16.mxu0 0
        %2779 = vmatpush1.bf16.xpose.msra.mxu0 0
        %2780 = vmatprep.subr.bf16.mxu0 0
        %2781 = vmatpush1.bf16.xpose.msra.mxu0 0
        %2782 = vmatprep.subr.bf16.mxu0 0
        %2783 = vmatpush1.bf16.xpose.msra.mxu0 0
        %2784 = vmatprep.mubr.bf16.mxu0 0
        %2785 = vmatmul.mubr.bf16.gmra.mrb[0].mxu0 %v2741
        %v2786 = vpop.f32.mrb[0].mxu0
        %v2787 = vadd.f32 %v664, %v2786
        %v2788 = vpop.f32.mrb[0].mxu0
        %v2789 = vpop.f32.mrb[0].mxu0
        %v2790 = vadd.f32 %v665, %v2789
        %v2791 = vpop.f32.mrb[0].mxu0
        %2792 = vmatprep.mubr.bf16.mxu0 0
        %2793 = vmatmul.mubr.bf16.gmra.mrb[0].mxu0 %v2744
        %v2794 = vpop.f32.mrb[0].mxu0
        %v2795 = vadd.f32 %v666, %v2794
        %v2796 = vpop.f32.mrb[0].mxu0
        %v2797 = vpop.f32.mrb[0].mxu0
        %v2798 = vadd.f32 %v667, %v2797
        %v2799 = vpop.f32.mrb[0].mxu0
        %2800 = vdwg.mxu0
        %v2802 = vsel %vm1885, %v1499, 0
        %v2805 = vsel %vm1885, %v1500, 0
        %v2808 = vsel %vm1885, %v1691, 0
        %v2811 = vsel %vm1885, %v1692, 0
        %2813 = vmatprep.subr.bf16.mxu0 0
        %2814 = vmatpush1.bf16.xpose.msra.mxu0 %v2808
        %2815 = vmatprep.subr.bf16.mxu0 0
        %2816 = vmatpush1.bf16.xpose.msra.mxu0 %v2811
        %2817 = vmatprep.subr.bf16.mxu0 0
        %2818 = vmatpush1.bf16.xpose.msra.mxu0 0
        %2819 = vmatprep.subr.bf16.mxu0 0
        %2820 = vmatpush1.bf16.xpose.msra.mxu0 0
        %2821 = vmatprep.subr.bf16.mxu0 0
        %2822 = vmatpush1.bf16.xpose.msra.mxu0 0
        %2823 = vmatprep.subr.bf16.mxu0 0
        %2824 = vmatpush1.bf16.xpose.msra.mxu0 0
        %2825 = vmatprep.subr.bf16.mxu0 0
        %2826 = vmatpush1.bf16.xpose.msra.mxu0 0
        %2827 = vmatprep.subr.bf16.mxu0 0
        %2828 = vmatpush1.bf16.xpose.msra.mxu0 0
        %2829 = vmatprep.subr.bf16.mxu0 0
        %2830 = vmatpush1.bf16.xpose.msra.mxu0 0
        %2831 = vmatprep.subr.bf16.mxu0 0
        %2832 = vmatpush1.bf16.xpose.msra.mxu0 0
        %2833 = vmatprep.subr.bf16.mxu0 0
        %2834 = vmatpush1.bf16.xpose.msra.mxu0 0
        %2835 = vmatprep.subr.bf16.mxu0 0
        %2836 = vmatpush1.bf16.xpose.msra.mxu0 0
        %2837 = vmatprep.subr.bf16.mxu0 0
        %2838 = vmatpush1.bf16.xpose.msra.mxu0 0
        %2839 = vmatprep.subr.bf16.mxu0 0
        %2840 = vmatpush1.bf16.xpose.msra.mxu0 0
        %2841 = vmatprep.subr.bf16.mxu0 0
        %2842 = vmatpush1.bf16.xpose.msra.mxu0 0
        %2843 = vmatprep.subr.bf16.mxu0 0
        %2844 = vmatpush1.bf16.xpose.msra.mxu0 0
        %2845 = vmatprep.mubr.bf16.mxu0 0
        %2846 = vmatmul.mubr.bf16.gmra.mrb[0].mxu0 %v2802
        %v2847 = vpop.f32.mrb[0].mxu0
        %v2848 = vadd.f32 %v664, %v2847
        %v2849 = vpop.f32.mrb[0].mxu0
        %v2850 = vpop.f32.mrb[0].mxu0
        %v2851 = vadd.f32 %v665, %v2850
        %v2852 = vpop.f32.mrb[0].mxu0
        %2853 = vmatprep.mubr.bf16.mxu0 0
        %2854 = vmatmul.mubr.bf16.gmra.mrb[0].mxu0 %v2805
        %v2855 = vpop.f32.mrb[0].mxu0
        %v2856 = vadd.f32 %v666, %v2855
        %v2857 = vpop.f32.mrb[0].mxu0
        %v2858 = vpop.f32.mrb[0].mxu0
        %v2859 = vadd.f32 %v667, %v2858
        %v2860 = vpop.f32.mrb[0].mxu0
        %2861 = vdwg.mxu0
        %v2862 = vsel %vm1885, %v1933, -inf
        %2863 = vmax.xlane.f32.xlu0 %v2862
        %v2864 = vpop.xlane.xlu0 %2863
        %v2865 = vsel %vm1885, %v1936, -inf
        %2866 = vmax.xlane.f32.xlu0 %v2865
        %v2867 = vpop.xlane.xlu0 %2866
        %v2868 = vsel %vm1885, %v1941, -inf
        %2869 = vmax.xlane.f32.xlu0 %v2868
        %v2870 = vpop.xlane.xlu0 %2869
        %v2871 = vsel %vm1885, %v1944, -inf
        %2872 = vmax.xlane.f32.xlu0 %v2871
        %v2873 = vpop.xlane.xlu0 %2872
        %v2874 = vsel %vm1885, %v1994, -inf
        %2875 = vmax.xlane.f32.xlu0 %v2874
        %v2876 = vpop.xlane.xlu0 %2875
        %v2877 = vsel %vm1885, %v1997, -inf
        %2878 = vmax.xlane.f32.xlu0 %v2877
        %v2879 = vpop.xlane.xlu0 %2878
        %v2880 = vsel %vm1885, %v2002, -inf
        %2881 = vmax.xlane.f32.xlu0 %v2880
        %v2882 = vpop.xlane.xlu0 %2881
        %v2883 = vsel %vm1885, %v2005, -inf
        %2884 = vmax.xlane.f32.xlu0 %v2883
        %v2885 = vpop.xlane.xlu0 %2884
        %v2886 = vsel %vm1885, %v2055, -inf
        %2887 = vmax.xlane.f32.xlu0 %v2886
        %v2888 = vpop.xlane.xlu0 %2887
        %v2889 = vsel %vm1885, %v2058, -inf
        %2890 = vmax.xlane.f32.xlu0 %v2889
        %v2891 = vpop.xlane.xlu0 %2890
        %v2892 = vsel %vm1885, %v2063, -inf
        %2893 = vmax.xlane.f32.xlu0 %v2892
        %v2894 = vpop.xlane.xlu0 %2893
        %v2895 = vsel %vm1885, %v2066, -inf
        %2896 = vmax.xlane.f32.xlu0 %v2895
        %v2897 = vpop.xlane.xlu0 %2896
        %v2898 = vsel %vm1885, %v2116, -inf
        %2899 = vmax.xlane.f32.xlu0 %v2898
        %v2900 = vpop.xlane.xlu0 %2899
        %v2901 = vsel %vm1885, %v2119, -inf
        %2902 = vmax.xlane.f32.xlu0 %v2901
        %v2903 = vpop.xlane.xlu0 %2902
        %v2904 = vsel %vm1885, %v2124, -inf
        %2905 = vmax.xlane.f32.xlu0 %v2904
        %v2906 = vpop.xlane.xlu0 %2905
        %v2907 = vsel %vm1885, %v2127, -inf
        %2908 = vmax.xlane.f32.xlu0 %v2907
        %v2909 = vpop.xlane.xlu0 %2908
        %v2910 = vsel %vm1885, %v2177, -inf
        %2911 = vmax.xlane.f32.xlu0 %v2910
        %v2912 = vpop.xlane.xlu0 %2911
        %v2913 = vsel %vm1885, %v2180, -inf
        %2914 = vmax.xlane.f32.xlu0 %v2913
        %v2915 = vpop.xlane.xlu0 %2914
        %v2916 = vsel %vm1885, %v2185, -inf
        %2917 = vmax.xlane.f32.xlu0 %v2916
        %v2918 = vpop.xlane.xlu0 %2917
        %v2919 = vsel %vm1885, %v2188, -inf
        %2920 = vmax.xlane.f32.xlu0 %v2919
        %v2921 = vpop.xlane.xlu0 %2920
        %v2922 = vsel %vm1885, %v2238, -inf
        %2923 = vmax.xlane.f32.xlu0 %v2922
        %v2924 = vpop.xlane.xlu0 %2923
        %v2925 = vsel %vm1885, %v2241, -inf
        %2926 = vmax.xlane.f32.xlu0 %v2925
        %v2927 = vpop.xlane.xlu0 %2926
        %v2928 = vsel %vm1885, %v2246, -inf
        %2929 = vmax.xlane.f32.xlu0 %v2928
        %v2930 = vpop.xlane.xlu0 %2929
        %v2931 = vsel %vm1885, %v2249, -inf
        %2932 = vmax.xlane.f32.xlu0 %v2931
        %v2933 = vpop.xlane.xlu0 %2932
        %v2934 = vsel %vm1885, %v2299, -inf
        %2935 = vmax.xlane.f32.xlu0 %v2934
        %v2936 = vpop.xlane.xlu0 %2935
        %v2937 = vsel %vm1885, %v2302, -inf
        %2938 = vmax.xlane.f32.xlu0 %v2937
        %v2939 = vpop.xlane.xlu0 %2938
        %v2940 = vsel %vm1885, %v2307, -inf
        %2941 = vmax.xlane.f32.xlu0 %v2940
        %v2942 = vpop.xlane.xlu0 %2941
        %v2943 = vsel %vm1885, %v2310, -inf
        %2944 = vmax.xlane.f32.xlu0 %v2943
        %v2945 = vpop.xlane.xlu0 %2944
        %v2946 = vsel %vm1885, %v2360, -inf
        %2947 = vmax.xlane.f32.xlu0 %v2946
        %v2948 = vpop.xlane.xlu0 %2947
        %v2949 = vsel %vm1885, %v2363, -inf
        %2950 = vmax.xlane.f32.xlu0 %v2949
        %v2951 = vpop.xlane.xlu0 %2950
        %v2952 = vsel %vm1885, %v2368, -inf
        %2953 = vmax.xlane.f32.xlu0 %v2952
        %v2954 = vpop.xlane.xlu0 %2953
        %v2955 = vsel %vm1885, %v2371, -inf
        %2956 = vmax.xlane.f32.xlu0 %v2955
        %v2957 = vpop.xlane.xlu0 %2956
        %v2958 = vsel %vm1885, %v2421, -inf
        %2959 = vmax.xlane.f32.xlu0 %v2958
        %v2960 = vpop.xlane.xlu0 %2959
        %v2961 = vsel %vm1885, %v2424, -inf
        %2962 = vmax.xlane.f32.xlu0 %v2961
        %v2963 = vpop.xlane.xlu0 %2962
        %v2964 = vsel %vm1885, %v2429, -inf
        %2965 = vmax.xlane.f32.xlu0 %v2964
        %v2966 = vpop.xlane.xlu0 %2965
        %v2967 = vsel %vm1885, %v2432, -inf
        %2968 = vmax.xlane.f32.xlu0 %v2967
        %v2969 = vpop.xlane.xlu0 %2968
        %v2970 = vsel %vm1885, %v2482, -inf
        %2971 = vmax.xlane.f32.xlu0 %v2970
        %v2972 = vpop.xlane.xlu0 %2971
        %v2973 = vsel %vm1885, %v2485, -inf
        %2974 = vmax.xlane.f32.xlu0 %v2973
        %v2975 = vpop.xlane.xlu0 %2974
        %v2976 = vsel %vm1885, %v2490, -inf
        %2977 = vmax.xlane.f32.xlu0 %v2976
        %v2978 = vpop.xlane.xlu0 %2977
        %v2979 = vsel %vm1885, %v2493, -inf
        %2980 = vmax.xlane.f32.xlu0 %v2979
        %v2981 = vpop.xlane.xlu0 %2980
        %v2982 = vsel %vm1885, %v2543, -inf
        %2983 = vmax.xlane.f32.xlu0 %v2982
        %v2984 = vpop.xlane.xlu0 %2983
        %v2985 = vsel %vm1885, %v2546, -inf
        %2986 = vmax.xlane.f32.xlu0 %v2985
        %v2987 = vpop.xlane.xlu0 %2986
        %v2988 = vsel %vm1885, %v2551, -inf
        %2989 = vmax.xlane.f32.xlu0 %v2988
        %v2990 = vpop.xlane.xlu0 %2989
        %v2991 = vsel %vm1885, %v2554, -inf
        %2992 = vmax.xlane.f32.xlu0 %v2991
        %v2993 = vpop.xlane.xlu0 %2992
        %v2994 = vsel %vm1885, %v2604, -inf
        %2995 = vmax.xlane.f32.xlu0 %v2994
        %v2996 = vpop.xlane.xlu0 %2995
        %v2997 = vsel %vm1885, %v2607, -inf
        %2998 = vmax.xlane.f32.xlu0 %v2997
        %v2999 = vpop.xlane.xlu0 %2998
        %v3000 = vsel %vm1885, %v2612, -inf
        %3001 = vmax.xlane.f32.xlu0 %v3000
        %v3002 = vpop.xlane.xlu0 %3001
        %v3003 = vsel %vm1885, %v2615, -inf
        %3004 = vmax.xlane.f32.xlu0 %v3003
        %v3005 = vpop.xlane.xlu0 %3004
        %v3006 = vsel %vm1885, %v2665, -inf
        %3007 = vmax.xlane.f32.xlu0 %v3006
        %v3008 = vpop.xlane.xlu0 %3007
        %v3009 = vsel %vm1885, %v2668, -inf
        %3010 = vmax.xlane.f32.xlu0 %v3009
        %v3011 = vpop.xlane.xlu0 %3010
        %v3012 = vsel %vm1885, %v2673, -inf
        %3013 = vmax.xlane.f32.xlu0 %v3012
        %v3014 = vpop.xlane.xlu0 %3013
        %v3015 = vsel %vm1885, %v2676, -inf
        %3016 = vmax.xlane.f32.xlu0 %v3015
        %v3017 = vpop.xlane.xlu0 %3016
        %v3018 = vsel %vm1885, %v2726, -inf
        %3019 = vmax.xlane.f32.xlu0 %v3018
        %v3020 = vpop.xlane.xlu0 %3019
        %v3021 = vsel %vm1885, %v2729, -inf
        %3022 = vmax.xlane.f32.xlu0 %v3021
        %v3023 = vpop.xlane.xlu0 %3022
        %v3024 = vsel %vm1885, %v2734, -inf
        %3025 = vmax.xlane.f32.xlu0 %v3024
        %v3026 = vpop.xlane.xlu0 %3025
        %v3027 = vsel %vm1885, %v2737, -inf
        %3028 = vmax.xlane.f32.xlu0 %v3027
        %v3029 = vpop.xlane.xlu0 %3028
        %v3030 = vsel %vm1885, %v2787, -inf
        %3031 = vmax.xlane.f32.xlu0 %v3030
        %v3032 = vpop.xlane.xlu0 %3031
        %v3033 = vsel %vm1885, %v2790, -inf
        %3034 = vmax.xlane.f32.xlu0 %v3033
        %v3035 = vpop.xlane.xlu0 %3034
        %v3036 = vsel %vm1885, %v2795, -inf
        %3037 = vmax.xlane.f32.xlu0 %v3036
        %v3038 = vpop.xlane.xlu0 %3037
        %v3039 = vsel %vm1885, %v2798, -inf
        %3040 = vmax.xlane.f32.xlu0 %v3039
        %v3041 = vpop.xlane.xlu0 %3040
        %v3042 = vsel %vm1885, %v2848, -inf
        %3043 = vmax.xlane.f32.xlu0 %v3042
        %v3044 = vpop.xlane.xlu0 %3043
        %v3045 = vsel %vm1885, %v2851, -inf
        %3046 = vmax.xlane.f32.xlu0 %v3045
        %v3047 = vpop.xlane.xlu0 %3046
        %v3048 = vsel %vm1885, %v2856, -inf
        %3049 = vmax.xlane.f32.xlu0 %v3048
        %v3050 = vpop.xlane.xlu0 %3049
        %v3051 = vsel %vm1885, %v2859, -inf
        %3052 = vmax.xlane.f32.xlu0 %v3051
        %v3053 = vpop.xlane.xlu0 %3052
        %v3054 = vsub.f32 %v1933, %v2864
        %v3055 = vsub.f32 %v1936, %v2867
        %v3056 = vsub.f32 %v1941, %v2870
        %v3057 = vsub.f32 %v1944, %v2873
        %v3058 = vsub.f32 %v1994, %v2876
        %v3059 = vsub.f32 %v1997, %v2879
        %v3060 = vsub.f32 %v2002, %v2882
        %v3061 = vsub.f32 %v2005, %v2885
        %v3062 = vsub.f32 %v2055, %v2888
        %v3063 = vsub.f32 %v2058, %v2891
        %v3064 = vsub.f32 %v2063, %v2894
        %v3065 = vsub.f32 %v2066, %v2897
        %v3066 = vsub.f32 %v2116, %v2900
        %v3067 = vsub.f32 %v2119, %v2903
        %v3068 = vsub.f32 %v2124, %v2906
        %v3069 = vsub.f32 %v2127, %v2909
        %v3070 = vsub.f32 %v2177, %v2912
        %v3071 = vsub.f32 %v2180, %v2915
        %v3072 = vsub.f32 %v2185, %v2918
        %v3073 = vsub.f32 %v2188, %v2921
        %v3074 = vsub.f32 %v2238, %v2924
        %v3075 = vsub.f32 %v2241, %v2927
        %v3076 = vsub.f32 %v2246, %v2930
        %v3077 = vsub.f32 %v2249, %v2933
        %v3078 = vsub.f32 %v2299, %v2936
        %v3079 = vsub.f32 %v2302, %v2939
        %v3080 = vsub.f32 %v2307, %v2942
        %v3081 = vsub.f32 %v2310, %v2945
        %v3082 = vsub.f32 %v2360, %v2948
        %v3083 = vsub.f32 %v2363, %v2951
        %v3084 = vsub.f32 %v2368, %v2954
        %v3085 = vsub.f32 %v2371, %v2957
        %v3086 = vsub.f32 %v2421, %v2960
        %v3087 = vsub.f32 %v2424, %v2963
        %v3088 = vsub.f32 %v2429, %v2966
        %v3089 = vsub.f32 %v2432, %v2969
        %v3090 = vsub.f32 %v2482, %v2972
        %v3091 = vsub.f32 %v2485, %v2975
        %v3092 = vsub.f32 %v2490, %v2978
        %v3093 = vsub.f32 %v2493, %v2981
        %v3094 = vsub.f32 %v2543, %v2984
        %v3095 = vsub.f32 %v2546, %v2987
        %v3096 = vsub.f32 %v2551, %v2990
        %v3097 = vsub.f32 %v2554, %v2993
        %v3098 = vsub.f32 %v2604, %v2996
        %v3099 = vsub.f32 %v2607, %v2999
        %v3100 = vsub.f32 %v2612, %v3002
        %v3101 = vsub.f32 %v2615, %v3005
        %v3102 = vsub.f32 %v2665, %v3008
        %v3103 = vsub.f32 %v2668, %v3011
        %v3104 = vsub.f32 %v2673, %v3014
        %v3105 = vsub.f32 %v2676, %v3017
        %v3106 = vsub.f32 %v2726, %v3020
        %v3107 = vsub.f32 %v2729, %v3023
        %v3108 = vsub.f32 %v2734, %v3026
        %v3109 = vsub.f32 %v2737, %v3029
        %v3110 = vsub.f32 %v2787, %v3032
        %v3111 = vsub.f32 %v2790, %v3035
        %v3112 = vsub.f32 %v2795, %v3038
        %v3113 = vsub.f32 %v2798, %v3041
        %v3114 = vsub.f32 %v2848, %v3044
        %v3115 = vsub.f32 %v2851, %v3047
        %v3116 = vsub.f32 %v2856, %v3050
        %v3117 = vsub.f32 %v2859, %v3053
        %v3118 = vmul.f32 %v3054, 1.442695
        %v3119 = vpow.pop %v3118
        %v3120 = vmul.f32 %v3055, 1.442695
        %v3121 = vpow.pop %v3120
        %v3122 = vmul.f32 %v3056, 1.442695
        %v3123 = vpow.pop %v3122
        %v3124 = vmul.f32 %v3057, 1.442695
        %v3125 = vpow.pop %v3124
        %v3126 = vmul.f32 %v3058, 1.442695
        %v3127 = vpow.pop %v3126
        %v3128 = vmul.f32 %v3059, 1.442695
        %v3129 = vpow.pop %v3128
        %v3130 = vmul.f32 %v3060, 1.442695
        %v3131 = vpow.pop %v3130
        %v3132 = vmul.f32 %v3061, 1.442695
        %v3133 = vpow.pop %v3132
        %v3134 = vmul.f32 %v3062, 1.442695
        %v3135 = vpow.pop %v3134
        %v3136 = vmul.f32 %v3063, 1.442695
        %v3137 = vpow.pop %v3136
        %v3138 = vmul.f32 %v3064, 1.442695
        %v3139 = vpow.pop %v3138
        %v3140 = vmul.f32 %v3065, 1.442695
        %v3141 = vpow.pop %v3140
        %v3142 = vmul.f32 %v3066, 1.442695
        %v3143 = vpow.pop %v3142
        %v3144 = vmul.f32 %v3067, 1.442695
        %v3145 = vpow.pop %v3144
        %v3146 = vmul.f32 %v3068, 1.442695
        %v3147 = vpow.pop %v3146
        %v3148 = vmul.f32 %v3069, 1.442695
        %v3149 = vpow.pop %v3148
        %v3150 = vmul.f32 %v3070, 1.442695
        %v3151 = vpow.pop %v3150
        %v3152 = vmul.f32 %v3071, 1.442695
        %v3153 = vpow.pop %v3152
        %v3154 = vmul.f32 %v3072, 1.442695
        %v3155 = vpow.pop %v3154
        %v3156 = vmul.f32 %v3073, 1.442695
        %v3157 = vpow.pop %v3156
        %v3158 = vmul.f32 %v3074, 1.442695
        %v3159 = vpow.pop %v3158
        %v3160 = vmul.f32 %v3075, 1.442695
        %v3161 = vpow.pop %v3160
        %v3162 = vmul.f32 %v3076, 1.442695
        %v3163 = vpow.pop %v3162
        %v3164 = vmul.f32 %v3077, 1.442695
        %v3165 = vpow.pop %v3164
        %v3166 = vmul.f32 %v3078, 1.442695
        %v3167 = vpow.pop %v3166
        %v3168 = vmul.f32 %v3079, 1.442695
        %v3169 = vpow.pop %v3168
        %v3170 = vmul.f32 %v3080, 1.442695
        %v3171 = vpow.pop %v3170
        %v3172 = vmul.f32 %v3081, 1.442695
        %v3173 = vpow.pop %v3172
        %v3174 = vmul.f32 %v3082, 1.442695
        %v3175 = vpow.pop %v3174
        %v3176 = vmul.f32 %v3083, 1.442695
        %v3177 = vpow.pop %v3176
        %v3178 = vmul.f32 %v3084, 1.442695
        %v3179 = vpow.pop %v3178
        %v3180 = vmul.f32 %v3085, 1.442695
        %v3181 = vpow.pop %v3180
        %v3182 = vmul.f32 %v3086, 1.442695
        %v3183 = vpow.pop %v3182
        %v3184 = vmul.f32 %v3087, 1.442695
        %v3185 = vpow.pop %v3184
        %v3186 = vmul.f32 %v3088, 1.442695
        %v3187 = vpow.pop %v3186
        %v3188 = vmul.f32 %v3089, 1.442695
        %v3189 = vpow.pop %v3188
        %v3190 = vmul.f32 %v3090, 1.442695
        %v3191 = vpow.pop %v3190
        %v3192 = vmul.f32 %v3091, 1.442695
        %v3193 = vpow.pop %v3192
        %v3194 = vmul.f32 %v3092, 1.442695
        %v3195 = vpow.pop %v3194
        %v3196 = vmul.f32 %v3093, 1.442695
        %v3197 = vpow.pop %v3196
        %v3198 = vmul.f32 %v3094, 1.442695
        %v3199 = vpow.pop %v3198
        %v3200 = vmul.f32 %v3095, 1.442695
        %v3201 = vpow.pop %v3200
        %v3202 = vmul.f32 %v3096, 1.442695
        %v3203 = vpow.pop %v3202
        %v3204 = vmul.f32 %v3097, 1.442695
        %v3205 = vpow.pop %v3204
        %v3206 = vmul.f32 %v3098, 1.442695
        %v3207 = vpow.pop %v3206
        %v3208 = vmul.f32 %v3099, 1.442695
        %v3209 = vpow.pop %v3208
        %v3210 = vmul.f32 %v3100, 1.442695
        %v3211 = vpow.pop %v3210
        %v3212 = vmul.f32 %v3101, 1.442695
        %v3213 = vpow.pop %v3212
        %v3214 = vmul.f32 %v3102, 1.442695
        %v3215 = vpow.pop %v3214
        %v3216 = vmul.f32 %v3103, 1.442695
        %v3217 = vpow.pop %v3216
        %v3218 = vmul.f32 %v3104, 1.442695
        %v3219 = vpow.pop %v3218
        %v3220 = vmul.f32 %v3105, 1.442695
        %v3221 = vpow.pop %v3220
        %v3222 = vmul.f32 %v3106, 1.442695
        %v3223 = vpow.pop %v3222
        %v3224 = vmul.f32 %v3107, 1.442695
        %v3225 = vpow.pop %v3224
        %v3226 = vmul.f32 %v3108, 1.442695
        %v3227 = vpow.pop %v3226
        %v3228 = vmul.f32 %v3109, 1.442695
        %v3229 = vpow.pop %v3228
        %v3230 = vmul.f32 %v3110, 1.442695
        %v3231 = vpow.pop %v3230
        %v3232 = vmul.f32 %v3111, 1.442695
        %v3233 = vpow.pop %v3232
        %v3234 = vmul.f32 %v3112, 1.442695
        %v3235 = vpow.pop %v3234
        %v3236 = vmul.f32 %v3113, 1.442695
        %v3237 = vpow.pop %v3236
        %v3238 = vmul.f32 %v3114, 1.442695
        %v3239 = vpow.pop %v3238
        %v3240 = vmul.f32 %v3115, 1.442695
        %v3241 = vpow.pop %v3240
        %v3242 = vmul.f32 %v3116, 1.442695
        %v3243 = vpow.pop %v3242
        %v3244 = vmul.f32 %v3117, 1.442695
        %v3245 = vpow.pop %v3244
        %v3246 = vsel %vm1885, %v3119, 0.0
        %3247 = vadd.xlane.f32.xlu0 %v3246
        %v3248 = vpop.xlane.xlu0 %3247
        %v3249 = vsel %vm1885, %v3121, 0.0
        %3250 = vadd.xlane.f32.xlu0 %v3249
        %v3251 = vpop.xlane.xlu0 %3250
        %v3252 = vsel %vm1885, %v3123, 0.0
        %3253 = vadd.xlane.f32.xlu0 %v3252
        %v3254 = vpop.xlane.xlu0 %3253
        %v3255 = vsel %vm1885, %v3125, 0.0
        %3256 = vadd.xlane.f32.xlu0 %v3255
        %v3257 = vpop.xlane.xlu0 %3256
        %v3258 = vsel %vm1885, %v3127, 0.0
        %3259 = vadd.xlane.f32.xlu0 %v3258
        %v3260 = vpop.xlane.xlu0 %3259
        %v3261 = vsel %vm1885, %v3129, 0.0
        %3262 = vadd.xlane.f32.xlu0 %v3261
        %v3263 = vpop.xlane.xlu0 %3262
        %v3264 = vsel %vm1885, %v3131, 0.0
        %3265 = vadd.xlane.f32.xlu0 %v3264
        %v3266 = vpop.xlane.xlu0 %3265
        %v3267 = vsel %vm1885, %v3133, 0.0
        %3268 = vadd.xlane.f32.xlu0 %v3267
        %v3269 = vpop.xlane.xlu0 %3268
        %v3270 = vsel %vm1885, %v3135, 0.0
        %3271 = vadd.xlane.f32.xlu0 %v3270
        %v3272 = vpop.xlane.xlu0 %3271
        %v3273 = vsel %vm1885, %v3137, 0.0
        %3274 = vadd.xlane.f32.xlu0 %v3273
        %v3275 = vpop.xlane.xlu0 %3274
        %v3276 = vsel %vm1885, %v3139, 0.0
        %3277 = vadd.xlane.f32.xlu0 %v3276
        %v3278 = vpop.xlane.xlu0 %3277
        %v3279 = vsel %vm1885, %v3141, 0.0
        %3280 = vadd.xlane.f32.xlu0 %v3279
        %v3281 = vpop.xlane.xlu0 %3280
        %v3282 = vsel %vm1885, %v3143, 0.0
        %3283 = vadd.xlane.f32.xlu0 %v3282
        %v3284 = vpop.xlane.xlu0 %3283
        %v3285 = vsel %vm1885, %v3145, 0.0
        %3286 = vadd.xlane.f32.xlu0 %v3285
        %v3287 = vpop.xlane.xlu0 %3286
        %v3288 = vsel %vm1885, %v3147, 0.0
        %3289 = vadd.xlane.f32.xlu0 %v3288
        %v3290 = vpop.xlane.xlu0 %3289
        %v3291 = vsel %vm1885, %v3149, 0.0
        %3292 = vadd.xlane.f32.xlu0 %v3291
        %v3293 = vpop.xlane.xlu0 %3292
        %v3294 = vsel %vm1885, %v3151, 0.0
        %3295 = vadd.xlane.f32.xlu0 %v3294
        %v3296 = vpop.xlane.xlu0 %3295
        %v3297 = vsel %vm1885, %v3153, 0.0
        %3298 = vadd.xlane.f32.xlu0 %v3297
        %v3299 = vpop.xlane.xlu0 %3298
        %v3300 = vsel %vm1885, %v3155, 0.0
        %3301 = vadd.xlane.f32.xlu0 %v3300
        %v3302 = vpop.xlane.xlu0 %3301
        %v3303 = vsel %vm1885, %v3157, 0.0
        %3304 = vadd.xlane.f32.xlu0 %v3303
        %v3305 = vpop.xlane.xlu0 %3304
        %v3306 = vsel %vm1885, %v3159, 0.0
        %3307 = vadd.xlane.f32.xlu0 %v3306
        %v3308 = vpop.xlane.xlu0 %3307
        %v3309 = vsel %vm1885, %v3161, 0.0
        %3310 = vadd.xlane.f32.xlu0 %v3309
        %v3311 = vpop.xlane.xlu0 %3310
        %v3312 = vsel %vm1885, %v3163, 0.0
        %3313 = vadd.xlane.f32.xlu0 %v3312
        %v3314 = vpop.xlane.xlu0 %3313
        %v3315 = vsel %vm1885, %v3165, 0.0
        %3316 = vadd.xlane.f32.xlu0 %v3315
        %v3317 = vpop.xlane.xlu0 %3316
        %v3318 = vsel %vm1885, %v3167, 0.0
        %3319 = vadd.xlane.f32.xlu0 %v3318
        %v3320 = vpop.xlane.xlu0 %3319
        %v3321 = vsel %vm1885, %v3169, 0.0
        %3322 = vadd.xlane.f32.xlu0 %v3321
        %v3323 = vpop.xlane.xlu0 %3322
        %v3324 = vsel %vm1885, %v3171, 0.0
        %3325 = vadd.xlane.f32.xlu0 %v3324
        %v3326 = vpop.xlane.xlu0 %3325
        %v3327 = vsel %vm1885, %v3173, 0.0
        %3328 = vadd.xlane.f32.xlu0 %v3327
        %v3329 = vpop.xlane.xlu0 %3328
        %v3330 = vsel %vm1885, %v3175, 0.0
        %3331 = vadd.xlane.f32.xlu0 %v3330
        %v3332 = vpop.xlane.xlu0 %3331
        %v3333 = vsel %vm1885, %v3177, 0.0
        %3334 = vadd.xlane.f32.xlu0 %v3333
        %v3335 = vpop.xlane.xlu0 %3334
        %v3336 = vsel %vm1885, %v3179, 0.0
        %3337 = vadd.xlane.f32.xlu0 %v3336
        %v3338 = vpop.xlane.xlu0 %3337
        %v3339 = vsel %vm1885, %v3181, 0.0
        %3340 = vadd.xlane.f32.xlu0 %v3339
        %v3341 = vpop.xlane.xlu0 %3340
        %v3342 = vsel %vm1885, %v3183, 0.0
        %3343 = vadd.xlane.f32.xlu0 %v3342
        %v3344 = vpop.xlane.xlu0 %3343
        %v3345 = vsel %vm1885, %v3185, 0.0
        %3346 = vadd.xlane.f32.xlu0 %v3345
        %v3347 = vpop.xlane.xlu0 %3346
        %v3348 = vsel %vm1885, %v3187, 0.0
        %3349 = vadd.xlane.f32.xlu0 %v3348
        %v3350 = vpop.xlane.xlu0 %3349
        %v3351 = vsel %vm1885, %v3189, 0.0
        %3352 = vadd.xlane.f32.xlu0 %v3351
        %v3353 = vpop.xlane.xlu0 %3352
        %v3354 = vsel %vm1885, %v3191, 0.0
        %3355 = vadd.xlane.f32.xlu0 %v3354
        %v3356 = vpop.xlane.xlu0 %3355
        %v3357 = vsel %vm1885, %v3193, 0.0
        %3358 = vadd.xlane.f32.xlu0 %v3357
        %v3359 = vpop.xlane.xlu0 %3358
        %v3360 = vsel %vm1885, %v3195, 0.0
        %3361 = vadd.xlane.f32.xlu0 %v3360
        %v3362 = vpop.xlane.xlu0 %3361
        %v3363 = vsel %vm1885, %v3197, 0.0
        %3364 = vadd.xlane.f32.xlu0 %v3363
        %v3365 = vpop.xlane.xlu0 %3364
        %v3366 = vsel %vm1885, %v3199, 0.0
        %3367 = vadd.xlane.f32.xlu0 %v3366
        %v3368 = vpop.xlane.xlu0 %3367
        %v3369 = vsel %vm1885, %v3201, 0.0
        %3370 = vadd.xlane.f32.xlu0 %v3369
        %v3371 = vpop.xlane.xlu0 %3370
        %v3372 = vsel %vm1885, %v3203, 0.0
        %3373 = vadd.xlane.f32.xlu0 %v3372
        %v3374 = vpop.xlane.xlu0 %3373
        %v3375 = vsel %vm1885, %v3205, 0.0
        %3376 = vadd.xlane.f32.xlu0 %v3375
        %v3377 = vpop.xlane.xlu0 %3376
        %v3378 = vsel %vm1885, %v3207, 0.0
        %3379 = vadd.xlane.f32.xlu0 %v3378
        %v3380 = vpop.xlane.xlu0 %3379
        %v3381 = vsel %vm1885, %v3209, 0.0
        %3382 = vadd.xlane.f32.xlu0 %v3381
        %v3383 = vpop.xlane.xlu0 %3382
        %v3384 = vsel %vm1885, %v3211, 0.0
        %3385 = vadd.xlane.f32.xlu0 %v3384
        %v3386 = vpop.xlane.xlu0 %3385
        %v3387 = vsel %vm1885, %v3213, 0.0
        %3388 = vadd.xlane.f32.xlu0 %v3387
        %v3389 = vpop.xlane.xlu0 %3388
        %v3390 = vsel %vm1885, %v3215, 0.0
        %3391 = vadd.xlane.f32.xlu0 %v3390
        %v3392 = vpop.xlane.xlu0 %3391
        %v3393 = vsel %vm1885, %v3217, 0.0
        %3394 = vadd.xlane.f32.xlu0 %v3393
        %v3395 = vpop.xlane.xlu0 %3394
        %v3396 = vsel %vm1885, %v3219, 0.0
        %3397 = vadd.xlane.f32.xlu0 %v3396
        %v3398 = vpop.xlane.xlu0 %3397
        %v3399 = vsel %vm1885, %v3221, 0.0
        %3400 = vadd.xlane.f32.xlu0 %v3399
        %v3401 = vpop.xlane.xlu0 %3400
        %v3402 = vsel %vm1885, %v3223, 0.0
        %3403 = vadd.xlane.f32.xlu0 %v3402
        %v3404 = vpop.xlane.xlu0 %3403
        %v3405 = vsel %vm1885, %v3225, 0.0
        %3406 = vadd.xlane.f32.xlu0 %v3405
        %v3407 = vpop.xlane.xlu0 %3406
        %v3408 = vsel %vm1885, %v3227, 0.0
        %3409 = vadd.xlane.f32.xlu0 %v3408
        %v3410 = vpop.xlane.xlu0 %3409
        %v3411 = vsel %vm1885, %v3229, 0.0
        %3412 = vadd.xlane.f32.xlu0 %v3411
        %v3413 = vpop.xlane.xlu0 %3412
        %v3414 = vsel %vm1885, %v3231, 0.0
        %3415 = vadd.xlane.f32.xlu0 %v3414
        %v3416 = vpop.xlane.xlu0 %3415
        %v3417 = vsel %vm1885, %v3233, 0.0
        %3418 = vadd.xlane.f32.xlu0 %v3417
        %v3419 = vpop.xlane.xlu0 %3418
        %v3420 = vsel %vm1885, %v3235, 0.0
        %3421 = vadd.xlane.f32.xlu0 %v3420
        %v3422 = vpop.xlane.xlu0 %3421
        %v3423 = vsel %vm1885, %v3237, 0.0
        %3424 = vadd.xlane.f32.xlu0 %v3423
        %v3425 = vpop.xlane.xlu0 %3424
        %v3426 = vsel %vm1885, %v3239, 0.0
        %3427 = vadd.xlane.f32.xlu0 %v3426
        %v3428 = vpop.xlane.xlu0 %3427
        %v3429 = vsel %vm1885, %v3241, 0.0
        %3430 = vadd.xlane.f32.xlu0 %v3429
        %v3431 = vpop.xlane.xlu0 %3430
        %v3432 = vsel %vm1885, %v3243, 0.0
        %3433 = vadd.xlane.f32.xlu0 %v3432
        %v3434 = vpop.xlane.xlu0 %3433
        %v3435 = vsel %vm1885, %v3245, 0.0
        %3436 = vadd.xlane.f32.xlu0 %v3435
        %v3437 = vpop.xlane.xlu0 %3436
        %v3438 = vrcp.pop %v3248
        %v3439 = vrcp.pop %v3251
        %v3440 = vrcp.pop %v3254
        %v3441 = vrcp.pop %v3257
        %v3442 = vrcp.pop %v3260
        %v3443 = vrcp.pop %v3263
        %v3444 = vrcp.pop %v3266
        %v3445 = vrcp.pop %v3269
        %v3446 = vrcp.pop %v3272
        %v3447 = vrcp.pop %v3275
        %v3448 = vrcp.pop %v3278
        %v3449 = vrcp.pop %v3281
        %v3450 = vrcp.pop %v3284
        %v3451 = vrcp.pop %v3287
        %v3452 = vrcp.pop %v3290
        %v3453 = vrcp.pop %v3293
        %v3454 = vrcp.pop %v3296
        %v3455 = vrcp.pop %v3299
        %v3456 = vrcp.pop %v3302
        %v3457 = vrcp.pop %v3305
        %v3458 = vrcp.pop %v3308
        %v3459 = vrcp.pop %v3311
        %v3460 = vrcp.pop %v3314
        %v3461 = vrcp.pop %v3317
        %v3462 = vrcp.pop %v3320
        %v3463 = vrcp.pop %v3323
        %v3464 = vrcp.pop %v3326
        %v3465 = vrcp.pop %v3329
        %v3466 = vrcp.pop %v3332
        %v3467 = vrcp.pop %v3335
        %v3468 = vrcp.pop %v3338
        %v3469 = vrcp.pop %v3341
        %v3470 = vrcp.pop %v3344
        %v3471 = vrcp.pop %v3347
        %v3472 = vrcp.pop %v3350
        %v3473 = vrcp.pop %v3353
        %v3474 = vrcp.pop %v3356
        %v3475 = vrcp.pop %v3359
        %v3476 = vrcp.pop %v3362
        %v3477 = vrcp.pop %v3365
        %v3478 = vrcp.pop %v3368
        %v3479 = vrcp.pop %v3371
        %v3480 = vrcp.pop %v3374
        %v3481 = vrcp.pop %v3377
        %v3482 = vrcp.pop %v3380
        %v3483 = vrcp.pop %v3383
        %v3484 = vrcp.pop %v3386
        %v3485 = vrcp.pop %v3389
        %v3486 = vrcp.pop %v3392
        %v3487 = vrcp.pop %v3395
        %v3488 = vrcp.pop %v3398
        %v3489 = vrcp.pop %v3401
        %v3490 = vrcp.pop %v3404
        %v3491 = vrcp.pop %v3407
        %v3492 = vrcp.pop %v3410
        %v3493 = vrcp.pop %v3413
        %v3494 = vrcp.pop %v3416
        %v3495 = vrcp.pop %v3419
        %v3496 = vrcp.pop %v3422
        %v3497 = vrcp.pop %v3425
        %v3498 = vrcp.pop %v3428
        %v3499 = vrcp.pop %v3431
        %v3500 = vrcp.pop %v3434
        %v3501 = vrcp.pop %v3437
        %v3502 = vmul.f32 %v3119, %v3438
        %v3503 = vmul.f32 %v3121, %v3439
        %v3504 = vmul.f32 %v3123, %v3440
        %v3505 = vmul.f32 %v3125, %v3441
        %v3506 = vmul.f32 %v3127, %v3442
        %v3507 = vmul.f32 %v3129, %v3443
        %v3508 = vmul.f32 %v3131, %v3444
        %v3509 = vmul.f32 %v3133, %v3445
        %v3510 = vmul.f32 %v3135, %v3446
        %v3511 = vmul.f32 %v3137, %v3447
        %v3512 = vmul.f32 %v3139, %v3448
        %v3513 = vmul.f32 %v3141, %v3449
        %v3514 = vmul.f32 %v3143, %v3450
        %v3515 = vmul.f32 %v3145, %v3451
        %v3516 = vmul.f32 %v3147, %v3452
        %v3517 = vmul.f32 %v3149, %v3453
        %v3518 = vmul.f32 %v3151, %v3454
        %v3519 = vmul.f32 %v3153, %v3455
        %v3520 = vmul.f32 %v3155, %v3456
        %v3521 = vmul.f32 %v3157, %v3457
        %v3522 = vmul.f32 %v3159, %v3458
        %v3523 = vmul.f32 %v3161, %v3459
        %v3524 = vmul.f32 %v3163, %v3460
        %v3525 = vmul.f32 %v3165, %v3461
        %v3526 = vmul.f32 %v3167, %v3462
        %v3527 = vmul.f32 %v3169, %v3463
        %v3528 = vmul.f32 %v3171, %v3464
        %v3529 = vmul.f32 %v3173, %v3465
        %v3530 = vmul.f32 %v3175, %v3466
        %v3531 = vmul.f32 %v3177, %v3467
        %v3532 = vmul.f32 %v3179, %v3468
        %v3533 = vmul.f32 %v3181, %v3469
        %v3534 = vmul.f32 %v3183, %v3470
        %v3535 = vmul.f32 %v3185, %v3471
        %v3536 = vmul.f32 %v3187, %v3472
        %v3537 = vmul.f32 %v3189, %v3473
        %v3538 = vmul.f32 %v3191, %v3474
        %v3539 = vmul.f32 %v3193, %v3475
        %v3540 = vmul.f32 %v3195, %v3476
        %v3541 = vmul.f32 %v3197, %v3477
        %v3542 = vmul.f32 %v3199, %v3478
        %v3543 = vmul.f32 %v3201, %v3479
        %v3544 = vmul.f32 %v3203, %v3480
        %v3545 = vmul.f32 %v3205, %v3481
        %v3546 = vmul.f32 %v3207, %v3482
        %v3547 = vmul.f32 %v3209, %v3483
        %v3548 = vmul.f32 %v3211, %v3484
        %v3549 = vmul.f32 %v3213, %v3485
        %v3550 = vmul.f32 %v3215, %v3486
        %v3551 = vmul.f32 %v3217, %v3487
        %v3552 = vmul.f32 %v3219, %v3488
        %v3553 = vmul.f32 %v3221, %v3489
        %v3554 = vmul.f32 %v3223, %v3490
        %v3555 = vmul.f32 %v3225, %v3491
        %v3556 = vmul.f32 %v3227, %v3492
        %v3557 = vmul.f32 %v3229, %v3493
        %v3558 = vmul.f32 %v3231, %v3494
        %v3559 = vmul.f32 %v3233, %v3495
        %v3560 = vmul.f32 %v3235, %v3496
        %v3561 = vmul.f32 %v3237, %v3497
        %v3562 = vmul.f32 %v3239, %v3498
        %v3563 = vmul.f32 %v3241, %v3499
        %v3564 = vmul.f32 %v3243, %v3500
        %v3565 = vmul.f32 %v3245, %v3501
        %v3566 = vpack.c.bf16 %v3503, %v3502
        %v3567 = vpack.c.bf16 %v3505, %v3504
        %v3568 = vpack.c.bf16 %v3507, %v3506
        %v3569 = vpack.c.bf16 %v3509, %v3508
        %v3570 = vpack.c.bf16 %v3511, %v3510
        %v3571 = vpack.c.bf16 %v3513, %v3512
        %v3572 = vpack.c.bf16 %v3515, %v3514
        %v3573 = vpack.c.bf16 %v3517, %v3516
        %v3574 = vpack.c.bf16 %v3519, %v3518
        %v3575 = vpack.c.bf16 %v3521, %v3520
        %v3576 = vpack.c.bf16 %v3523, %v3522
        %v3577 = vpack.c.bf16 %v3525, %v3524
        %v3578 = vpack.c.bf16 %v3527, %v3526
        %v3579 = vpack.c.bf16 %v3529, %v3528
        %v3580 = vpack.c.bf16 %v3531, %v3530
        %v3581 = vpack.c.bf16 %v3533, %v3532
        %v3582 = vpack.c.bf16 %v3535, %v3534
        %v3583 = vpack.c.bf16 %v3537, %v3536
        %v3584 = vpack.c.bf16 %v3539, %v3538
        %v3585 = vpack.c.bf16 %v3541, %v3540
        %v3586 = vpack.c.bf16 %v3543, %v3542
        %v3587 = vpack.c.bf16 %v3545, %v3544
        %v3588 = vpack.c.bf16 %v3547, %v3546
        %v3589 = vpack.c.bf16 %v3549, %v3548
        %v3590 = vpack.c.bf16 %v3551, %v3550
        %v3591 = vpack.c.bf16 %v3553, %v3552
        %v3592 = vpack.c.bf16 %v3555, %v3554
        %v3593 = vpack.c.bf16 %v3557, %v3556
        %v3594 = vpack.c.bf16 %v3559, %v3558
        %v3595 = vpack.c.bf16 %v3561, %v3560
        %v3596 = vpack.c.bf16 %v3563, %v3562
        %v3597 = vpack.c.bf16 %v3565, %v3564
        %v3599 = vsel %vm1885, %v3566, 0
        %v3602 = vsel %vm1885, %v3567, 0
        %3604 = vmatprep.subr.bf16.mxu0 0
        %3605 = vmatpush1.bf16.msra.mxu0 %v1853
        %3606 = vmatprep.subr.bf16.mxu0 0
        %3607 = vmatpush1.bf16.msra.mxu0 %v1854
        %3608 = vmatprep.subr.bf16.mxu0 0
        %3609 = vmatpush1.bf16.msra.mxu0 0
        %3610 = vmatprep.subr.bf16.mxu0 0
        %3611 = vmatpush1.bf16.msra.mxu0 0
        %3612 = vmatprep.subr.bf16.mxu0 0
        %3613 = vmatpush1.bf16.msra.mxu0 0
        %3614 = vmatprep.subr.bf16.mxu0 0
        %3615 = vmatpush1.bf16.msra.mxu0 0
        %3616 = vmatprep.subr.bf16.mxu0 0
        %3617 = vmatpush1.bf16.msra.mxu0 0
        %3618 = vmatprep.subr.bf16.mxu0 0
        %3619 = vmatpush1.bf16.msra.mxu0 0
        %3620 = vmatprep.subr.bf16.mxu0 0
        %3621 = vmatpush1.bf16.msra.mxu0 0
        %3622 = vmatprep.subr.bf16.mxu0 0
        %3623 = vmatpush1.bf16.msra.mxu0 0
        %3624 = vmatprep.subr.bf16.mxu0 0
        %3625 = vmatpush1.bf16.msra.mxu0 0
        %3626 = vmatprep.subr.bf16.mxu0 0
        %3627 = vmatpush1.bf16.msra.mxu0 0
        %3628 = vmatprep.subr.bf16.mxu0 0
        %3629 = vmatpush1.bf16.msra.mxu0 0
        %3630 = vmatprep.subr.bf16.mxu0 0
        %3631 = vmatpush1.bf16.msra.mxu0 0
        %3632 = vmatprep.subr.bf16.mxu0 0
        %3633 = vmatpush1.bf16.msra.mxu0 0
        %3634 = vmatprep.subr.bf16.mxu0 0
        %3635 = vmatpush1.bf16.msra.mxu0 0
        %3636 = vmatprep.mubr.bf16.mxu0 0
        %3637 = vmatmul.mubr.bf16.gmra.mrb[0].mxu0 %v3599
        %v3638 = vpop.f32.mrb[0].mxu0
        %v3639 = vadd.f32 0.0, %v3638
        %v3640 = vpop.f32.mrb[0].mxu0
        %v3641 = vpop.f32.mrb[0].mxu0
        %v3642 = vadd.f32 0.0, %v3641
        %v3643 = vpop.f32.mrb[0].mxu0
        %3644 = vmatprep.mubr.bf16.mxu0 0
        %3645 = vmatmul.mubr.bf16.gmra.mrb[0].mxu0 %v3602
        %v3646 = vpop.f32.mrb[0].mxu0
        %v3647 = vadd.f32 0.0, %v3646
        %v3648 = vpop.f32.mrb[0].mxu0
        %v3649 = vpop.f32.mrb[0].mxu0
        %v3650 = vadd.f32 0.0, %v3649
        %v3651 = vpop.f32.mrb[0].mxu0
        %3652 = vdwg.mxu0
        %v3654 = vsel %vm1885, %v3568, 0
        %v3657 = vsel %vm1885, %v3569, 0
        %3659 = vmatprep.subr.bf16.mxu0 0
        %3660 = vmatpush1.bf16.msra.mxu0 %v1855
        %3661 = vmatprep.subr.bf16.mxu0 0
        %3662 = vmatpush1.bf16.msra.mxu0 %v1856
        %3663 = vmatprep.subr.bf16.mxu0 0
        %3664 = vmatpush1.bf16.msra.mxu0 0
        %3665 = vmatprep.subr.bf16.mxu0 0
        %3666 = vmatpush1.bf16.msra.mxu0 0
        %3667 = vmatprep.subr.bf16.mxu0 0
        %3668 = vmatpush1.bf16.msra.mxu0 0
        %3669 = vmatprep.subr.bf16.mxu0 0
        %3670 = vmatpush1.bf16.msra.mxu0 0
        %3671 = vmatprep.subr.bf16.mxu0 0
        %3672 = vmatpush1.bf16.msra.mxu0 0
        %3673 = vmatprep.subr.bf16.mxu0 0
        %3674 = vmatpush1.bf16.msra.mxu0 0
        %3675 = vmatprep.subr.bf16.mxu0 0
        %3676 = vmatpush1.bf16.msra.mxu0 0
        %3677 = vmatprep.subr.bf16.mxu0 0
        %3678 = vmatpush1.bf16.msra.mxu0 0
        %3679 = vmatprep.subr.bf16.mxu0 0
        %3680 = vmatpush1.bf16.msra.mxu0 0
        %3681 = vmatprep.subr.bf16.mxu0 0
        %3682 = vmatpush1.bf16.msra.mxu0 0
        %3683 = vmatprep.subr.bf16.mxu0 0
        %3684 = vmatpush1.bf16.msra.mxu0 0
        %3685 = vmatprep.subr.bf16.mxu0 0
        %3686 = vmatpush1.bf16.msra.mxu0 0
        %3687 = vmatprep.subr.bf16.mxu0 0
        %3688 = vmatpush1.bf16.msra.mxu0 0
        %3689 = vmatprep.subr.bf16.mxu0 0
        %3690 = vmatpush1.bf16.msra.mxu0 0
        %3691 = vmatprep.mubr.bf16.mxu0 0
        %3692 = vmatmul.mubr.bf16.gmra.mrb[0].mxu0 %v3654
        %v3693 = vpop.f32.mrb[0].mxu0
        %v3694 = vadd.f32 0.0, %v3693
        %v3695 = vpop.f32.mrb[0].mxu0
        %v3696 = vpop.f32.mrb[0].mxu0
        %v3697 = vadd.f32 0.0, %v3696
        %v3698 = vpop.f32.mrb[0].mxu0
        %3699 = vmatprep.mubr.bf16.mxu0 0
        %3700 = vmatmul.mubr.bf16.gmra.mrb[0].mxu0 %v3657
        %v3701 = vpop.f32.mrb[0].mxu0
        %v3702 = vadd.f32 0.0, %v3701
        %v3703 = vpop.f32.mrb[0].mxu0
        %v3704 = vpop.f32.mrb[0].mxu0
        %v3705 = vadd.f32 0.0, %v3704
        %v3706 = vpop.f32.mrb[0].mxu0
        %3707 = vdwg.mxu0
        %v3709 = vsel %vm1885, %v3570, 0
        %v3712 = vsel %vm1885, %v3571, 0
        %3714 = vmatprep.subr.bf16.mxu0 0
        %3715 = vmatpush1.bf16.msra.mxu0 %v1857
        %3716 = vmatprep.subr.bf16.mxu0 0
        %3717 = vmatpush1.bf16.msra.mxu0 %v1858
        %3718 = vmatprep.subr.bf16.mxu0 0
        %3719 = vmatpush1.bf16.msra.mxu0 0
        %3720 = vmatprep.subr.bf16.mxu0 0
        %3721 = vmatpush1.bf16.msra.mxu0 0
        %3722 = vmatprep.subr.bf16.mxu0 0
        %3723 = vmatpush1.bf16.msra.mxu0 0
        %3724 = vmatprep.subr.bf16.mxu0 0
        %3725 = vmatpush1.bf16.msra.mxu0 0
        %3726 = vmatprep.subr.bf16.mxu0 0
        %3727 = vmatpush1.bf16.msra.mxu0 0
        %3728 = vmatprep.subr.bf16.mxu0 0
        %3729 = vmatpush1.bf16.msra.mxu0 0
        %3730 = vmatprep.subr.bf16.mxu0 0
        %3731 = vmatpush1.bf16.msra.mxu0 0
        %3732 = vmatprep.subr.bf16.mxu0 0
        %3733 = vmatpush1.bf16.msra.mxu0 0
        %3734 = vmatprep.subr.bf16.mxu0 0
        %3735 = vmatpush1.bf16.msra.mxu0 0
        %3736 = vmatprep.subr.bf16.mxu0 0
        %3737 = vmatpush1.bf16.msra.mxu0 0
        %3738 = vmatprep.subr.bf16.mxu0 0
        %3739 = vmatpush1.bf16.msra.mxu0 0
        %3740 = vmatprep.subr.bf16.mxu0 0
        %3741 = vmatpush1.bf16.msra.mxu0 0
        %3742 = vmatprep.subr.bf16.mxu0 0
        %3743 = vmatpush1.bf16.msra.mxu0 0
        %3744 = vmatprep.subr.bf16.mxu0 0
        %3745 = vmatpush1.bf16.msra.mxu0 0
        %3746 = vmatprep.mubr.bf16.mxu0 0
        %3747 = vmatmul.mubr.bf16.gmra.mrb[0].mxu0 %v3709
        %v3748 = vpop.f32.mrb[0].mxu0
        %v3749 = vadd.f32 0.0, %v3748
        %v3750 = vpop.f32.mrb[0].mxu0
        %v3751 = vpop.f32.mrb[0].mxu0
        %v3752 = vadd.f32 0.0, %v3751
        %v3753 = vpop.f32.mrb[0].mxu0
        %3754 = vmatprep.mubr.bf16.mxu0 0
        %3755 = vmatmul.mubr.bf16.gmra.mrb[0].mxu0 %v3712
        %v3756 = vpop.f32.mrb[0].mxu0
        %v3757 = vadd.f32 0.0, %v3756
        %v3758 = vpop.f32.mrb[0].mxu0
        %v3759 = vpop.f32.mrb[0].mxu0
        %v3760 = vadd.f32 0.0, %v3759
        %v3761 = vpop.f32.mrb[0].mxu0
        %3762 = vdwg.mxu0
        %v3764 = vsel %vm1885, %v3572, 0
        %v3767 = vsel %vm1885, %v3573, 0
        %3769 = vmatprep.subr.bf16.mxu0 0
        %3770 = vmatpush1.bf16.msra.mxu0 %v1859
        %3771 = vmatprep.subr.bf16.mxu0 0
        %3772 = vmatpush1.bf16.msra.mxu0 %v1860
        %3773 = vmatprep.subr.bf16.mxu0 0
        %3774 = vmatpush1.bf16.msra.mxu0 0
        %3775 = vmatprep.subr.bf16.mxu0 0
        %3776 = vmatpush1.bf16.msra.mxu0 0
        %3777 = vmatprep.subr.bf16.mxu0 0
        %3778 = vmatpush1.bf16.msra.mxu0 0
        %3779 = vmatprep.subr.bf16.mxu0 0
        %3780 = vmatpush1.bf16.msra.mxu0 0
        %3781 = vmatprep.subr.bf16.mxu0 0
        %3782 = vmatpush1.bf16.msra.mxu0 0
        %3783 = vmatprep.subr.bf16.mxu0 0
        %3784 = vmatpush1.bf16.msra.mxu0 0
        %3785 = vmatprep.subr.bf16.mxu0 0
        %3786 = vmatpush1.bf16.msra.mxu0 0
        %3787 = vmatprep.subr.bf16.mxu0 0
        %3788 = vmatpush1.bf16.msra.mxu0 0
        %3789 = vmatprep.subr.bf16.mxu0 0
        %3790 = vmatpush1.bf16.msra.mxu0 0
        %3791 = vmatprep.subr.bf16.mxu0 0
        %3792 = vmatpush1.bf16.msra.mxu0 0
        %3793 = vmatprep.subr.bf16.mxu0 0
        %3794 = vmatpush1.bf16.msra.mxu0 0
        %3795 = vmatprep.subr.bf16.mxu0 0
        %3796 = vmatpush1.bf16.msra.mxu0 0
        %3797 = vmatprep.subr.bf16.mxu0 0
        %3798 = vmatpush1.bf16.msra.mxu0 0
        %3799 = vmatprep.subr.bf16.mxu0 0
        %3800 = vmatpush1.bf16.msra.mxu0 0
        %3801 = vmatprep.mubr.bf16.mxu0 0
        %3802 = vmatmul.mubr.bf16.gmra.mrb[0].mxu0 %v3764
        %v3803 = vpop.f32.mrb[0].mxu0
        %v3804 = vadd.f32 0.0, %v3803
        %v3805 = vpop.f32.mrb[0].mxu0
        %v3806 = vpop.f32.mrb[0].mxu0
        %v3807 = vadd.f32 0.0, %v3806
        %v3808 = vpop.f32.mrb[0].mxu0
        %3809 = vmatprep.mubr.bf16.mxu0 0
        %3810 = vmatmul.mubr.bf16.gmra.mrb[0].mxu0 %v3767
        %v3811 = vpop.f32.mrb[0].mxu0
        %v3812 = vadd.f32 0.0, %v3811
        %v3813 = vpop.f32.mrb[0].mxu0
        %v3814 = vpop.f32.mrb[0].mxu0
        %v3815 = vadd.f32 0.0, %v3814
        %v3816 = vpop.f32.mrb[0].mxu0
        %3817 = vdwg.mxu0
        %v3819 = vsel %vm1885, %v3574, 0
        %v3822 = vsel %vm1885, %v3575, 0
        %3824 = vmatprep.subr.bf16.mxu0 0
        %3825 = vmatpush1.bf16.msra.mxu0 %v1861
        %3826 = vmatprep.subr.bf16.mxu0 0
        %3827 = vmatpush1.bf16.msra.mxu0 %v1862
        %3828 = vmatprep.subr.bf16.mxu0 0
        %3829 = vmatpush1.bf16.msra.mxu0 0
        %3830 = vmatprep.subr.bf16.mxu0 0
        %3831 = vmatpush1.bf16.msra.mxu0 0
        %3832 = vmatprep.subr.bf16.mxu0 0
        %3833 = vmatpush1.bf16.msra.mxu0 0
        %3834 = vmatprep.subr.bf16.mxu0 0
        %3835 = vmatpush1.bf16.msra.mxu0 0
        %3836 = vmatprep.subr.bf16.mxu0 0
        %3837 = vmatpush1.bf16.msra.mxu0 0
        %3838 = vmatprep.subr.bf16.mxu0 0
        %3839 = vmatpush1.bf16.msra.mxu0 0
        %3840 = vmatprep.subr.bf16.mxu0 0
        %3841 = vmatpush1.bf16.msra.mxu0 0
        %3842 = vmatprep.subr.bf16.mxu0 0
        %3843 = vmatpush1.bf16.msra.mxu0 0
        %3844 = vmatprep.subr.bf16.mxu0 0
        %3845 = vmatpush1.bf16.msra.mxu0 0
        %3846 = vmatprep.subr.bf16.mxu0 0
        %3847 = vmatpush1.bf16.msra.mxu0 0
        %3848 = vmatprep.subr.bf16.mxu0 0
        %3849 = vmatpush1.bf16.msra.mxu0 0
        %3850 = vmatprep.subr.bf16.mxu0 0
        %3851 = vmatpush1.bf16.msra.mxu0 0
        %3852 = vmatprep.subr.bf16.mxu0 0
        %3853 = vmatpush1.bf16.msra.mxu0 0
        %3854 = vmatprep.subr.bf16.mxu0 0
        %3855 = vmatpush1.bf16.msra.mxu0 0
        %3856 = vmatprep.mubr.bf16.mxu0 0
        %3857 = vmatmul.mubr.bf16.gmra.mrb[0].mxu0 %v3819
        %v3858 = vpop.f32.mrb[0].mxu0
        %v3859 = vadd.f32 0.0, %v3858
        %v3860 = vpop.f32.mrb[0].mxu0
        %v3861 = vpop.f32.mrb[0].mxu0
        %v3862 = vadd.f32 0.0, %v3861
        %v3863 = vpop.f32.mrb[0].mxu0
        %3864 = vmatprep.mubr.bf16.mxu0 0
        %3865 = vmatmul.mubr.bf16.gmra.mrb[0].mxu0 %v3822
        %v3866 = vpop.f32.mrb[0].mxu0
        %v3867 = vadd.f32 0.0, %v3866
        %v3868 = vpop.f32.mrb[0].mxu0
        %v3869 = vpop.f32.mrb[0].mxu0
        %v3870 = vadd.f32 0.0, %v3869
        %v3871 = vpop.f32.mrb[0].mxu0
        %3872 = vdwg.mxu0
        %v3874 = vsel %vm1885, %v3576, 0
        %v3877 = vsel %vm1885, %v3577, 0
        %3879 = vmatprep.subr.bf16.mxu0 0
        %3880 = vmatpush1.bf16.msra.mxu0 %v1863
        %3881 = vmatprep.subr.bf16.mxu0 0
        %3882 = vmatpush1.bf16.msra.mxu0 %v1864
        %3883 = vmatprep.subr.bf16.mxu0 0
        %3884 = vmatpush1.bf16.msra.mxu0 0
        %3885 = vmatprep.subr.bf16.mxu0 0
        %3886 = vmatpush1.bf16.msra.mxu0 0
        %3887 = vmatprep.subr.bf16.mxu0 0
        %3888 = vmatpush1.bf16.msra.mxu0 0
        %3889 = vmatprep.subr.bf16.mxu0 0
        %3890 = vmatpush1.bf16.msra.mxu0 0
        %3891 = vmatprep.subr.bf16.mxu0 0
        %3892 = vmatpush1.bf16.msra.mxu0 0
        %3893 = vmatprep.subr.bf16.mxu0 0
        %3894 = vmatpush1.bf16.msra.mxu0 0
        %3895 = vmatprep.subr.bf16.mxu0 0
        %3896 = vmatpush1.bf16.msra.mxu0 0
        %3897 = vmatprep.subr.bf16.mxu0 0
        %3898 = vmatpush1.bf16.msra.mxu0 0
        %3899 = vmatprep.subr.bf16.mxu0 0
        %3900 = vmatpush1.bf16.msra.mxu0 0
        %3901 = vmatprep.subr.bf16.mxu0 0
        %3902 = vmatpush1.bf16.msra.mxu0 0
        %3903 = vmatprep.subr.bf16.mxu0 0
        %3904 = vmatpush1.bf16.msra.mxu0 0
        %3905 = vmatprep.subr.bf16.mxu0 0
        %3906 = vmatpush1.bf16.msra.mxu0 0
        %3907 = vmatprep.subr.bf16.mxu0 0
        %3908 = vmatpush1.bf16.msra.mxu0 0
        %3909 = vmatprep.subr.bf16.mxu0 0
        %3910 = vmatpush1.bf16.msra.mxu0 0
        %3911 = vmatprep.mubr.bf16.mxu0 0
        %3912 = vmatmul.mubr.bf16.gmra.mrb[0].mxu0 %v3874
        %v3913 = vpop.f32.mrb[0].mxu0
        %v3914 = vadd.f32 0.0, %v3913
        %v3915 = vpop.f32.mrb[0].mxu0
        %v3916 = vpop.f32.mrb[0].mxu0
        %v3917 = vadd.f32 0.0, %v3916
        %v3918 = vpop.f32.mrb[0].mxu0
        %3919 = vmatprep.mubr.bf16.mxu0 0
        %3920 = vmatmul.mubr.bf16.gmra.mrb[0].mxu0 %v3877
        %v3921 = vpop.f32.mrb[0].mxu0
        %v3922 = vadd.f32 0.0, %v3921
        %v3923 = vpop.f32.mrb[0].mxu0
        %v3924 = vpop.f32.mrb[0].mxu0
        %v3925 = vadd.f32 0.0, %v3924
        %v3926 = vpop.f32.mrb[0].mxu0
        %3927 = vdwg.mxu0
        %v3929 = vsel %vm1885, %v3578, 0
        %v3932 = vsel %vm1885, %v3579, 0
        %3934 = vmatprep.subr.bf16.mxu0 0
        %3935 = vmatpush1.bf16.msra.mxu0 %v1865
        %3936 = vmatprep.subr.bf16.mxu0 0
        %3937 = vmatpush1.bf16.msra.mxu0 %v1866
        %3938 = vmatprep.subr.bf16.mxu0 0
        %3939 = vmatpush1.bf16.msra.mxu0 0
        %3940 = vmatprep.subr.bf16.mxu0 0
        %3941 = vmatpush1.bf16.msra.mxu0 0
        %3942 = vmatprep.subr.bf16.mxu0 0
        %3943 = vmatpush1.bf16.msra.mxu0 0
        %3944 = vmatprep.subr.bf16.mxu0 0
        %3945 = vmatpush1.bf16.msra.mxu0 0
        %3946 = vmatprep.subr.bf16.mxu0 0
        %3947 = vmatpush1.bf16.msra.mxu0 0
        %3948 = vmatprep.subr.bf16.mxu0 0
        %3949 = vmatpush1.bf16.msra.mxu0 0
        %3950 = vmatprep.subr.bf16.mxu0 0
        %3951 = vmatpush1.bf16.msra.mxu0 0
        %3952 = vmatprep.subr.bf16.mxu0 0
        %3953 = vmatpush1.bf16.msra.mxu0 0
        %3954 = vmatprep.subr.bf16.mxu0 0
        %3955 = vmatpush1.bf16.msra.mxu0 0
        %3956 = vmatprep.subr.bf16.mxu0 0
        %3957 = vmatpush1.bf16.msra.mxu0 0
        %3958 = vmatprep.subr.bf16.mxu0 0
        %3959 = vmatpush1.bf16.msra.mxu0 0
        %3960 = vmatprep.subr.bf16.mxu0 0
        %3961 = vmatpush1.bf16.msra.mxu0 0
        %3962 = vmatprep.subr.bf16.mxu0 0
        %3963 = vmatpush1.bf16.msra.mxu0 0
        %3964 = vmatprep.subr.bf16.mxu0 0
        %3965 = vmatpush1.bf16.msra.mxu0 0
        %3966 = vmatprep.mubr.bf16.mxu0 0
        %3967 = vmatmul.mubr.bf16.gmra.mrb[0].mxu0 %v3929
        %v3968 = vpop.f32.mrb[0].mxu0
        %v3969 = vadd.f32 0.0, %v3968
        %v3970 = vpop.f32.mrb[0].mxu0
        %v3971 = vpop.f32.mrb[0].mxu0
        %v3972 = vadd.f32 0.0, %v3971
        %v3973 = vpop.f32.mrb[0].mxu0
        %3974 = vmatprep.mubr.bf16.mxu0 0
        %3975 = vmatmul.mubr.bf16.gmra.mrb[0].mxu0 %v3932
        %v3976 = vpop.f32.mrb[0].mxu0
        %v3977 = vadd.f32 0.0, %v3976
        %v3978 = vpop.f32.mrb[0].mxu0
        %v3979 = vpop.f32.mrb[0].mxu0
        %v3980 = vadd.f32 0.0, %v3979
        %v3981 = vpop.f32.mrb[0].mxu0
        %3982 = vdwg.mxu0
        %v3984 = vsel %vm1885, %v3580, 0
        %v3987 = vsel %vm1885, %v3581, 0
        %3989 = vmatprep.subr.bf16.mxu0 0
        %3990 = vmatpush1.bf16.msra.mxu0 %v1867
        %3991 = vmatprep.subr.bf16.mxu0 0
        %3992 = vmatpush1.bf16.msra.mxu0 %v1868
        %3993 = vmatprep.subr.bf16.mxu0 0
        %3994 = vmatpush1.bf16.msra.mxu0 0
        %3995 = vmatprep.subr.bf16.mxu0 0
        %3996 = vmatpush1.bf16.msra.mxu0 0
        %3997 = vmatprep.subr.bf16.mxu0 0
        %3998 = vmatpush1.bf16.msra.mxu0 0
        %3999 = vmatprep.subr.bf16.mxu0 0
        %4000 = vmatpush1.bf16.msra.mxu0 0
        %4001 = vmatprep.subr.bf16.mxu0 0
        %4002 = vmatpush1.bf16.msra.mxu0 0
        %4003 = vmatprep.subr.bf16.mxu0 0
        %4004 = vmatpush1.bf16.msra.mxu0 0
        %4005 = vmatprep.subr.bf16.mxu0 0
        %4006 = vmatpush1.bf16.msra.mxu0 0
        %4007 = vmatprep.subr.bf16.mxu0 0
        %4008 = vmatpush1.bf16.msra.mxu0 0
        %4009 = vmatprep.subr.bf16.mxu0 0
        %4010 = vmatpush1.bf16.msra.mxu0 0
        %4011 = vmatprep.subr.bf16.mxu0 0
        %4012 = vmatpush1.bf16.msra.mxu0 0
        %4013 = vmatprep.subr.bf16.mxu0 0
        %4014 = vmatpush1.bf16.msra.mxu0 0
        %4015 = vmatprep.subr.bf16.mxu0 0
        %4016 = vmatpush1.bf16.msra.mxu0 0
        %4017 = vmatprep.subr.bf16.mxu0 0
        %4018 = vmatpush1.bf16.msra.mxu0 0
        %4019 = vmatprep.subr.bf16.mxu0 0
        %4020 = vmatpush1.bf16.msra.mxu0 0
        %4021 = vmatprep.mubr.bf16.mxu0 0
        %4022 = vmatmul.mubr.bf16.gmra.mrb[0].mxu0 %v3984
        %v4023 = vpop.f32.mrb[0].mxu0
        %v4024 = vadd.f32 0.0, %v4023
        %v4025 = vpop.f32.mrb[0].mxu0
        %v4026 = vpop.f32.mrb[0].mxu0
        %v4027 = vadd.f32 0.0, %v4026
        %v4028 = vpop.f32.mrb[0].mxu0
        %4029 = vmatprep.mubr.bf16.mxu0 0
        %4030 = vmatmul.mubr.bf16.gmra.mrb[0].mxu0 %v3987
        %v4031 = vpop.f32.mrb[0].mxu0
        %v4032 = vadd.f32 0.0, %v4031
        %v4033 = vpop.f32.mrb[0].mxu0
        %v4034 = vpop.f32.mrb[0].mxu0
        %v4035 = vadd.f32 0.0, %v4034
        %v4036 = vpop.f32.mrb[0].mxu0
        %4037 = vdwg.mxu0
        %v4039 = vsel %vm1885, %v3582, 0
        %v4042 = vsel %vm1885, %v3583, 0
        %4044 = vmatprep.subr.bf16.mxu0 0
        %4045 = vmatpush1.bf16.msra.mxu0 %v1869
        %4046 = vmatprep.subr.bf16.mxu0 0
        %4047 = vmatpush1.bf16.msra.mxu0 %v1870
        %4048 = vmatprep.subr.bf16.mxu0 0
        %4049 = vmatpush1.bf16.msra.mxu0 0
        %4050 = vmatprep.subr.bf16.mxu0 0
        %4051 = vmatpush1.bf16.msra.mxu0 0
        %4052 = vmatprep.subr.bf16.mxu0 0
        %4053 = vmatpush1.bf16.msra.mxu0 0
        %4054 = vmatprep.subr.bf16.mxu0 0
        %4055 = vmatpush1.bf16.msra.mxu0 0
        %4056 = vmatprep.subr.bf16.mxu0 0
        %4057 = vmatpush1.bf16.msra.mxu0 0
        %4058 = vmatprep.subr.bf16.mxu0 0
        %4059 = vmatpush1.bf16.msra.mxu0 0
        %4060 = vmatprep.subr.bf16.mxu0 0
        %4061 = vmatpush1.bf16.msra.mxu0 0
        %4062 = vmatprep.subr.bf16.mxu0 0
        %4063 = vmatpush1.bf16.msra.mxu0 0
        %4064 = vmatprep.subr.bf16.mxu0 0
        %4065 = vmatpush1.bf16.msra.mxu0 0
        %4066 = vmatprep.subr.bf16.mxu0 0
        %4067 = vmatpush1.bf16.msra.mxu0 0
        %4068 = vmatprep.subr.bf16.mxu0 0
        %4069 = vmatpush1.bf16.msra.mxu0 0
        %4070 = vmatprep.subr.bf16.mxu0 0
        %4071 = vmatpush1.bf16.msra.mxu0 0
        %4072 = vmatprep.subr.bf16.mxu0 0
        %4073 = vmatpush1.bf16.msra.mxu0 0
        %4074 = vmatprep.subr.bf16.mxu0 0
        %4075 = vmatpush1.bf16.msra.mxu0 0
        %4076 = vmatprep.mubr.bf16.mxu0 0
        %4077 = vmatmul.mubr.bf16.gmra.mrb[0].mxu0 %v4039
        %v4078 = vpop.f32.mrb[0].mxu0
        %v4079 = vadd.f32 0.0, %v4078
        %v4080 = vpop.f32.mrb[0].mxu0
        %v4081 = vpop.f32.mrb[0].mxu0
        %v4082 = vadd.f32 0.0, %v4081
        %v4083 = vpop.f32.mrb[0].mxu0
        %4084 = vmatprep.mubr.bf16.mxu0 0
        %4085 = vmatmul.mubr.bf16.gmra.mrb[0].mxu0 %v4042
        %v4086 = vpop.f32.mrb[0].mxu0
        %v4087 = vadd.f32 0.0, %v4086
        %v4088 = vpop.f32.mrb[0].mxu0
        %v4089 = vpop.f32.mrb[0].mxu0
        %v4090 = vadd.f32 0.0, %v4089
        %v4091 = vpop.f32.mrb[0].mxu0
        %4092 = vdwg.mxu0
        %v4094 = vsel %vm1885, %v3584, 0
        %v4097 = vsel %vm1885, %v3585, 0
        %4099 = vmatprep.subr.bf16.mxu0 0
        %4100 = vmatpush1.bf16.msra.mxu0 %v1871
        %4101 = vmatprep.subr.bf16.mxu0 0
        %4102 = vmatpush1.bf16.msra.mxu0 %v1872
        %4103 = vmatprep.subr.bf16.mxu0 0
        %4104 = vmatpush1.bf16.msra.mxu0 0
        %4105 = vmatprep.subr.bf16.mxu0 0
        %4106 = vmatpush1.bf16.msra.mxu0 0
        %4107 = vmatprep.subr.bf16.mxu0 0
        %4108 = vmatpush1.bf16.msra.mxu0 0
        %4109 = vmatprep.subr.bf16.mxu0 0
        %4110 = vmatpush1.bf16.msra.mxu0 0
        %4111 = vmatprep.subr.bf16.mxu0 0
        %4112 = vmatpush1.bf16.msra.mxu0 0
        %4113 = vmatprep.subr.bf16.mxu0 0
        %4114 = vmatpush1.bf16.msra.mxu0 0
        %4115 = vmatprep.subr.bf16.mxu0 0
        %4116 = vmatpush1.bf16.msra.mxu0 0
        %4117 = vmatprep.subr.bf16.mxu0 0
        %4118 = vmatpush1.bf16.msra.mxu0 0
        %4119 = vmatprep.subr.bf16.mxu0 0
        %4120 = vmatpush1.bf16.msra.mxu0 0
        %4121 = vmatprep.subr.bf16.mxu0 0
        %4122 = vmatpush1.bf16.msra.mxu0 0
        %4123 = vmatprep.subr.bf16.mxu0 0
        %4124 = vmatpush1.bf16.msra.mxu0 0
        %4125 = vmatprep.subr.bf16.mxu0 0
        %4126 = vmatpush1.bf16.msra.mxu0 0
        %4127 = vmatprep.subr.bf16.mxu0 0
        %4128 = vmatpush1.bf16.msra.mxu0 0
        %4129 = vmatprep.subr.bf16.mxu0 0
        %4130 = vmatpush1.bf16.msra.mxu0 0
        %4131 = vmatprep.mubr.bf16.mxu0 0
        %4132 = vmatmul.mubr.bf16.gmra.mrb[0].mxu0 %v4094
        %v4133 = vpop.f32.mrb[0].mxu0
        %v4134 = vadd.f32 0.0, %v4133
        %v4135 = vpop.f32.mrb[0].mxu0
        %v4136 = vpop.f32.mrb[0].mxu0
        %v4137 = vadd.f32 0.0, %v4136
        %v4138 = vpop.f32.mrb[0].mxu0
        %4139 = vmatprep.mubr.bf16.mxu0 0
        %4140 = vmatmul.mubr.bf16.gmra.mrb[0].mxu0 %v4097
        %v4141 = vpop.f32.mrb[0].mxu0
        %v4142 = vadd.f32 0.0, %v4141
        %v4143 = vpop.f32.mrb[0].mxu0
        %v4144 = vpop.f32.mrb[0].mxu0
        %v4145 = vadd.f32 0.0, %v4144
        %v4146 = vpop.f32.mrb[0].mxu0
        %4147 = vdwg.mxu0
        %v4149 = vsel %vm1885, %v3586, 0
        %v4152 = vsel %vm1885, %v3587, 0
        %4154 = vmatprep.subr.bf16.mxu0 0
        %4155 = vmatpush1.bf16.msra.mxu0 %v1873
        %4156 = vmatprep.subr.bf16.mxu0 0
        %4157 = vmatpush1.bf16.msra.mxu0 %v1874
        %4158 = vmatprep.subr.bf16.mxu0 0
        %4159 = vmatpush1.bf16.msra.mxu0 0
        %4160 = vmatprep.subr.bf16.mxu0 0
        %4161 = vmatpush1.bf16.msra.mxu0 0
        %4162 = vmatprep.subr.bf16.mxu0 0
        %4163 = vmatpush1.bf16.msra.mxu0 0
        %4164 = vmatprep.subr.bf16.mxu0 0
        %4165 = vmatpush1.bf16.msra.mxu0 0
        %4166 = vmatprep.subr.bf16.mxu0 0
        %4167 = vmatpush1.bf16.msra.mxu0 0
        %4168 = vmatprep.subr.bf16.mxu0 0
        %4169 = vmatpush1.bf16.msra.mxu0 0
        %4170 = vmatprep.subr.bf16.mxu0 0
        %4171 = vmatpush1.bf16.msra.mxu0 0
        %4172 = vmatprep.subr.bf16.mxu0 0
        %4173 = vmatpush1.bf16.msra.mxu0 0
        %4174 = vmatprep.subr.bf16.mxu0 0
        %4175 = vmatpush1.bf16.msra.mxu0 0
        %4176 = vmatprep.subr.bf16.mxu0 0
        %4177 = vmatpush1.bf16.msra.mxu0 0
        %4178 = vmatprep.subr.bf16.mxu0 0
        %4179 = vmatpush1.bf16.msra.mxu0 0
        %4180 = vmatprep.subr.bf16.mxu0 0
        %4181 = vmatpush1.bf16.msra.mxu0 0
        %4182 = vmatprep.subr.bf16.mxu0 0
        %4183 = vmatpush1.bf16.msra.mxu0 0
        %4184 = vmatprep.subr.bf16.mxu0 0
        %4185 = vmatpush1.bf16.msra.mxu0 0
        %4186 = vmatprep.mubr.bf16.mxu0 0
        %4187 = vmatmul.mubr.bf16.gmra.mrb[0].mxu0 %v4149
        %v4188 = vpop.f32.mrb[0].mxu0
        %v4189 = vadd.f32 0.0, %v4188
        %v4190 = vpop.f32.mrb[0].mxu0
        %v4191 = vpop.f32.mrb[0].mxu0
        %v4192 = vadd.f32 0.0, %v4191
        %v4193 = vpop.f32.mrb[0].mxu0
        %4194 = vmatprep.mubr.bf16.mxu0 0
        %4195 = vmatmul.mubr.bf16.gmra.mrb[0].mxu0 %v4152
        %v4196 = vpop.f32.mrb[0].mxu0
        %v4197 = vadd.f32 0.0, %v4196
        %v4198 = vpop.f32.mrb[0].mxu0
        %v4199 = vpop.f32.mrb[0].mxu0
        %v4200 = vadd.f32 0.0, %v4199
        %v4201 = vpop.f32.mrb[0].mxu0
        %4202 = vdwg.mxu0
        %v4204 = vsel %vm1885, %v3588, 0
        %v4207 = vsel %vm1885, %v3589, 0
        %4209 = vmatprep.subr.bf16.mxu0 0
        %4210 = vmatpush1.bf16.msra.mxu0 %v1875
        %4211 = vmatprep.subr.bf16.mxu0 0
        %4212 = vmatpush1.bf16.msra.mxu0 %v1876
        %4213 = vmatprep.subr.bf16.mxu0 0
        %4214 = vmatpush1.bf16.msra.mxu0 0
        %4215 = vmatprep.subr.bf16.mxu0 0
        %4216 = vmatpush1.bf16.msra.mxu0 0
        %4217 = vmatprep.subr.bf16.mxu0 0
        %4218 = vmatpush1.bf16.msra.mxu0 0
        %4219 = vmatprep.subr.bf16.mxu0 0
        %4220 = vmatpush1.bf16.msra.mxu0 0
        %4221 = vmatprep.subr.bf16.mxu0 0
        %4222 = vmatpush1.bf16.msra.mxu0 0
        %4223 = vmatprep.subr.bf16.mxu0 0
        %4224 = vmatpush1.bf16.msra.mxu0 0
        %4225 = vmatprep.subr.bf16.mxu0 0
        %4226 = vmatpush1.bf16.msra.mxu0 0
        %4227 = vmatprep.subr.bf16.mxu0 0
        %4228 = vmatpush1.bf16.msra.mxu0 0
        %4229 = vmatprep.subr.bf16.mxu0 0
        %4230 = vmatpush1.bf16.msra.mxu0 0
        %4231 = vmatprep.subr.bf16.mxu0 0
        %4232 = vmatpush1.bf16.msra.mxu0 0
        %4233 = vmatprep.subr.bf16.mxu0 0
        %4234 = vmatpush1.bf16.msra.mxu0 0
        %4235 = vmatprep.subr.bf16.mxu0 0
        %4236 = vmatpush1.bf16.msra.mxu0 0
        %4237 = vmatprep.subr.bf16.mxu0 0
        %4238 = vmatpush1.bf16.msra.mxu0 0
        %4239 = vmatprep.subr.bf16.mxu0 0
        %4240 = vmatpush1.bf16.msra.mxu0 0
        %4241 = vmatprep.mubr.bf16.mxu0 0
        %4242 = vmatmul.mubr.bf16.gmra.mrb[0].mxu0 %v4204
        %v4243 = vpop.f32.mrb[0].mxu0
        %v4244 = vadd.f32 0.0, %v4243
        %v4245 = vpop.f32.mrb[0].mxu0
        %v4246 = vpop.f32.mrb[0].mxu0
        %v4247 = vadd.f32 0.0, %v4246
        %v4248 = vpop.f32.mrb[0].mxu0
        %4249 = vmatprep.mubr.bf16.mxu0 0
        %4250 = vmatmul.mubr.bf16.gmra.mrb[0].mxu0 %v4207
        %v4251 = vpop.f32.mrb[0].mxu0
        %v4252 = vadd.f32 0.0, %v4251
        %v4253 = vpop.f32.mrb[0].mxu0
        %v4254 = vpop.f32.mrb[0].mxu0
        %v4255 = vadd.f32 0.0, %v4254
        %v4256 = vpop.f32.mrb[0].mxu0
        %4257 = vdwg.mxu0
        %v4259 = vsel %vm1885, %v3590, 0
        %v4262 = vsel %vm1885, %v3591, 0
        %4264 = vmatprep.subr.bf16.mxu0 0
        %4265 = vmatpush1.bf16.msra.mxu0 %v1877
        %4266 = vmatprep.subr.bf16.mxu0 0
        %4267 = vmatpush1.bf16.msra.mxu0 %v1878
        %4268 = vmatprep.subr.bf16.mxu0 0
        %4269 = vmatpush1.bf16.msra.mxu0 0
        %4270 = vmatprep.subr.bf16.mxu0 0
        %4271 = vmatpush1.bf16.msra.mxu0 0
        %4272 = vmatprep.subr.bf16.mxu0 0
        %4273 = vmatpush1.bf16.msra.mxu0 0
        %4274 = vmatprep.subr.bf16.mxu0 0
        %4275 = vmatpush1.bf16.msra.mxu0 0
        %4276 = vmatprep.subr.bf16.mxu0 0
        %4277 = vmatpush1.bf16.msra.mxu0 0
        %4278 = vmatprep.subr.bf16.mxu0 0
        %4279 = vmatpush1.bf16.msra.mxu0 0
        %4280 = vmatprep.subr.bf16.mxu0 0
        %4281 = vmatpush1.bf16.msra.mxu0 0
        %4282 = vmatprep.subr.bf16.mxu0 0
        %4283 = vmatpush1.bf16.msra.mxu0 0
        %4284 = vmatprep.subr.bf16.mxu0 0
        %4285 = vmatpush1.bf16.msra.mxu0 0
        %4286 = vmatprep.subr.bf16.mxu0 0
        %4287 = vmatpush1.bf16.msra.mxu0 0
        %4288 = vmatprep.subr.bf16.mxu0 0
        %4289 = vmatpush1.bf16.msra.mxu0 0
        %4290 = vmatprep.subr.bf16.mxu0 0
        %4291 = vmatpush1.bf16.msra.mxu0 0
        %4292 = vmatprep.subr.bf16.mxu0 0
        %4293 = vmatpush1.bf16.msra.mxu0 0
        %4294 = vmatprep.subr.bf16.mxu0 0
        %4295 = vmatpush1.bf16.msra.mxu0 0
        %4296 = vmatprep.mubr.bf16.mxu0 0
        %4297 = vmatmul.mubr.bf16.gmra.mrb[0].mxu0 %v4259
        %v4298 = vpop.f32.mrb[0].mxu0
        %v4299 = vadd.f32 0.0, %v4298
        %v4300 = vpop.f32.mrb[0].mxu0
        %v4301 = vpop.f32.mrb[0].mxu0
        %v4302 = vadd.f32 0.0, %v4301
        %v4303 = vpop.f32.mrb[0].mxu0
        %4304 = vmatprep.mubr.bf16.mxu0 0
        %4305 = vmatmul.mubr.bf16.gmra.mrb[0].mxu0 %v4262
        %v4306 = vpop.f32.mrb[0].mxu0
        %v4307 = vadd.f32 0.0, %v4306
        %v4308 = vpop.f32.mrb[0].mxu0
        %v4309 = vpop.f32.mrb[0].mxu0
        %v4310 = vadd.f32 0.0, %v4309
        %v4311 = vpop.f32.mrb[0].mxu0
        %4312 = vdwg.mxu0
        %v4314 = vsel %vm1885, %v3592, 0
        %v4317 = vsel %vm1885, %v3593, 0
        %4319 = vmatprep.subr.bf16.mxu0 0
        %4320 = vmatpush1.bf16.msra.mxu0 %v1879
        %4321 = vmatprep.subr.bf16.mxu0 0
        %4322 = vmatpush1.bf16.msra.mxu0 %v1880
        %4323 = vmatprep.subr.bf16.mxu0 0
        %4324 = vmatpush1.bf16.msra.mxu0 0
        %4325 = vmatprep.subr.bf16.mxu0 0
        %4326 = vmatpush1.bf16.msra.mxu0 0
        %4327 = vmatprep.subr.bf16.mxu0 0
        %4328 = vmatpush1.bf16.msra.mxu0 0
        %4329 = vmatprep.subr.bf16.mxu0 0
        %4330 = vmatpush1.bf16.msra.mxu0 0
        %4331 = vmatprep.subr.bf16.mxu0 0
        %4332 = vmatpush1.bf16.msra.mxu0 0
        %4333 = vmatprep.subr.bf16.mxu0 0
        %4334 = vmatpush1.bf16.msra.mxu0 0
        %4335 = vmatprep.subr.bf16.mxu0 0
        %4336 = vmatpush1.bf16.msra.mxu0 0
        %4337 = vmatprep.subr.bf16.mxu0 0
        %4338 = vmatpush1.bf16.msra.mxu0 0
        %4339 = vmatprep.subr.bf16.mxu0 0
        %4340 = vmatpush1.bf16.msra.mxu0 0
        %4341 = vmatprep.subr.bf16.mxu0 0
        %4342 = vmatpush1.bf16.msra.mxu0 0
        %4343 = vmatprep.subr.bf16.mxu0 0
        %4344 = vmatpush1.bf16.msra.mxu0 0
        %4345 = vmatprep.subr.bf16.mxu0 0
        %4346 = vmatpush1.bf16.msra.mxu0 0
        %4347 = vmatprep.subr.bf16.mxu0 0
        %4348 = vmatpush1.bf16.msra.mxu0 0
        %4349 = vmatprep.subr.bf16.mxu0 0
        %4350 = vmatpush1.bf16.msra.mxu0 0
        %4351 = vmatprep.mubr.bf16.mxu0 0
        %4352 = vmatmul.mubr.bf16.gmra.mrb[0].mxu0 %v4314
        %v4353 = vpop.f32.mrb[0].mxu0
        %v4354 = vadd.f32 0.0, %v4353
        %v4355 = vpop.f32.mrb[0].mxu0
        %v4356 = vpop.f32.mrb[0].mxu0
        %v4357 = vadd.f32 0.0, %v4356
        %v4358 = vpop.f32.mrb[0].mxu0
        %4359 = vmatprep.mubr.bf16.mxu0 0
        %4360 = vmatmul.mubr.bf16.gmra.mrb[0].mxu0 %v4317
        %v4361 = vpop.f32.mrb[0].mxu0
        %v4362 = vadd.f32 0.0, %v4361
        %v4363 = vpop.f32.mrb[0].mxu0
        %v4364 = vpop.f32.mrb[0].mxu0
        %v4365 = vadd.f32 0.0, %v4364
        %v4366 = vpop.f32.mrb[0].mxu0
        %4367 = vdwg.mxu0
        %v4369 = vsel %vm1885, %v3594, 0
        %v4372 = vsel %vm1885, %v3595, 0
        %4374 = vmatprep.subr.bf16.mxu0 0
        %4375 = vmatpush1.bf16.msra.mxu0 %v1881
        %4376 = vmatprep.subr.bf16.mxu0 0
        %4377 = vmatpush1.bf16.msra.mxu0 %v1882
        %4378 = vmatprep.subr.bf16.mxu0 0
        %4379 = vmatpush1.bf16.msra.mxu0 0
        %4380 = vmatprep.subr.bf16.mxu0 0
        %4381 = vmatpush1.bf16.msra.mxu0 0
        %4382 = vmatprep.subr.bf16.mxu0 0
        %4383 = vmatpush1.bf16.msra.mxu0 0
        %4384 = vmatprep.subr.bf16.mxu0 0
        %4385 = vmatpush1.bf16.msra.mxu0 0
        %4386 = vmatprep.subr.bf16.mxu0 0
        %4387 = vmatpush1.bf16.msra.mxu0 0
        %4388 = vmatprep.subr.bf16.mxu0 0
        %4389 = vmatpush1.bf16.msra.mxu0 0
        %4390 = vmatprep.subr.bf16.mxu0 0
        %4391 = vmatpush1.bf16.msra.mxu0 0
        %4392 = vmatprep.subr.bf16.mxu0 0
        %4393 = vmatpush1.bf16.msra.mxu0 0
        %4394 = vmatprep.subr.bf16.mxu0 0
        %4395 = vmatpush1.bf16.msra.mxu0 0
        %4396 = vmatprep.subr.bf16.mxu0 0
        %4397 = vmatpush1.bf16.msra.mxu0 0
        %4398 = vmatprep.subr.bf16.mxu0 0
        %4399 = vmatpush1.bf16.msra.mxu0 0
        %4400 = vmatprep.subr.bf16.mxu0 0
        %4401 = vmatpush1.bf16.msra.mxu0 0
        %4402 = vmatprep.subr.bf16.mxu0 0
        %4403 = vmatpush1.bf16.msra.mxu0 0
        %4404 = vmatprep.subr.bf16.mxu0 0
        %4405 = vmatpush1.bf16.msra.mxu0 0
        %4406 = vmatprep.mubr.bf16.mxu0 0
        %4407 = vmatmul.mubr.bf16.gmra.mrb[0].mxu0 %v4369
        %v4408 = vpop.f32.mrb[0].mxu0
        %v4409 = vadd.f32 0.0, %v4408
        %v4410 = vpop.f32.mrb[0].mxu0
        %v4411 = vpop.f32.mrb[0].mxu0
        %v4412 = vadd.f32 0.0, %v4411
        %v4413 = vpop.f32.mrb[0].mxu0
        %4414 = vmatprep.mubr.bf16.mxu0 0
        %4415 = vmatmul.mubr.bf16.gmra.mrb[0].mxu0 %v4372
        %v4416 = vpop.f32.mrb[0].mxu0
        %v4417 = vadd.f32 0.0, %v4416
        %v4418 = vpop.f32.mrb[0].mxu0
        %v4419 = vpop.f32.mrb[0].mxu0
        %v4420 = vadd.f32 0.0, %v4419
        %v4421 = vpop.f32.mrb[0].mxu0
        %4422 = vdwg.mxu0
        %v4424 = vsel %vm1885, %v3596, 0
        %v4427 = vsel %vm1885, %v3597, 0
        %4429 = vmatprep.subr.bf16.mxu0 0
        %4430 = vmatpush1.bf16.msra.mxu0 %v1883
        %4431 = vmatprep.subr.bf16.mxu0 0
        %4432 = vmatpush1.bf16.msra.mxu0 %v1884
        %4433 = vmatprep.subr.bf16.mxu0 0
        %4434 = vmatpush1.bf16.msra.mxu0 0
        %4435 = vmatprep.subr.bf16.mxu0 0
        %4436 = vmatpush1.bf16.msra.mxu0 0
        %4437 = vmatprep.subr.bf16.mxu0 0
        %4438 = vmatpush1.bf16.msra.mxu0 0
        %4439 = vmatprep.subr.bf16.mxu0 0
        %4440 = vmatpush1.bf16.msra.mxu0 0
        %4441 = vmatprep.subr.bf16.mxu0 0
        %4442 = vmatpush1.bf16.msra.mxu0 0
        %4443 = vmatprep.subr.bf16.mxu0 0
        %4444 = vmatpush1.bf16.msra.mxu0 0
        %4445 = vmatprep.subr.bf16.mxu0 0
        %4446 = vmatpush1.bf16.msra.mxu0 0
        %4447 = vmatprep.subr.bf16.mxu0 0
        %4448 = vmatpush1.bf16.msra.mxu0 0
        %4449 = vmatprep.subr.bf16.mxu0 0
        %4450 = vmatpush1.bf16.msra.mxu0 0
        %4451 = vmatprep.subr.bf16.mxu0 0
        %4452 = vmatpush1.bf16.msra.mxu0 0
        %4453 = vmatprep.subr.bf16.mxu0 0
        %4454 = vmatpush1.bf16.msra.mxu0 0
        %4455 = vmatprep.subr.bf16.mxu0 0
        %4456 = vmatpush1.bf16.msra.mxu0 0
        %4457 = vmatprep.subr.bf16.mxu0 0
        %4458 = vmatpush1.bf16.msra.mxu0 0
        %4459 = vmatprep.subr.bf16.mxu0 0
        %4460 = vmatpush1.bf16.msra.mxu0 0
        %4461 = vmatprep.mubr.bf16.mxu0 0
        %4462 = vmatmul.mubr.bf16.gmra.mrb[0].mxu0 %v4424
        %v4463 = vpop.f32.mrb[0].mxu0
        %v4464 = vadd.f32 0.0, %v4463
        %v4465 = vpop.f32.mrb[0].mxu0
        %v4466 = vpop.f32.mrb[0].mxu0
        %v4467 = vadd.f32 0.0, %v4466
        %v4468 = vpop.f32.mrb[0].mxu0
        %4469 = vmatprep.mubr.bf16.mxu0 0
        %4470 = vmatmul.mubr.bf16.gmra.mrb[0].mxu0 %v4427
        %v4471 = vpop.f32.mrb[0].mxu0
        %v4472 = vadd.f32 0.0, %v4471
        %v4473 = vpop.f32.mrb[0].mxu0
        %v4474 = vpop.f32.mrb[0].mxu0
        %v4475 = vadd.f32 0.0, %v4474
        %v4476 = vpop.f32.mrb[0].mxu0
        %4477 = vdwg.mxu0
        %4482 = vrot.lane.b32.xlu0 %v3694, 32
        %v4483 = vpop.permute.xlu0 %4482
        %4484 = vrot.lane.b32.xlu0 %v3697, 32
        %v4485 = vpop.permute.xlu0 %4484
        %4486 = vrot.lane.b32.xlu0 %v3702, 32
        %v4487 = vpop.permute.xlu0 %4486
        %4488 = vrot.lane.b32.xlu0 %v3705, 32
        %v4489 = vpop.permute.xlu0 %4488
        %4498 = vrot.lane.b32.xlu0 %v3749, 64
        %v4499 = vpop.permute.xlu0 %4498
        %4500 = vrot.lane.b32.xlu0 %v3752, 64
        %v4501 = vpop.permute.xlu0 %4500
        %4502 = vrot.lane.b32.xlu0 %v3757, 64
        %v4503 = vpop.permute.xlu0 %4502
        %4504 = vrot.lane.b32.xlu0 %v3760, 64
        %v4505 = vpop.permute.xlu0 %4504
        %4514 = vrot.lane.b32.xlu0 %v3804, 96
        %v4515 = vpop.permute.xlu0 %4514
        %4516 = vrot.lane.b32.xlu0 %v3807, 96
        %v4517 = vpop.permute.xlu0 %4516
        %4518 = vrot.lane.b32.xlu0 %v3812, 96
        %v4519 = vpop.permute.xlu0 %4518
        %4520 = vrot.lane.b32.xlu0 %v3815, 96
        %v4521 = vpop.permute.xlu0 %4520
        %v4526 = vsel %vm1885, %v3639, %v4483
        %v4527 = vsel %vm1885, %v3642, %v4485
        %v4528 = vsel %vm1885, %v3647, %v4487
        %v4529 = vsel %vm1885, %v3650, %v4489
        %vm4530 = vcmask 523264
        %v4531 = vsel %vm4530, %v4526, %v4499
        %v4532 = vsel %vm4530, %v4527, %v4501
        %v4533 = vsel %vm4530, %v4528, %v4503
        %v4534 = vsel %vm4530, %v4529, %v4505
        %vm4535 = vcmask 785408
        %v4536 = vsel %vm4535, %v4531, %v4515
        %v4537 = vsel %vm4535, %v4532, %v4517
        %v4538 = vsel %vm4535, %v4533, %v4519
        %v4539 = vsel %vm4535, %v4534, %v4521
        %4544 = vrot.lane.b32.xlu0 %v3914, 32
        %v4545 = vpop.permute.xlu0 %4544
        %4546 = vrot.lane.b32.xlu0 %v3917, 32
        %v4547 = vpop.permute.xlu0 %4546
        %4548 = vrot.lane.b32.xlu0 %v3922, 32
        %v4549 = vpop.permute.xlu0 %4548
        %4550 = vrot.lane.b32.xlu0 %v3925, 32
        %v4551 = vpop.permute.xlu0 %4550
        %4560 = vrot.lane.b32.xlu0 %v3969, 64
        %v4561 = vpop.permute.xlu0 %4560
        %4562 = vrot.lane.b32.xlu0 %v3972, 64
        %v4563 = vpop.permute.xlu0 %4562
        %4564 = vrot.lane.b32.xlu0 %v3977, 64
        %v4565 = vpop.permute.xlu0 %4564
        %4566 = vrot.lane.b32.xlu0 %v3980, 64
        %v4567 = vpop.permute.xlu0 %4566
        %4576 = vrot.lane.b32.xlu0 %v4024, 96
        %v4577 = vpop.permute.xlu0 %4576
        %4578 = vrot.lane.b32.xlu0 %v4027, 96
        %v4579 = vpop.permute.xlu0 %4578
        %4580 = vrot.lane.b32.xlu0 %v4032, 96
        %v4581 = vpop.permute.xlu0 %4580
        %4582 = vrot.lane.b32.xlu0 %v4035, 96
        %v4583 = vpop.permute.xlu0 %4582
        %v4588 = vsel %vm1885, %v3859, %v4545
        %v4589 = vsel %vm1885, %v3862, %v4547
        %v4590 = vsel %vm1885, %v3867, %v4549
        %v4591 = vsel %vm1885, %v3870, %v4551
        %v4592 = vsel %vm4530, %v4588, %v4561
        %v4593 = vsel %vm4530, %v4589, %v4563
        %v4594 = vsel %vm4530, %v4590, %v4565
        %v4595 = vsel %vm4530, %v4591, %v4567
        %v4596 = vsel %vm4535, %v4592, %v4577
        %v4597 = vsel %vm4535, %v4593, %v4579
        %v4598 = vsel %vm4535, %v4594, %v4581
        %v4599 = vsel %vm4535, %v4595, %v4583
        %4604 = vrot.lane.b32.xlu0 %v4134, 32
        %v4605 = vpop.permute.xlu0 %4604
        %4606 = vrot.lane.b32.xlu0 %v4137, 32
        %v4607 = vpop.permute.xlu0 %4606
        %4608 = vrot.lane.b32.xlu0 %v4142, 32
        %v4609 = vpop.permute.xlu0 %4608
        %4610 = vrot.lane.b32.xlu0 %v4145, 32
        %v4611 = vpop.permute.xlu0 %4610
        %4620 = vrot.lane.b32.xlu0 %v4189, 64
        %v4621 = vpop.permute.xlu0 %4620
        %4622 = vrot.lane.b32.xlu0 %v4192, 64
        %v4623 = vpop.permute.xlu0 %4622
        %4624 = vrot.lane.b32.xlu0 %v4197, 64
        %v4625 = vpop.permute.xlu0 %4624
        %4626 = vrot.lane.b32.xlu0 %v4200, 64
        %v4627 = vpop.permute.xlu0 %4626
        %4636 = vrot.lane.b32.xlu0 %v4244, 96
        %v4637 = vpop.permute.xlu0 %4636
        %4638 = vrot.lane.b32.xlu0 %v4247, 96
        %v4639 = vpop.permute.xlu0 %4638
        %4640 = vrot.lane.b32.xlu0 %v4252, 96
        %v4641 = vpop.permute.xlu0 %4640
        %4642 = vrot.lane.b32.xlu0 %v4255, 96
        %v4643 = vpop.permute.xlu0 %4642
        %v4648 = vsel %vm1885, %v4079, %v4605
        %v4649 = vsel %vm1885, %v4082, %v4607
        %v4650 = vsel %vm1885, %v4087, %v4609
        %v4651 = vsel %vm1885, %v4090, %v4611
        %v4652 = vsel %vm4530, %v4648, %v4621
        %v4653 = vsel %vm4530, %v4649, %v4623
        %v4654 = vsel %vm4530, %v4650, %v4625
        %v4655 = vsel %vm4530, %v4651, %v4627
        %v4656 = vsel %vm4535, %v4652, %v4637
        %v4657 = vsel %vm4535, %v4653, %v4639
        %v4658 = vsel %vm4535, %v4654, %v4641
        %v4659 = vsel %vm4535, %v4655, %v4643
        %4664 = vrot.lane.b32.xlu0 %v4354, 32
        %v4665 = vpop.permute.xlu0 %4664
        %4666 = vrot.lane.b32.xlu0 %v4357, 32
        %v4667 = vpop.permute.xlu0 %4666
        %4668 = vrot.lane.b32.xlu0 %v4362, 32
        %v4669 = vpop.permute.xlu0 %4668
        %4670 = vrot.lane.b32.xlu0 %v4365, 32
        %v4671 = vpop.permute.xlu0 %4670
        %4680 = vrot.lane.b32.xlu0 %v4409, 64
        %v4681 = vpop.permute.xlu0 %4680
        %4682 = vrot.lane.b32.xlu0 %v4412, 64
        %v4683 = vpop.permute.xlu0 %4682
        %4684 = vrot.lane.b32.xlu0 %v4417, 64
        %v4685 = vpop.permute.xlu0 %4684
        %4686 = vrot.lane.b32.xlu0 %v4420, 64
        %v4687 = vpop.permute.xlu0 %4686
        %4696 = vrot.lane.b32.xlu0 %v4464, 96
        %v4697 = vpop.permute.xlu0 %4696
        %4698 = vrot.lane.b32.xlu0 %v4467, 96
        %v4699 = vpop.permute.xlu0 %4698
        %4700 = vrot.lane.b32.xlu0 %v4472, 96
        %v4701 = vpop.permute.xlu0 %4700
        %4702 = vrot.lane.b32.xlu0 %v4475, 96
        %v4703 = vpop.permute.xlu0 %4702
        %v4708 = vsel %vm1885, %v4299, %v4665
        %v4709 = vsel %vm1885, %v4302, %v4667
        %v4710 = vsel %vm1885, %v4307, %v4669
        %v4711 = vsel %vm1885, %v4310, %v4671
        %v4712 = vsel %vm4530, %v4708, %v4681
        %v4713 = vsel %vm4530, %v4709, %v4683
        %v4714 = vsel %vm4530, %v4710, %v4685
        %v4715 = vsel %vm4530, %v4711, %v4687
        %v4716 = vsel %vm4535, %v4712, %v4697
        %v4717 = vsel %vm4535, %v4713, %v4699
        %v4718 = vsel %vm4535, %v4714, %v4701
        %v4719 = vsel %vm4535, %v4715, %v4703
        %v4720 = vpack.c.bf16 %v4537, %v4536
        %v4721 = vpack.c.bf16 %v4539, %v4538
        %v4722 = vpack.c.bf16 %v4597, %v4596
        %v4723 = vpack.c.bf16 %v4599, %v4598
        %v4724 = vpack.c.bf16 %v4657, %v4656
        %v4725 = vpack.c.bf16 %v4659, %v4658
        %v4726 = vpack.c.bf16 %v4717, %v4716
        %v4727 = vpack.c.bf16 %v4719, %v4718
        %s4728 = smul.u32 %s40, 16
        %s4729 = smul.addr %s4728, 4
        %s4730 = scalar_lea.vmem [#allocation7], %s4729
        %v4731 = vld [vmem:[%s4730] sm:$0xf]
        %v4732 = vld [vmem:[%s4730 + $0x4] sm:$0xf]
        %v4733 = vld [vmem:[%s4730 + $0x8] sm:$0xf]
        %v4734 = vld [vmem:[%s4730 + $0xc] sm:$0xf]
        %v4735 = vld [vmem:[%s4730 + $0x10] sm:$0xf]
        %v4736 = vld [vmem:[%s4730 + $0x14] sm:$0xf]
        %v4737 = vld [vmem:[%s4730 + $0x18] sm:$0xf]
        %v4738 = vld [vmem:[%s4730 + $0x1c] sm:$0xf]
        %v4739 = vld [vmem:[%s4730 + $0x20] sm:$0xf]
        %v4740 = vld [vmem:[%s4730 + $0x24] sm:$0xf]
        %v4741 = vld [vmem:[%s4730 + $0x28] sm:$0xf]
        %v4742 = vld [vmem:[%s4730 + $0x2c] sm:$0xf]
        %v4743 = vld [vmem:[%s4730 + $0x30] sm:$0xf]
        %v4744 = vld [vmem:[%s4730 + $0x34] sm:$0xf]
        %v4745 = vld [vmem:[%s4730 + $0x38] sm:$0xf]
        %v4746 = vld [vmem:[%s4730 + $0x3c] sm:$0xf]
        %s4747 = scalar_lea.vmem [#allocation8], %s40
        %v4748 = vld [vmem:[%s4747] sm:$0x1]
        %v4750 = vlaneseq
        %v4751 = vshrl.u32 %v4750, 7
        %v4752 = vsub.s32 0, %v4751
        %v4753 = vrot.slane %v4748, %v4752
        %v4771 = vunpack.c.l.b16 %v4731
        %v4772 = vunpack.c.l.b16 %v4732
        %v4773 = vunpack.c.l.b16 %v4733
        %v4774 = vunpack.c.l.b16 %v4734
        %v4775 = vunpack.c.l.b16 %v4735
        %v4776 = vunpack.c.l.b16 %v4736
        %v4777 = vunpack.c.l.b16 %v4737
        %v4778 = vunpack.c.l.b16 %v4738
        %v4779 = vunpack.c.l.b16 %v4739
        %v4780 = vunpack.c.l.b16 %v4740
        %v4781 = vunpack.c.l.b16 %v4741
        %v4782 = vunpack.c.l.b16 %v4742
        %v4783 = vunpack.c.l.b16 %v4743
        %v4784 = vunpack.c.l.b16 %v4744
        %v4785 = vunpack.c.l.b16 %v4745
        %v4786 = vunpack.c.l.b16 %v4746
        %v4787 = vpack.c.b16 %v4772, %v4771
        %v4788 = vpack.c.b16 %v4774, %v4773
        %v4789 = vpack.c.b16 %v4776, %v4775
        %v4790 = vpack.c.b16 %v4778, %v4777
        %v4791 = vpack.c.b16 %v4780, %v4779
        %v4792 = vpack.c.b16 %v4782, %v4781
        %v4793 = vpack.c.b16 %v4784, %v4783
        %v4794 = vpack.c.b16 %v4786, %v4785
        %4803 = vmatprep.subr.bf16.mxu0 0
        %4804 = vmatpush1.bf16.msra.mxu0 %v4787
        %4805 = vmatprep.subr.bf16.mxu0 0
        %4806 = vmatpush1.bf16.msra.mxu0 %v4788
        %4807 = vmatprep.subr.bf16.mxu0 0
        %4808 = vmatpush1.bf16.msra.mxu0 %v4789
        %4809 = vmatprep.subr.bf16.mxu0 0
        %4810 = vmatpush1.bf16.msra.mxu0 %v4790
        %4811 = vmatprep.subr.bf16.mxu0 0
        %4812 = vmatpush1.bf16.msra.mxu0 %v4791
        %4813 = vmatprep.subr.bf16.mxu0 0
        %4814 = vmatpush1.bf16.msra.mxu0 %v4792
        %4815 = vmatprep.subr.bf16.mxu0 0
        %4816 = vmatpush1.bf16.msra.mxu0 %v4793
        %4817 = vmatprep.subr.bf16.mxu0 0
        %4818 = vmatpush1.bf16.msra.mxu0 %v4794
        %4819 = vmatprep.subr.bf16.mxu0 0
        %4820 = vmatpush1.bf16.msra.mxu0 0
        %4821 = vmatprep.subr.bf16.mxu0 0
        %4822 = vmatpush1.bf16.msra.mxu0 0
        %4823 = vmatprep.subr.bf16.mxu0 0
        %4824 = vmatpush1.bf16.msra.mxu0 0
        %4825 = vmatprep.subr.bf16.mxu0 0
        %4826 = vmatpush1.bf16.msra.mxu0 0
        %4827 = vmatprep.subr.bf16.mxu0 0
        %4828 = vmatpush1.bf16.msra.mxu0 0
        %4829 = vmatprep.subr.bf16.mxu0 0
        %4830 = vmatpush1.bf16.msra.mxu0 0
        %4831 = vmatprep.subr.bf16.mxu0 0
        %4832 = vmatpush1.bf16.msra.mxu0 0
        %4833 = vmatprep.subr.bf16.mxu0 0
        %4834 = vmatpush1.bf16.msra.mxu0 0
        %4835 = vmatprep.mubr.bf16.mxu0 0
        %4836 = vmatmul.mubr.bf16.gmra.mrb[0].mxu0 %v4720
        %v4837 = vpop.f32.mrb[0].mxu0
        %v4838 = vadd.f32 %v4753, %v4837
        %v4839 = vpop.f32.mrb[0].mxu0
        %v4840 = vpop.f32.mrb[0].mxu0
        %v4841 = vadd.f32 %v4753, %v4840
        %v4842 = vpop.f32.mrb[0].mxu0
        %4843 = vmatprep.mubr.bf16.mxu0 0
        %4844 = vmatmul.mubr.bf16.gmra.mrb[0].mxu0 %v4721
        %v4845 = vpop.f32.mrb[0].mxu0
        %v4846 = vadd.f32 %v4753, %v4845
        %v4847 = vpop.f32.mrb[0].mxu0
        %v4848 = vpop.f32.mrb[0].mxu0
        %v4849 = vadd.f32 %v4753, %v4848
        %v4850 = vpop.f32.mrb[0].mxu0
        %4851 = vmatprep.mubr.bf16.mxu0 0
        %4852 = vmatmul.mubr.bf16.gmra.mrb[0].mxu0 %v4722
        %v4853 = vpop.f32.mrb[0].mxu0
        %v4854 = vadd.f32 %v4753, %v4853
        %v4855 = vpop.f32.mrb[0].mxu0
        %v4856 = vpop.f32.mrb[0].mxu0
        %v4857 = vadd.f32 %v4753, %v4856
        %v4858 = vpop.f32.mrb[0].mxu0
        %4859 = vmatprep.mubr.bf16.mxu0 0
        %4860 = vmatmul.mubr.bf16.gmra.mrb[0].mxu0 %v4723
        %v4861 = vpop.f32.mrb[0].mxu0
        %v4862 = vadd.f32 %v4753, %v4861
        %v4863 = vpop.f32.mrb[0].mxu0
        %v4864 = vpop.f32.mrb[0].mxu0
        %v4865 = vadd.f32 %v4753, %v4864
        %v4866 = vpop.f32.mrb[0].mxu0
        %4867 = vmatprep.mubr.bf16.mxu0 0
        %4868 = vmatmul.mubr.bf16.gmra.mrb[0].mxu0 %v4724
        %v4869 = vpop.f32.mrb[0].mxu0
        %v4870 = vadd.f32 %v4753, %v4869
        %v4871 = vpop.f32.mrb[0].mxu0
        %v4872 = vpop.f32.mrb[0].mxu0
        %v4873 = vadd.f32 %v4753, %v4872
        %v4874 = vpop.f32.mrb[0].mxu0
        %4875 = vmatprep.mubr.bf16.mxu0 0
        %4876 = vmatmul.mubr.bf16.gmra.mrb[0].mxu0 %v4725
        %v4877 = vpop.f32.mrb[0].mxu0
        %v4878 = vadd.f32 %v4753, %v4877
        %v4879 = vpop.f32.mrb[0].mxu0
        %v4880 = vpop.f32.mrb[0].mxu0
        %v4881 = vadd.f32 %v4753, %v4880
        %v4882 = vpop.f32.mrb[0].mxu0
        %4883 = vmatprep.mubr.bf16.mxu0 0
        %4884 = vmatmul.mubr.bf16.gmra.mrb[0].mxu0 %v4726
        %v4885 = vpop.f32.mrb[0].mxu0
        %v4886 = vadd.f32 %v4753, %v4885
        %v4887 = vpop.f32.mrb[0].mxu0
        %v4888 = vpop.f32.mrb[0].mxu0
        %v4889 = vadd.f32 %v4753, %v4888
        %v4890 = vpop.f32.mrb[0].mxu0
        %4891 = vmatprep.mubr.bf16.mxu0 0
        %4892 = vmatmul.mubr.bf16.gmra.mrb[0].mxu0 %v4727
        %v4893 = vpop.f32.mrb[0].mxu0
        %v4894 = vadd.f32 %v4753, %v4893
        %v4895 = vpop.f32.mrb[0].mxu0
        %v4896 = vpop.f32.mrb[0].mxu0
        %v4897 = vadd.f32 %v4753, %v4896
        %v4898 = vpop.f32.mrb[0].mxu0
        %4899 = vdwg.mxu0
        %v4900 = vadd.f32 %v637, %v4838
        %v4901 = vadd.f32 %v638, %v4841
        %v4902 = vadd.f32 %v639, %v4846
        %v4903 = vadd.f32 %v640, %v4849
        %v4904 = vadd.f32 %v641, %v4854
        %v4905 = vadd.f32 %v642, %v4857
        %v4906 = vadd.f32 %v643, %v4862
        %v4907 = vadd.f32 %v644, %v4865
        %v4908 = vadd.f32 %v645, %v4870
        %v4909 = vadd.f32 %v646, %v4873
        %v4910 = vadd.f32 %v647, %v4878
        %v4911 = vadd.f32 %v648, %v4881
        %v4912 = vadd.f32 %v649, %v4886
        %v4913 = vadd.f32 %v650, %v4889
        %v4914 = vadd.f32 %v651, %v4894
        %v4915 = vadd.f32 %v652, %v4897
        %s4916 = scalar_lea.vmem %s7, %s40
        %v4917 = vld [vmem:[%s4916] sm:$0x1]
        %s4918 = scalar_lea.vmem %s8, %s40
        %v4919 = vld [vmem:[%s4918] sm:$0x1]
        %4920 = vadd.xlane.f32.xlu0 %v4900
        %v4921 = vpop.xlane.xlu0 %4920
        %4922 = vadd.xlane.f32.xlu0 %v4901
        %v4923 = vpop.xlane.xlu0 %4922
        %4924 = vadd.xlane.f32.xlu0 %v4902
        %v4925 = vpop.xlane.xlu0 %4924
        %4926 = vadd.xlane.f32.xlu0 %v4903
        %v4927 = vpop.xlane.xlu0 %4926
        %4928 = vadd.xlane.f32.xlu0 %v4904
        %v4929 = vpop.xlane.xlu0 %4928
        %4930 = vadd.xlane.f32.xlu0 %v4905
        %v4931 = vpop.xlane.xlu0 %4930
        %4932 = vadd.xlane.f32.xlu0 %v4906
        %v4933 = vpop.xlane.xlu0 %4932
        %4934 = vadd.xlane.f32.xlu0 %v4907
        %v4935 = vpop.xlane.xlu0 %4934
        %4936 = vadd.xlane.f32.xlu0 %v4908
        %v4937 = vpop.xlane.xlu0 %4936
        %4938 = vadd.xlane.f32.xlu0 %v4909
        %v4939 = vpop.xlane.xlu0 %4938
        %4940 = vadd.xlane.f32.xlu0 %v4910
        %v4941 = vpop.xlane.xlu0 %4940
        %4942 = vadd.xlane.f32.xlu0 %v4911
        %v4943 = vpop.xlane.xlu0 %4942
        %4944 = vadd.xlane.f32.xlu0 %v4912
        %v4945 = vpop.xlane.xlu0 %4944
        %4946 = vadd.xlane.f32.xlu0 %v4913
        %v4947 = vpop.xlane.xlu0 %4946
        %4948 = vadd.xlane.f32.xlu0 %v4914
        %v4949 = vpop.xlane.xlu0 %4948
        %4950 = vadd.xlane.f32.xlu0 %v4915
        %v4951 = vpop.xlane.xlu0 %4950
        %v4952 = vmul.f32 %v4921, %v704
        %v4953 = vmul.f32 %v4923, %v704
        %v4954 = vmul.f32 %v4925, %v704
        %v4955 = vmul.f32 %v4927, %v704
        %v4956 = vmul.f32 %v4929, %v704
        %v4957 = vmul.f32 %v4931, %v704
        %v4958 = vmul.f32 %v4933, %v704
        %v4959 = vmul.f32 %v4935, %v704
        %v4960 = vmul.f32 %v4937, %v704
        %v4961 = vmul.f32 %v4939, %v704
        %v4962 = vmul.f32 %v4941, %v704
        %v4963 = vmul.f32 %v4943, %v704
        %v4964 = vmul.f32 %v4945, %v704
        %v4965 = vmul.f32 %v4947, %v704
        %v4966 = vmul.f32 %v4949, %v704
        %v4967 = vmul.f32 %v4951, %v704
        %v4968 = vsub.f32 %v4900, %v4952
        %v4969 = vsub.f32 %v4901, %v4953
        %v4970 = vsub.f32 %v4902, %v4954
        %v4971 = vsub.f32 %v4903, %v4955
        %v4972 = vsub.f32 %v4904, %v4956
        %v4973 = vsub.f32 %v4905, %v4957
        %v4974 = vsub.f32 %v4906, %v4958
        %v4975 = vsub.f32 %v4907, %v4959
        %v4976 = vsub.f32 %v4908, %v4960
        %v4977 = vsub.f32 %v4909, %v4961
        %v4978 = vsub.f32 %v4910, %v4962
        %v4979 = vsub.f32 %v4911, %v4963
        %v4980 = vsub.f32 %v4912, %v4964
        %v4981 = vsub.f32 %v4913, %v4965
        %v4982 = vsub.f32 %v4914, %v4966
        %v4983 = vsub.f32 %v4915, %v4967
        %v4984 = vmul.f32 %v4968, %v4968
        %v4985 = vmul.f32 %v4969, %v4969
        %v4986 = vmul.f32 %v4970, %v4970
        %v4987 = vmul.f32 %v4971, %v4971
        %v4988 = vmul.f32 %v4972, %v4972
        %v4989 = vmul.f32 %v4973, %v4973
        %v4990 = vmul.f32 %v4974, %v4974
        %v4991 = vmul.f32 %v4975, %v4975
        %v4992 = vmul.f32 %v4976, %v4976
        %v4993 = vmul.f32 %v4977, %v4977
        %v4994 = vmul.f32 %v4978, %v4978
        %v4995 = vmul.f32 %v4979, %v4979
        %v4996 = vmul.f32 %v4980, %v4980
        %v4997 = vmul.f32 %v4981, %v4981
        %v4998 = vmul.f32 %v4982, %v4982
        %v4999 = vmul.f32 %v4983, %v4983
        %5000 = vadd.xlane.f32.xlu0 %v4984
        %v5001 = vpop.xlane.xlu0 %5000
        %5002 = vadd.xlane.f32.xlu0 %v4985
        %v5003 = vpop.xlane.xlu0 %5002
        %5004 = vadd.xlane.f32.xlu0 %v4986
        %v5005 = vpop.xlane.xlu0 %5004
        %5006 = vadd.xlane.f32.xlu0 %v4987
        %v5007 = vpop.xlane.xlu0 %5006
        %5008 = vadd.xlane.f32.xlu0 %v4988
        %v5009 = vpop.xlane.xlu0 %5008
        %5010 = vadd.xlane.f32.xlu0 %v4989
        %v5011 = vpop.xlane.xlu0 %5010
        %5012 = vadd.xlane.f32.xlu0 %v4990
        %v5013 = vpop.xlane.xlu0 %5012
        %5014 = vadd.xlane.f32.xlu0 %v4991
        %v5015 = vpop.xlane.xlu0 %5014
        %5016 = vadd.xlane.f32.xlu0 %v4992
        %v5017 = vpop.xlane.xlu0 %5016
        %5018 = vadd.xlane.f32.xlu0 %v4993
        %v5019 = vpop.xlane.xlu0 %5018
        %5020 = vadd.xlane.f32.xlu0 %v4994
        %v5021 = vpop.xlane.xlu0 %5020
        %5022 = vadd.xlane.f32.xlu0 %v4995
        %v5023 = vpop.xlane.xlu0 %5022
        %5024 = vadd.xlane.f32.xlu0 %v4996
        %v5025 = vpop.xlane.xlu0 %5024
        %5026 = vadd.xlane.f32.xlu0 %v4997
        %v5027 = vpop.xlane.xlu0 %5026
        %5028 = vadd.xlane.f32.xlu0 %v4998
        %v5029 = vpop.xlane.xlu0 %5028
        %5030 = vadd.xlane.f32.xlu0 %v4999
        %v5031 = vpop.xlane.xlu0 %5030
        %v5032 = vmul.f32 %v5001, %v704
        %v5033 = vmul.f32 %v5003, %v704
        %v5034 = vmul.f32 %v5005, %v704
        %v5035 = vmul.f32 %v5007, %v704
        %v5036 = vmul.f32 %v5009, %v704
        %v5037 = vmul.f32 %v5011, %v704
        %v5038 = vmul.f32 %v5013, %v704
        %v5039 = vmul.f32 %v5015, %v704
        %v5040 = vmul.f32 %v5017, %v704
        %v5041 = vmul.f32 %v5019, %v704
        %v5042 = vmul.f32 %v5021, %v704
        %v5043 = vmul.f32 %v5023, %v704
        %v5044 = vmul.f32 %v5025, %v704
        %v5045 = vmul.f32 %v5027, %v704
        %v5046 = vmul.f32 %v5029, %v704
        %v5047 = vmul.f32 %v5031, %v704
        %v5048 = vadd.f32 %v5032, 1e-05
        %v5049 = vadd.f32 %v5033, 1e-05
        %v5050 = vadd.f32 %v5034, 1e-05
        %v5051 = vadd.f32 %v5035, 1e-05
        %v5052 = vadd.f32 %v5036, 1e-05
        %v5053 = vadd.f32 %v5037, 1e-05
        %v5054 = vadd.f32 %v5038, 1e-05
        %v5055 = vadd.f32 %v5039, 1e-05
        %v5056 = vadd.f32 %v5040, 1e-05
        %v5057 = vadd.f32 %v5041, 1e-05
        %v5058 = vadd.f32 %v5042, 1e-05
        %v5059 = vadd.f32 %v5043, 1e-05
        %v5060 = vadd.f32 %v5044, 1e-05
        %v5061 = vadd.f32 %v5045, 1e-05
        %v5062 = vadd.f32 %v5046, 1e-05
        %v5063 = vadd.f32 %v5047, 1e-05
        %v5064 = vrsqrt.pop %v5048
        %v5065 = vrsqrt.pop %v5049
        %v5066 = vrsqrt.pop %v5050
        %v5067 = vrsqrt.pop %v5051
        %v5068 = vrsqrt.pop %v5052
        %v5069 = vrsqrt.pop %v5053
        %v5070 = vrsqrt.pop %v5054
        %v5071 = vrsqrt.pop %v5055
        %v5072 = vrsqrt.pop %v5056
        %v5073 = vrsqrt.pop %v5057
        %v5074 = vrsqrt.pop %v5058
        %v5075 = vrsqrt.pop %v5059
        %v5076 = vrsqrt.pop %v5060
        %v5077 = vrsqrt.pop %v5061
        %v5078 = vrsqrt.pop %v5062
        %v5079 = vrsqrt.pop %v5063
        %v5080 = vmul.f32 %v4968, %v5064
        %v5081 = vmul.f32 %v4969, %v5065
        %v5082 = vmul.f32 %v4970, %v5066
        %v5083 = vmul.f32 %v4971, %v5067
        %v5084 = vmul.f32 %v4972, %v5068
        %v5085 = vmul.f32 %v4973, %v5069
        %v5086 = vmul.f32 %v4974, %v5070
        %v5087 = vmul.f32 %v4975, %v5071
        %v5088 = vmul.f32 %v4976, %v5072
        %v5089 = vmul.f32 %v4977, %v5073
        %v5090 = vmul.f32 %v4978, %v5074
        %v5091 = vmul.f32 %v4979, %v5075
        %v5092 = vmul.f32 %v4980, %v5076
        %v5093 = vmul.f32 %v4981, %v5077
        %v5094 = vmul.f32 %v4982, %v5078
        %v5095 = vmul.f32 %v4983, %v5079
        %v5097 = vlaneseq
        %v5098 = vshrl.u32 %v5097, 7
        %v5099 = vsub.s32 0, %v5098
        %v5100 = vrot.slane %v4917, %v5099
        %v5102 = vmul.f32 %v5080, %v5100
        %v5103 = vmul.f32 %v5081, %v5100
        %v5104 = vmul.f32 %v5082, %v5100
        %v5105 = vmul.f32 %v5083, %v5100
        %v5106 = vmul.f32 %v5084, %v5100
        %v5107 = vmul.f32 %v5085, %v5100
        %v5108 = vmul.f32 %v5086, %v5100
        %v5109 = vmul.f32 %v5087, %v5100
        %v5110 = vmul.f32 %v5088, %v5100
        %v5111 = vmul.f32 %v5089, %v5100
        %v5112 = vmul.f32 %v5090, %v5100
        %v5113 = vmul.f32 %v5091, %v5100
        %v5114 = vmul.f32 %v5092, %v5100
        %v5115 = vmul.f32 %v5093, %v5100
        %v5116 = vmul.f32 %v5094, %v5100
        %v5117 = vmul.f32 %v5095, %v5100
        %v5119 = vlaneseq
        %v5120 = vshrl.u32 %v5119, 7
        %v5121 = vsub.s32 0, %v5120
        %v5122 = vrot.slane %v4919, %v5121
        %v5124 = vadd.f32 %v5102, %v5122
        %v5125 = vadd.f32 %v5103, %v5122
        %v5126 = vadd.f32 %v5104, %v5122
        %v5127 = vadd.f32 %v5105, %v5122
        %v5128 = vadd.f32 %v5106, %v5122
        %v5129 = vadd.f32 %v5107, %v5122
        %v5130 = vadd.f32 %v5108, %v5122
        %v5131 = vadd.f32 %v5109, %v5122
        %v5132 = vadd.f32 %v5110, %v5122
        %v5133 = vadd.f32 %v5111, %v5122
        %v5134 = vadd.f32 %v5112, %v5122
        %v5135 = vadd.f32 %v5113, %v5122
        %v5136 = vadd.f32 %v5114, %v5122
        %v5137 = vadd.f32 %v5115, %v5122
        %v5138 = vadd.f32 %v5116, %v5122
        %v5139 = vadd.f32 %v5117, %v5122
        %v5140 = vpack.c.bf16 %v5125, %v5124
        %v5141 = vpack.c.bf16 %v5127, %v5126
        %v5142 = vpack.c.bf16 %v5129, %v5128
        %v5143 = vpack.c.bf16 %v5131, %v5130
        %v5144 = vpack.c.bf16 %v5133, %v5132
        %v5145 = vpack.c.bf16 %v5135, %v5134
        %v5146 = vpack.c.bf16 %v5137, %v5136
        %v5147 = vpack.c.bf16 %v5139, %v5138
        %s5148 = smul.u32 %s40, 64
        %s5149 = smul.addr %s5148, 4
        %s5150 = scalar_lea.vmem [#allocation10], %s5149
        %v5151 = vld [vmem:[%s5150] sm:$0xff]
        %v5152 = vld [vmem:[%s5150 + $0x8] sm:$0xff]
        %v5153 = vld [vmem:[%s5150 + $0x10] sm:$0xff]
        %v5154 = vld [vmem:[%s5150 + $0x18] sm:$0xff]
        %v5155 = vld [vmem:[%s5150 + $0x20] sm:$0xff]
        %v5156 = vld [vmem:[%s5150 + $0x28] sm:$0xff]
        %v5157 = vld [vmem:[%s5150 + $0x30] sm:$0xff]
        %v5158 = vld [vmem:[%s5150 + $0x38] sm:$0xff]
        %v5159 = vld [vmem:[%s5150 + $0x40] sm:$0xff]
        %v5160 = vld [vmem:[%s5150 + $0x48] sm:$0xff]
        %v5161 = vld [vmem:[%s5150 + $0x50] sm:$0xff]
        %v5162 = vld [vmem:[%s5150 + $0x58] sm:$0xff]
        %v5163 = vld [vmem:[%s5150 + $0x60] sm:$0xff]
        %v5164 = vld [vmem:[%s5150 + $0x68] sm:$0xff]
        %v5165 = vld [vmem:[%s5150 + $0x70] sm:$0xff]
        %v5166 = vld [vmem:[%s5150 + $0x78] sm:$0xff]
        %v5167 = vld [vmem:[%s5150 + $0x80] sm:$0xff]
        %v5168 = vld [vmem:[%s5150 + $0x88] sm:$0xff]
        %v5169 = vld [vmem:[%s5150 + $0x90] sm:$0xff]
        %v5170 = vld [vmem:[%s5150 + $0x98] sm:$0xff]
        %v5171 = vld [vmem:[%s5150 + $0xa0] sm:$0xff]
        %v5172 = vld [vmem:[%s5150 + $0xa8] sm:$0xff]
        %v5173 = vld [vmem:[%s5150 + $0xb0] sm:$0xff]
        %v5174 = vld [vmem:[%s5150 + $0xb8] sm:$0xff]
        %v5175 = vld [vmem:[%s5150 + $0xc0] sm:$0xff]
        %v5176 = vld [vmem:[%s5150 + $0xc8] sm:$0xff]
        %v5177 = vld [vmem:[%s5150 + $0xd0] sm:$0xff]
        %v5178 = vld [vmem:[%s5150 + $0xd8] sm:$0xff]
        %v5179 = vld [vmem:[%s5150 + $0xe0] sm:$0xff]
        %v5180 = vld [vmem:[%s5150 + $0xe8] sm:$0xff]
        %v5181 = vld [vmem:[%s5150 + $0xf0] sm:$0xff]
        %v5182 = vld [vmem:[%s5150 + $0xf8] sm:$0xff]
        %s5183 = smul.u32 %s40, 4
        %s5184 = scalar_lea.vmem %s10, %s5183
        %v5185 = vld [vmem:[%s5184] sm:$0xf]
        %v5187 = vlaneseq
        %v5188 = vshrl.u32 %v5187, 7
        %v5189 = vsub.s32 0, %v5188
        %v5190 = vrot.slane %v5185, %v5189
        %v5191 = vlaneseq
        %v5192 = vshrl.u32 %v5191, 7
        %v5193 = vsub.s32 1, %v5192
        %v5194 = vrot.slane %v5185, %v5193
        %v5195 = vlaneseq
        %v5196 = vshrl.u32 %v5195, 7
        %v5197 = vsub.s32 2, %v5196
        %v5198 = vrot.slane %v5185, %v5197
        %v5199 = vlaneseq
        %v5200 = vshrl.u32 %v5199, 7
        %v5201 = vsub.s32 3, %v5200
        %v5202 = vrot.slane %v5185, %v5201
        %v5239 = vunpack.c.l.b16 %v5151
        %v5240 = vunpack.c.h.b16 %v5151
        %v5241 = vunpack.c.l.b16 %v5152
        %v5242 = vunpack.c.h.b16 %v5152
        %v5243 = vunpack.c.l.b16 %v5153
        %v5244 = vunpack.c.h.b16 %v5153
        %v5245 = vunpack.c.l.b16 %v5154
        %v5246 = vunpack.c.h.b16 %v5154
        %v5247 = vunpack.c.l.b16 %v5155
        %v5248 = vunpack.c.h.b16 %v5155
        %v5249 = vunpack.c.l.b16 %v5156
        %v5250 = vunpack.c.h.b16 %v5156
        %v5251 = vunpack.c.l.b16 %v5157
        %v5252 = vunpack.c.h.b16 %v5157
        %v5253 = vunpack.c.l.b16 %v5158
        %v5254 = vunpack.c.h.b16 %v5158
        %v5255 = vunpack.c.l.b16 %v5159
        %v5256 = vunpack.c.h.b16 %v5159
        %v5257 = vunpack.c.l.b16 %v5160
        %v5258 = vunpack.c.h.b16 %v5160
        %v5259 = vunpack.c.l.b16 %v5161
        %v5260 = vunpack.c.h.b16 %v5161
        %v5261 = vunpack.c.l.b16 %v5162
        %v5262 = vunpack.c.h.b16 %v5162
        %v5263 = vunpack.c.l.b16 %v5163
        %v5264 = vunpack.c.h.b16 %v5163
        %v5265 = vunpack.c.l.b16 %v5164
        %v5266 = vunpack.c.h.b16 %v5164
        %v5267 = vunpack.c.l.b16 %v5165
        %v5268 = vunpack.c.h.b16 %v5165
        %v5269 = vunpack.c.l.b16 %v5166
        %v5270 = vunpack.c.h.b16 %v5166
        %v5271 = vunpack.c.l.b16 %v5167
        %v5272 = vunpack.c.h.b16 %v5167
        %v5273 = vunpack.c.l.b16 %v5168
        %v5274 = vunpack.c.h.b16 %v5168
        %v5275 = vunpack.c.l.b16 %v5169
        %v5276 = vunpack.c.h.b16 %v5169
        %v5277 = vunpack.c.l.b16 %v5170
        %v5278 = vunpack.c.h.b16 %v5170
        %v5279 = vunpack.c.l.b16 %v5171
        %v5280 = vunpack.c.h.b16 %v5171
        %v5281 = vunpack.c.l.b16 %v5172
        %v5282 = vunpack.c.h.b16 %v5172
        %v5283 = vunpack.c.l.b16 %v5173
        %v5284 = vunpack.c.h.b16 %v5173
        %v5285 = vunpack.c.l.b16 %v5174
        %v5286 = vunpack.c.h.b16 %v5174
        %v5287 = vunpack.c.l.b16 %v5175
        %v5288 = vunpack.c.h.b16 %v5175
        %v5289 = vunpack.c.l.b16 %v5176
        %v5290 = vunpack.c.h.b16 %v5176
        %v5291 = vunpack.c.l.b16 %v5177
        %v5292 = vunpack.c.h.b16 %v5177
        %v5293 = vunpack.c.l.b16 %v5178
        %v5294 = vunpack.c.h.b16 %v5178
        %v5295 = vunpack.c.l.b16 %v5179
        %v5296 = vunpack.c.h.b16 %v5179
        %v5297 = vunpack.c.l.b16 %v5180
        %v5298 = vunpack.c.h.b16 %v5180
        %v5299 = vunpack.c.l.b16 %v5181
        %v5300 = vunpack.c.h.b16 %v5181
        %v5301 = vunpack.c.l.b16 %v5182
        %v5302 = vunpack.c.h.b16 %v5182
        %v5303 = vpack.c.b16 %v5243, %v5239
        %v5304 = vpack.c.b16 %v5244, %v5240
        %v5305 = vpack.c.b16 %v5245, %v5241
        %v5306 = vpack.c.b16 %v5246, %v5242
        %v5307 = vpack.c.b16 %v5251, %v5247
        %v5308 = vpack.c.b16 %v5252, %v5248
        %v5309 = vpack.c.b16 %v5253, %v5249
        %v5310 = vpack.c.b16 %v5254, %v5250
        %v5311 = vpack.c.b16 %v5259, %v5255
        %v5312 = vpack.c.b16 %v5260, %v5256
        %v5313 = vpack.c.b16 %v5261, %v5257
        %v5314 = vpack.c.b16 %v5262, %v5258
        %v5315 = vpack.c.b16 %v5267, %v5263
        %v5316 = vpack.c.b16 %v5268, %v5264
        %v5317 = vpack.c.b16 %v5269, %v5265
        %v5318 = vpack.c.b16 %v5270, %v5266
        %v5319 = vpack.c.b16 %v5275, %v5271
        %v5320 = vpack.c.b16 %v5276, %v5272
        %v5321 = vpack.c.b16 %v5277, %v5273
        %v5322 = vpack.c.b16 %v5278, %v5274
        %v5323 = vpack.c.b16 %v5283, %v5279
        %v5324 = vpack.c.b16 %v5284, %v5280
        %v5325 = vpack.c.b16 %v5285, %v5281
        %v5326 = vpack.c.b16 %v5286, %v5282
        %v5327 = vpack.c.b16 %v5291, %v5287
        %v5328 = vpack.c.b16 %v5292, %v5288
        %v5329 = vpack.c.b16 %v5293, %v5289
        %v5330 = vpack.c.b16 %v5294, %v5290
        %v5331 = vpack.c.b16 %v5299, %v5295
        %v5332 = vpack.c.b16 %v5300, %v5296
        %v5333 = vpack.c.b16 %v5301, %v5297
        %v5334 = vpack.c.b16 %v5302, %v5298
        %5367 = vmatprep.subr.bf16.mxu0 %v5304
        %5368 = vmatpush1.bf16.msra.mxu0 %v5303
        %5369 = vmatprep.subr.bf16.mxu0 %v5308
        %5370 = vmatpush1.bf16.msra.mxu0 %v5307
        %5371 = vmatprep.subr.bf16.mxu0 %v5312
        %5372 = vmatpush1.bf16.msra.mxu0 %v5311
        %5373 = vmatprep.subr.bf16.mxu0 %v5316
        %5374 = vmatpush1.bf16.msra.mxu0 %v5315
        %5375 = vmatprep.subr.bf16.mxu0 %v5320
        %5376 = vmatpush1.bf16.msra.mxu0 %v5319
        %5377 = vmatprep.subr.bf16.mxu0 %v5324
        %5378 = vmatpush1.bf16.msra.mxu0 %v5323
        %5379 = vmatprep.subr.bf16.mxu0 %v5328
        %5380 = vmatpush1.bf16.msra.mxu0 %v5327
        %5381 = vmatprep.subr.bf16.mxu0 %v5332
        %5382 = vmatpush1.bf16.msra.mxu0 %v5331
        %5383 = vmatprep.subr.bf16.mxu0 0
        %5384 = vmatpush1.bf16.msra.mxu0 0
        %5385 = vmatprep.subr.bf16.mxu0 0
        %5386 = vmatpush1.bf16.msra.mxu0 0
        %5387 = vmatprep.subr.bf16.mxu0 0
        %5388 = vmatpush1.bf16.msra.mxu0 0
        %5389 = vmatprep.subr.bf16.mxu0 0
        %5390 = vmatpush1.bf16.msra.mxu0 0
        %5391 = vmatprep.subr.bf16.mxu0 0
        %5392 = vmatpush1.bf16.msra.mxu0 0
        %5393 = vmatprep.subr.bf16.mxu0 0
        %5394 = vmatpush1.bf16.msra.mxu0 0
        %5395 = vmatprep.subr.bf16.mxu0 0
        %5396 = vmatpush1.bf16.msra.mxu0 0
        %5397 = vmatprep.subr.bf16.mxu0 0
        %5398 = vmatpush1.bf16.msra.mxu0 0
        %5399 = vmatprep.mubr.bf16.mxu0 0
        %5400 = vmatmul.mubr.bf16.gmra.mrb[0].mxu0 %v5140
        %v5401 = vpop.f32.mrb[0].mxu0
        %v5402 = vadd.f32 %v5190, %v5401
        %v5403 = vpop.f32.mrb[0].mxu0
        %v5404 = vadd.f32 %v5194, %v5403
        %v5405 = vpop.f32.mrb[0].mxu0
        %v5406 = vadd.f32 %v5190, %v5405
        %v5407 = vpop.f32.mrb[0].mxu0
        %v5408 = vadd.f32 %v5194, %v5407
        %5409 = vmatprep.mubr.bf16.mxu0 0
        %5410 = vmatmul.mubr.bf16.gmra.mrb[0].mxu0 %v5141
        %v5411 = vpop.f32.mrb[0].mxu0
        %v5412 = vadd.f32 %v5190, %v5411
        %v5413 = vpop.f32.mrb[0].mxu0
        %v5414 = vadd.f32 %v5194, %v5413
        %v5415 = vpop.f32.mrb[0].mxu0
        %v5416 = vadd.f32 %v5190, %v5415
        %v5417 = vpop.f32.mrb[0].mxu0
        %v5418 = vadd.f32 %v5194, %v5417
        %5419 = vmatprep.mubr.bf16.mxu0 0
        %5420 = vmatmul.mubr.bf16.gmra.mrb[0].mxu0 %v5142
        %v5421 = vpop.f32.mrb[0].mxu0
        %v5422 = vadd.f32 %v5190, %v5421
        %v5423 = vpop.f32.mrb[0].mxu0
        %v5424 = vadd.f32 %v5194, %v5423
        %v5425 = vpop.f32.mrb[0].mxu0
        %v5426 = vadd.f32 %v5190, %v5425
        %v5427 = vpop.f32.mrb[0].mxu0
        %v5428 = vadd.f32 %v5194, %v5427
        %5429 = vmatprep.mubr.bf16.mxu0 0
        %5430 = vmatmul.mubr.bf16.gmra.mrb[0].mxu0 %v5143
        %v5431 = vpop.f32.mrb[0].mxu0
        %v5432 = vadd.f32 %v5190, %v5431
        %v5433 = vpop.f32.mrb[0].mxu0
        %v5434 = vadd.f32 %v5194, %v5433
        %v5435 = vpop.f32.mrb[0].mxu0
        %v5436 = vadd.f32 %v5190, %v5435
        %v5437 = vpop.f32.mrb[0].mxu0
        %v5438 = vadd.f32 %v5194, %v5437
        %5439 = vmatprep.mubr.bf16.mxu0 0
        %5440 = vmatmul.mubr.bf16.gmra.mrb[0].mxu0 %v5144
        %v5441 = vpop.f32.mrb[0].mxu0
        %v5442 = vadd.f32 %v5190, %v5441
        %v5443 = vpop.f32.mrb[0].mxu0
        %v5444 = vadd.f32 %v5194, %v5443
        %v5445 = vpop.f32.mrb[0].mxu0
        %v5446 = vadd.f32 %v5190, %v5445
        %v5447 = vpop.f32.mrb[0].mxu0
        %v5448 = vadd.f32 %v5194, %v5447
        %5449 = vmatprep.mubr.bf16.mxu0 0
        %5450 = vmatmul.mubr.bf16.gmra.mrb[0].mxu0 %v5145
        %v5451 = vpop.f32.mrb[0].mxu0
        %v5452 = vadd.f32 %v5190, %v5451
        %v5453 = vpop.f32.mrb[0].mxu0
        %v5454 = vadd.f32 %v5194, %v5453
        %v5455 = vpop.f32.mrb[0].mxu0
        %v5456 = vadd.f32 %v5190, %v5455
        %v5457 = vpop.f32.mrb[0].mxu0
        %v5458 = vadd.f32 %v5194, %v5457
        %5459 = vmatprep.mubr.bf16.mxu0 0
        %5460 = vmatmul.mubr.bf16.gmra.mrb[0].mxu0 %v5146
        %v5461 = vpop.f32.mrb[0].mxu0
        %v5462 = vadd.f32 %v5190, %v5461
        %v5463 = vpop.f32.mrb[0].mxu0
        %v5464 = vadd.f32 %v5194, %v5463
        %v5465 = vpop.f32.mrb[0].mxu0
        %v5466 = vadd.f32 %v5190, %v5465
        %v5467 = vpop.f32.mrb[0].mxu0
        %v5468 = vadd.f32 %v5194, %v5467
        %5469 = vmatprep.mubr.bf16.mxu0 0
        %5470 = vmatmul.mubr.bf16.gmra.mrb[0].mxu0 %v5147
        %v5471 = vpop.f32.mrb[0].mxu0
        %v5472 = vadd.f32 %v5190, %v5471
        %v5473 = vpop.f32.mrb[0].mxu0
        %v5474 = vadd.f32 %v5194, %v5473
        %v5475 = vpop.f32.mrb[0].mxu0
        %v5476 = vadd.f32 %v5190, %v5475
        %v5477 = vpop.f32.mrb[0].mxu0
        %v5478 = vadd.f32 %v5194, %v5477
        %5479 = vdwg.mxu0
        %5480 = vmatprep.subr.bf16.mxu0 %v5306
        %5481 = vmatpush1.bf16.msra.mxu0 %v5305
        %5482 = vmatprep.subr.bf16.mxu0 %v5310
        %5483 = vmatpush1.bf16.msra.mxu0 %v5309
        %5484 = vmatprep.subr.bf16.mxu0 %v5314
        %5485 = vmatpush1.bf16.msra.mxu0 %v5313
        %5486 = vmatprep.subr.bf16.mxu0 %v5318
        %5487 = vmatpush1.bf16.msra.mxu0 %v5317
        %5488 = vmatprep.subr.bf16.mxu0 %v5322
        %5489 = vmatpush1.bf16.msra.mxu0 %v5321
        %5490 = vmatprep.subr.bf16.mxu0 %v5326
        %5491 = vmatpush1.bf16.msra.mxu0 %v5325
        %5492 = vmatprep.subr.bf16.mxu0 %v5330
        %5493 = vmatpush1.bf16.msra.mxu0 %v5329
        %5494 = vmatprep.subr.bf16.mxu0 %v5334
        %5495 = vmatpush1.bf16.msra.mxu0 %v5333
        %5496 = vmatprep.subr.bf16.mxu0 0
        %5497 = vmatpush1.bf16.msra.mxu0 0
        %5498 = vmatprep.subr.bf16.mxu0 0
        %5499 = vmatpush1.bf16.msra.mxu0 0
        %5500 = vmatprep.subr.bf16.mxu0 0
        %5501 = vmatpush1.bf16.msra.mxu0 0
        %5502 = vmatprep.subr.bf16.mxu0 0
        %5503 = vmatpush1.bf16.msra.mxu0 0
        %5504 = vmatprep.subr.bf16.mxu0 0
        %5505 = vmatpush1.bf16.msra.mxu0 0
        %5506 = vmatprep.subr.bf16.mxu0 0
        %5507 = vmatpush1.bf16.msra.mxu0 0
        %5508 = vmatprep.subr.bf16.mxu0 0
        %5509 = vmatpush1.bf16.msra.mxu0 0
        %5510 = vmatprep.subr.bf16.mxu0 0
        %5511 = vmatpush1.bf16.msra.mxu0 0
        %5512 = vmatprep.mubr.bf16.mxu0 0
        %5513 = vmatmul.mubr.bf16.gmra.mrb[0].mxu0 %v5140
        %v5514 = vpop.f32.mrb[0].mxu0
        %v5515 = vadd.f32 %v5198, %v5514
        %v5516 = vpop.f32.mrb[0].mxu0
        %v5517 = vadd.f32 %v5202, %v5516
        %v5518 = vpop.f32.mrb[0].mxu0
        %v5519 = vadd.f32 %v5198, %v5518
        %v5520 = vpop.f32.mrb[0].mxu0
        %v5521 = vadd.f32 %v5202, %v5520
        %5522 = vmatprep.mubr.bf16.mxu0 0
        %5523 = vmatmul.mubr.bf16.gmra.mrb[0].mxu0 %v5141
        %v5524 = vpop.f32.mrb[0].mxu0
        %v5525 = vadd.f32 %v5198, %v5524
        %v5526 = vpop.f32.mrb[0].mxu0
        %v5527 = vadd.f32 %v5202, %v5526
        %v5528 = vpop.f32.mrb[0].mxu0
        %v5529 = vadd.f32 %v5198, %v5528
        %v5530 = vpop.f32.mrb[0].mxu0
        %v5531 = vadd.f32 %v5202, %v5530
        %5532 = vmatprep.mubr.bf16.mxu0 0
        %5533 = vmatmul.mubr.bf16.gmra.mrb[0].mxu0 %v5142
        %v5534 = vpop.f32.mrb[0].mxu0
        %v5535 = vadd.f32 %v5198, %v5534
        %v5536 = vpop.f32.mrb[0].mxu0
        %v5537 = vadd.f32 %v5202, %v5536
        %v5538 = vpop.f32.mrb[0].mxu0
        %v5539 = vadd.f32 %v5198, %v5538
        %v5540 = vpop.f32.mrb[0].mxu0
        %v5541 = vadd.f32 %v5202, %v5540
        %5542 = vmatprep.mubr.bf16.mxu0 0
        %5543 = vmatmul.mubr.bf16.gmra.mrb[0].mxu0 %v5143
        %v5544 = vpop.f32.mrb[0].mxu0
        %v5545 = vadd.f32 %v5198, %v5544
        %v5546 = vpop.f32.mrb[0].mxu0
        %v5547 = vadd.f32 %v5202, %v5546
        %v5548 = vpop.f32.mrb[0].mxu0
        %v5549 = vadd.f32 %v5198, %v5548
        %v5550 = vpop.f32.mrb[0].mxu0
        %v5551 = vadd.f32 %v5202, %v5550
        %5552 = vmatprep.mubr.bf16.mxu0 0
        %5553 = vmatmul.mubr.bf16.gmra.mrb[0].mxu0 %v5144
        %v5554 = vpop.f32.mrb[0].mxu0
        %v5555 = vadd.f32 %v5198, %v5554
        %v5556 = vpop.f32.mrb[0].mxu0
        %v5557 = vadd.f32 %v5202, %v5556
        %v5558 = vpop.f32.mrb[0].mxu0
        %v5559 = vadd.f32 %v5198, %v5558
        %v5560 = vpop.f32.mrb[0].mxu0
        %v5561 = vadd.f32 %v5202, %v5560
        %5562 = vmatprep.mubr.bf16.mxu0 0
        %5563 = vmatmul.mubr.bf16.gmra.mrb[0].mxu0 %v5145
        %v5564 = vpop.f32.mrb[0].mxu0
        %v5565 = vadd.f32 %v5198, %v5564
        %v5566 = vpop.f32.mrb[0].mxu0
        %v5567 = vadd.f32 %v5202, %v5566
        %v5568 = vpop.f32.mrb[0].mxu0
        %v5569 = vadd.f32 %v5198, %v5568
        %v5570 = vpop.f32.mrb[0].mxu0
        %v5571 = vadd.f32 %v5202, %v5570
        %5572 = vmatprep.mubr.bf16.mxu0 0
        %5573 = vmatmul.mubr.bf16.gmra.mrb[0].mxu0 %v5146
        %v5574 = vpop.f32.mrb[0].mxu0
        %v5575 = vadd.f32 %v5198, %v5574
        %v5576 = vpop.f32.mrb[0].mxu0
        %v5577 = vadd.f32 %v5202, %v5576
        %v5578 = vpop.f32.mrb[0].mxu0
        %v5579 = vadd.f32 %v5198, %v5578
        %v5580 = vpop.f32.mrb[0].mxu0
        %v5581 = vadd.f32 %v5202, %v5580
        %5582 = vmatprep.mubr.bf16.mxu0 0
        %5583 = vmatmul.mubr.bf16.gmra.mrb[0].mxu0 %v5147
        %v5584 = vpop.f32.mrb[0].mxu0
        %v5585 = vadd.f32 %v5198, %v5584
        %v5586 = vpop.f32.mrb[0].mxu0
        %v5587 = vadd.f32 %v5202, %v5586
        %v5588 = vpop.f32.mrb[0].mxu0
        %v5589 = vadd.f32 %v5198, %v5588
        %v5590 = vpop.f32.mrb[0].mxu0
        %v5591 = vadd.f32 %v5202, %v5590
        %5592 = vdwg.mxu0
        %v5593 = vmul.f32 %v5402, 0.5
        %v5594 = vmul.f32 %v5404, 0.5
        %v5595 = vmul.f32 %v5515, 0.5
        %v5596 = vmul.f32 %v5517, 0.5
        %v5597 = vmul.f32 %v5406, 0.5
        %v5598 = vmul.f32 %v5408, 0.5
        %v5599 = vmul.f32 %v5519, 0.5
        %v5600 = vmul.f32 %v5521, 0.5
        %v5601 = vmul.f32 %v5412, 0.5
        %v5602 = vmul.f32 %v5414, 0.5
        %v5603 = vmul.f32 %v5525, 0.5
        %v5604 = vmul.f32 %v5527, 0.5
        %v5605 = vmul.f32 %v5416, 0.5
        %v5606 = vmul.f32 %v5418, 0.5
        %v5607 = vmul.f32 %v5529, 0.5
        %v5608 = vmul.f32 %v5531, 0.5
        %v5609 = vmul.f32 %v5422, 0.5
        %v5610 = vmul.f32 %v5424, 0.5
        %v5611 = vmul.f32 %v5535, 0.5
        %v5612 = vmul.f32 %v5537, 0.5
        %v5613 = vmul.f32 %v5426, 0.5
        %v5614 = vmul.f32 %v5428, 0.5
        %v5615 = vmul.f32 %v5539, 0.5
        %v5616 = vmul.f32 %v5541, 0.5
        %v5617 = vmul.f32 %v5432, 0.5
        %v5618 = vmul.f32 %v5434, 0.5
        %v5619 = vmul.f32 %v5545, 0.5
        %v5620 = vmul.f32 %v5547, 0.5
        %v5621 = vmul.f32 %v5436, 0.5
        %v5622 = vmul.f32 %v5438, 0.5
        %v5623 = vmul.f32 %v5549, 0.5
        %v5624 = vmul.f32 %v5551, 0.5
        %v5625 = vmul.f32 %v5442, 0.5
        %v5626 = vmul.f32 %v5444, 0.5
        %v5627 = vmul.f32 %v5555, 0.5
        %v5628 = vmul.f32 %v5557, 0.5
        %v5629 = vmul.f32 %v5446, 0.5
        %v5630 = vmul.f32 %v5448, 0.5
        %v5631 = vmul.f32 %v5559, 0.5
        %v5632 = vmul.f32 %v5561, 0.5
        %v5633 = vmul.f32 %v5452, 0.5
        %v5634 = vmul.f32 %v5454, 0.5
        %v5635 = vmul.f32 %v5565, 0.5
        %v5636 = vmul.f32 %v5567, 0.5
        %v5637 = vmul.f32 %v5456, 0.5
        %v5638 = vmul.f32 %v5458, 0.5
        %v5639 = vmul.f32 %v5569, 0.5
        %v5640 = vmul.f32 %v5571, 0.5
        %v5641 = vmul.f32 %v5462, 0.5
        %v5642 = vmul.f32 %v5464, 0.5
        %v5643 = vmul.f32 %v5575, 0.5
        %v5644 = vmul.f32 %v5577, 0.5
        %v5645 = vmul.f32 %v5466, 0.5
        %v5646 = vmul.f32 %v5468, 0.5
        %v5647 = vmul.f32 %v5579, 0.5
        %v5648 = vmul.f32 %v5581, 0.5
        %v5649 = vmul.f32 %v5472, 0.5
        %v5650 = vmul.f32 %v5474, 0.5
        %v5651 = vmul.f32 %v5585, 0.5
        %v5652 = vmul.f32 %v5587, 0.5
        %v5653 = vmul.f32 %v5476, 0.5
        %v5654 = vmul.f32 %v5478, 0.5
        %v5655 = vmul.f32 %v5589, 0.5
        %v5656 = vmul.f32 %v5591, 0.5
        %v5657 = vmul.f32 %v5402, 0.70710677
        %v5658 = vmul.f32 %v5404, 0.70710677
        %v5659 = vmul.f32 %v5515, 0.70710677
        %v5660 = vmul.f32 %v5517, 0.70710677
        %v5661 = vmul.f32 %v5406, 0.70710677
        %v5662 = vmul.f32 %v5408, 0.70710677
        %v5663 = vmul.f32 %v5519, 0.70710677
        %v5664 = vmul.f32 %v5521, 0.70710677
        %v5665 = vmul.f32 %v5412, 0.70710677
        %v5666 = vmul.f32 %v5414, 0.70710677
        %v5667 = vmul.f32 %v5525, 0.70710677
        %v5668 = vmul.f32 %v5527, 0.70710677
        %v5669 = vmul.f32 %v5416, 0.70710677
        %v5670 = vmul.f32 %v5418, 0.70710677
        %v5671 = vmul.f32 %v5529, 0.70710677
        %v5672 = vmul.f32 %v5531, 0.70710677
        %v5673 = vmul.f32 %v5422, 0.70710677
        %v5674 = vmul.f32 %v5424, 0.70710677
        %v5675 = vmul.f32 %v5535, 0.70710677
        %v5676 = vmul.f32 %v5537, 0.70710677
        %v5677 = vmul.f32 %v5426, 0.70710677
        %v5678 = vmul.f32 %v5428, 0.70710677
        %v5679 = vmul.f32 %v5539, 0.70710677
        %v5680 = vmul.f32 %v5541, 0.70710677
        %v5681 = vmul.f32 %v5432, 0.70710677
        %v5682 = vmul.f32 %v5434, 0.70710677
        %v5683 = vmul.f32 %v5545, 0.70710677
        %v5684 = vmul.f32 %v5547, 0.70710677
        %v5685 = vmul.f32 %v5436, 0.70710677
        %v5686 = vmul.f32 %v5438, 0.70710677
        %v5687 = vmul.f32 %v5549, 0.70710677
        %v5688 = vmul.f32 %v5551, 0.70710677
        %v5689 = vmul.f32 %v5442, 0.70710677
        %v5690 = vmul.f32 %v5444, 0.70710677
        %v5691 = vmul.f32 %v5555, 0.70710677
        %v5692 = vmul.f32 %v5557, 0.70710677
        %v5693 = vmul.f32 %v5446, 0.70710677
        %v5694 = vmul.f32 %v5448, 0.70710677
        %v5695 = vmul.f32 %v5559, 0.70710677
        %v5696 = vmul.f32 %v5561, 0.70710677
        %v5697 = vmul.f32 %v5452, 0.70710677
        %v5698 = vmul.f32 %v5454, 0.70710677
        %v5699 = vmul.f32 %v5565, 0.70710677
        %v5700 = vmul.f32 %v5567, 0.70710677
        %v5701 = vmul.f32 %v5456, 0.70710677
        %v5702 = vmul.f32 %v5458, 0.70710677
        %v5703 = vmul.f32 %v5569, 0.70710677
        %v5704 = vmul.f32 %v5571, 0.70710677
        %v5705 = vmul.f32 %v5462, 0.70710677
        %v5706 = vmul.f32 %v5464, 0.70710677
        %v5707 = vmul.f32 %v5575, 0.70710677
        %v5708 = vmul.f32 %v5577, 0.70710677
        %v5709 = vmul.f32 %v5466, 0.70710677
        %v5710 = vmul.f32 %v5468, 0.70710677
        %v5711 = vmul.f32 %v5579, 0.70710677
        %v5712 = vmul.f32 %v5581, 0.70710677
        %v5713 = vmul.f32 %v5472, 0.70710677
        %v5714 = vmul.f32 %v5474, 0.70710677
        %v5715 = vmul.f32 %v5585, 0.70710677
        %v5716 = vmul.f32 %v5587, 0.70710677
        %v5717 = vmul.f32 %v5476, 0.70710677
        %v5718 = vmul.f32 %v5478, 0.70710677
        %v5719 = vmul.f32 %v5589, 0.70710677
        %v5720 = vmul.f32 %v5591, 0.70710677
        %v5721 = verf.f32.pop %v5657
        %v5722 = verf.f32.pop %v5658
        %v5723 = verf.f32.pop %v5659
        %v5724 = verf.f32.pop %v5660
        %v5725 = verf.f32.pop %v5661
        %v5726 = verf.f32.pop %v5662
        %v5727 = verf.f32.pop %v5663
        %v5728 = verf.f32.pop %v5664
        %v5729 = verf.f32.pop %v5665
        %v5730 = verf.f32.pop %v5666
        %v5731 = verf.f32.pop %v5667
        %v5732 = verf.f32.pop %v5668
        %v5733 = verf.f32.pop %v5669
        %v5734 = verf.f32.pop %v5670
        %v5735 = verf.f32.pop %v5671
        %v5736 = verf.f32.pop %v5672
        %v5737 = verf.f32.pop %v5673
        %v5738 = verf.f32.pop %v5674
        %v5739 = verf.f32.pop %v5675
        %v5740 = verf.f32.pop %v5676
        %v5741 = verf.f32.pop %v5677
        %v5742 = verf.f32.pop %v5678
        %v5743 = verf.f32.pop %v5679
        %v5744 = verf.f32.pop %v5680
        %v5745 = verf.f32.pop %v5681
        %v5746 = verf.f32.pop %v5682
        %v5747 = verf.f32.pop %v5683
        %v5748 = verf.f32.pop %v5684
        %v5749 = verf.f32.pop %v5685
        %v5750 = verf.f32.pop %v5686
        %v5751 = verf.f32.pop %v5687
        %v5752 = verf.f32.pop %v5688
        %v5753 = verf.f32.pop %v5689
        %v5754 = verf.f32.pop %v5690
        %v5755 = verf.f32.pop %v5691
        %v5756 = verf.f32.pop %v5692
        %v5757 = verf.f32.pop %v5693
        %v5758 = verf.f32.pop %v5694
        %v5759 = verf.f32.pop %v5695
        %v5760 = verf.f32.pop %v5696
        %v5761 = verf.f32.pop %v5697
        %v5762 = verf.f32.pop %v5698
        %v5763 = verf.f32.pop %v5699
        %v5764 = verf.f32.pop %v5700
        %v5765 = verf.f32.pop %v5701
        %v5766 = verf.f32.pop %v5702
        %v5767 = verf.f32.pop %v5703
        %v5768 = verf.f32.pop %v5704
        %v5769 = verf.f32.pop %v5705
        %v5770 = verf.f32.pop %v5706
        %v5771 = verf.f32.pop %v5707
        %v5772 = verf.f32.pop %v5708
        %v5773 = verf.f32.pop %v5709
        %v5774 = verf.f32.pop %v5710
        %v5775 = verf.f32.pop %v5711
        %v5776 = verf.f32.pop %v5712
        %v5777 = verf.f32.pop %v5713
        %v5778 = verf.f32.pop %v5714
        %v5779 = verf.f32.pop %v5715
        %v5780 = verf.f32.pop %v5716
        %v5781 = verf.f32.pop %v5717
        %v5782 = verf.f32.pop %v5718
        %v5783 = verf.f32.pop %v5719
        %v5784 = verf.f32.pop %v5720
        %v5785 = vadd.f32 %v5721, 1.0
        %v5786 = vadd.f32 %v5722, 1.0
        %v5787 = vadd.f32 %v5723, 1.0
        %v5788 = vadd.f32 %v5724, 1.0
        %v5789 = vadd.f32 %v5725, 1.0
        %v5790 = vadd.f32 %v5726, 1.0
        %v5791 = vadd.f32 %v5727, 1.0
        %v5792 = vadd.f32 %v5728, 1.0
        %v5793 = vadd.f32 %v5729, 1.0
        %v5794 = vadd.f32 %v5730, 1.0
        %v5795 = vadd.f32 %v5731, 1.0
        %v5796 = vadd.f32 %v5732, 1.0
        %v5797 = vadd.f32 %v5733, 1.0
        %v5798 = vadd.f32 %v5734, 1.0
        %v5799 = vadd.f32 %v5735, 1.0
        %v5800 = vadd.f32 %v5736, 1.0
        %v5801 = vadd.f32 %v5737, 1.0
        %v5802 = vadd.f32 %v5738, 1.0
        %v5803 = vadd.f32 %v5739, 1.0
        %v5804 = vadd.f32 %v5740, 1.0
        %v5805 = vadd.f32 %v5741, 1.0
        %v5806 = vadd.f32 %v5742, 1.0
        %v5807 = vadd.f32 %v5743, 1.0
        %v5808 = vadd.f32 %v5744, 1.0
        %v5809 = vadd.f32 %v5745, 1.0
        %v5810 = vadd.f32 %v5746, 1.0
        %v5811 = vadd.f32 %v5747, 1.0
        %v5812 = vadd.f32 %v5748, 1.0
        %v5813 = vadd.f32 %v5749, 1.0
        %v5814 = vadd.f32 %v5750, 1.0
        %v5815 = vadd.f32 %v5751, 1.0
        %v5816 = vadd.f32 %v5752, 1.0
        %v5817 = vadd.f32 %v5753, 1.0
        %v5818 = vadd.f32 %v5754, 1.0
        %v5819 = vadd.f32 %v5755, 1.0
        %v5820 = vadd.f32 %v5756, 1.0
        %v5821 = vadd.f32 %v5757, 1.0
        %v5822 = vadd.f32 %v5758, 1.0
        %v5823 = vadd.f32 %v5759, 1.0
        %v5824 = vadd.f32 %v5760, 1.0
        %v5825 = vadd.f32 %v5761, 1.0
        %v5826 = vadd.f32 %v5762, 1.0
        %v5827 = vadd.f32 %v5763, 1.0
        %v5828 = vadd.f32 %v5764, 1.0
        %v5829 = vadd.f32 %v5765, 1.0
        %v5830 = vadd.f32 %v5766, 1.0
        %v5831 = vadd.f32 %v5767, 1.0
        %v5832 = vadd.f32 %v5768, 1.0
        %v5833 = vadd.f32 %v5769, 1.0
        %v5834 = vadd.f32 %v5770, 1.0
        %v5835 = vadd.f32 %v5771, 1.0
        %v5836 = vadd.f32 %v5772, 1.0
        %v5837 = vadd.f32 %v5773, 1.0
        %v5838 = vadd.f32 %v5774, 1.0
        %v5839 = vadd.f32 %v5775, 1.0
        %v5840 = vadd.f32 %v5776, 1.0
        %v5841 = vadd.f32 %v5777, 1.0
        %v5842 = vadd.f32 %v5778, 1.0
        %v5843 = vadd.f32 %v5779, 1.0
        %v5844 = vadd.f32 %v5780, 1.0
        %v5845 = vadd.f32 %v5781, 1.0
        %v5846 = vadd.f32 %v5782, 1.0
        %v5847 = vadd.f32 %v5783, 1.0
        %v5848 = vadd.f32 %v5784, 1.0
        %v5849 = vmul.f32 %v5593, %v5785
        %v5850 = vmul.f32 %v5594, %v5786
        %v5851 = vmul.f32 %v5595, %v5787
        %v5852 = vmul.f32 %v5596, %v5788
        %v5853 = vmul.f32 %v5597, %v5789
        %v5854 = vmul.f32 %v5598, %v5790
        %v5855 = vmul.f32 %v5599, %v5791
        %v5856 = vmul.f32 %v5600, %v5792
        %v5857 = vmul.f32 %v5601, %v5793
        %v5858 = vmul.f32 %v5602, %v5794
        %v5859 = vmul.f32 %v5603, %v5795
        %v5860 = vmul.f32 %v5604, %v5796
        %v5861 = vmul.f32 %v5605, %v5797
        %v5862 = vmul.f32 %v5606, %v5798
        %v5863 = vmul.f32 %v5607, %v5799
        %v5864 = vmul.f32 %v5608, %v5800
        %v5865 = vmul.f32 %v5609, %v5801
        %v5866 = vmul.f32 %v5610, %v5802
        %v5867 = vmul.f32 %v5611, %v5803
        %v5868 = vmul.f32 %v5612, %v5804
        %v5869 = vmul.f32 %v5613, %v5805
        %v5870 = vmul.f32 %v5614, %v5806
        %v5871 = vmul.f32 %v5615, %v5807
        %v5872 = vmul.f32 %v5616, %v5808
        %v5873 = vmul.f32 %v5617, %v5809
        %v5874 = vmul.f32 %v5618, %v5810
        %v5875 = vmul.f32 %v5619, %v5811
        %v5876 = vmul.f32 %v5620, %v5812
        %v5877 = vmul.f32 %v5621, %v5813
        %v5878 = vmul.f32 %v5622, %v5814
        %v5879 = vmul.f32 %v5623, %v5815
        %v5880 = vmul.f32 %v5624, %v5816
        %v5881 = vmul.f32 %v5625, %v5817
        %v5882 = vmul.f32 %v5626, %v5818
        %v5883 = vmul.f32 %v5627, %v5819
        %v5884 = vmul.f32 %v5628, %v5820
        %v5885 = vmul.f32 %v5629, %v5821
        %v5886 = vmul.f32 %v5630, %v5822
        %v5887 = vmul.f32 %v5631, %v5823
        %v5888 = vmul.f32 %v5632, %v5824
        %v5889 = vmul.f32 %v5633, %v5825
        %v5890 = vmul.f32 %v5634, %v5826
        %v5891 = vmul.f32 %v5635, %v5827
        %v5892 = vmul.f32 %v5636, %v5828
        %v5893 = vmul.f32 %v5637, %v5829
        %v5894 = vmul.f32 %v5638, %v5830
        %v5895 = vmul.f32 %v5639, %v5831
        %v5896 = vmul.f32 %v5640, %v5832
        %v5897 = vmul.f32 %v5641, %v5833
        %v5898 = vmul.f32 %v5642, %v5834
        %v5899 = vmul.f32 %v5643, %v5835
        %v5900 = vmul.f32 %v5644, %v5836
        %v5901 = vmul.f32 %v5645, %v5837
        %v5902 = vmul.f32 %v5646, %v5838
        %v5903 = vmul.f32 %v5647, %v5839
        %v5904 = vmul.f32 %v5648, %v5840
        %v5905 = vmul.f32 %v5649, %v5841
        %v5906 = vmul.f32 %v5650, %v5842
        %v5907 = vmul.f32 %v5651, %v5843
        %v5908 = vmul.f32 %v5652, %v5844
        %v5909 = vmul.f32 %v5653, %v5845
        %v5910 = vmul.f32 %v5654, %v5846
        %v5911 = vmul.f32 %v5655, %v5847
        %v5912 = vmul.f32 %v5656, %v5848
        %v5913 = vpack.c.bf16 %v5853, %v5849
        %v5914 = vpack.c.bf16 %v5854, %v5850
        %v5915 = vpack.c.bf16 %v5855, %v5851
        %v5916 = vpack.c.bf16 %v5856, %v5852
        %v5917 = vpack.c.bf16 %v5861, %v5857
        %v5918 = vpack.c.bf16 %v5862, %v5858
        %v5919 = vpack.c.bf16 %v5863, %v5859
        %v5920 = vpack.c.bf16 %v5864, %v5860
        %v5921 = vpack.c.bf16 %v5869, %v5865
        %v5922 = vpack.c.bf16 %v5870, %v5866
        %v5923 = vpack.c.bf16 %v5871, %v5867
        %v5924 = vpack.c.bf16 %v5872, %v5868
        %v5925 = vpack.c.bf16 %v5877, %v5873
        %v5926 = vpack.c.bf16 %v5878, %v5874
        %v5927 = vpack.c.bf16 %v5879, %v5875
        %v5928 = vpack.c.bf16 %v5880, %v5876
        %v5929 = vpack.c.bf16 %v5885, %v5881
        %v5930 = vpack.c.bf16 %v5886, %v5882
        %v5931 = vpack.c.bf16 %v5887, %v5883
        %v5932 = vpack.c.bf16 %v5888, %v5884
        %v5933 = vpack.c.bf16 %v5893, %v5889
        %v5934 = vpack.c.bf16 %v5894, %v5890
        %v5935 = vpack.c.bf16 %v5895, %v5891
        %v5936 = vpack.c.bf16 %v5896, %v5892
        %v5937 = vpack.c.bf16 %v5901, %v5897
        %v5938 = vpack.c.bf16 %v5902, %v5898
        %v5939 = vpack.c.bf16 %v5903, %v5899
        %v5940 = vpack.c.bf16 %v5904, %v5900
        %v5941 = vpack.c.bf16 %v5909, %v5905
        %v5942 = vpack.c.bf16 %v5910, %v5906
        %v5943 = vpack.c.bf16 %v5911, %v5907
        %v5944 = vpack.c.bf16 %v5912, %v5908
        %s5945 = smul.addr %s5148, 4
        %s5946 = scalar_lea.vmem [#allocation11], %s5945
        %v5947 = vld [vmem:[%s5946] sm:$0xf]
        %v5948 = vld [vmem:[%s5946 + $0x4] sm:$0xf]
        %v5949 = vld [vmem:[%s5946 + $0x8] sm:$0xf]
        %v5950 = vld [vmem:[%s5946 + $0xc] sm:$0xf]
        %v5951 = vld [vmem:[%s5946 + $0x10] sm:$0xf]
        %v5952 = vld [vmem:[%s5946 + $0x14] sm:$0xf]
        %v5953 = vld [vmem:[%s5946 + $0x18] sm:$0xf]
        %v5954 = vld [vmem:[%s5946 + $0x1c] sm:$0xf]
        %v5955 = vld [vmem:[%s5946 + $0x20] sm:$0xf]
        %v5956 = vld [vmem:[%s5946 + $0x24] sm:$0xf]
        %v5957 = vld [vmem:[%s5946 + $0x28] sm:$0xf]
        %v5958 = vld [vmem:[%s5946 + $0x2c] sm:$0xf]
        %v5959 = vld [vmem:[%s5946 + $0x30] sm:$0xf]
        %v5960 = vld [vmem:[%s5946 + $0x34] sm:$0xf]
        %v5961 = vld [vmem:[%s5946 + $0x38] sm:$0xf]
        %v5962 = vld [vmem:[%s5946 + $0x3c] sm:$0xf]
        %v5963 = vld [vmem:[%s5946 + $0x40] sm:$0xf]
        %v5964 = vld [vmem:[%s5946 + $0x44] sm:$0xf]
        %v5965 = vld [vmem:[%s5946 + $0x48] sm:$0xf]
        %v5966 = vld [vmem:[%s5946 + $0x4c] sm:$0xf]
        %v5967 = vld [vmem:[%s5946 + $0x50] sm:$0xf]
        %v5968 = vld [vmem:[%s5946 + $0x54] sm:$0xf]
        %v5969 = vld [vmem:[%s5946 + $0x58] sm:$0xf]
        %v5970 = vld [vmem:[%s5946 + $0x5c] sm:$0xf]
        %v5971 = vld [vmem:[%s5946 + $0x60] sm:$0xf]
        %v5972 = vld [vmem:[%s5946 + $0x64] sm:$0xf]
        %v5973 = vld [vmem:[%s5946 + $0x68] sm:$0xf]
        %v5974 = vld [vmem:[%s5946 + $0x6c] sm:$0xf]
        %v5975 = vld [vmem:[%s5946 + $0x70] sm:$0xf]
        %v5976 = vld [vmem:[%s5946 + $0x74] sm:$0xf]
        %v5977 = vld [vmem:[%s5946 + $0x78] sm:$0xf]
        %v5978 = vld [vmem:[%s5946 + $0x7c] sm:$0xf]
        %v5979 = vld [vmem:[%s5946 + $0x80] sm:$0xf]
        %v5980 = vld [vmem:[%s5946 + $0x84] sm:$0xf]
        %v5981 = vld [vmem:[%s5946 + $0x88] sm:$0xf]
        %v5982 = vld [vmem:[%s5946 + $0x8c] sm:$0xf]
        %v5983 = vld [vmem:[%s5946 + $0x90] sm:$0xf]
        %v5984 = vld [vmem:[%s5946 + $0x94] sm:$0xf]
        %v5985 = vld [vmem:[%s5946 + $0x98] sm:$0xf]
        %v5986 = vld [vmem:[%s5946 + $0x9c] sm:$0xf]
        %v5987 = vld [vmem:[%s5946 + $0xa0] sm:$0xf]
        %v5988 = vld [vmem:[%s5946 + $0xa4] sm:$0xf]
        %v5989 = vld [vmem:[%s5946 + $0xa8] sm:$0xf]
        %v5990 = vld [vmem:[%s5946 + $0xac] sm:$0xf]
        %v5991 = vld [vmem:[%s5946 + $0xb0] sm:$0xf]
        %v5992 = vld [vmem:[%s5946 + $0xb4] sm:$0xf]
        %v5993 = vld [vmem:[%s5946 + $0xb8] sm:$0xf]
        %v5994 = vld [vmem:[%s5946 + $0xbc] sm:$0xf]
        %v5995 = vld [vmem:[%s5946 + $0xc0] sm:$0xf]
        %v5996 = vld [vmem:[%s5946 + $0xc4] sm:$0xf]
        %v5997 = vld [vmem:[%s5946 + $0xc8] sm:$0xf]
        %v5998 = vld [vmem:[%s5946 + $0xcc] sm:$0xf]
        %v5999 = vld [vmem:[%s5946 + $0xd0] sm:$0xf]
        %v6000 = vld [vmem:[%s5946 + $0xd4] sm:$0xf]
        %v6001 = vld [vmem:[%s5946 + $0xd8] sm:$0xf]
        %v6002 = vld [vmem:[%s5946 + $0xdc] sm:$0xf]
        %v6003 = vld [vmem:[%s5946 + $0xe0] sm:$0xf]
        %v6004 = vld [vmem:[%s5946 + $0xe4] sm:$0xf]
        %v6005 = vld [vmem:[%s5946 + $0xe8] sm:$0xf]
        %v6006 = vld [vmem:[%s5946 + $0xec] sm:$0xf]
        %v6007 = vld [vmem:[%s5946 + $0xf0] sm:$0xf]
        %v6008 = vld [vmem:[%s5946 + $0xf4] sm:$0xf]
        %v6009 = vld [vmem:[%s5946 + $0xf8] sm:$0xf]
        %v6010 = vld [vmem:[%s5946 + $0xfc] sm:$0xf]
        %s6011 = scalar_lea.vmem %s12, %s40
        %v6012 = vld [vmem:[%s6011] sm:$0x1]
        %v6014 = vlaneseq
        %v6015 = vshrl.u32 %v6014, 7
        %v6016 = vsub.s32 0, %v6015
        %v6017 = vrot.slane %v6012, %v6016
        %v6083 = vunpack.c.l.b16 %v5947
        %v6084 = vunpack.c.l.b16 %v5948
        %v6085 = vunpack.c.l.b16 %v5949
        %v6086 = vunpack.c.l.b16 %v5950
        %v6087 = vunpack.c.l.b16 %v5951
        %v6088 = vunpack.c.l.b16 %v5952
        %v6089 = vunpack.c.l.b16 %v5953
        %v6090 = vunpack.c.l.b16 %v5954
        %v6091 = vunpack.c.l.b16 %v5955
        %v6092 = vunpack.c.l.b16 %v5956
        %v6093 = vunpack.c.l.b16 %v5957
        %v6094 = vunpack.c.l.b16 %v5958
        %v6095 = vunpack.c.l.b16 %v5959
        %v6096 = vunpack.c.l.b16 %v5960
        %v6097 = vunpack.c.l.b16 %v5961
        %v6098 = vunpack.c.l.b16 %v5962
        %v6099 = vunpack.c.l.b16 %v5963
        %v6100 = vunpack.c.l.b16 %v5964
        %v6101 = vunpack.c.l.b16 %v5965
        %v6102 = vunpack.c.l.b16 %v5966
        %v6103 = vunpack.c.l.b16 %v5967
        %v6104 = vunpack.c.l.b16 %v5968
        %v6105 = vunpack.c.l.b16 %v5969
        %v6106 = vunpack.c.l.b16 %v5970
        %v6107 = vunpack.c.l.b16 %v5971
        %v6108 = vunpack.c.l.b16 %v5972
        %v6109 = vunpack.c.l.b16 %v5973
        %v6110 = vunpack.c.l.b16 %v5974
        %v6111 = vunpack.c.l.b16 %v5975
        %v6112 = vunpack.c.l.b16 %v5976
        %v6113 = vunpack.c.l.b16 %v5977
        %v6114 = vunpack.c.l.b16 %v5978
        %v6115 = vunpack.c.l.b16 %v5979
        %v6116 = vunpack.c.l.b16 %v5980
        %v6117 = vunpack.c.l.b16 %v5981
        %v6118 = vunpack.c.l.b16 %v5982
        %v6119 = vunpack.c.l.b16 %v5983
        %v6120 = vunpack.c.l.b16 %v5984
        %v6121 = vunpack.c.l.b16 %v5985
        %v6122 = vunpack.c.l.b16 %v5986
        %v6123 = vunpack.c.l.b16 %v5987
        %v6124 = vunpack.c.l.b16 %v5988
        %v6125 = vunpack.c.l.b16 %v5989
        %v6126 = vunpack.c.l.b16 %v5990
        %v6127 = vunpack.c.l.b16 %v5991
        %v6128 = vunpack.c.l.b16 %v5992
        %v6129 = vunpack.c.l.b16 %v5993
        %v6130 = vunpack.c.l.b16 %v5994
        %v6131 = vunpack.c.l.b16 %v5995
        %v6132 = vunpack.c.l.b16 %v5996
        %v6133 = vunpack.c.l.b16 %v5997
        %v6134 = vunpack.c.l.b16 %v5998
        %v6135 = vunpack.c.l.b16 %v5999
        %v6136 = vunpack.c.l.b16 %v6000
        %v6137 = vunpack.c.l.b16 %v6001
        %v6138 = vunpack.c.l.b16 %v6002
        %v6139 = vunpack.c.l.b16 %v6003
        %v6140 = vunpack.c.l.b16 %v6004
        %v6141 = vunpack.c.l.b16 %v6005
        %v6142 = vunpack.c.l.b16 %v6006
        %v6143 = vunpack.c.l.b16 %v6007
        %v6144 = vunpack.c.l.b16 %v6008
        %v6145 = vunpack.c.l.b16 %v6009
        %v6146 = vunpack.c.l.b16 %v6010
        %v6147 = vpack.c.b16 %v6084, %v6083
        %v6148 = vpack.c.b16 %v6086, %v6085
        %v6149 = vpack.c.b16 %v6088, %v6087
        %v6150 = vpack.c.b16 %v6090, %v6089
        %v6151 = vpack.c.b16 %v6092, %v6091
        %v6152 = vpack.c.b16 %v6094, %v6093
        %v6153 = vpack.c.b16 %v6096, %v6095
        %v6154 = vpack.c.b16 %v6098, %v6097
        %v6155 = vpack.c.b16 %v6100, %v6099
        %v6156 = vpack.c.b16 %v6102, %v6101
        %v6157 = vpack.c.b16 %v6104, %v6103
        %v6158 = vpack.c.b16 %v6106, %v6105
        %v6159 = vpack.c.b16 %v6108, %v6107
        %v6160 = vpack.c.b16 %v6110, %v6109
        %v6161 = vpack.c.b16 %v6112, %v6111
        %v6162 = vpack.c.b16 %v6114, %v6113
        %v6163 = vpack.c.b16 %v6116, %v6115
        %v6164 = vpack.c.b16 %v6118, %v6117
        %v6165 = vpack.c.b16 %v6120, %v6119
        %v6166 = vpack.c.b16 %v6122, %v6121
        %v6167 = vpack.c.b16 %v6124, %v6123
        %v6168 = vpack.c.b16 %v6126, %v6125
        %v6169 = vpack.c.b16 %v6128, %v6127
        %v6170 = vpack.c.b16 %v6130, %v6129
        %v6171 = vpack.c.b16 %v6132, %v6131
        %v6172 = vpack.c.b16 %v6134, %v6133
        %v6173 = vpack.c.b16 %v6136, %v6135
        %v6174 = vpack.c.b16 %v6138, %v6137
        %v6175 = vpack.c.b16 %v6140, %v6139
        %v6176 = vpack.c.b16 %v6142, %v6141
        %v6177 = vpack.c.b16 %v6144, %v6143
        %v6178 = vpack.c.b16 %v6146, %v6145
        %6211 = vmatprep.subr.bf16.mxu0 0
        %6212 = vmatpush1.bf16.msra.mxu0 %v6147
        %6213 = vmatprep.subr.bf16.mxu0 0
        %6214 = vmatpush1.bf16.msra.mxu0 %v6148
        %6215 = vmatprep.subr.bf16.mxu0 0
        %6216 = vmatpush1.bf16.msra.mxu0 %v6149
        %6217 = vmatprep.subr.bf16.mxu0 0
        %6218 = vmatpush1.bf16.msra.mxu0 %v6150
        %6219 = vmatprep.subr.bf16.mxu0 0
        %6220 = vmatpush1.bf16.msra.mxu0 %v6151
        %6221 = vmatprep.subr.bf16.mxu0 0
        %6222 = vmatpush1.bf16.msra.mxu0 %v6152
        %6223 = vmatprep.subr.bf16.mxu0 0
        %6224 = vmatpush1.bf16.msra.mxu0 %v6153
        %6225 = vmatprep.subr.bf16.mxu0 0
        %6226 = vmatpush1.bf16.msra.mxu0 %v6154
        %6227 = vmatprep.subr.bf16.mxu0 0
        %6228 = vmatpush1.bf16.msra.mxu0 %v6155
        %6229 = vmatprep.subr.bf16.mxu0 0
        %6230 = vmatpush1.bf16.msra.mxu0 %v6156
        %6231 = vmatprep.subr.bf16.mxu0 0
        %6232 = vmatpush1.bf16.msra.mxu0 %v6157
        %6233 = vmatprep.subr.bf16.mxu0 0
        %6234 = vmatpush1.bf16.msra.mxu0 %v6158
        %6235 = vmatprep.subr.bf16.mxu0 0
        %6236 = vmatpush1.bf16.msra.mxu0 %v6159
        %6237 = vmatprep.subr.bf16.mxu0 0
        %6238 = vmatpush1.bf16.msra.mxu0 %v6160
        %6239 = vmatprep.subr.bf16.mxu0 0
        %6240 = vmatpush1.bf16.msra.mxu0 %v6161
        %6241 = vmatprep.subr.bf16.mxu0 0
        %6242 = vmatpush1.bf16.msra.mxu0 %v6162
        %6243 = vmatprep.mubr.bf16.mxu0 %v5914
        %6244 = vmatmul.mubr.bf16.gmra.mrb[0].mxu0 %v5913
        %v6245 = vpop.f32.mrb[0].mxu0
        %v6246 = vadd.f32 %v6017, %v6245
        %v6247 = vpop.f32.mrb[0].mxu0
        %v6248 = vpop.f32.mrb[0].mxu0
        %v6249 = vadd.f32 %v6017, %v6248
        %v6250 = vpop.f32.mrb[0].mxu0
        %6251 = vmatprep.mubr.bf16.mxu0 %v5918
        %6252 = vmatmul.mubr.bf16.gmra.mrb[0].mxu0 %v5917
        %v6253 = vpop.f32.mrb[0].mxu0
        %v6254 = vadd.f32 %v6017, %v6253
        %v6255 = vpop.f32.mrb[0].mxu0
        %v6256 = vpop.f32.mrb[0].mxu0
        %v6257 = vadd.f32 %v6017, %v6256
        %v6258 = vpop.f32.mrb[0].mxu0
        %6259 = vmatprep.mubr.bf16.mxu0 %v5922
        %6260 = vmatmul.mubr.bf16.gmra.mrb[0].mxu0 %v5921
        %v6261 = vpop.f32.mrb[0].mxu0
        %v6262 = vadd.f32 %v6017, %v6261
        %v6263 = vpop.f32.mrb[0].mxu0
        %v6264 = vpop.f32.mrb[0].mxu0
        %v6265 = vadd.f32 %v6017, %v6264
        %v6266 = vpop.f32.mrb[0].mxu0
        %6267 = vmatprep.mubr.bf16.mxu0 %v5926
        %6268 = vmatmul.mubr.bf16.gmra.mrb[0].mxu0 %v5925
        %v6269 = vpop.f32.mrb[0].mxu0
        %v6270 = vadd.f32 %v6017, %v6269
        %v6271 = vpop.f32.mrb[0].mxu0
        %v6272 = vpop.f32.mrb[0].mxu0
        %v6273 = vadd.f32 %v6017, %v6272
        %v6274 = vpop.f32.mrb[0].mxu0
        %6275 = vmatprep.mubr.bf16.mxu0 %v5930
        %6276 = vmatmul.mubr.bf16.gmra.mrb[0].mxu0 %v5929
        %v6277 = vpop.f32.mrb[0].mxu0
        %v6278 = vadd.f32 %v6017, %v6277
        %v6279 = vpop.f32.mrb[0].mxu0
        %v6280 = vpop.f32.mrb[0].mxu0
        %v6281 = vadd.f32 %v6017, %v6280
        %v6282 = vpop.f32.mrb[0].mxu0
        %6283 = vmatprep.mubr.bf16.mxu0 %v5934
        %6284 = vmatmul.mubr.bf16.gmra.mrb[0].mxu0 %v5933
        %v6285 = vpop.f32.mrb[0].mxu0
        %v6286 = vadd.f32 %v6017, %v6285
        %v6287 = vpop.f32.mrb[0].mxu0
        %v6288 = vpop.f32.mrb[0].mxu0
        %v6289 = vadd.f32 %v6017, %v6288
        %v6290 = vpop.f32.mrb[0].mxu0
        %6291 = vmatprep.mubr.bf16.mxu0 %v5938
        %6292 = vmatmul.mubr.bf16.gmra.mrb[0].mxu0 %v5937
        %v6293 = vpop.f32.mrb[0].mxu0
        %v6294 = vadd.f32 %v6017, %v6293
        %v6295 = vpop.f32.mrb[0].mxu0
        %v6296 = vpop.f32.mrb[0].mxu0
        %v6297 = vadd.f32 %v6017, %v6296
        %v6298 = vpop.f32.mrb[0].mxu0
        %6299 = vmatprep.mubr.bf16.mxu0 %v5942
        %6300 = vmatmul.mubr.bf16.gmra.mrb[0].mxu0 %v5941
        %v6301 = vpop.f32.mrb[0].mxu0
        %v6302 = vadd.f32 %v6017, %v6301
        %v6303 = vpop.f32.mrb[0].mxu0
        %v6304 = vpop.f32.mrb[0].mxu0
        %v6305 = vadd.f32 %v6017, %v6304
        %v6306 = vpop.f32.mrb[0].mxu0
        %6307 = vdwg.mxu0
        %6308 = vmatprep.subr.bf16.mxu0 0
        %6309 = vmatpush1.bf16.msra.mxu0 %v6163
        %6310 = vmatprep.subr.bf16.mxu0 0
        %6311 = vmatpush1.bf16.msra.mxu0 %v6164
        %6312 = vmatprep.subr.bf16.mxu0 0
        %6313 = vmatpush1.bf16.msra.mxu0 %v6165
        %6314 = vmatprep.subr.bf16.mxu0 0
        %6315 = vmatpush1.bf16.msra.mxu0 %v6166
        %6316 = vmatprep.subr.bf16.mxu0 0
        %6317 = vmatpush1.bf16.msra.mxu0 %v6167
        %6318 = vmatprep.subr.bf16.mxu0 0
        %6319 = vmatpush1.bf16.msra.mxu0 %v6168
        %6320 = vmatprep.subr.bf16.mxu0 0
        %6321 = vmatpush1.bf16.msra.mxu0 %v6169
        %6322 = vmatprep.subr.bf16.mxu0 0
        %6323 = vmatpush1.bf16.msra.mxu0 %v6170
        %6324 = vmatprep.subr.bf16.mxu0 0
        %6325 = vmatpush1.bf16.msra.mxu0 %v6171
        %6326 = vmatprep.subr.bf16.mxu0 0
        %6327 = vmatpush1.bf16.msra.mxu0 %v6172
        %6328 = vmatprep.subr.bf16.mxu0 0
        %6329 = vmatpush1.bf16.msra.mxu0 %v6173
        %6330 = vmatprep.subr.bf16.mxu0 0
        %6331 = vmatpush1.bf16.msra.mxu0 %v6174
        %6332 = vmatprep.subr.bf16.mxu0 0
        %6333 = vmatpush1.bf16.msra.mxu0 %v6175
        %6334 = vmatprep.subr.bf16.mxu0 0
        %6335 = vmatpush1.bf16.msra.mxu0 %v6176
        %6336 = vmatprep.subr.bf16.mxu0 0
        %6337 = vmatpush1.bf16.msra.mxu0 %v6177
        %6338 = vmatprep.subr.bf16.mxu0 0
        %6339 = vmatpush1.bf16.msra.mxu0 %v6178
        %6340 = vmatprep.mubr.bf16.mxu0 %v5916
        %6341 = vmatmul.mubr.bf16.gmra.mrb[0].mxu0 %v5915
        %v6342 = vpop.f32.mrb[0].mxu0
        %v6343 = vadd.f32 %v6246, %v6342
        %v6344 = vpop.f32.mrb[0].mxu0
        %v6345 = vpop.f32.mrb[0].mxu0
        %v6346 = vadd.f32 %v6249, %v6345
        %v6347 = vpop.f32.mrb[0].mxu0
        %6348 = vmatprep.mubr.bf16.mxu0 %v5920
        %6349 = vmatmul.mubr.bf16.gmra.mrb[0].mxu0 %v5919
        %v6350 = vpop.f32.mrb[0].mxu0
        %v6351 = vadd.f32 %v6254, %v6350
        %v6352 = vpop.f32.mrb[0].mxu0
        %v6353 = vpop.f32.mrb[0].mxu0
        %v6354 = vadd.f32 %v6257, %v6353
        %v6355 = vpop.f32.mrb[0].mxu0
        %6356 = vmatprep.mubr.bf16.mxu0 %v5924
        %6357 = vmatmul.mubr.bf16.gmra.mrb[0].mxu0 %v5923
        %v6358 = vpop.f32.mrb[0].mxu0
        %v6359 = vadd.f32 %v6262, %v6358
        %v6360 = vpop.f32.mrb[0].mxu0
        %v6361 = vpop.f32.mrb[0].mxu0
        %v6362 = vadd.f32 %v6265, %v6361
        %v6363 = vpop.f32.mrb[0].mxu0
        %6364 = vmatprep.mubr.bf16.mxu0 %v5928
        %6365 = vmatmul.mubr.bf16.gmra.mrb[0].mxu0 %v5927
        %v6366 = vpop.f32.mrb[0].mxu0
        %v6367 = vadd.f32 %v6270, %v6366
        %v6368 = vpop.f32.mrb[0].mxu0
        %v6369 = vpop.f32.mrb[0].mxu0
        %v6370 = vadd.f32 %v6273, %v6369
        %v6371 = vpop.f32.mrb[0].mxu0
        %6372 = vmatprep.mubr.bf16.mxu0 %v5932
        %6373 = vmatmul.mubr.bf16.gmra.mrb[0].mxu0 %v5931
        %v6374 = vpop.f32.mrb[0].mxu0
        %v6375 = vadd.f32 %v6278, %v6374
        %v6376 = vpop.f32.mrb[0].mxu0
        %v6377 = vpop.f32.mrb[0].mxu0
        %v6378 = vadd.f32 %v6281, %v6377
        %v6379 = vpop.f32.mrb[0].mxu0
        %6380 = vmatprep.mubr.bf16.mxu0 %v5936
        %6381 = vmatmul.mubr.bf16.gmra.mrb[0].mxu0 %v5935
        %v6382 = vpop.f32.mrb[0].mxu0
        %v6383 = vadd.f32 %v6286, %v6382
        %v6384 = vpop.f32.mrb[0].mxu0
        %v6385 = vpop.f32.mrb[0].mxu0
        %v6386 = vadd.f32 %v6289, %v6385
        %v6387 = vpop.f32.mrb[0].mxu0
        %6388 = vmatprep.mubr.bf16.mxu0 %v5940
        %6389 = vmatmul.mubr.bf16.gmra.mrb[0].mxu0 %v5939
        %v6390 = vpop.f32.mrb[0].mxu0
        %v6391 = vadd.f32 %v6294, %v6390
        %v6392 = vpop.f32.mrb[0].mxu0
        %v6393 = vpop.f32.mrb[0].mxu0
        %v6394 = vadd.f32 %v6297, %v6393
        %v6395 = vpop.f32.mrb[0].mxu0
        %6396 = vmatprep.mubr.bf16.mxu0 %v5944
        %6397 = vmatmul.mubr.bf16.gmra.mrb[0].mxu0 %v5943
        %v6398 = vpop.f32.mrb[0].mxu0
        %v6399 = vadd.f32 %v6302, %v6398
        %v6400 = vpop.f32.mrb[0].mxu0
        %v6401 = vpop.f32.mrb[0].mxu0
        %v6402 = vadd.f32 %v6305, %v6401
        %v6403 = vpop.f32.mrb[0].mxu0
        %6404 = vdwg.mxu0
        %v6405 = vadd.f32 %v4900, %v6343
        %v6406 = vadd.f32 %v4901, %v6346
        %v6407 = vadd.f32 %v4902, %v6351
        %v6408 = vadd.f32 %v4903, %v6354
        %v6409 = vadd.f32 %v4904, %v6359
        %v6410 = vadd.f32 %v4905, %v6362
        %v6411 = vadd.f32 %v4906, %v6367
        %v6412 = vadd.f32 %v4907, %v6370
        %v6413 = vadd.f32 %v4908, %v6375
        %v6414 = vadd.f32 %v4909, %v6378
        %v6415 = vadd.f32 %v4910, %v6383
        %v6416 = vadd.f32 %v4911, %v6386
        %v6417 = vadd.f32 %v4912, %v6391
        %v6418 = vadd.f32 %v4913, %v6394
        %v6419 = vadd.f32 %v4914, %v6399
        %v6420 = vadd.f32 %v4915, %v6402
        %6421 = vst [vmem:[%s597] sm:$0xff] %v6405
        %6422 = vst [vmem:[%s597 + $0x8] sm:$0xff] %v6406
        %6423 = vst [vmem:[%s597 + $0x10] sm:$0xff] %v6407
        %6424 = vst [vmem:[%s597 + $0x18] sm:$0xff] %v6408
        %6425 = vst [vmem:[%s597 + $0x20] sm:$0xff] %v6409
        %6426 = vst [vmem:[%s597 + $0x28] sm:$0xff] %v6410
        %6427 = vst [vmem:[%s597 + $0x30] sm:$0xff] %v6411
        %6428 = vst [vmem:[%s597 + $0x38] sm:$0xff] %v6412
        %6429 = vst [vmem:[%s597 + $0x40] sm:$0xff] %v6413
        %6430 = vst [vmem:[%s597 + $0x48] sm:$0xff] %v6414
        %6431 = vst [vmem:[%s597 + $0x50] sm:$0xff] %v6415
        %6432 = vst [vmem:[%s597 + $0x58] sm:$0xff] %v6416
        %6433 = vst [vmem:[%s597 + $0x60] sm:$0xff] %v6417
        %6434 = vst [vmem:[%s597 + $0x68] sm:$0xff] %v6418
        %6435 = vst [vmem:[%s597 + $0x70] sm:$0xff] %v6419
        %6436 = vst [vmem:[%s597 + $0x78] sm:$0xff] %v6420
        %p6437 = scmp.eq.s32.totalorder %s40, 1
        // Predicated region
        $region109: #{tpu_custom_call.1} parent=79 // pred_check
          %p6438 = pneg %p6437
        $region110: #{tpu_custom_call.1} parent=79 // pred_check_branch
          %6440 = sbr.rel (%p6438) target = $region112
        $region111: #{tpu_custom_call.1} parent=79 // pred_region
          %v6441 = vld [vmem:[%s13] sm:$0x1]
          %v6442 = vld [vmem:[%s14] sm:$0x1]
          %6443 = vadd.xlane.f32.xlu0 %v6405
          %v6444 = vpop.xlane.xlu0 %6443
          %6445 = vadd.xlane.f32.xlu0 %v6406
          %v6446 = vpop.xlane.xlu0 %6445
          %6447 = vadd.xlane.f32.xlu0 %v6407
          %v6448 = vpop.xlane.xlu0 %6447
          %6449 = vadd.xlane.f32.xlu0 %v6408
          %v6450 = vpop.xlane.xlu0 %6449
          %6451 = vadd.xlane.f32.xlu0 %v6409
          %v6452 = vpop.xlane.xlu0 %6451
          %6453 = vadd.xlane.f32.xlu0 %v6410
          %v6454 = vpop.xlane.xlu0 %6453
          %6455 = vadd.xlane.f32.xlu0 %v6411
          %v6456 = vpop.xlane.xlu0 %6455
          %6457 = vadd.xlane.f32.xlu0 %v6412
          %v6458 = vpop.xlane.xlu0 %6457
          %6459 = vadd.xlane.f32.xlu0 %v6413
          %v6460 = vpop.xlane.xlu0 %6459
          %6461 = vadd.xlane.f32.xlu0 %v6414
          %v6462 = vpop.xlane.xlu0 %6461
          %6463 = vadd.xlane.f32.xlu0 %v6415
          %v6464 = vpop.xlane.xlu0 %6463
          %6465 = vadd.xlane.f32.xlu0 %v6416
          %v6466 = vpop.xlane.xlu0 %6465
          %6467 = vadd.xlane.f32.xlu0 %v6417
          %v6468 = vpop.xlane.xlu0 %6467
          %6469 = vadd.xlane.f32.xlu0 %v6418
          %v6470 = vpop.xlane.xlu0 %6469
          %6471 = vadd.xlane.f32.xlu0 %v6419
          %v6472 = vpop.xlane.xlu0 %6471
          %6473 = vadd.xlane.f32.xlu0 %v6420
          %v6474 = vpop.xlane.xlu0 %6473
          %v6475 = vmul.f32 %v6444, %v704
          %v6476 = vmul.f32 %v6446, %v704
          %v6477 = vmul.f32 %v6448, %v704
          %v6478 = vmul.f32 %v6450, %v704
          %v6479 = vmul.f32 %v6452, %v704
          %v6480 = vmul.f32 %v6454, %v704
          %v6481 = vmul.f32 %v6456, %v704
          %v6482 = vmul.f32 %v6458, %v704
          %v6483 = vmul.f32 %v6460, %v704
          %v6484 = vmul.f32 %v6462, %v704
          %v6485 = vmul.f32 %v6464, %v704
          %v6486 = vmul.f32 %v6466, %v704
          %v6487 = vmul.f32 %v6468, %v704
          %v6488 = vmul.f32 %v6470, %v704
          %v6489 = vmul.f32 %v6472, %v704
          %v6490 = vmul.f32 %v6474, %v704
          %v6491 = vsub.f32 %v6405, %v6475
          %v6492 = vsub.f32 %v6406, %v6476
          %v6493 = vsub.f32 %v6407, %v6477
          %v6494 = vsub.f32 %v6408, %v6478
          %v6495 = vsub.f32 %v6409, %v6479
          %v6496 = vsub.f32 %v6410, %v6480
          %v6497 = vsub.f32 %v6411, %v6481
          %v6498 = vsub.f32 %v6412, %v6482
          %v6499 = vsub.f32 %v6413, %v6483
          %v6500 = vsub.f32 %v6414, %v6484
          %v6501 = vsub.f32 %v6415, %v6485
          %v6502 = vsub.f32 %v6416, %v6486
          %v6503 = vsub.f32 %v6417, %v6487
          %v6504 = vsub.f32 %v6418, %v6488
          %v6505 = vsub.f32 %v6419, %v6489
          %v6506 = vsub.f32 %v6420, %v6490
          %v6507 = vmul.f32 %v6491, %v6491
          %v6508 = vmul.f32 %v6492, %v6492
          %v6509 = vmul.f32 %v6493, %v6493
          %v6510 = vmul.f32 %v6494, %v6494
          %v6511 = vmul.f32 %v6495, %v6495
          %v6512 = vmul.f32 %v6496, %v6496
          %v6513 = vmul.f32 %v6497, %v6497
          %v6514 = vmul.f32 %v6498, %v6498
          %v6515 = vmul.f32 %v6499, %v6499
          %v6516 = vmul.f32 %v6500, %v6500
          %v6517 = vmul.f32 %v6501, %v6501
          %v6518 = vmul.f32 %v6502, %v6502
          %v6519 = vmul.f32 %v6503, %v6503
          %v6520 = vmul.f32 %v6504, %v6504
          %v6521 = vmul.f32 %v6505, %v6505
          %v6522 = vmul.f32 %v6506, %v6506
          %6523 = vadd.xlane.f32.xlu0 %v6507
          %v6524 = vpop.xlane.xlu0 %6523
          %6525 = vadd.xlane.f32.xlu0 %v6508
          %v6526 = vpop.xlane.xlu0 %6525
          %6527 = vadd.xlane.f32.xlu0 %v6509
          %v6528 = vpop.xlane.xlu0 %6527
          %6529 = vadd.xlane.f32.xlu0 %v6510
          %v6530 = vpop.xlane.xlu0 %6529
          %6531 = vadd.xlane.f32.xlu0 %v6511
          %v6532 = vpop.xlane.xlu0 %6531
          %6533 = vadd.xlane.f32.xlu0 %v6512
          %v6534 = vpop.xlane.xlu0 %6533
          %6535 = vadd.xlane.f32.xlu0 %v6513
          %v6536 = vpop.xlane.xlu0 %6535
          %6537 = vadd.xlane.f32.xlu0 %v6514
          %v6538 = vpop.xlane.xlu0 %6537
          %6539 = vadd.xlane.f32.xlu0 %v6515
          %v6540 = vpop.xlane.xlu0 %6539
          %6541 = vadd.xlane.f32.xlu0 %v6516
          %v6542 = vpop.xlane.xlu0 %6541
          %6543 = vadd.xlane.f32.xlu0 %v6517
          %v6544 = vpop.xlane.xlu0 %6543
          %6545 = vadd.xlane.f32.xlu0 %v6518
          %v6546 = vpop.xlane.xlu0 %6545
          %6547 = vadd.xlane.f32.xlu0 %v6519
          %v6548 = vpop.xlane.xlu0 %6547
          %6549 = vadd.xlane.f32.xlu0 %v6520
          %v6550 = vpop.xlane.xlu0 %6549
          %6551 = vadd.xlane.f32.xlu0 %v6521
          %v6552 = vpop.xlane.xlu0 %6551
          %6553 = vadd.xlane.f32.xlu0 %v6522
          %v6554 = vpop.xlane.xlu0 %6553
          %v6555 = vmul.f32 %v6524, %v704
          %v6556 = vmul.f32 %v6526, %v704
          %v6557 = vmul.f32 %v6528, %v704
          %v6558 = vmul.f32 %v6530, %v704
          %v6559 = vmul.f32 %v6532, %v704
          %v6560 = vmul.f32 %v6534, %v704
          %v6561 = vmul.f32 %v6536, %v704
          %v6562 = vmul.f32 %v6538, %v704
          %v6563 = vmul.f32 %v6540, %v704
          %v6564 = vmul.f32 %v6542, %v704
          %v6565 = vmul.f32 %v6544, %v704
          %v6566 = vmul.f32 %v6546, %v704
          %v6567 = vmul.f32 %v6548, %v704
          %v6568 = vmul.f32 %v6550, %v704
          %v6569 = vmul.f32 %v6552, %v704
          %v6570 = vmul.f32 %v6554, %v704
          %v6571 = vadd.f32 %v6555, 1e-05
          %v6572 = vadd.f32 %v6556, 1e-05
          %v6573 = vadd.f32 %v6557, 1e-05
          %v6574 = vadd.f32 %v6558, 1e-05
          %v6575 = vadd.f32 %v6559, 1e-05
          %v6576 = vadd.f32 %v6560, 1e-05
          %v6577 = vadd.f32 %v6561, 1e-05
          %v6578 = vadd.f32 %v6562, 1e-05
          %v6579 = vadd.f32 %v6563, 1e-05
          %v6580 = vadd.f32 %v6564, 1e-05
          %v6581 = vadd.f32 %v6565, 1e-05
          %v6582 = vadd.f32 %v6566, 1e-05
          %v6583 = vadd.f32 %v6567, 1e-05
          %v6584 = vadd.f32 %v6568, 1e-05
          %v6585 = vadd.f32 %v6569, 1e-05
          %v6586 = vadd.f32 %v6570, 1e-05
          %v6587 = vrsqrt.pop %v6571
          %v6588 = vrsqrt.pop %v6572
          %v6589 = vrsqrt.pop %v6573
          %v6590 = vrsqrt.pop %v6574
          %v6591 = vrsqrt.pop %v6575
          %v6592 = vrsqrt.pop %v6576
          %v6593 = vrsqrt.pop %v6577
          %v6594 = vrsqrt.pop %v6578
          %v6595 = vrsqrt.pop %v6579
          %v6596 = vrsqrt.pop %v6580
          %v6597 = vrsqrt.pop %v6581
          %v6598 = vrsqrt.pop %v6582
          %v6599 = vrsqrt.pop %v6583
          %v6600 = vrsqrt.pop %v6584
          %v6601 = vrsqrt.pop %v6585
          %v6602 = vrsqrt.pop %v6586
          %v6603 = vmul.f32 %v6491, %v6587
          %v6604 = vmul.f32 %v6492, %v6588
          %v6605 = vmul.f32 %v6493, %v6589
          %v6606 = vmul.f32 %v6494, %v6590
          %v6607 = vmul.f32 %v6495, %v6591
          %v6608 = vmul.f32 %v6496, %v6592
          %v6609 = vmul.f32 %v6497, %v6593
          %v6610 = vmul.f32 %v6498, %v6594
          %v6611 = vmul.f32 %v6499, %v6595
          %v6612 = vmul.f32 %v6500, %v6596
          %v6613 = vmul.f32 %v6501, %v6597
          %v6614 = vmul.f32 %v6502, %v6598
          %v6615 = vmul.f32 %v6503, %v6599
          %v6616 = vmul.f32 %v6504, %v6600
          %v6617 = vmul.f32 %v6505, %v6601
          %v6618 = vmul.f32 %v6506, %v6602
          %v6620 = vlaneseq
          %v6621 = vshrl.u32 %v6620, 7
          %v6622 = vsub.s32 0, %v6621
          %v6623 = vrot.slane %v6441, %v6622
          %v6625 = vmul.f32 %v6603, %v6623
          %v6626 = vmul.f32 %v6604, %v6623
          %v6627 = vmul.f32 %v6605, %v6623
          %v6628 = vmul.f32 %v6606, %v6623
          %v6629 = vmul.f32 %v6607, %v6623
          %v6630 = vmul.f32 %v6608, %v6623
          %v6631 = vmul.f32 %v6609, %v6623
          %v6632 = vmul.f32 %v6610, %v6623
          %v6633 = vmul.f32 %v6611, %v6623
          %v6634 = vmul.f32 %v6612, %v6623
          %v6635 = vmul.f32 %v6613, %v6623
          %v6636 = vmul.f32 %v6614, %v6623
          %v6637 = vmul.f32 %v6615, %v6623
          %v6638 = vmul.f32 %v6616, %v6623
          %v6639 = vmul.f32 %v6617, %v6623
          %v6640 = vmul.f32 %v6618, %v6623
          %v6642 = vlaneseq
          %v6643 = vshrl.u32 %v6642, 7
          %v6644 = vsub.s32 0, %v6643
          %v6645 = vrot.slane %v6442, %v6644
          %v6647 = vadd.f32 %v6625, %v6645
          %v6648 = vadd.f32 %v6626, %v6645
          %v6649 = vadd.f32 %v6627, %v6645
          %v6650 = vadd.f32 %v6628, %v6645
          %v6651 = vadd.f32 %v6629, %v6645
          %v6652 = vadd.f32 %v6630, %v6645
          %v6653 = vadd.f32 %v6631, %v6645
          %v6654 = vadd.f32 %v6632, %v6645
          %v6655 = vadd.f32 %v6633, %v6645
          %v6656 = vadd.f32 %v6634, %v6645
          %v6657 = vadd.f32 %v6635, %v6645
          %v6658 = vadd.f32 %v6636, %v6645
          %v6659 = vadd.f32 %v6637, %v6645
          %v6660 = vadd.f32 %v6638, %v6645
          %v6661 = vadd.f32 %v6639, %v6645
          %v6662 = vadd.f32 %v6640, %v6645
          %6663 = vst [vmem:[%s597] sm:$0xff] %v6647
          %6664 = vst [vmem:[%s597 + $0x8] sm:$0xff] %v6648
          %6665 = vst [vmem:[%s597 + $0x10] sm:$0xff] %v6649
          %6666 = vst [vmem:[%s597 + $0x18] sm:$0xff] %v6650
          %6667 = vst [vmem:[%s597 + $0x20] sm:$0xff] %v6651
          %6668 = vst [vmem:[%s597 + $0x28] sm:$0xff] %v6652
          %6669 = vst [vmem:[%s597 + $0x30] sm:$0xff] %v6653
          %6670 = vst [vmem:[%s597 + $0x38] sm:$0xff] %v6654
          %6671 = vst [vmem:[%s597 + $0x40] sm:$0xff] %v6655
          %6672 = vst [vmem:[%s597 + $0x48] sm:$0xff] %v6656
          %6673 = vst [vmem:[%s597 + $0x50] sm:$0xff] %v6657
          %6674 = vst [vmem:[%s597 + $0x58] sm:$0xff] %v6658
          %6675 = vst [vmem:[%s597 + $0x60] sm:$0xff] %v6659
          %6676 = vst [vmem:[%s597 + $0x68] sm:$0xff] %v6660
          %6677 = vst [vmem:[%s597 + $0x70] sm:$0xff] %v6661
          %6678 = vst [vmem:[%s597 + $0x78] sm:$0xff] %v6662
        $region112: #{tpu_custom_call.1} parent=79 // pred_fallthru
          _
        %s6679 = sand.u32 %s375, 1
        %s6680 = scalar_lea.sflag [#allocation4], %s6679
        %s6681 = sand.u32 %s375, 1
        %s6682 = smul.addr %s6681, 128
        %s6683 = scalar_lea.vmem [#allocation13], %s6682
        // Predicated region
        $region113: #{tpu_custom_call.1} parent=79 // pred_check
          %p6684 = pneg %p385
        $region114: #{tpu_custom_call.1} parent=79 // pred_check_branch
          %6686 = sbr.rel (%p6684) target = $region116
        $region115: #{tpu_custom_call.1} parent=79 // pred_region
          %s6687 = smul.u32 16, %s39
          %s6689 = ssub.s32 2048, 2048
          %6690 = vsyncadd %s6680, %s6689
          %s6691 = smul.addr %s6687, 128
          %s6692 = scalar_lea.hbm %s15, %s6691
          %s6693 = sshll.u32 %s6683, 4
          %s6694 = int_to_ptr.vmem [resolvable:$true] %s6693
          %6699 = dma.vmem_to_hbm [thread:$0]  %s6694, 2048, %s6692, %s6680, 128, 128, 8
        $region116: #{tpu_custom_call.1} parent=79 // pred_fallthru
          _
      $region80: #{tpu_custom_call.1} parent=5 // pred_fallthru
        _
      %p6700 = scmp.le.s32.totalorder 2, %s30
      // Predicated region
      $region117: #{tpu_custom_call.1} parent=5 // pred_check
        %p6701 = pneg %p6700
      $region118: #{tpu_custom_call.1} parent=5 // pred_check_branch
        %6703 = sbr.rel (%p6701) target = $region120
      $region119: #{tpu_custom_call.1} parent=5 // pred_region
        %s6704 = ssub.s32 %s30, 2
        // Predicated region
        $region121: #{tpu_custom_call.1} parent=119 // pred_check
          %p6705 = pneg %p391
        $region122: #{tpu_custom_call.1} parent=119 // pred_check_branch
          %6707 = sbr.rel (%p6705) target = $region124
        $region123: #{tpu_custom_call.1} parent=119 // pred_region
          %s6708 = sand.u32 %s376, 1
          %s6709 = scalar_lea.sflag [#allocation4], %s6708
          %s6710 = sand.u32 %s376, 1
          %s6711 = smul.addr %s6710, 128
          %s6712 = scalar_lea.vmem [#allocation13], %s6711
          %6713 = dma.done %s6709, 2048
        $region124: #{tpu_custom_call.1} parent=119 // pred_fallthru
          _
      $region120: #{tpu_custom_call.1} parent=5 // pred_fallthru
        _
    $region6: #{tpu_custom_call.1} parent=1 // loop_footer
      %s34 = sadd.s32 1, %s30
    $region7: #{tpu_custom_call.1} parent=1 // loop_footer_branch
      %29 = sbr.rel target = $region3
    $region8: #{tpu_custom_call.1} parent=1 // loop_exit
      _
    %6714 = vsyncpa [#allocation3], 1
    %s6715 = scalar_lea.sflag [#allocation3], 1
    %6716 = vsyncpa %s6715, 1
    %6717 = vsyncpa [#allocation6], 1
    %6718 = vsyncpa [#allocation9], 1
    %6719 = vsyncpa [#allocation12], 1
    %6720 = vsyncpa [#allocation4], 1
    %s6721 = scalar_lea.sflag [#allocation4], 1
    %6722 = vsyncpa %s6721, 1

</llo_original>
